<compile_context>
chip_gen: v7x
topology: tpu7x:2x2x1
jax: 0.10.0
libtpu: 0.0.40
codegen_flags: <defaults>
</compile_context>

<pallas_src>
import jax
import jax.numpy as jnp
from jax.experimental import pallas as pl
from jax.experimental.pallas import tpu as pltpu

SELU_ALPHA = 1.6732632423543772
SELU_SCALE = 1.0507009873554805
IN_EPS = 1e-5


# ----------------------------------------------------------------------------
# In-kernel helpers (traced; all shapes static per stage)
# ----------------------------------------------------------------------------
def _selu(y):
    return SELU_SCALE * jnp.where(y > 0, y, SELU_ALPHA * (jnp.exp(y) - 1.0))


def _conv3x3(x, w3_ref, base):
    """3x3 'same' conv as three accumulated bf16 (H,128)x(128,128) matmuls.

    x: (H, L) f32, lane-dense (lane = w*C + c).  w3_ref[base+ky] is the
    host-built banded weight block for row offset ky-1 (x-banding folded in).
    Row shifts are zero-row concats -- no wide lane concat is materialized.
    """
    h, l = x.shape
    z = jnp.zeros((1, l), jnp.float32)
    x_dn = jnp.concatenate([z, x[:h - 1, :]], axis=0)          # row y-1
    x_up = jnp.concatenate([x[1:, :], z], axis=0)              # row y+1
    y = jnp.dot(x_dn.astype(jnp.bfloat16), w3_ref[base + 0],
                preferred_element_type=jnp.float32)
    y += jnp.dot(x.astype(jnp.bfloat16), w3_ref[base + 1],
                 preferred_element_type=jnp.float32)
    y += jnp.dot(x_up.astype(jnp.bfloat16), w3_ref[base + 2],
                 preferred_element_type=jnp.float32)
    return y


def _instance_norm_selu(y, t, gamma, beta):
    """Per-channel InstanceNorm2d(affine) + SELU; stats fully in f32.

    t: (L, L) host-built channel-fold matrix with 1/(H*W) folded in.
    Rows are reduced first (VALU), then one M=1 matmul folds the W lane
    groups per statistic (2 MXU pushes per norm total).
    """
    s = jnp.sum(y, axis=0, keepdims=True)                       # (1, L)
    mean = jnp.dot(s, t, preferred_element_type=jnp.float32)    # (1, L)
    yc = y - mean
    s2 = jnp.sum(yc * yc, axis=0, keepdims=True)
    var = jnp.dot(s2, t, preferred_element_type=jnp.float32)
    out = yc * jax.lax.rsqrt(var + IN_EPS) * gamma + beta
    return _selu(out)


def _stage(x, skip, u_ref, p_ref, w3_ref, t_ref, vec_ref):
    """Upconv(k2,s2) -> [conv3x3 + IN + SELU] x2 with the skip folded in."""
    l = skip.shape[1]
    vec = vec_ref[...]
    b_row, g1, bt1, g2, bt2 = (vec[k:k + 1, :] for k in range(5))
    t = t_ref[...].astype(jnp.float32)                          # (L, L)

    # ConvTranspose2d(k=2, s=2): one bf16 matmul + tiny exact row interleave.
    y2 = jnp.dot(x.astype(jnp.bfloat16), u_ref[...],
                 preferred_element_type=jnp.float32)            # (H_in, 2L)
    ycat = jnp.concatenate([y2[:, :l], y2[:, l:]], axis=0)      # (2H_in, L)
    up = jnp.dot(p_ref[...], ycat,
                 preferred_element_type=jnp.float32) + b_row    # (H, L)

    # ConvBlock 1: conv over concat([up, skip]) == split-weight accumulation.
    y = _conv3x3(up, w3_ref, 0) + _conv3x3(skip, w3_ref, 3)
    y = _instance_norm_selu(y, t, g1, bt1)
    # ConvBlock 2.
    y = _conv3x3(y, w3_ref, 6)
    y = _instance_norm_selu(y, t, g2, bt2)
    return y
    # TODO(synk): Dropout2d skipped -- drop_p=0.0 here / identity in eval mode.


def _make_decoder_kernel(n_stage):
    def kernel(*refs):
        h_ref = refs[0]
        skip_refs = refs[1:1 + n_stage]
        w_refs = refs[1 + n_stage:1 + n_stage + 5 * n_stage]
        mfc_ref = refs[1 + 6 * n_stage]
        bfc_ref = refs[2 + 6 * n_stage]
        o_ref = refs[3 + 6 * n_stage]

        x = h_ref[0].astype(jnp.float32)                        # (H0, 128)
        for i in range(n_stage):
            u_ref, p_ref, w3_ref, t_ref, vec_ref = w_refs[5 * i:5 * i + 5]
            skip = skip_refs[i][0].astype(jnp.float32)
            x = _stage(x, skip, u_ref, p_ref, w3_ref, t_ref, vec_ref)
        out = jnp.dot(x.astype(jnp.bfloat16), mfc_ref[...],
                      preferred_element_type=jnp.float32) + bfc_ref[...]
        o_ref[0] = out.astype(o_ref.dtype)

    return kernel


# ----------------------------------------------------------------------------
# Host-side weight packing: lane-dense block-banded matrices
# ----------------------------------------------------------------------------
def _banded_conv_blocks(w, width):
    """w: (3, 3, Cin, Cout) -> (3, width*Cin, width*Cout), blocks indexed by ky."""
    cin, cout = w.shape[2], w.shape[3]
    kx = jnp.arange(3)[:, None, None]
    xi = jnp.arange(width)[None, :, None]
    xo = jnp.arange(width)[None, None, :]
    sel = (xi == xo + kx - 1).astype(w.dtype)                   # (3, W, W)
    blocks = []
    for ky in range(3):
        m = (sel[:, :, :, None, None] * w[ky][:, None, None, :, :]).sum(0)
        blocks.append(jnp.transpose(m, (0, 2, 1, 3)).reshape(width * cin,
                                                             width * cout))
    return jnp.stack(blocks, axis=0)


def _upconv_matrix(w, w_in):
    """w: (2, 2, Cin, Cout) -> (w_in*Cin, 2*(2*w_in*Cout)), cols [dy0 | dy1]."""
    cin, cout = w.shape[2], w.shape[3]
    w_out = 2 * w_in
    dx = jnp.arange(2)[:, None, None]
    wi = jnp.arange(w_in)[None, :, None]
    wo = jnp.arange(w_out)[None, None, :]
    sel = (wo == 2 * wi + dx).astype(w.dtype)                   # (2, W_in, W_out)
    mats = []
    for dy in range(2):
        m = (sel[:, :, :, None, None] * w[dy][:, None, None, :, :]).sum(0)
        mats.append(jnp.transpose(m, (0, 2, 1, 3)).reshape(w_in * cin,
                                                           w_out * cout))
    return jnp.concatenate(mats, axis=1)


def _interleave_matrix(h_out):
    """(h_out, h_out) P with P @ [rows_dy0 ; rows_dy1] = even/odd row interleave."""
    h_in = h_out // 2
    j = jnp.arange(h_in)
    p = jnp.zeros((h_out, h_out), jnp.float32)
    p = p.at[2 * j, j].set(1.0)
    p = p.at[2 * j + 1, h_in + j].set(1.0)
    return p


def _channel_fold_matrix(width, c):
    """(width*c, width*c) with 1/(width^2) where lanes share a channel (lane%c)."""
    idx = jnp.arange(width * c)
    same = (idx[:, None] % c) == (idx[None, :] % c)
    return jnp.where(same, 1.0 / float(width * width), 0.0).astype(jnp.float32)


def _block_diag_matrix(w, width, cout_pad):
    """1x1 conv: w (Cin, Cout) -> (width*Cin, width*cout_pad) block-diagonal."""
    cin, cout = w.shape
    wp = jnp.zeros((cin, cout_pad), w.dtype).at[:, :cout].set(w)
    eye = jnp.eye(width, dtype=w.dtype)
    m = eye[:, :, None, None] * wp[None, None, :, :]
    return jnp.transpose(m, (0, 2, 1, 3)).reshape(width * cin, width * cout_pad)


def pack_decoder_params(params, hidden_dims, out_dim, base_width):
    stages = []
    w_in = base_width
    for i in range(4):
        c = hidden_dims[3 - i]
        cin_up = hidden_dims[4 - i]
        w = 2 * w_in
        assert w * c == 128, "lane-dense layout assumes W*C == 128 per stage"
        assert w_in * cin_up == 128, "upconv input slab must be 128 lanes wide"
        up = params[f"upconv{i + 1}"]
        blk1, blk2 = params[f"layer{i + 1}"]
        w1 = blk1["w"]                                          # (3,3,2C,C)
        w3 = jnp.concatenate([_banded_conv_blocks(w1[:, :, :c, :], w),
                              _banded_conv_blocks(w1[:, :, c:, :], w),
                              _banded_conv_blocks(blk2["w"], w)],
                             axis=0).astype(jnp.bfloat16)       # (9,128,128)
        vec = jnp.stack([jnp.tile(up["b"], w),
                         jnp.tile(blk1["gamma"], w), jnp.tile(blk1["beta"], w),
                         jnp.tile(blk2["gamma"], w), jnp.tile(blk2["beta"], w)],
                        axis=0)
        vec = jnp.concatenate([vec, jnp.zeros((3, w * c), vec.dtype)], axis=0)
        stages.append({
            "U": _upconv_matrix(up["w"], w_in).astype(jnp.bfloat16),
            "P": _interleave_matrix(w),                         # f32, exact 0/1
            "W3": w3,
            "T": _channel_fold_matrix(w, c).astype(jnp.bfloat16),
            "vec": vec.astype(jnp.float32),
        })
        w_in = w

    cout_pad = out_dim
    while (w_in * cout_pad) % 128 != 0:                         # 128-lane output
        cout_pad += 1
    return {
        "stages": stages,
        "Mfc": _block_diag_matrix(params["fc"]["w"], w_in,
                                  cout_pad).astype(jnp.bfloat16),
        "bfc": jnp.tile(jnp.pad(params["fc"]["b"], (0, cout_pad - out_dim)),
                        w_in)[None, :].astype(jnp.float32),
        "out_dim": out_dim,
        "cout_pad": cout_pad,
        "final_width": w_in,
    }


# ----------------------------------------------------------------------------
# Public forward (NCHW in / NCHW out), single fused pallas_call
# ----------------------------------------------------------------------------
def _const_spec(a):
    nd = a.ndim
    return pl.BlockSpec(a.shape, lambda b, _nd=nd: (0,) * _nd,
                        pipeline_mode=pl.Buffered(1))


def decoder_forward(packed, h, stage_outputs):
    # TODO(synk): upstream encoder could emit lane-dense (H, W*C) skips directly;
    # these tiny XLA transposes exist only because the spec input is NCHW.
    def to_lane_dense(t):
        n_, c_, hh, ww = t.shape
        return jnp.transpose(t, (0, 2, 3, 1)).reshape(n_, hh, ww * c_)

    n = h.shape[0]
    acts = [to_lane_dense(h)] + [to_lane_dense(stage_outputs[k])
                                 for k in ("stage4", "stage3", "stage2",
                                           "stage1")]

    args = list(acts)
    in_specs = [pl.BlockSpec((1,) + a.shape[1:], lambda b: (b, 0, 0))
                for a in acts]
    for st in packed["stages"]:
        for name in ("U", "P", "W3", "T", "vec"):
            args.append(st[name])
            in_specs.append(_const_spec(st[name]))
    args += [packed["Mfc"], packed["bfc"]]
    in_specs += [_const_spec(packed["Mfc"]), _const_spec(packed["bfc"])]

    wf = packed["final_width"]
    lanes = wf * packed["cout_pad"]
    out2d = pl.pallas_call(
        _make_decoder_kernel(len(packed["stages"])),
        out_shape=jax.ShapeDtypeStruct((n, wf, lanes), h.dtype),
        grid=(n,),
        in_specs=in_specs,
        out_specs=pl.BlockSpec((1, wf, lanes), lambda b: (b, 0, 0)),
        compiler_params=pltpu.CompilerParams(
            dimension_semantics=("parallel",)),
    )(*args)
    out = out2d.reshape(n, wf, wf, packed["cout_pad"])
    return jnp.transpose(out, (0, 3, 1, 2))[:, :packed["out_dim"]]


# ----------------------------------------------------------------------------
# Parameter init (deterministic, synthetic) in "math" layouts
# ----------------------------------------------------------------------------
def _kaiming(key, shape, fan_in):
    return jnp.sqrt(2.0 / fan_in) * jax.random.normal(key, shape, jnp.float32)


def init_decoder_params(key, hidden_dims, out_dim):
    hd = hidden_dims
    keys = jax.random.split(key, 32)
    ki = iter(range(32))

    def conv_block_params(cin, cout):
        return {"w": _kaiming(keys[next(ki)], (3, 3, cin, cout), 9 * cin),
                "gamma": jnp.ones((cout,), jnp.float32),
                "beta": jnp.zeros((cout,), jnp.float32)}

    def upconv_params(cin, cout):
        return {"w": _kaiming(keys[next(ki)], (2, 2, cin, cout), 4 * cin),
                "b": 0.01 * jax.random.normal(keys[next(ki)], (cout,),
                                              dtype=jnp.float32)}

    params = {}
    params["upconv1"] = upconv_params(hd[4], hd[3])
    params["layer1"] = [conv_block_params(hd[3] * 2, hd[3]),
                        conv_block_params(hd[3], hd[3])]
    params["upconv2"] = upconv_params(hd[3], hd[2])
    params["layer2"] = [conv_block_params(hd[2] * 2, hd[2]),
                        conv_block_params(hd[2], hd[2])]
    params["upconv3"] = upconv_params(hd[2], hd[1])
    params["layer3"] = [conv_block_params(hd[1] * 2, hd[1]),
                        conv_block_params(hd[1], hd[1])]
    params["upconv4"] = upconv_params(hd[1], hd[0])
    params["layer4"] = [conv_block_params(hd[0] * 2, hd[0]),
                        conv_block_params(hd[0], hd[0])]
    params["fc"] = {"w": _kaiming(keys[next(ki)], (hd[0], out_dim), hd[0]),
                    "b": 0.01 * jax.random.normal(keys[next(ki)], (out_dim,),
                                                  dtype=jnp.float32)}
    return params


def round_weights_to_bf16(params):
    """The model weights live in bf16 (kernel DMAs them as bf16); round the
    master copy so the pure-f32 reference uses identical weight values."""
    def rnd(x):
        return x.astype(jnp.bfloat16).astype(jnp.float32)

    out = {}
    for k, v in params.items():
        if isinstance(v, list):
            out[k] = [dict(blk, w=rnd(blk["w"])) for blk in v]
        else:
            out[k] = dict(v, w=rnd(v["w"]))
    return out


# ----------------------------------------------------------------------------
# Pure-JAX reference (for correctness verification only)
# ----------------------------------------------------------------------------
def _ref_conv_block(x, w, gamma, beta):
    y = jax.lax.conv_general_dilated(
        x, w, window_strides=(1, 1), padding="SAME",
        dimension_numbers=("NHWC", "HWIO", "NHWC"),
        precision=jax.lax.Precision.HIGHEST)
    mean = jnp.mean(y, axis=(1, 2), keepdims=True)
    var = jnp.mean((y - mean) ** 2, axis=(1, 2), keepdims=True)
    y = (y - mean) * jax.lax.rsqrt(var + IN_EPS) * gamma + beta
    return jax.nn.selu(y)


def _ref_upconv(x, w, b):
    y = jnp.einsum("nhwc,ijcd->nhiwjd", x, w,
                   precision=jax.lax.Precision.HIGHEST)
    n, hh, _, ww, _, cout = y.shape
    return y.reshape(n, hh * 2, ww * 2, cout) + b


def decoder_reference(params, h, stage_outputs):
    to_nhwc = lambda t: jnp.transpose(t, (0, 2, 3, 1))
    x = to_nhwc(h)
    skips = [to_nhwc(stage_outputs[k])
             for k in ("stage4", "stage3", "stage2", "stage1")]
    for i in range(4):
        up = params[f"upconv{i + 1}"]
        x = _ref_upconv(x, up["w"], up["b"])
        x = jnp.concatenate([x, skips[i]], axis=-1)
        for blk in params[f"layer{i + 1}"]:
            x = _ref_conv_block(x, blk["w"], blk["gamma"], blk["beta"])
    fc = params["fc"]
    x = jnp.einsum("nhwc,cd->nhwd", x, fc["w"],
                   precision=jax.lax.Precision.HIGHEST) + fc["b"]
    return jnp.transpose(x, (0, 3, 1, 2))


if __name__ == "__main__":
    hidden_dims = [4, 8, 16, 32, 64]
    out_dim = 2
    n = 2

    key = jax.random.PRNGKey(0)
    k_params, k_h, k1, k2, k3, k4 = jax.random.split(key, 6)

    params = init_decoder_params(k_params, hidden_dims, out_dim)
    params = round_weights_to_bf16(params)        # model weights stored in bf16
    packed = pack_decoder_params(params, hidden_dims, out_dim, base_width=2)

    # Bottleneck feature h and encoder skip connections (NCHW).
    h = jax.random.normal(k_h, (n, hidden_dims[4], 2, 2), dtype=jnp.float32)
    stage_outputs = {
        "stage4": jax.random.normal(k1, (n, hidden_dims[3], 4, 4), jnp.float32),
        "stage3": jax.random.normal(k2, (n, hidden_dims[2], 8, 8), jnp.float32),
        "stage2": jax.random.normal(k3, (n, hidden_dims[1], 16, 16), jnp.float32),
        "stage1": jax.random.normal(k4, (n, hidden_dims[0], 32, 32), jnp.float32),
    }

    out = jax.block_until_ready(decoder_forward(packed, h, stage_outputs))
    assert out.shape == (n, out_dim, 32, 32), out.shape
    assert bool(jnp.all(jnp.isfinite(out)))

    ref = jax.block_until_ready(decoder_reference(params, h, stage_outputs))
    max_err = float(jnp.max(jnp.abs(out - ref)))
    # Kernel uses bf16 matmul operands (weights are identical bf16 values in
    # both paths); remaining difference is activation rounding only.
    assert max_err < 1e-1, f"max |pallas - reference| = {max_err}"

    print("KERNEL_OK")
</pallas_src>

<mosaic_0001>
module attributes {stable_mosaic.version = 11 : i64} {
  func.func @kernel(%arg0: i32, %arg1: memref<1x2x128xf32, #tpu.memory_space<vmem>>, %arg2: memref<1x4x128xf32, #tpu.memory_space<vmem>>, %arg3: memref<1x8x128xf32, #tpu.memory_space<vmem>>, %arg4: memref<1x16x128xf32, #tpu.memory_space<vmem>>, %arg5: memref<1x32x128xf32, #tpu.memory_space<vmem>>, %arg6: memref<128x256xbf16, #tpu.memory_space<vmem>>, %arg7: memref<4x4xf32, #tpu.memory_space<vmem>>, %arg8: memref<9x128x128xbf16, #tpu.memory_space<vmem>>, %arg9: memref<128x128xbf16, #tpu.memory_space<vmem>>, %arg10: memref<8x128xf32, #tpu.memory_space<vmem>>, %arg11: memref<128x256xbf16, #tpu.memory_space<vmem>>, %arg12: memref<8x8xf32, #tpu.memory_space<vmem>>, %arg13: memref<9x128x128xbf16, #tpu.memory_space<vmem>>, %arg14: memref<128x128xbf16, #tpu.memory_space<vmem>>, %arg15: memref<8x128xf32, #tpu.memory_space<vmem>>, %arg16: memref<128x256xbf16, #tpu.memory_space<vmem>>, %arg17: memref<16x16xf32, #tpu.memory_space<vmem>>, %arg18: memref<9x128x128xbf16, #tpu.memory_space<vmem>>, %arg19: memref<128x128xbf16, #tpu.memory_space<vmem>>, %arg20: memref<8x128xf32, #tpu.memory_space<vmem>>, %arg21: memref<128x256xbf16, #tpu.memory_space<vmem>>, %arg22: memref<32x32xf32, #tpu.memory_space<vmem>>, %arg23: memref<9x128x128xbf16, #tpu.memory_space<vmem>>, %arg24: memref<128x128xbf16, #tpu.memory_space<vmem>>, %arg25: memref<8x128xf32, #tpu.memory_space<vmem>>, %arg26: memref<128x128xbf16, #tpu.memory_space<vmem>>, %arg27: memref<1x128xf32, #tpu.memory_space<vmem>>, %arg28: memref<1x32x128xf32, #tpu.memory_space<vmem>>) attributes {dimension_semantics = [#tpu.dimension_semantics<parallel>], iteration_bounds = array<i64: 2>, scalar_prefetch = 0 : i64, scratch_operands = 0 : i64, tpu.core_type = #tpu.core_type<tc>, window_params = [{transform_indices = @transform_0, window_bounds = array<i64: 1, 2, 128>}, {transform_indices = @transform_1, window_bounds = array<i64: 1, 4, 128>}, {transform_indices = @transform_2, window_bounds = array<i64: 1, 8, 128>}, {transform_indices = @transform_3, window_bounds = array<i64: 1, 16, 128>}, {transform_indices = @transform_4, window_bounds = array<i64: 1, 32, 128>}, {pipeline_mode = #tpu.pipeline_mode<synchronous>, transform_indices = @transform_5, window_bounds = array<i64: 128, 256>}, {pipeline_mode = #tpu.pipeline_mode<synchronous>, transform_indices = @transform_6, window_bounds = array<i64: 4, 4>}, {pipeline_mode = #tpu.pipeline_mode<synchronous>, transform_indices = @transform_7, window_bounds = array<i64: 9, 128, 128>}, {pipeline_mode = #tpu.pipeline_mode<synchronous>, transform_indices = @transform_8, window_bounds = array<i64: 128, 128>}, {pipeline_mode = #tpu.pipeline_mode<synchronous>, transform_indices = @transform_9, window_bounds = array<i64: 8, 128>}, {pipeline_mode = #tpu.pipeline_mode<synchronous>, transform_indices = @transform_10, window_bounds = array<i64: 128, 256>}, {pipeline_mode = #tpu.pipeline_mode<synchronous>, transform_indices = @transform_11, window_bounds = array<i64: 8, 8>}, {pipeline_mode = #tpu.pipeline_mode<synchronous>, transform_indices = @transform_12, window_bounds = array<i64: 9, 128, 128>}, {pipeline_mode = #tpu.pipeline_mode<synchronous>, transform_indices = @transform_13, window_bounds = array<i64: 128, 128>}, {pipeline_mode = #tpu.pipeline_mode<synchronous>, transform_indices = @transform_14, window_bounds = array<i64: 8, 128>}, {pipeline_mode = #tpu.pipeline_mode<synchronous>, transform_indices = @transform_15, window_bounds = array<i64: 128, 256>}, {pipeline_mode = #tpu.pipeline_mode<synchronous>, transform_indices = @transform_16, window_bounds = array<i64: 16, 16>}, {pipeline_mode = #tpu.pipeline_mode<synchronous>, transform_indices = @transform_17, window_bounds = array<i64: 9, 128, 128>}, {pipeline_mode = #tpu.pipeline_mode<synchronous>, transform_indices = @transform_18, window_bounds = array<i64: 128, 128>}, {pipeline_mode = #tpu.pipeline_mode<synchronous>, transform_indices = @transform_19, window_bounds = array<i64: 8, 128>}, {pipeline_mode = #tpu.pipeline_mode<synchronous>, transform_indices = @transform_20, window_bounds = array<i64: 128, 256>}, {pipeline_mode = #tpu.pipeline_mode<synchronous>, transform_indices = @transform_21, window_bounds = array<i64: 32, 32>}, {pipeline_mode = #tpu.pipeline_mode<synchronous>, transform_indices = @transform_22, window_bounds = array<i64: 9, 128, 128>}, {pipeline_mode = #tpu.pipeline_mode<synchronous>, transform_indices = @transform_23, window_bounds = array<i64: 128, 128>}, {pipeline_mode = #tpu.pipeline_mode<synchronous>, transform_indices = @transform_24, window_bounds = array<i64: 8, 128>}, {pipeline_mode = #tpu.pipeline_mode<synchronous>, transform_indices = @transform_25, window_bounds = array<i64: 128, 128>}, {pipeline_mode = #tpu.pipeline_mode<synchronous>, transform_indices = @transform_26, window_bounds = array<i64: 1, 128>}, {transform_indices = @transform_27, window_bounds = array<i64: 1, 32, 128>}]} {
    %c0 = arith.constant 0 : index
    %c0_0 = arith.constant 0 : index
    %c0_1 = arith.constant 0 : index
    %0 = vector.load %arg1[%c0, %c0_0, %c0_1] : memref<1x2x128xf32, #tpu.memory_space<vmem>>, vector<1x2x128xf32>
    %1 = vector.shape_cast %0 : vector<1x2x128xf32> to vector<2x128xf32>
    %c0_2 = arith.constant 0 : index
    %c0_3 = arith.constant 0 : index
    %c0_4 = arith.constant 0 : index
    %2 = vector.load %arg2[%c0_2, %c0_3, %c0_4] : memref<1x4x128xf32, #tpu.memory_space<vmem>>, vector<1x4x128xf32>
    %3 = vector.shape_cast %2 : vector<1x4x128xf32> to vector<4x128xf32>
    %c0_5 = arith.constant 0 : index
    %c0_6 = arith.constant 0 : index
    %4 = vector.load %arg10[%c0_5, %c0_6] : memref<8x128xf32, #tpu.memory_space<vmem>>, vector<8x128xf32>
    %5 = vector.extract_strided_slice %4 {offsets = [0, 0], sizes = [1, 128], strides = [1, 1]} : vector<8x128xf32> to vector<1x128xf32>
    %6 = vector.extract_strided_slice %4 {offsets = [1, 0], sizes = [1, 128], strides = [1, 1]} : vector<8x128xf32> to vector<1x128xf32>
    %7 = vector.extract_strided_slice %4 {offsets = [2, 0], sizes = [1, 128], strides = [1, 1]} : vector<8x128xf32> to vector<1x128xf32>
    %8 = vector.extract_strided_slice %4 {offsets = [3, 0], sizes = [1, 128], strides = [1, 1]} : vector<8x128xf32> to vector<1x128xf32>
    %9 = vector.extract_strided_slice %4 {offsets = [4, 0], sizes = [1, 128], strides = [1, 1]} : vector<8x128xf32> to vector<1x128xf32>
    %c0_7 = arith.constant 0 : index
    %c0_8 = arith.constant 0 : index
    %10 = vector.load %arg9[%c0_7, %c0_8] : memref<128x128xbf16, #tpu.memory_space<vmem>>, vector<128x128xbf16>
    %11 = arith.extf %10 : vector<128x128xbf16> to vector<128x128xf32>
    %12 = arith.truncf %1 : vector<2x128xf32> to vector<2x128xbf16>
    %c0_9 = arith.constant 0 : index
    %c0_10 = arith.constant 0 : index
    %13 = vector.load %arg6[%c0_9, %c0_10] : memref<128x256xbf16, #tpu.memory_space<vmem>>, vector<128x256xbf16>
    %cst = arith.constant dense<0.000000e+00> : vector<2x256xf32>
    %14 = tpu.matmul %12, %13, %cst {dimension_numbers = #tpu.dot_dimension_numbers<[1], [0], [0], [1], [0, 0, 1, 1], [], []>} : vector<2x128xbf16>, vector<128x256xbf16>, vector<2x256xf32> -> vector<2x256xf32>
    %15 = vector.extract_strided_slice %14 {offsets = [0, 0], sizes = [2, 128], strides = [1, 1]} : vector<2x256xf32> to vector<2x128xf32>
    %16 = vector.extract_strided_slice %14 {offsets = [0, 128], sizes = [2, 128], strides = [1, 1]} : vector<2x256xf32> to vector<2x128xf32>
    %17 = tpu.concatenate %15, %16 in 0 : vector<2x128xf32>, vector<2x128xf32> -> vector<4x128xf32>
    %c0_11 = arith.constant 0 : index
    %c0_12 = arith.constant 0 : index
    %18 = vector.load %arg7[%c0_11, %c0_12] : memref<4x4xf32, #tpu.memory_space<vmem>>, vector<4x4xf32>
    %cst_13 = arith.constant dense<0.000000e+00> : vector<4x128xf32>
    %19 = tpu.matmul %18, %17, %cst_13 {dimension_numbers = #tpu.dot_dimension_numbers<[1], [0], [0], [1], [0, 0, 1, 1], [], []>} : vector<4x4xf32>, vector<4x128xf32>, vector<4x128xf32> -> vector<4x128xf32>
    %20 = vector.broadcast %5 : vector<1x128xf32> to vector<4x128xf32>
    %21 = arith.addf %19, %20 : vector<4x128xf32>
    %cst_14 = arith.constant 0.000000e+00 : f32
    %22 = vector.broadcast %cst_14 : f32 to vector<1x128xf32>
    %23 = vector.extract_strided_slice %21 {offsets = [0, 0], sizes = [3, 128], strides = [1, 1]} : vector<4x128xf32> to vector<3x128xf32>
    %24 = tpu.concatenate %22, %23 in 0 : vector<1x128xf32>, vector<3x128xf32> -> vector<4x128xf32>
    %25 = vector.extract_strided_slice %21 {offsets = [1, 0], sizes = [3, 128], strides = [1, 1]} : vector<4x128xf32> to vector<3x128xf32>
    %26 = tpu.concatenate %25, %22 in 0 : vector<3x128xf32>, vector<1x128xf32> -> vector<4x128xf32>
    %27 = arith.truncf %24 : vector<4x128xf32> to vector<4x128xbf16>
    %c0_15 = arith.constant 0 : index
    %c0_16 = arith.constant 0 : index
    %c0_17 = arith.constant 0 : index
    %28 = vector.load %arg8[%c0_15, %c0_16, %c0_17] : memref<9x128x128xbf16, #tpu.memory_space<vmem>>, vector<1x128x128xbf16>
    %29 = vector.shape_cast %28 : vector<1x128x128xbf16> to vector<128x128xbf16>
    %cst_18 = arith.constant dense<0.000000e+00> : vector<4x128xf32>
    %30 = tpu.matmul %27, %29, %cst_18 {dimension_numbers = #tpu.dot_dimension_numbers<[1], [0], [0], [1], [0, 0, 1, 1], [], []>} : vector<4x128xbf16>, vector<128x128xbf16>, vector<4x128xf32> -> vector<4x128xf32>
    %31 = arith.truncf %21 : vector<4x128xf32> to vector<4x128xbf16>
    %c1 = arith.constant 1 : index
    %c0_19 = arith.constant 0 : index
    %c0_20 = arith.constant 0 : index
    %32 = vector.load %arg8[%c1, %c0_19, %c0_20] : memref<9x128x128xbf16, #tpu.memory_space<vmem>>, vector<1x128x128xbf16>
    %33 = vector.shape_cast %32 : vector<1x128x128xbf16> to vector<128x128xbf16>
    %cst_21 = arith.constant dense<0.000000e+00> : vector<4x128xf32>
    %34 = tpu.matmul %31, %33, %cst_21 {dimension_numbers = #tpu.dot_dimension_numbers<[1], [0], [0], [1], [0, 0, 1, 1], [], []>} : vector<4x128xbf16>, vector<128x128xbf16>, vector<4x128xf32> -> vector<4x128xf32>
    %35 = arith.addf %30, %34 : vector<4x128xf32>
    %36 = arith.truncf %26 : vector<4x128xf32> to vector<4x128xbf16>
    %c2 = arith.constant 2 : index
    %c0_22 = arith.constant 0 : index
    %c0_23 = arith.constant 0 : index
    %37 = vector.load %arg8[%c2, %c0_22, %c0_23] : memref<9x128x128xbf16, #tpu.memory_space<vmem>>, vector<1x128x128xbf16>
    %38 = vector.shape_cast %37 : vector<1x128x128xbf16> to vector<128x128xbf16>
    %cst_24 = arith.constant dense<0.000000e+00> : vector<4x128xf32>
    %39 = tpu.matmul %36, %38, %cst_24 {dimension_numbers = #tpu.dot_dimension_numbers<[1], [0], [0], [1], [0, 0, 1, 1], [], []>} : vector<4x128xbf16>, vector<128x128xbf16>, vector<4x128xf32> -> vector<4x128xf32>
    %40 = arith.addf %35, %39 : vector<4x128xf32>
    %cst_25 = arith.constant 0.000000e+00 : f32
    %41 = vector.broadcast %cst_25 : f32 to vector<1x128xf32>
    %42 = vector.extract_strided_slice %3 {offsets = [0, 0], sizes = [3, 128], strides = [1, 1]} : vector<4x128xf32> to vector<3x128xf32>
    %43 = tpu.concatenate %41, %42 in 0 : vector<1x128xf32>, vector<3x128xf32> -> vector<4x128xf32>
    %44 = vector.extract_strided_slice %3 {offsets = [1, 0], sizes = [3, 128], strides = [1, 1]} : vector<4x128xf32> to vector<3x128xf32>
    %45 = tpu.concatenate %44, %41 in 0 : vector<3x128xf32>, vector<1x128xf32> -> vector<4x128xf32>
    %46 = arith.truncf %43 : vector<4x128xf32> to vector<4x128xbf16>
    %c3 = arith.constant 3 : index
    %c0_26 = arith.constant 0 : index
    %c0_27 = arith.constant 0 : index
    %47 = vector.load %arg8[%c3, %c0_26, %c0_27] : memref<9x128x128xbf16, #tpu.memory_space<vmem>>, vector<1x128x128xbf16>
    %48 = vector.shape_cast %47 : vector<1x128x128xbf16> to vector<128x128xbf16>
    %cst_28 = arith.constant dense<0.000000e+00> : vector<4x128xf32>
    %49 = tpu.matmul %46, %48, %cst_28 {dimension_numbers = #tpu.dot_dimension_numbers<[1], [0], [0], [1], [0, 0, 1, 1], [], []>} : vector<4x128xbf16>, vector<128x128xbf16>, vector<4x128xf32> -> vector<4x128xf32>
    %50 = arith.truncf %3 : vector<4x128xf32> to vector<4x128xbf16>
    %c4 = arith.constant 4 : index
    %c0_29 = arith.constant 0 : index
    %c0_30 = arith.constant 0 : index
    %51 = vector.load %arg8[%c4, %c0_29, %c0_30] : memref<9x128x128xbf16, #tpu.memory_space<vmem>>, vector<1x128x128xbf16>
    %52 = vector.shape_cast %51 : vector<1x128x128xbf16> to vector<128x128xbf16>
    %cst_31 = arith.constant dense<0.000000e+00> : vector<4x128xf32>
    %53 = tpu.matmul %50, %52, %cst_31 {dimension_numbers = #tpu.dot_dimension_numbers<[1], [0], [0], [1], [0, 0, 1, 1], [], []>} : vector<4x128xbf16>, vector<128x128xbf16>, vector<4x128xf32> -> vector<4x128xf32>
    %54 = arith.addf %49, %53 : vector<4x128xf32>
    %55 = arith.truncf %45 : vector<4x128xf32> to vector<4x128xbf16>
    %c5 = arith.constant 5 : index
    %c0_32 = arith.constant 0 : index
    %c0_33 = arith.constant 0 : index
    %56 = vector.load %arg8[%c5, %c0_32, %c0_33] : memref<9x128x128xbf16, #tpu.memory_space<vmem>>, vector<1x128x128xbf16>
    %57 = vector.shape_cast %56 : vector<1x128x128xbf16> to vector<128x128xbf16>
    %cst_34 = arith.constant dense<0.000000e+00> : vector<4x128xf32>
    %58 = tpu.matmul %55, %57, %cst_34 {dimension_numbers = #tpu.dot_dimension_numbers<[1], [0], [0], [1], [0, 0, 1, 1], [], []>} : vector<4x128xbf16>, vector<128x128xbf16>, vector<4x128xf32> -> vector<4x128xf32>
    %59 = arith.addf %54, %58 : vector<4x128xf32>
    %60 = arith.addf %40, %59 : vector<4x128xf32>
    %cst_35 = arith.constant dense<0.000000e+00> : vector<128xf32>
    %61 = vector.multi_reduction <add>, %60, %cst_35 [0] : vector<4x128xf32> to vector<128xf32>
    %62 = vector.shape_cast %61 : vector<128xf32> to vector<1x128xf32>
    %cst_36 = arith.constant dense<0.000000e+00> : vector<1x128xf32>
    %63 = tpu.matmul %62, %11, %cst_36 {dimension_numbers = #tpu.dot_dimension_numbers<[1], [0], [0], [1], [0, 0, 1, 1], [], []>} : vector<1x128xf32>, vector<128x128xf32>, vector<1x128xf32> -> vector<1x128xf32>
    %64 = vector.broadcast %63 : vector<1x128xf32> to vector<4x128xf32>
    %65 = arith.subf %60, %64 : vector<4x128xf32>
    %66 = arith.mulf %65, %65 : vector<4x128xf32>
    %cst_37 = arith.constant dense<0.000000e+00> : vector<128xf32>
    %67 = vector.multi_reduction <add>, %66, %cst_37 [0] : vector<4x128xf32> to vector<128xf32>
    %68 = vector.shape_cast %67 : vector<128xf32> to vector<1x128xf32>
    %cst_38 = arith.constant dense<0.000000e+00> : vector<1x128xf32>
    %69 = tpu.matmul %68, %11, %cst_38 {dimension_numbers = #tpu.dot_dimension_numbers<[1], [0], [0], [1], [0, 0, 1, 1], [], []>} : vector<1x128xf32>, vector<128x128xf32>, vector<1x128xf32> -> vector<1x128xf32>
    %cst_39 = arith.constant 9.99999974E-6 : f32
    %70 = vector.broadcast %cst_39 : f32 to vector<1x128xf32>
    %71 = arith.addf %69, %70 : vector<1x128xf32>
    %72 = math.rsqrt %71 : vector<1x128xf32>
    %73 = vector.broadcast %72 : vector<1x128xf32> to vector<4x128xf32>
    %74 = arith.mulf %65, %73 : vector<4x128xf32>
    %75 = vector.broadcast %6 : vector<1x128xf32> to vector<4x128xf32>
    %76 = arith.mulf %74, %75 : vector<4x128xf32>
    %77 = vector.broadcast %7 : vector<1x128xf32> to vector<4x128xf32>
    %78 = arith.addf %76, %77 : vector<4x128xf32>
    %cst_40 = arith.constant 0.000000e+00 : f32
    %79 = vector.broadcast %cst_40 : f32 to vector<4x128xf32>
    %80 = arith.cmpf ogt, %78, %79 : vector<4x128xf32>
    %81 = math.exp %78 : vector<4x128xf32>
    %cst_41 = arith.constant 1.000000e+00 : f32
    %82 = vector.broadcast %cst_41 : f32 to vector<4x128xf32>
    %83 = arith.subf %81, %82 : vector<4x128xf32>
    %cst_42 = arith.constant 1.67326319 : f32
    %84 = vector.broadcast %cst_42 : f32 to vector<4x128xf32>
    %85 = arith.mulf %84, %83 : vector<4x128xf32>
    %86 = arith.select %80, %78, %85 : vector<4x128xi1>, vector<4x128xf32>
    %cst_43 = arith.constant 1.05070102 : f32
    %87 = vector.broadcast %cst_43 : f32 to vector<4x128xf32>
    %88 = arith.mulf %87, %86 : vector<4x128xf32>
    %cst_44 = arith.constant 0.000000e+00 : f32
    %89 = vector.broadcast %cst_44 : f32 to vector<1x128xf32>
    %90 = vector.extract_strided_slice %88 {offsets = [0, 0], sizes = [3, 128], strides = [1, 1]} : vector<4x128xf32> to vector<3x128xf32>
    %91 = tpu.concatenate %89, %90 in 0 : vector<1x128xf32>, vector<3x128xf32> -> vector<4x128xf32>
    %92 = vector.extract_strided_slice %88 {offsets = [1, 0], sizes = [3, 128], strides = [1, 1]} : vector<4x128xf32> to vector<3x128xf32>
    %93 = tpu.concatenate %92, %89 in 0 : vector<3x128xf32>, vector<1x128xf32> -> vector<4x128xf32>
    %94 = arith.truncf %91 : vector<4x128xf32> to vector<4x128xbf16>
    %c6 = arith.constant 6 : index
    %c0_45 = arith.constant 0 : index
    %c0_46 = arith.constant 0 : index
    %95 = vector.load %arg8[%c6, %c0_45, %c0_46] : memref<9x128x128xbf16, #tpu.memory_space<vmem>>, vector<1x128x128xbf16>
    %96 = vector.shape_cast %95 : vector<1x128x128xbf16> to vector<128x128xbf16>
    %cst_47 = arith.constant dense<0.000000e+00> : vector<4x128xf32>
    %97 = tpu.matmul %94, %96, %cst_47 {dimension_numbers = #tpu.dot_dimension_numbers<[1], [0], [0], [1], [0, 0, 1, 1], [], []>} : vector<4x128xbf16>, vector<128x128xbf16>, vector<4x128xf32> -> vector<4x128xf32>
    %98 = arith.truncf %88 : vector<4x128xf32> to vector<4x128xbf16>
    %c7 = arith.constant 7 : index
    %c0_48 = arith.constant 0 : index
    %c0_49 = arith.constant 0 : index
    %99 = vector.load %arg8[%c7, %c0_48, %c0_49] : memref<9x128x128xbf16, #tpu.memory_space<vmem>>, vector<1x128x128xbf16>
    %100 = vector.shape_cast %99 : vector<1x128x128xbf16> to vector<128x128xbf16>
    %cst_50 = arith.constant dense<0.000000e+00> : vector<4x128xf32>
    %101 = tpu.matmul %98, %100, %cst_50 {dimension_numbers = #tpu.dot_dimension_numbers<[1], [0], [0], [1], [0, 0, 1, 1], [], []>} : vector<4x128xbf16>, vector<128x128xbf16>, vector<4x128xf32> -> vector<4x128xf32>
    %102 = arith.addf %97, %101 : vector<4x128xf32>
    %103 = arith.truncf %93 : vector<4x128xf32> to vector<4x128xbf16>
    %c8 = arith.constant 8 : index
    %c0_51 = arith.constant 0 : index
    %c0_52 = arith.constant 0 : index
    %104 = vector.load %arg8[%c8, %c0_51, %c0_52] : memref<9x128x128xbf16, #tpu.memory_space<vmem>>, vector<1x128x128xbf16>
    %105 = vector.shape_cast %104 : vector<1x128x128xbf16> to vector<128x128xbf16>
    %cst_53 = arith.constant dense<0.000000e+00> : vector<4x128xf32>
    %106 = tpu.matmul %103, %105, %cst_53 {dimension_numbers = #tpu.dot_dimension_numbers<[1], [0], [0], [1], [0, 0, 1, 1], [], []>} : vector<4x128xbf16>, vector<128x128xbf16>, vector<4x128xf32> -> vector<4x128xf32>
    %107 = arith.addf %102, %106 : vector<4x128xf32>
    %cst_54 = arith.constant dense<0.000000e+00> : vector<128xf32>
    %108 = vector.multi_reduction <add>, %107, %cst_54 [0] : vector<4x128xf32> to vector<128xf32>
    %109 = vector.shape_cast %108 : vector<128xf32> to vector<1x128xf32>
    %cst_55 = arith.constant dense<0.000000e+00> : vector<1x128xf32>
    %110 = tpu.matmul %109, %11, %cst_55 {dimension_numbers = #tpu.dot_dimension_numbers<[1], [0], [0], [1], [0, 0, 1, 1], [], []>} : vector<1x128xf32>, vector<128x128xf32>, vector<1x128xf32> -> vector<1x128xf32>
    %111 = vector.broadcast %110 : vector<1x128xf32> to vector<4x128xf32>
    %112 = arith.subf %107, %111 : vector<4x128xf32>
    %113 = arith.mulf %112, %112 : vector<4x128xf32>
    %cst_56 = arith.constant dense<0.000000e+00> : vector<128xf32>
    %114 = vector.multi_reduction <add>, %113, %cst_56 [0] : vector<4x128xf32> to vector<128xf32>
    %115 = vector.shape_cast %114 : vector<128xf32> to vector<1x128xf32>
    %cst_57 = arith.constant dense<0.000000e+00> : vector<1x128xf32>
    %116 = tpu.matmul %115, %11, %cst_57 {dimension_numbers = #tpu.dot_dimension_numbers<[1], [0], [0], [1], [0, 0, 1, 1], [], []>} : vector<1x128xf32>, vector<128x128xf32>, vector<1x128xf32> -> vector<1x128xf32>
    %cst_58 = arith.constant 9.99999974E-6 : f32
    %117 = vector.broadcast %cst_58 : f32 to vector<1x128xf32>
    %118 = arith.addf %116, %117 : vector<1x128xf32>
    %119 = math.rsqrt %118 : vector<1x128xf32>
    %120 = vector.broadcast %119 : vector<1x128xf32> to vector<4x128xf32>
    %121 = arith.mulf %112, %120 : vector<4x128xf32>
    %122 = vector.broadcast %8 : vector<1x128xf32> to vector<4x128xf32>
    %123 = arith.mulf %121, %122 : vector<4x128xf32>
    %124 = vector.broadcast %9 : vector<1x128xf32> to vector<4x128xf32>
    %125 = arith.addf %123, %124 : vector<4x128xf32>
    %cst_59 = arith.constant 0.000000e+00 : f32
    %126 = vector.broadcast %cst_59 : f32 to vector<4x128xf32>
    %127 = arith.cmpf ogt, %125, %126 : vector<4x128xf32>
    %128 = math.exp %125 : vector<4x128xf32>
    %cst_60 = arith.constant 1.000000e+00 : f32
    %129 = vector.broadcast %cst_60 : f32 to vector<4x128xf32>
    %130 = arith.subf %128, %129 : vector<4x128xf32>
    %cst_61 = arith.constant 1.67326319 : f32
    %131 = vector.broadcast %cst_61 : f32 to vector<4x128xf32>
    %132 = arith.mulf %131, %130 : vector<4x128xf32>
    %133 = arith.select %127, %125, %132 : vector<4x128xi1>, vector<4x128xf32>
    %cst_62 = arith.constant 1.05070102 : f32
    %134 = vector.broadcast %cst_62 : f32 to vector<4x128xf32>
    %135 = arith.mulf %134, %133 : vector<4x128xf32>
    %c0_63 = arith.constant 0 : index
    %c0_64 = arith.constant 0 : index
    %c0_65 = arith.constant 0 : index
    %136 = vector.load %arg3[%c0_63, %c0_64, %c0_65] : memref<1x8x128xf32, #tpu.memory_space<vmem>>, vector<1x8x128xf32>
    %137 = vector.shape_cast %136 : vector<1x8x128xf32> to vector<8x128xf32>
    %c0_66 = arith.constant 0 : index
    %c0_67 = arith.constant 0 : index
    %138 = vector.load %arg15[%c0_66, %c0_67] : memref<8x128xf32, #tpu.memory_space<vmem>>, vector<8x128xf32>
    %139 = vector.extract_strided_slice %138 {offsets = [0, 0], sizes = [1, 128], strides = [1, 1]} : vector<8x128xf32> to vector<1x128xf32>
    %140 = vector.extract_strided_slice %138 {offsets = [1, 0], sizes = [1, 128], strides = [1, 1]} : vector<8x128xf32> to vector<1x128xf32>
    %141 = vector.extract_strided_slice %138 {offsets = [2, 0], sizes = [1, 128], strides = [1, 1]} : vector<8x128xf32> to vector<1x128xf32>
    %142 = vector.extract_strided_slice %138 {offsets = [3, 0], sizes = [1, 128], strides = [1, 1]} : vector<8x128xf32> to vector<1x128xf32>
    %143 = vector.extract_strided_slice %138 {offsets = [4, 0], sizes = [1, 128], strides = [1, 1]} : vector<8x128xf32> to vector<1x128xf32>
    %c0_68 = arith.constant 0 : index
    %c0_69 = arith.constant 0 : index
    %144 = vector.load %arg14[%c0_68, %c0_69] : memref<128x128xbf16, #tpu.memory_space<vmem>>, vector<128x128xbf16>
    %145 = arith.extf %144 : vector<128x128xbf16> to vector<128x128xf32>
    %146 = arith.truncf %135 : vector<4x128xf32> to vector<4x128xbf16>
    %c0_70 = arith.constant 0 : index
    %c0_71 = arith.constant 0 : index
    %147 = vector.load %arg11[%c0_70, %c0_71] : memref<128x256xbf16, #tpu.memory_space<vmem>>, vector<128x256xbf16>
    %cst_72 = arith.constant dense<0.000000e+00> : vector<4x256xf32>
    %148 = tpu.matmul %146, %147, %cst_72 {dimension_numbers = #tpu.dot_dimension_numbers<[1], [0], [0], [1], [0, 0, 1, 1], [], []>} : vector<4x128xbf16>, vector<128x256xbf16>, vector<4x256xf32> -> vector<4x256xf32>
    %149 = vector.extract_strided_slice %148 {offsets = [0, 0], sizes = [4, 128], strides = [1, 1]} : vector<4x256xf32> to vector<4x128xf32>
    %150 = vector.extract_strided_slice %148 {offsets = [0, 128], sizes = [4, 128], strides = [1, 1]} : vector<4x256xf32> to vector<4x128xf32>
    %151 = tpu.concatenate %149, %150 in 0 : vector<4x128xf32>, vector<4x128xf32> -> vector<8x128xf32>
    %c0_73 = arith.constant 0 : index
    %c0_74 = arith.constant 0 : index
    %152 = vector.load %arg12[%c0_73, %c0_74] : memref<8x8xf32, #tpu.memory_space<vmem>>, vector<8x8xf32>
    %cst_75 = arith.constant dense<0.000000e+00> : vector<8x128xf32>
    %153 = tpu.matmul %152, %151, %cst_75 {dimension_numbers = #tpu.dot_dimension_numbers<[1], [0], [0], [1], [0, 0, 1, 1], [], []>} : vector<8x8xf32>, vector<8x128xf32>, vector<8x128xf32> -> vector<8x128xf32>
    %154 = vector.broadcast %139 : vector<1x128xf32> to vector<8x128xf32>
    %155 = arith.addf %153, %154 : vector<8x128xf32>
    %cst_76 = arith.constant 0.000000e+00 : f32
    %156 = vector.broadcast %cst_76 : f32 to vector<1x128xf32>
    %157 = vector.extract_strided_slice %155 {offsets = [0, 0], sizes = [7, 128], strides = [1, 1]} : vector<8x128xf32> to vector<7x128xf32>
    %158 = tpu.concatenate %156, %157 in 0 : vector<1x128xf32>, vector<7x128xf32> -> vector<8x128xf32>
    %159 = vector.extract_strided_slice %155 {offsets = [1, 0], sizes = [7, 128], strides = [1, 1]} : vector<8x128xf32> to vector<7x128xf32>
    %160 = tpu.concatenate %159, %156 in 0 : vector<7x128xf32>, vector<1x128xf32> -> vector<8x128xf32>
    %161 = arith.truncf %158 : vector<8x128xf32> to vector<8x128xbf16>
    %c0_77 = arith.constant 0 : index
    %c0_78 = arith.constant 0 : index
    %c0_79 = arith.constant 0 : index
    %162 = vector.load %arg13[%c0_77, %c0_78, %c0_79] : memref<9x128x128xbf16, #tpu.memory_space<vmem>>, vector<1x128x128xbf16>
    %163 = vector.shape_cast %162 : vector<1x128x128xbf16> to vector<128x128xbf16>
    %cst_80 = arith.constant dense<0.000000e+00> : vector<8x128xf32>
    %164 = tpu.matmul %161, %163, %cst_80 {dimension_numbers = #tpu.dot_dimension_numbers<[1], [0], [0], [1], [0, 0, 1, 1], [], []>} : vector<8x128xbf16>, vector<128x128xbf16>, vector<8x128xf32> -> vector<8x128xf32>
    %165 = arith.truncf %155 : vector<8x128xf32> to vector<8x128xbf16>
    %c1_81 = arith.constant 1 : index
    %c0_82 = arith.constant 0 : index
    %c0_83 = arith.constant 0 : index
    %166 = vector.load %arg13[%c1_81, %c0_82, %c0_83] : memref<9x128x128xbf16, #tpu.memory_space<vmem>>, vector<1x128x128xbf16>
    %167 = vector.shape_cast %166 : vector<1x128x128xbf16> to vector<128x128xbf16>
    %cst_84 = arith.constant dense<0.000000e+00> : vector<8x128xf32>
    %168 = tpu.matmul %165, %167, %cst_84 {dimension_numbers = #tpu.dot_dimension_numbers<[1], [0], [0], [1], [0, 0, 1, 1], [], []>} : vector<8x128xbf16>, vector<128x128xbf16>, vector<8x128xf32> -> vector<8x128xf32>
    %169 = arith.addf %164, %168 : vector<8x128xf32>
    %170 = arith.truncf %160 : vector<8x128xf32> to vector<8x128xbf16>
    %c2_85 = arith.constant 2 : index
    %c0_86 = arith.constant 0 : index
    %c0_87 = arith.constant 0 : index
    %171 = vector.load %arg13[%c2_85, %c0_86, %c0_87] : memref<9x128x128xbf16, #tpu.memory_space<vmem>>, vector<1x128x128xbf16>
    %172 = vector.shape_cast %171 : vector<1x128x128xbf16> to vector<128x128xbf16>
    %cst_88 = arith.constant dense<0.000000e+00> : vector<8x128xf32>
    %173 = tpu.matmul %170, %172, %cst_88 {dimension_numbers = #tpu.dot_dimension_numbers<[1], [0], [0], [1], [0, 0, 1, 1], [], []>} : vector<8x128xbf16>, vector<128x128xbf16>, vector<8x128xf32> -> vector<8x128xf32>
    %174 = arith.addf %169, %173 : vector<8x128xf32>
    %cst_89 = arith.constant 0.000000e+00 : f32
    %175 = vector.broadcast %cst_89 : f32 to vector<1x128xf32>
    %176 = vector.extract_strided_slice %137 {offsets = [0, 0], sizes = [7, 128], strides = [1, 1]} : vector<8x128xf32> to vector<7x128xf32>
    %177 = tpu.concatenate %175, %176 in 0 : vector<1x128xf32>, vector<7x128xf32> -> vector<8x128xf32>
    %178 = vector.extract_strided_slice %137 {offsets = [1, 0], sizes = [7, 128], strides = [1, 1]} : vector<8x128xf32> to vector<7x128xf32>
    %179 = tpu.concatenate %178, %175 in 0 : vector<7x128xf32>, vector<1x128xf32> -> vector<8x128xf32>
    %180 = arith.truncf %177 : vector<8x128xf32> to vector<8x128xbf16>
    %c3_90 = arith.constant 3 : index
    %c0_91 = arith.constant 0 : index
    %c0_92 = arith.constant 0 : index
    %181 = vector.load %arg13[%c3_90, %c0_91, %c0_92] : memref<9x128x128xbf16, #tpu.memory_space<vmem>>, vector<1x128x128xbf16>
    %182 = vector.shape_cast %181 : vector<1x128x128xbf16> to vector<128x128xbf16>
    %cst_93 = arith.constant dense<0.000000e+00> : vector<8x128xf32>
    %183 = tpu.matmul %180, %182, %cst_93 {dimension_numbers = #tpu.dot_dimension_numbers<[1], [0], [0], [1], [0, 0, 1, 1], [], []>} : vector<8x128xbf16>, vector<128x128xbf16>, vector<8x128xf32> -> vector<8x128xf32>
    %184 = arith.truncf %137 : vector<8x128xf32> to vector<8x128xbf16>
    %c4_94 = arith.constant 4 : index
    %c0_95 = arith.constant 0 : index
    %c0_96 = arith.constant 0 : index
    %185 = vector.load %arg13[%c4_94, %c0_95, %c0_96] : memref<9x128x128xbf16, #tpu.memory_space<vmem>>, vector<1x128x128xbf16>
    %186 = vector.shape_cast %185 : vector<1x128x128xbf16> to vector<128x128xbf16>
    %cst_97 = arith.constant dense<0.000000e+00> : vector<8x128xf32>
    %187 = tpu.matmul %184, %186, %cst_97 {dimension_numbers = #tpu.dot_dimension_numbers<[1], [0], [0], [1], [0, 0, 1, 1], [], []>} : vector<8x128xbf16>, vector<128x128xbf16>, vector<8x128xf32> -> vector<8x128xf32>
    %188 = arith.addf %183, %187 : vector<8x128xf32>
    %189 = arith.truncf %179 : vector<8x128xf32> to vector<8x128xbf16>
    %c5_98 = arith.constant 5 : index
    %c0_99 = arith.constant 0 : index
    %c0_100 = arith.constant 0 : index
    %190 = vector.load %arg13[%c5_98, %c0_99, %c0_100] : memref<9x128x128xbf16, #tpu.memory_space<vmem>>, vector<1x128x128xbf16>
    %191 = vector.shape_cast %190 : vector<1x128x128xbf16> to vector<128x128xbf16>
    %cst_101 = arith.constant dense<0.000000e+00> : vector<8x128xf32>
    %192 = tpu.matmul %189, %191, %cst_101 {dimension_numbers = #tpu.dot_dimension_numbers<[1], [0], [0], [1], [0, 0, 1, 1], [], []>} : vector<8x128xbf16>, vector<128x128xbf16>, vector<8x128xf32> -> vector<8x128xf32>
    %193 = arith.addf %188, %192 : vector<8x128xf32>
    %194 = arith.addf %174, %193 : vector<8x128xf32>
    %cst_102 = arith.constant dense<0.000000e+00> : vector<128xf32>
    %195 = vector.multi_reduction <add>, %194, %cst_102 [0] : vector<8x128xf32> to vector<128xf32>
    %196 = vector.shape_cast %195 : vector<128xf32> to vector<1x128xf32>
    %cst_103 = arith.constant dense<0.000000e+00> : vector<1x128xf32>
    %197 = tpu.matmul %196, %145, %cst_103 {dimension_numbers = #tpu.dot_dimension_numbers<[1], [0], [0], [1], [0, 0, 1, 1], [], []>} : vector<1x128xf32>, vector<128x128xf32>, vector<1x128xf32> -> vector<1x128xf32>
    %198 = vector.broadcast %197 : vector<1x128xf32> to vector<8x128xf32>
    %199 = arith.subf %194, %198 : vector<8x128xf32>
    %200 = arith.mulf %199, %199 : vector<8x128xf32>
    %cst_104 = arith.constant dense<0.000000e+00> : vector<128xf32>
    %201 = vector.multi_reduction <add>, %200, %cst_104 [0] : vector<8x128xf32> to vector<128xf32>
    %202 = vector.shape_cast %201 : vector<128xf32> to vector<1x128xf32>
    %cst_105 = arith.constant dense<0.000000e+00> : vector<1x128xf32>
    %203 = tpu.matmul %202, %145, %cst_105 {dimension_numbers = #tpu.dot_dimension_numbers<[1], [0], [0], [1], [0, 0, 1, 1], [], []>} : vector<1x128xf32>, vector<128x128xf32>, vector<1x128xf32> -> vector<1x128xf32>
    %cst_106 = arith.constant 9.99999974E-6 : f32
    %204 = vector.broadcast %cst_106 : f32 to vector<1x128xf32>
    %205 = arith.addf %203, %204 : vector<1x128xf32>
    %206 = math.rsqrt %205 : vector<1x128xf32>
    %207 = vector.broadcast %206 : vector<1x128xf32> to vector<8x128xf32>
    %208 = arith.mulf %199, %207 : vector<8x128xf32>
    %209 = vector.broadcast %140 : vector<1x128xf32> to vector<8x128xf32>
    %210 = arith.mulf %208, %209 : vector<8x128xf32>
    %211 = vector.broadcast %141 : vector<1x128xf32> to vector<8x128xf32>
    %212 = arith.addf %210, %211 : vector<8x128xf32>
    %cst_107 = arith.constant 0.000000e+00 : f32
    %213 = vector.broadcast %cst_107 : f32 to vector<8x128xf32>
    %214 = arith.cmpf ogt, %212, %213 : vector<8x128xf32>
    %215 = math.exp %212 : vector<8x128xf32>
    %cst_108 = arith.constant 1.000000e+00 : f32
    %216 = vector.broadcast %cst_108 : f32 to vector<8x128xf32>
    %217 = arith.subf %215, %216 : vector<8x128xf32>
    %cst_109 = arith.constant 1.67326319 : f32
    %218 = vector.broadcast %cst_109 : f32 to vector<8x128xf32>
    %219 = arith.mulf %218, %217 : vector<8x128xf32>
    %220 = arith.select %214, %212, %219 : vector<8x128xi1>, vector<8x128xf32>
    %cst_110 = arith.constant 1.05070102 : f32
    %221 = vector.broadcast %cst_110 : f32 to vector<8x128xf32>
    %222 = arith.mulf %221, %220 : vector<8x128xf32>
    %cst_111 = arith.constant 0.000000e+00 : f32
    %223 = vector.broadcast %cst_111 : f32 to vector<1x128xf32>
    %224 = vector.extract_strided_slice %222 {offsets = [0, 0], sizes = [7, 128], strides = [1, 1]} : vector<8x128xf32> to vector<7x128xf32>
    %225 = tpu.concatenate %223, %224 in 0 : vector<1x128xf32>, vector<7x128xf32> -> vector<8x128xf32>
    %226 = vector.extract_strided_slice %222 {offsets = [1, 0], sizes = [7, 128], strides = [1, 1]} : vector<8x128xf32> to vector<7x128xf32>
    %227 = tpu.concatenate %226, %223 in 0 : vector<7x128xf32>, vector<1x128xf32> -> vector<8x128xf32>
    %228 = arith.truncf %225 : vector<8x128xf32> to vector<8x128xbf16>
    %c6_112 = arith.constant 6 : index
    %c0_113 = arith.constant 0 : index
    %c0_114 = arith.constant 0 : index
    %229 = vector.load %arg13[%c6_112, %c0_113, %c0_114] : memref<9x128x128xbf16, #tpu.memory_space<vmem>>, vector<1x128x128xbf16>
    %230 = vector.shape_cast %229 : vector<1x128x128xbf16> to vector<128x128xbf16>
    %cst_115 = arith.constant dense<0.000000e+00> : vector<8x128xf32>
    %231 = tpu.matmul %228, %230, %cst_115 {dimension_numbers = #tpu.dot_dimension_numbers<[1], [0], [0], [1], [0, 0, 1, 1], [], []>} : vector<8x128xbf16>, vector<128x128xbf16>, vector<8x128xf32> -> vector<8x128xf32>
    %232 = arith.truncf %222 : vector<8x128xf32> to vector<8x128xbf16>
    %c7_116 = arith.constant 7 : index
    %c0_117 = arith.constant 0 : index
    %c0_118 = arith.constant 0 : index
    %233 = vector.load %arg13[%c7_116, %c0_117, %c0_118] : memref<9x128x128xbf16, #tpu.memory_space<vmem>>, vector<1x128x128xbf16>
    %234 = vector.shape_cast %233 : vector<1x128x128xbf16> to vector<128x128xbf16>
    %cst_119 = arith.constant dense<0.000000e+00> : vector<8x128xf32>
    %235 = tpu.matmul %232, %234, %cst_119 {dimension_numbers = #tpu.dot_dimension_numbers<[1], [0], [0], [1], [0, 0, 1, 1], [], []>} : vector<8x128xbf16>, vector<128x128xbf16>, vector<8x128xf32> -> vector<8x128xf32>
    %236 = arith.addf %231, %235 : vector<8x128xf32>
    %237 = arith.truncf %227 : vector<8x128xf32> to vector<8x128xbf16>
    %c8_120 = arith.constant 8 : index
    %c0_121 = arith.constant 0 : index
    %c0_122 = arith.constant 0 : index
    %238 = vector.load %arg13[%c8_120, %c0_121, %c0_122] : memref<9x128x128xbf16, #tpu.memory_space<vmem>>, vector<1x128x128xbf16>
    %239 = vector.shape_cast %238 : vector<1x128x128xbf16> to vector<128x128xbf16>
    %cst_123 = arith.constant dense<0.000000e+00> : vector<8x128xf32>
    %240 = tpu.matmul %237, %239, %cst_123 {dimension_numbers = #tpu.dot_dimension_numbers<[1], [0], [0], [1], [0, 0, 1, 1], [], []>} : vector<8x128xbf16>, vector<128x128xbf16>, vector<8x128xf32> -> vector<8x128xf32>
    %241 = arith.addf %236, %240 : vector<8x128xf32>
    %cst_124 = arith.constant dense<0.000000e+00> : vector<128xf32>
    %242 = vector.multi_reduction <add>, %241, %cst_124 [0] : vector<8x128xf32> to vector<128xf32>
    %243 = vector.shape_cast %242 : vector<128xf32> to vector<1x128xf32>
    %cst_125 = arith.constant dense<0.000000e+00> : vector<1x128xf32>
    %244 = tpu.matmul %243, %145, %cst_125 {dimension_numbers = #tpu.dot_dimension_numbers<[1], [0], [0], [1], [0, 0, 1, 1], [], []>} : vector<1x128xf32>, vector<128x128xf32>, vector<1x128xf32> -> vector<1x128xf32>
    %245 = vector.broadcast %244 : vector<1x128xf32> to vector<8x128xf32>
    %246 = arith.subf %241, %245 : vector<8x128xf32>
    %247 = arith.mulf %246, %246 : vector<8x128xf32>
    %cst_126 = arith.constant dense<0.000000e+00> : vector<128xf32>
    %248 = vector.multi_reduction <add>, %247, %cst_126 [0] : vector<8x128xf32> to vector<128xf32>
    %249 = vector.shape_cast %248 : vector<128xf32> to vector<1x128xf32>
    %cst_127 = arith.constant dense<0.000000e+00> : vector<1x128xf32>
    %250 = tpu.matmul %249, %145, %cst_127 {dimension_numbers = #tpu.dot_dimension_numbers<[1], [0], [0], [1], [0, 0, 1, 1], [], []>} : vector<1x128xf32>, vector<128x128xf32>, vector<1x128xf32> -> vector<1x128xf32>
    %cst_128 = arith.constant 9.99999974E-6 : f32
    %251 = vector.broadcast %cst_128 : f32 to vector<1x128xf32>
    %252 = arith.addf %250, %251 : vector<1x128xf32>
    %253 = math.rsqrt %252 : vector<1x128xf32>
    %254 = vector.broadcast %253 : vector<1x128xf32> to vector<8x128xf32>
    %255 = arith.mulf %246, %254 : vector<8x128xf32>
    %256 = vector.broadcast %142 : vector<1x128xf32> to vector<8x128xf32>
    %257 = arith.mulf %255, %256 : vector<8x128xf32>
    %258 = vector.broadcast %143 : vector<1x128xf32> to vector<8x128xf32>
    %259 = arith.addf %257, %258 : vector<8x128xf32>
    %cst_129 = arith.constant 0.000000e+00 : f32
    %260 = vector.broadcast %cst_129 : f32 to vector<8x128xf32>
    %261 = arith.cmpf ogt, %259, %260 : vector<8x128xf32>
    %262 = math.exp %259 : vector<8x128xf32>
    %cst_130 = arith.constant 1.000000e+00 : f32
    %263 = vector.broadcast %cst_130 : f32 to vector<8x128xf32>
    %264 = arith.subf %262, %263 : vector<8x128xf32>
    %cst_131 = arith.constant 1.67326319 : f32
    %265 = vector.broadcast %cst_131 : f32 to vector<8x128xf32>
    %266 = arith.mulf %265, %264 : vector<8x128xf32>
    %267 = arith.select %261, %259, %266 : vector<8x128xi1>, vector<8x128xf32>
    %cst_132 = arith.constant 1.05070102 : f32
    %268 = vector.broadcast %cst_132 : f32 to vector<8x128xf32>
    %269 = arith.mulf %268, %267 : vector<8x128xf32>
    %c0_133 = arith.constant 0 : index
    %c0_134 = arith.constant 0 : index
    %c0_135 = arith.constant 0 : index
    %270 = vector.load %arg4[%c0_133, %c0_134, %c0_135] : memref<1x16x128xf32, #tpu.memory_space<vmem>>, vector<1x16x128xf32>
    %271 = vector.shape_cast %270 : vector<1x16x128xf32> to vector<16x128xf32>
    %c0_136 = arith.constant 0 : index
    %c0_137 = arith.constant 0 : index
    %272 = vector.load %arg20[%c0_136, %c0_137] : memref<8x128xf32, #tpu.memory_space<vmem>>, vector<8x128xf32>
    %273 = vector.extract_strided_slice %272 {offsets = [0, 0], sizes = [1, 128], strides = [1, 1]} : vector<8x128xf32> to vector<1x128xf32>
    %274 = vector.extract_strided_slice %272 {offsets = [1, 0], sizes = [1, 128], strides = [1, 1]} : vector<8x128xf32> to vector<1x128xf32>
    %275 = vector.extract_strided_slice %272 {offsets = [2, 0], sizes = [1, 128], strides = [1, 1]} : vector<8x128xf32> to vector<1x128xf32>
    %276 = vector.extract_strided_slice %272 {offsets = [3, 0], sizes = [1, 128], strides = [1, 1]} : vector<8x128xf32> to vector<1x128xf32>
    %277 = vector.extract_strided_slice %272 {offsets = [4, 0], sizes = [1, 128], strides = [1, 1]} : vector<8x128xf32> to vector<1x128xf32>
    %c0_138 = arith.constant 0 : index
    %c0_139 = arith.constant 0 : index
    %278 = vector.load %arg19[%c0_138, %c0_139] : memref<128x128xbf16, #tpu.memory_space<vmem>>, vector<128x128xbf16>
    %279 = arith.extf %278 : vector<128x128xbf16> to vector<128x128xf32>
    %280 = arith.truncf %269 : vector<8x128xf32> to vector<8x128xbf16>
    %c0_140 = arith.constant 0 : index
    %c0_141 = arith.constant 0 : index
    %281 = vector.load %arg16[%c0_140, %c0_141] : memref<128x256xbf16, #tpu.memory_space<vmem>>, vector<128x256xbf16>
    %cst_142 = arith.constant dense<0.000000e+00> : vector<8x256xf32>
    %282 = tpu.matmul %280, %281, %cst_142 {dimension_numbers = #tpu.dot_dimension_numbers<[1], [0], [0], [1], [0, 0, 1, 1], [], []>} : vector<8x128xbf16>, vector<128x256xbf16>, vector<8x256xf32> -> vector<8x256xf32>
    %283 = vector.extract_strided_slice %282 {offsets = [0, 0], sizes = [8, 128], strides = [1, 1]} : vector<8x256xf32> to vector<8x128xf32>
    %284 = vector.extract_strided_slice %282 {offsets = [0, 128], sizes = [8, 128], strides = [1, 1]} : vector<8x256xf32> to vector<8x128xf32>
    %285 = tpu.concatenate %283, %284 in 0 : vector<8x128xf32>, vector<8x128xf32> -> vector<16x128xf32>
    %c0_143 = arith.constant 0 : index
    %c0_144 = arith.constant 0 : index
    %286 = vector.load %arg17[%c0_143, %c0_144] : memref<16x16xf32, #tpu.memory_space<vmem>>, vector<16x16xf32>
    %cst_145 = arith.constant dense<0.000000e+00> : vector<16x128xf32>
    %287 = tpu.matmul %286, %285, %cst_145 {dimension_numbers = #tpu.dot_dimension_numbers<[1], [0], [0], [1], [0, 0, 1, 1], [], []>} : vector<16x16xf32>, vector<16x128xf32>, vector<16x128xf32> -> vector<16x128xf32>
    %288 = vector.broadcast %273 : vector<1x128xf32> to vector<16x128xf32>
    %289 = arith.addf %287, %288 : vector<16x128xf32>
    %cst_146 = arith.constant 0.000000e+00 : f32
    %290 = vector.broadcast %cst_146 : f32 to vector<1x128xf32>
    %291 = vector.extract_strided_slice %289 {offsets = [0, 0], sizes = [15, 128], strides = [1, 1]} : vector<16x128xf32> to vector<15x128xf32>
    %292 = tpu.concatenate %290, %291 in 0 : vector<1x128xf32>, vector<15x128xf32> -> vector<16x128xf32>
    %293 = vector.extract_strided_slice %289 {offsets = [1, 0], sizes = [15, 128], strides = [1, 1]} : vector<16x128xf32> to vector<15x128xf32>
    %294 = tpu.concatenate %293, %290 in 0 : vector<15x128xf32>, vector<1x128xf32> -> vector<16x128xf32>
    %295 = arith.truncf %292 : vector<16x128xf32> to vector<16x128xbf16>
    %c0_147 = arith.constant 0 : index
    %c0_148 = arith.constant 0 : index
    %c0_149 = arith.constant 0 : index
    %296 = vector.load %arg18[%c0_147, %c0_148, %c0_149] : memref<9x128x128xbf16, #tpu.memory_space<vmem>>, vector<1x128x128xbf16>
    %297 = vector.shape_cast %296 : vector<1x128x128xbf16> to vector<128x128xbf16>
    %cst_150 = arith.constant dense<0.000000e+00> : vector<16x128xf32>
    %298 = tpu.matmul %295, %297, %cst_150 {dimension_numbers = #tpu.dot_dimension_numbers<[1], [0], [0], [1], [0, 0, 1, 1], [], []>} : vector<16x128xbf16>, vector<128x128xbf16>, vector<16x128xf32> -> vector<16x128xf32>
    %299 = arith.truncf %289 : vector<16x128xf32> to vector<16x128xbf16>
    %c1_151 = arith.constant 1 : index
    %c0_152 = arith.constant 0 : index
    %c0_153 = arith.constant 0 : index
    %300 = vector.load %arg18[%c1_151, %c0_152, %c0_153] : memref<9x128x128xbf16, #tpu.memory_space<vmem>>, vector<1x128x128xbf16>
    %301 = vector.shape_cast %300 : vector<1x128x128xbf16> to vector<128x128xbf16>
    %cst_154 = arith.constant dense<0.000000e+00> : vector<16x128xf32>
    %302 = tpu.matmul %299, %301, %cst_154 {dimension_numbers = #tpu.dot_dimension_numbers<[1], [0], [0], [1], [0, 0, 1, 1], [], []>} : vector<16x128xbf16>, vector<128x128xbf16>, vector<16x128xf32> -> vector<16x128xf32>
    %303 = arith.addf %298, %302 : vector<16x128xf32>
    %304 = arith.truncf %294 : vector<16x128xf32> to vector<16x128xbf16>
    %c2_155 = arith.constant 2 : index
    %c0_156 = arith.constant 0 : index
    %c0_157 = arith.constant 0 : index
    %305 = vector.load %arg18[%c2_155, %c0_156, %c0_157] : memref<9x128x128xbf16, #tpu.memory_space<vmem>>, vector<1x128x128xbf16>
    %306 = vector.shape_cast %305 : vector<1x128x128xbf16> to vector<128x128xbf16>
    %cst_158 = arith.constant dense<0.000000e+00> : vector<16x128xf32>
    %307 = tpu.matmul %304, %306, %cst_158 {dimension_numbers = #tpu.dot_dimension_numbers<[1], [0], [0], [1], [0, 0, 1, 1], [], []>} : vector<16x128xbf16>, vector<128x128xbf16>, vector<16x128xf32> -> vector<16x128xf32>
    %308 = arith.addf %303, %307 : vector<16x128xf32>
    %cst_159 = arith.constant 0.000000e+00 : f32
    %309 = vector.broadcast %cst_159 : f32 to vector<1x128xf32>
    %310 = vector.extract_strided_slice %271 {offsets = [0, 0], sizes = [15, 128], strides = [1, 1]} : vector<16x128xf32> to vector<15x128xf32>
    %311 = tpu.concatenate %309, %310 in 0 : vector<1x128xf32>, vector<15x128xf32> -> vector<16x128xf32>
    %312 = vector.extract_strided_slice %271 {offsets = [1, 0], sizes = [15, 128], strides = [1, 1]} : vector<16x128xf32> to vector<15x128xf32>
    %313 = tpu.concatenate %312, %309 in 0 : vector<15x128xf32>, vector<1x128xf32> -> vector<16x128xf32>
    %314 = arith.truncf %311 : vector<16x128xf32> to vector<16x128xbf16>
    %c3_160 = arith.constant 3 : index
    %c0_161 = arith.constant 0 : index
    %c0_162 = arith.constant 0 : index
    %315 = vector.load %arg18[%c3_160, %c0_161, %c0_162] : memref<9x128x128xbf16, #tpu.memory_space<vmem>>, vector<1x128x128xbf16>
    %316 = vector.shape_cast %315 : vector<1x128x128xbf16> to vector<128x128xbf16>
    %cst_163 = arith.constant dense<0.000000e+00> : vector<16x128xf32>
    %317 = tpu.matmul %314, %316, %cst_163 {dimension_numbers = #tpu.dot_dimension_numbers<[1], [0], [0], [1], [0, 0, 1, 1], [], []>} : vector<16x128xbf16>, vector<128x128xbf16>, vector<16x128xf32> -> vector<16x128xf32>
    %318 = arith.truncf %271 : vector<16x128xf32> to vector<16x128xbf16>
    %c4_164 = arith.constant 4 : index
    %c0_165 = arith.constant 0 : index
    %c0_166 = arith.constant 0 : index
    %319 = vector.load %arg18[%c4_164, %c0_165, %c0_166] : memref<9x128x128xbf16, #tpu.memory_space<vmem>>, vector<1x128x128xbf16>
    %320 = vector.shape_cast %319 : vector<1x128x128xbf16> to vector<128x128xbf16>
    %cst_167 = arith.constant dense<0.000000e+00> : vector<16x128xf32>
    %321 = tpu.matmul %318, %320, %cst_167 {dimension_numbers = #tpu.dot_dimension_numbers<[1], [0], [0], [1], [0, 0, 1, 1], [], []>} : vector<16x128xbf16>, vector<128x128xbf16>, vector<16x128xf32> -> vector<16x128xf32>
    %322 = arith.addf %317, %321 : vector<16x128xf32>
    %323 = arith.truncf %313 : vector<16x128xf32> to vector<16x128xbf16>
    %c5_168 = arith.constant 5 : index
    %c0_169 = arith.constant 0 : index
    %c0_170 = arith.constant 0 : index
    %324 = vector.load %arg18[%c5_168, %c0_169, %c0_170] : memref<9x128x128xbf16, #tpu.memory_space<vmem>>, vector<1x128x128xbf16>
    %325 = vector.shape_cast %324 : vector<1x128x128xbf16> to vector<128x128xbf16>
    %cst_171 = arith.constant dense<0.000000e+00> : vector<16x128xf32>
    %326 = tpu.matmul %323, %325, %cst_171 {dimension_numbers = #tpu.dot_dimension_numbers<[1], [0], [0], [1], [0, 0, 1, 1], [], []>} : vector<16x128xbf16>, vector<128x128xbf16>, vector<16x128xf32> -> vector<16x128xf32>
    %327 = arith.addf %322, %326 : vector<16x128xf32>
    %328 = arith.addf %308, %327 : vector<16x128xf32>
    %cst_172 = arith.constant dense<0.000000e+00> : vector<128xf32>
    %329 = vector.multi_reduction <add>, %328, %cst_172 [0] : vector<16x128xf32> to vector<128xf32>
    %330 = vector.shape_cast %329 : vector<128xf32> to vector<1x128xf32>
    %cst_173 = arith.constant dense<0.000000e+00> : vector<1x128xf32>
    %331 = tpu.matmul %330, %279, %cst_173 {dimension_numbers = #tpu.dot_dimension_numbers<[1], [0], [0], [1], [0, 0, 1, 1], [], []>} : vector<1x128xf32>, vector<128x128xf32>, vector<1x128xf32> -> vector<1x128xf32>
    %332 = vector.broadcast %331 : vector<1x128xf32> to vector<16x128xf32>
    %333 = arith.subf %328, %332 : vector<16x128xf32>
    %334 = arith.mulf %333, %333 : vector<16x128xf32>
    %cst_174 = arith.constant dense<0.000000e+00> : vector<128xf32>
    %335 = vector.multi_reduction <add>, %334, %cst_174 [0] : vector<16x128xf32> to vector<128xf32>
    %336 = vector.shape_cast %335 : vector<128xf32> to vector<1x128xf32>
    %cst_175 = arith.constant dense<0.000000e+00> : vector<1x128xf32>
    %337 = tpu.matmul %336, %279, %cst_175 {dimension_numbers = #tpu.dot_dimension_numbers<[1], [0], [0], [1], [0, 0, 1, 1], [], []>} : vector<1x128xf32>, vector<128x128xf32>, vector<1x128xf32> -> vector<1x128xf32>
    %cst_176 = arith.constant 9.99999974E-6 : f32
    %338 = vector.broadcast %cst_176 : f32 to vector<1x128xf32>
    %339 = arith.addf %337, %338 : vector<1x128xf32>
    %340 = math.rsqrt %339 : vector<1x128xf32>
    %341 = vector.broadcast %340 : vector<1x128xf32> to vector<16x128xf32>
    %342 = arith.mulf %333, %341 : vector<16x128xf32>
    %343 = vector.broadcast %274 : vector<1x128xf32> to vector<16x128xf32>
    %344 = arith.mulf %342, %343 : vector<16x128xf32>
    %345 = vector.broadcast %275 : vector<1x128xf32> to vector<16x128xf32>
    %346 = arith.addf %344, %345 : vector<16x128xf32>
    %cst_177 = arith.constant 0.000000e+00 : f32
    %347 = vector.broadcast %cst_177 : f32 to vector<16x128xf32>
    %348 = arith.cmpf ogt, %346, %347 : vector<16x128xf32>
    %349 = math.exp %346 : vector<16x128xf32>
    %cst_178 = arith.constant 1.000000e+00 : f32
    %350 = vector.broadcast %cst_178 : f32 to vector<16x128xf32>
    %351 = arith.subf %349, %350 : vector<16x128xf32>
    %cst_179 = arith.constant 1.67326319 : f32
    %352 = vector.broadcast %cst_179 : f32 to vector<16x128xf32>
    %353 = arith.mulf %352, %351 : vector<16x128xf32>
    %354 = arith.select %348, %346, %353 : vector<16x128xi1>, vector<16x128xf32>
    %cst_180 = arith.constant 1.05070102 : f32
    %355 = vector.broadcast %cst_180 : f32 to vector<16x128xf32>
    %356 = arith.mulf %355, %354 : vector<16x128xf32>
    %cst_181 = arith.constant 0.000000e+00 : f32
    %357 = vector.broadcast %cst_181 : f32 to vector<1x128xf32>
    %358 = vector.extract_strided_slice %356 {offsets = [0, 0], sizes = [15, 128], strides = [1, 1]} : vector<16x128xf32> to vector<15x128xf32>
    %359 = tpu.concatenate %357, %358 in 0 : vector<1x128xf32>, vector<15x128xf32> -> vector<16x128xf32>
    %360 = vector.extract_strided_slice %356 {offsets = [1, 0], sizes = [15, 128], strides = [1, 1]} : vector<16x128xf32> to vector<15x128xf32>
    %361 = tpu.concatenate %360, %357 in 0 : vector<15x128xf32>, vector<1x128xf32> -> vector<16x128xf32>
    %362 = arith.truncf %359 : vector<16x128xf32> to vector<16x128xbf16>
    %c6_182 = arith.constant 6 : index
    %c0_183 = arith.constant 0 : index
    %c0_184 = arith.constant 0 : index
    %363 = vector.load %arg18[%c6_182, %c0_183, %c0_184] : memref<9x128x128xbf16, #tpu.memory_space<vmem>>, vector<1x128x128xbf16>
    %364 = vector.shape_cast %363 : vector<1x128x128xbf16> to vector<128x128xbf16>
    %cst_185 = arith.constant dense<0.000000e+00> : vector<16x128xf32>
    %365 = tpu.matmul %362, %364, %cst_185 {dimension_numbers = #tpu.dot_dimension_numbers<[1], [0], [0], [1], [0, 0, 1, 1], [], []>} : vector<16x128xbf16>, vector<128x128xbf16>, vector<16x128xf32> -> vector<16x128xf32>
    %366 = arith.truncf %356 : vector<16x128xf32> to vector<16x128xbf16>
    %c7_186 = arith.constant 7 : index
    %c0_187 = arith.constant 0 : index
    %c0_188 = arith.constant 0 : index
    %367 = vector.load %arg18[%c7_186, %c0_187, %c0_188] : memref<9x128x128xbf16, #tpu.memory_space<vmem>>, vector<1x128x128xbf16>
    %368 = vector.shape_cast %367 : vector<1x128x128xbf16> to vector<128x128xbf16>
    %cst_189 = arith.constant dense<0.000000e+00> : vector<16x128xf32>
    %369 = tpu.matmul %366, %368, %cst_189 {dimension_numbers = #tpu.dot_dimension_numbers<[1], [0], [0], [1], [0, 0, 1, 1], [], []>} : vector<16x128xbf16>, vector<128x128xbf16>, vector<16x128xf32> -> vector<16x128xf32>
    %370 = arith.addf %365, %369 : vector<16x128xf32>
    %371 = arith.truncf %361 : vector<16x128xf32> to vector<16x128xbf16>
    %c8_190 = arith.constant 8 : index
    %c0_191 = arith.constant 0 : index
    %c0_192 = arith.constant 0 : index
    %372 = vector.load %arg18[%c8_190, %c0_191, %c0_192] : memref<9x128x128xbf16, #tpu.memory_space<vmem>>, vector<1x128x128xbf16>
    %373 = vector.shape_cast %372 : vector<1x128x128xbf16> to vector<128x128xbf16>
    %cst_193 = arith.constant dense<0.000000e+00> : vector<16x128xf32>
    %374 = tpu.matmul %371, %373, %cst_193 {dimension_numbers = #tpu.dot_dimension_numbers<[1], [0], [0], [1], [0, 0, 1, 1], [], []>} : vector<16x128xbf16>, vector<128x128xbf16>, vector<16x128xf32> -> vector<16x128xf32>
    %375 = arith.addf %370, %374 : vector<16x128xf32>
    %cst_194 = arith.constant dense<0.000000e+00> : vector<128xf32>
    %376 = vector.multi_reduction <add>, %375, %cst_194 [0] : vector<16x128xf32> to vector<128xf32>
    %377 = vector.shape_cast %376 : vector<128xf32> to vector<1x128xf32>
    %cst_195 = arith.constant dense<0.000000e+00> : vector<1x128xf32>
    %378 = tpu.matmul %377, %279, %cst_195 {dimension_numbers = #tpu.dot_dimension_numbers<[1], [0], [0], [1], [0, 0, 1, 1], [], []>} : vector<1x128xf32>, vector<128x128xf32>, vector<1x128xf32> -> vector<1x128xf32>
    %379 = vector.broadcast %378 : vector<1x128xf32> to vector<16x128xf32>
    %380 = arith.subf %375, %379 : vector<16x128xf32>
    %381 = arith.mulf %380, %380 : vector<16x128xf32>
    %cst_196 = arith.constant dense<0.000000e+00> : vector<128xf32>
    %382 = vector.multi_reduction <add>, %381, %cst_196 [0] : vector<16x128xf32> to vector<128xf32>
    %383 = vector.shape_cast %382 : vector<128xf32> to vector<1x128xf32>
    %cst_197 = arith.constant dense<0.000000e+00> : vector<1x128xf32>
    %384 = tpu.matmul %383, %279, %cst_197 {dimension_numbers = #tpu.dot_dimension_numbers<[1], [0], [0], [1], [0, 0, 1, 1], [], []>} : vector<1x128xf32>, vector<128x128xf32>, vector<1x128xf32> -> vector<1x128xf32>
    %cst_198 = arith.constant 9.99999974E-6 : f32
    %385 = vector.broadcast %cst_198 : f32 to vector<1x128xf32>
    %386 = arith.addf %384, %385 : vector<1x128xf32>
    %387 = math.rsqrt %386 : vector<1x128xf32>
    %388 = vector.broadcast %387 : vector<1x128xf32> to vector<16x128xf32>
    %389 = arith.mulf %380, %388 : vector<16x128xf32>
    %390 = vector.broadcast %276 : vector<1x128xf32> to vector<16x128xf32>
    %391 = arith.mulf %389, %390 : vector<16x128xf32>
    %392 = vector.broadcast %277 : vector<1x128xf32> to vector<16x128xf32>
    %393 = arith.addf %391, %392 : vector<16x128xf32>
    %cst_199 = arith.constant 0.000000e+00 : f32
    %394 = vector.broadcast %cst_199 : f32 to vector<16x128xf32>
    %395 = arith.cmpf ogt, %393, %394 : vector<16x128xf32>
    %396 = math.exp %393 : vector<16x128xf32>
    %cst_200 = arith.constant 1.000000e+00 : f32
    %397 = vector.broadcast %cst_200 : f32 to vector<16x128xf32>
    %398 = arith.subf %396, %397 : vector<16x128xf32>
    %cst_201 = arith.constant 1.67326319 : f32
    %399 = vector.broadcast %cst_201 : f32 to vector<16x128xf32>
    %400 = arith.mulf %399, %398 : vector<16x128xf32>
    %401 = arith.select %395, %393, %400 : vector<16x128xi1>, vector<16x128xf32>
    %cst_202 = arith.constant 1.05070102 : f32
    %402 = vector.broadcast %cst_202 : f32 to vector<16x128xf32>
    %403 = arith.mulf %402, %401 : vector<16x128xf32>
    %c0_203 = arith.constant 0 : index
    %c0_204 = arith.constant 0 : index
    %c0_205 = arith.constant 0 : index
    %404 = vector.load %arg5[%c0_203, %c0_204, %c0_205] : memref<1x32x128xf32, #tpu.memory_space<vmem>>, vector<1x32x128xf32>
    %405 = vector.shape_cast %404 : vector<1x32x128xf32> to vector<32x128xf32>
    %c0_206 = arith.constant 0 : index
    %c0_207 = arith.constant 0 : index
    %406 = vector.load %arg25[%c0_206, %c0_207] : memref<8x128xf32, #tpu.memory_space<vmem>>, vector<8x128xf32>
    %407 = vector.extract_strided_slice %406 {offsets = [0, 0], sizes = [1, 128], strides = [1, 1]} : vector<8x128xf32> to vector<1x128xf32>
    %408 = vector.extract_strided_slice %406 {offsets = [1, 0], sizes = [1, 128], strides = [1, 1]} : vector<8x128xf32> to vector<1x128xf32>
    %409 = vector.extract_strided_slice %406 {offsets = [2, 0], sizes = [1, 128], strides = [1, 1]} : vector<8x128xf32> to vector<1x128xf32>
    %410 = vector.extract_strided_slice %406 {offsets = [3, 0], sizes = [1, 128], strides = [1, 1]} : vector<8x128xf32> to vector<1x128xf32>
    %411 = vector.extract_strided_slice %406 {offsets = [4, 0], sizes = [1, 128], strides = [1, 1]} : vector<8x128xf32> to vector<1x128xf32>
    %c0_208 = arith.constant 0 : index
    %c0_209 = arith.constant 0 : index
    %412 = vector.load %arg24[%c0_208, %c0_209] : memref<128x128xbf16, #tpu.memory_space<vmem>>, vector<128x128xbf16>
    %413 = arith.extf %412 : vector<128x128xbf16> to vector<128x128xf32>
    %414 = arith.truncf %403 : vector<16x128xf32> to vector<16x128xbf16>
    %c0_210 = arith.constant 0 : index
    %c0_211 = arith.constant 0 : index
    %415 = vector.load %arg21[%c0_210, %c0_211] : memref<128x256xbf16, #tpu.memory_space<vmem>>, vector<128x256xbf16>
    %cst_212 = arith.constant dense<0.000000e+00> : vector<16x256xf32>
    %416 = tpu.matmul %414, %415, %cst_212 {dimension_numbers = #tpu.dot_dimension_numbers<[1], [0], [0], [1], [0, 0, 1, 1], [], []>} : vector<16x128xbf16>, vector<128x256xbf16>, vector<16x256xf32> -> vector<16x256xf32>
    %417 = vector.extract_strided_slice %416 {offsets = [0, 0], sizes = [16, 128], strides = [1, 1]} : vector<16x256xf32> to vector<16x128xf32>
    %418 = vector.extract_strided_slice %416 {offsets = [0, 128], sizes = [16, 128], strides = [1, 1]} : vector<16x256xf32> to vector<16x128xf32>
    %419 = tpu.concatenate %417, %418 in 0 : vector<16x128xf32>, vector<16x128xf32> -> vector<32x128xf32>
    %c0_213 = arith.constant 0 : index
    %c0_214 = arith.constant 0 : index
    %420 = vector.load %arg22[%c0_213, %c0_214] : memref<32x32xf32, #tpu.memory_space<vmem>>, vector<32x32xf32>
    %cst_215 = arith.constant dense<0.000000e+00> : vector<32x128xf32>
    %421 = tpu.matmul %420, %419, %cst_215 {dimension_numbers = #tpu.dot_dimension_numbers<[1], [0], [0], [1], [0, 0, 1, 1], [], []>} : vector<32x32xf32>, vector<32x128xf32>, vector<32x128xf32> -> vector<32x128xf32>
    %422 = vector.broadcast %407 : vector<1x128xf32> to vector<32x128xf32>
    %423 = arith.addf %421, %422 : vector<32x128xf32>
    %cst_216 = arith.constant 0.000000e+00 : f32
    %424 = vector.broadcast %cst_216 : f32 to vector<1x128xf32>
    %425 = vector.extract_strided_slice %423 {offsets = [0, 0], sizes = [31, 128], strides = [1, 1]} : vector<32x128xf32> to vector<31x128xf32>
    %426 = tpu.concatenate %424, %425 in 0 : vector<1x128xf32>, vector<31x128xf32> -> vector<32x128xf32>
    %427 = vector.extract_strided_slice %423 {offsets = [1, 0], sizes = [31, 128], strides = [1, 1]} : vector<32x128xf32> to vector<31x128xf32>
    %428 = tpu.concatenate %427, %424 in 0 : vector<31x128xf32>, vector<1x128xf32> -> vector<32x128xf32>
    %429 = arith.truncf %426 : vector<32x128xf32> to vector<32x128xbf16>
    %c0_217 = arith.constant 0 : index
    %c0_218 = arith.constant 0 : index
    %c0_219 = arith.constant 0 : index
    %430 = vector.load %arg23[%c0_217, %c0_218, %c0_219] : memref<9x128x128xbf16, #tpu.memory_space<vmem>>, vector<1x128x128xbf16>
    %431 = vector.shape_cast %430 : vector<1x128x128xbf16> to vector<128x128xbf16>
    %cst_220 = arith.constant dense<0.000000e+00> : vector<32x128xf32>
    %432 = tpu.matmul %429, %431, %cst_220 {dimension_numbers = #tpu.dot_dimension_numbers<[1], [0], [0], [1], [0, 0, 1, 1], [], []>} : vector<32x128xbf16>, vector<128x128xbf16>, vector<32x128xf32> -> vector<32x128xf32>
    %433 = arith.truncf %423 : vector<32x128xf32> to vector<32x128xbf16>
    %c1_221 = arith.constant 1 : index
    %c0_222 = arith.constant 0 : index
    %c0_223 = arith.constant 0 : index
    %434 = vector.load %arg23[%c1_221, %c0_222, %c0_223] : memref<9x128x128xbf16, #tpu.memory_space<vmem>>, vector<1x128x128xbf16>
    %435 = vector.shape_cast %434 : vector<1x128x128xbf16> to vector<128x128xbf16>
    %cst_224 = arith.constant dense<0.000000e+00> : vector<32x128xf32>
    %436 = tpu.matmul %433, %435, %cst_224 {dimension_numbers = #tpu.dot_dimension_numbers<[1], [0], [0], [1], [0, 0, 1, 1], [], []>} : vector<32x128xbf16>, vector<128x128xbf16>, vector<32x128xf32> -> vector<32x128xf32>
    %437 = arith.addf %432, %436 : vector<32x128xf32>
    %438 = arith.truncf %428 : vector<32x128xf32> to vector<32x128xbf16>
    %c2_225 = arith.constant 2 : index
    %c0_226 = arith.constant 0 : index
    %c0_227 = arith.constant 0 : index
    %439 = vector.load %arg23[%c2_225, %c0_226, %c0_227] : memref<9x128x128xbf16, #tpu.memory_space<vmem>>, vector<1x128x128xbf16>
    %440 = vector.shape_cast %439 : vector<1x128x128xbf16> to vector<128x128xbf16>
    %cst_228 = arith.constant dense<0.000000e+00> : vector<32x128xf32>
    %441 = tpu.matmul %438, %440, %cst_228 {dimension_numbers = #tpu.dot_dimension_numbers<[1], [0], [0], [1], [0, 0, 1, 1], [], []>} : vector<32x128xbf16>, vector<128x128xbf16>, vector<32x128xf32> -> vector<32x128xf32>
    %442 = arith.addf %437, %441 : vector<32x128xf32>
    %cst_229 = arith.constant 0.000000e+00 : f32
    %443 = vector.broadcast %cst_229 : f32 to vector<1x128xf32>
    %444 = vector.extract_strided_slice %405 {offsets = [0, 0], sizes = [31, 128], strides = [1, 1]} : vector<32x128xf32> to vector<31x128xf32>
    %445 = tpu.concatenate %443, %444 in 0 : vector<1x128xf32>, vector<31x128xf32> -> vector<32x128xf32>
    %446 = vector.extract_strided_slice %405 {offsets = [1, 0], sizes = [31, 128], strides = [1, 1]} : vector<32x128xf32> to vector<31x128xf32>
    %447 = tpu.concatenate %446, %443 in 0 : vector<31x128xf32>, vector<1x128xf32> -> vector<32x128xf32>
    %448 = arith.truncf %445 : vector<32x128xf32> to vector<32x128xbf16>
    %c3_230 = arith.constant 3 : index
    %c0_231 = arith.constant 0 : index
    %c0_232 = arith.constant 0 : index
    %449 = vector.load %arg23[%c3_230, %c0_231, %c0_232] : memref<9x128x128xbf16, #tpu.memory_space<vmem>>, vector<1x128x128xbf16>
    %450 = vector.shape_cast %449 : vector<1x128x128xbf16> to vector<128x128xbf16>
    %cst_233 = arith.constant dense<0.000000e+00> : vector<32x128xf32>
    %451 = tpu.matmul %448, %450, %cst_233 {dimension_numbers = #tpu.dot_dimension_numbers<[1], [0], [0], [1], [0, 0, 1, 1], [], []>} : vector<32x128xbf16>, vector<128x128xbf16>, vector<32x128xf32> -> vector<32x128xf32>
    %452 = arith.truncf %405 : vector<32x128xf32> to vector<32x128xbf16>
    %c4_234 = arith.constant 4 : index
    %c0_235 = arith.constant 0 : index
    %c0_236 = arith.constant 0 : index
    %453 = vector.load %arg23[%c4_234, %c0_235, %c0_236] : memref<9x128x128xbf16, #tpu.memory_space<vmem>>, vector<1x128x128xbf16>
    %454 = vector.shape_cast %453 : vector<1x128x128xbf16> to vector<128x128xbf16>
    %cst_237 = arith.constant dense<0.000000e+00> : vector<32x128xf32>
    %455 = tpu.matmul %452, %454, %cst_237 {dimension_numbers = #tpu.dot_dimension_numbers<[1], [0], [0], [1], [0, 0, 1, 1], [], []>} : vector<32x128xbf16>, vector<128x128xbf16>, vector<32x128xf32> -> vector<32x128xf32>
    %456 = arith.addf %451, %455 : vector<32x128xf32>
    %457 = arith.truncf %447 : vector<32x128xf32> to vector<32x128xbf16>
    %c5_238 = arith.constant 5 : index
    %c0_239 = arith.constant 0 : index
    %c0_240 = arith.constant 0 : index
    %458 = vector.load %arg23[%c5_238, %c0_239, %c0_240] : memref<9x128x128xbf16, #tpu.memory_space<vmem>>, vector<1x128x128xbf16>
    %459 = vector.shape_cast %458 : vector<1x128x128xbf16> to vector<128x128xbf16>
    %cst_241 = arith.constant dense<0.000000e+00> : vector<32x128xf32>
    %460 = tpu.matmul %457, %459, %cst_241 {dimension_numbers = #tpu.dot_dimension_numbers<[1], [0], [0], [1], [0, 0, 1, 1], [], []>} : vector<32x128xbf16>, vector<128x128xbf16>, vector<32x128xf32> -> vector<32x128xf32>
    %461 = arith.addf %456, %460 : vector<32x128xf32>
    %462 = arith.addf %442, %461 : vector<32x128xf32>
    %cst_242 = arith.constant dense<0.000000e+00> : vector<128xf32>
    %463 = vector.multi_reduction <add>, %462, %cst_242 [0] : vector<32x128xf32> to vector<128xf32>
    %464 = vector.shape_cast %463 : vector<128xf32> to vector<1x128xf32>
    %cst_243 = arith.constant dense<0.000000e+00> : vector<1x128xf32>
    %465 = tpu.matmul %464, %413, %cst_243 {dimension_numbers = #tpu.dot_dimension_numbers<[1], [0], [0], [1], [0, 0, 1, 1], [], []>} : vector<1x128xf32>, vector<128x128xf32>, vector<1x128xf32> -> vector<1x128xf32>
    %466 = vector.broadcast %465 : vector<1x128xf32> to vector<32x128xf32>
    %467 = arith.subf %462, %466 : vector<32x128xf32>
    %468 = arith.mulf %467, %467 : vector<32x128xf32>
    %cst_244 = arith.constant dense<0.000000e+00> : vector<128xf32>
    %469 = vector.multi_reduction <add>, %468, %cst_244 [0] : vector<32x128xf32> to vector<128xf32>
    %470 = vector.shape_cast %469 : vector<128xf32> to vector<1x128xf32>
    %cst_245 = arith.constant dense<0.000000e+00> : vector<1x128xf32>
    %471 = tpu.matmul %470, %413, %cst_245 {dimension_numbers = #tpu.dot_dimension_numbers<[1], [0], [0], [1], [0, 0, 1, 1], [], []>} : vector<1x128xf32>, vector<128x128xf32>, vector<1x128xf32> -> vector<1x128xf32>
    %cst_246 = arith.constant 9.99999974E-6 : f32
    %472 = vector.broadcast %cst_246 : f32 to vector<1x128xf32>
    %473 = arith.addf %471, %472 : vector<1x128xf32>
    %474 = math.rsqrt %473 : vector<1x128xf32>
    %475 = vector.broadcast %474 : vector<1x128xf32> to vector<32x128xf32>
    %476 = arith.mulf %467, %475 : vector<32x128xf32>
    %477 = vector.broadcast %408 : vector<1x128xf32> to vector<32x128xf32>
    %478 = arith.mulf %476, %477 : vector<32x128xf32>
    %479 = vector.broadcast %409 : vector<1x128xf32> to vector<32x128xf32>
    %480 = arith.addf %478, %479 : vector<32x128xf32>
    %cst_247 = arith.constant 0.000000e+00 : f32
    %481 = vector.broadcast %cst_247 : f32 to vector<32x128xf32>
    %482 = arith.cmpf ogt, %480, %481 : vector<32x128xf32>
    %483 = math.exp %480 : vector<32x128xf32>
    %cst_248 = arith.constant 1.000000e+00 : f32
    %484 = vector.broadcast %cst_248 : f32 to vector<32x128xf32>
    %485 = arith.subf %483, %484 : vector<32x128xf32>
    %cst_249 = arith.constant 1.67326319 : f32
    %486 = vector.broadcast %cst_249 : f32 to vector<32x128xf32>
    %487 = arith.mulf %486, %485 : vector<32x128xf32>
    %488 = arith.select %482, %480, %487 : vector<32x128xi1>, vector<32x128xf32>
    %cst_250 = arith.constant 1.05070102 : f32
    %489 = vector.broadcast %cst_250 : f32 to vector<32x128xf32>
    %490 = arith.mulf %489, %488 : vector<32x128xf32>
    %cst_251 = arith.constant 0.000000e+00 : f32
    %491 = vector.broadcast %cst_251 : f32 to vector<1x128xf32>
    %492 = vector.extract_strided_slice %490 {offsets = [0, 0], sizes = [31, 128], strides = [1, 1]} : vector<32x128xf32> to vector<31x128xf32>
    %493 = tpu.concatenate %491, %492 in 0 : vector<1x128xf32>, vector<31x128xf32> -> vector<32x128xf32>
    %494 = vector.extract_strided_slice %490 {offsets = [1, 0], sizes = [31, 128], strides = [1, 1]} : vector<32x128xf32> to vector<31x128xf32>
    %495 = tpu.concatenate %494, %491 in 0 : vector<31x128xf32>, vector<1x128xf32> -> vector<32x128xf32>
    %496 = arith.truncf %493 : vector<32x128xf32> to vector<32x128xbf16>
    %c6_252 = arith.constant 6 : index
    %c0_253 = arith.constant 0 : index
    %c0_254 = arith.constant 0 : index
    %497 = vector.load %arg23[%c6_252, %c0_253, %c0_254] : memref<9x128x128xbf16, #tpu.memory_space<vmem>>, vector<1x128x128xbf16>
    %498 = vector.shape_cast %497 : vector<1x128x128xbf16> to vector<128x128xbf16>
    %cst_255 = arith.constant dense<0.000000e+00> : vector<32x128xf32>
    %499 = tpu.matmul %496, %498, %cst_255 {dimension_numbers = #tpu.dot_dimension_numbers<[1], [0], [0], [1], [0, 0, 1, 1], [], []>} : vector<32x128xbf16>, vector<128x128xbf16>, vector<32x128xf32> -> vector<32x128xf32>
    %500 = arith.truncf %490 : vector<32x128xf32> to vector<32x128xbf16>
    %c7_256 = arith.constant 7 : index
    %c0_257 = arith.constant 0 : index
    %c0_258 = arith.constant 0 : index
    %501 = vector.load %arg23[%c7_256, %c0_257, %c0_258] : memref<9x128x128xbf16, #tpu.memory_space<vmem>>, vector<1x128x128xbf16>
    %502 = vector.shape_cast %501 : vector<1x128x128xbf16> to vector<128x128xbf16>
    %cst_259 = arith.constant dense<0.000000e+00> : vector<32x128xf32>
    %503 = tpu.matmul %500, %502, %cst_259 {dimension_numbers = #tpu.dot_dimension_numbers<[1], [0], [0], [1], [0, 0, 1, 1], [], []>} : vector<32x128xbf16>, vector<128x128xbf16>, vector<32x128xf32> -> vector<32x128xf32>
    %504 = arith.addf %499, %503 : vector<32x128xf32>
    %505 = arith.truncf %495 : vector<32x128xf32> to vector<32x128xbf16>
    %c8_260 = arith.constant 8 : index
    %c0_261 = arith.constant 0 : index
    %c0_262 = arith.constant 0 : index
    %506 = vector.load %arg23[%c8_260, %c0_261, %c0_262] : memref<9x128x128xbf16, #tpu.memory_space<vmem>>, vector<1x128x128xbf16>
    %507 = vector.shape_cast %506 : vector<1x128x128xbf16> to vector<128x128xbf16>
    %cst_263 = arith.constant dense<0.000000e+00> : vector<32x128xf32>
    %508 = tpu.matmul %505, %507, %cst_263 {dimension_numbers = #tpu.dot_dimension_numbers<[1], [0], [0], [1], [0, 0, 1, 1], [], []>} : vector<32x128xbf16>, vector<128x128xbf16>, vector<32x128xf32> -> vector<32x128xf32>
    %509 = arith.addf %504, %508 : vector<32x128xf32>
    %cst_264 = arith.constant dense<0.000000e+00> : vector<128xf32>
    %510 = vector.multi_reduction <add>, %509, %cst_264 [0] : vector<32x128xf32> to vector<128xf32>
    %511 = vector.shape_cast %510 : vector<128xf32> to vector<1x128xf32>
    %cst_265 = arith.constant dense<0.000000e+00> : vector<1x128xf32>
    %512 = tpu.matmul %511, %413, %cst_265 {dimension_numbers = #tpu.dot_dimension_numbers<[1], [0], [0], [1], [0, 0, 1, 1], [], []>} : vector<1x128xf32>, vector<128x128xf32>, vector<1x128xf32> -> vector<1x128xf32>
    %513 = vector.broadcast %512 : vector<1x128xf32> to vector<32x128xf32>
    %514 = arith.subf %509, %513 : vector<32x128xf32>
    %515 = arith.mulf %514, %514 : vector<32x128xf32>
    %cst_266 = arith.constant dense<0.000000e+00> : vector<128xf32>
    %516 = vector.multi_reduction <add>, %515, %cst_266 [0] : vector<32x128xf32> to vector<128xf32>
    %517 = vector.shape_cast %516 : vector<128xf32> to vector<1x128xf32>
    %cst_267 = arith.constant dense<0.000000e+00> : vector<1x128xf32>
    %518 = tpu.matmul %517, %413, %cst_267 {dimension_numbers = #tpu.dot_dimension_numbers<[1], [0], [0], [1], [0, 0, 1, 1], [], []>} : vector<1x128xf32>, vector<128x128xf32>, vector<1x128xf32> -> vector<1x128xf32>
    %cst_268 = arith.constant 9.99999974E-6 : f32
    %519 = vector.broadcast %cst_268 : f32 to vector<1x128xf32>
    %520 = arith.addf %518, %519 : vector<1x128xf32>
    %521 = math.rsqrt %520 : vector<1x128xf32>
    %522 = vector.broadcast %521 : vector<1x128xf32> to vector<32x128xf32>
    %523 = arith.mulf %514, %522 : vector<32x128xf32>
    %524 = vector.broadcast %410 : vector<1x128xf32> to vector<32x128xf32>
    %525 = arith.mulf %523, %524 : vector<32x128xf32>
    %526 = vector.broadcast %411 : vector<1x128xf32> to vector<32x128xf32>
    %527 = arith.addf %525, %526 : vector<32x128xf32>
    %cst_269 = arith.constant 0.000000e+00 : f32
    %528 = vector.broadcast %cst_269 : f32 to vector<32x128xf32>
    %529 = arith.cmpf ogt, %527, %528 : vector<32x128xf32>
    %530 = math.exp %527 : vector<32x128xf32>
    %cst_270 = arith.constant 1.000000e+00 : f32
    %531 = vector.broadcast %cst_270 : f32 to vector<32x128xf32>
    %532 = arith.subf %530, %531 : vector<32x128xf32>
    %cst_271 = arith.constant 1.67326319 : f32
    %533 = vector.broadcast %cst_271 : f32 to vector<32x128xf32>
    %534 = arith.mulf %533, %532 : vector<32x128xf32>
    %535 = arith.select %529, %527, %534 : vector<32x128xi1>, vector<32x128xf32>
    %cst_272 = arith.constant 1.05070102 : f32
    %536 = vector.broadcast %cst_272 : f32 to vector<32x128xf32>
    %537 = arith.mulf %536, %535 : vector<32x128xf32>
    %538 = arith.truncf %537 : vector<32x128xf32> to vector<32x128xbf16>
    %c0_273 = arith.constant 0 : index
    %c0_274 = arith.constant 0 : index
    %539 = vector.load %arg26[%c0_273, %c0_274] : memref<128x128xbf16, #tpu.memory_space<vmem>>, vector<128x128xbf16>
    %cst_275 = arith.constant dense<0.000000e+00> : vector<32x128xf32>
    %540 = tpu.matmul %538, %539, %cst_275 {dimension_numbers = #tpu.dot_dimension_numbers<[1], [0], [0], [1], [0, 0, 1, 1], [], []>} : vector<32x128xbf16>, vector<128x128xbf16>, vector<32x128xf32> -> vector<32x128xf32>
    %c0_276 = arith.constant 0 : index
    %c0_277 = arith.constant 0 : index
    %541 = vector.load %arg27[%c0_276, %c0_277] : memref<1x128xf32, #tpu.memory_space<vmem>>, vector<1x128xf32>
    %542 = vector.broadcast %541 : vector<1x128xf32> to vector<32x128xf32>
    %543 = arith.addf %540, %542 : vector<32x128xf32>
    %c0_278 = arith.constant 0 : index
    %c0_279 = arith.constant 0 : index
    %c0_280 = arith.constant 0 : index
    %544 = vector.load %arg28[%c0_278, %c0_279, %c0_280] : memref<1x32x128xf32, #tpu.memory_space<vmem>>, vector<1x32x128xf32>
    %545 = vector.shape_cast %544 : vector<1x32x128xf32> to vector<32x128xf32>
    %546 = vector.shape_cast %543 : vector<32x128xf32> to vector<1x32x128xf32>
    tpu.vector_store %arg28[%c0_278, %c0_279, %c0_280], %546 {strides = array<i32>} : memref<1x32x128xf32, #tpu.memory_space<vmem>>, vector<1x32x128xf32>,
    return
  }
  func.func @transform_0(%arg0: i32) -> (i32, i32, i32) {
    %c0_i32 = arith.constant 0 : i32
    %c0_i32_0 = arith.constant 0 : i32
    %c0_i32_1 = arith.constant 0 : i32
    return %arg0, %c0_i32, %c0_i32_0 : i32, i32, i32
  }
  func.func @transform_1(%arg0: i32) -> (i32, i32, i32) {
    %c0_i32 = arith.constant 0 : i32
    %c0_i32_0 = arith.constant 0 : i32
    %c0_i32_1 = arith.constant 0 : i32
    return %arg0, %c0_i32, %c0_i32_0 : i32, i32, i32
  }
  func.func @transform_2(%arg0: i32) -> (i32, i32, i32) {
    %c0_i32 = arith.constant 0 : i32
    %c0_i32_0 = arith.constant 0 : i32
    %c0_i32_1 = arith.constant 0 : i32
    return %arg0, %c0_i32, %c0_i32_0 : i32, i32, i32
  }
  func.func @transform_3(%arg0: i32) -> (i32, i32, i32) {
    %c0_i32 = arith.constant 0 : i32
    %c0_i32_0 = arith.constant 0 : i32
    %c0_i32_1 = arith.constant 0 : i32
    return %arg0, %c0_i32, %c0_i32_0 : i32, i32, i32
  }
  func.func @transform_4(%arg0: i32) -> (i32, i32, i32) {
    %c0_i32 = arith.constant 0 : i32
    %c0_i32_0 = arith.constant 0 : i32
    %c0_i32_1 = arith.constant 0 : i32
    return %arg0, %c0_i32, %c0_i32_0 : i32, i32, i32
  }
  func.func @transform_5(%arg0: i32) -> (i32, i32) {
    %c0_i32 = arith.constant 0 : i32
    %c0_i32_0 = arith.constant 0 : i32
    %c0_i32_1 = arith.constant 0 : i32
    return %c0_i32, %c0_i32_0 : i32, i32
  }
  func.func @transform_6(%arg0: i32) -> (i32, i32) {
    %c0_i32 = arith.constant 0 : i32
    %c0_i32_0 = arith.constant 0 : i32
    %c0_i32_1 = arith.constant 0 : i32
    return %c0_i32, %c0_i32_0 : i32, i32
  }
  func.func @transform_7(%arg0: i32) -> (i32, i32, i32) {
    %c0_i32 = arith.constant 0 : i32
    %c0_i32_0 = arith.constant 0 : i32
    %c0_i32_1 = arith.constant 0 : i32
    %c0_i32_2 = arith.constant 0 : i32
    return %c0_i32, %c0_i32_0, %c0_i32_1 : i32, i32, i32
  }
  func.func @transform_8(%arg0: i32) -> (i32, i32) {
    %c0_i32 = arith.constant 0 : i32
    %c0_i32_0 = arith.constant 0 : i32
    %c0_i32_1 = arith.constant 0 : i32
    return %c0_i32, %c0_i32_0 : i32, i32
  }
  func.func @transform_9(%arg0: i32) -> (i32, i32) {
    %c0_i32 = arith.constant 0 : i32
    %c0_i32_0 = arith.constant 0 : i32
    %c0_i32_1 = arith.constant 0 : i32
    return %c0_i32, %c0_i32_0 : i32, i32
  }
  func.func @transform_10(%arg0: i32) -> (i32, i32) {
    %c0_i32 = arith.constant 0 : i32
    %c0_i32_0 = arith.constant 0 : i32
    %c0_i32_1 = arith.constant 0 : i32
    return %c0_i32, %c0_i32_0 : i32, i32
  }
  func.func @transform_11(%arg0: i32) -> (i32, i32) {
    %c0_i32 = arith.constant 0 : i32
    %c0_i32_0 = arith.constant 0 : i32
    %c0_i32_1 = arith.constant 0 : i32
    return %c0_i32, %c0_i32_0 : i32, i32
  }
  func.func @transform_12(%arg0: i32) -> (i32, i32, i32) {
    %c0_i32 = arith.constant 0 : i32
    %c0_i32_0 = arith.constant 0 : i32
    %c0_i32_1 = arith.constant 0 : i32
    %c0_i32_2 = arith.constant 0 : i32
    return %c0_i32, %c0_i32_0, %c0_i32_1 : i32, i32, i32
  }
  func.func @transform_13(%arg0: i32) -> (i32, i32) {
    %c0_i32 = arith.constant 0 : i32
    %c0_i32_0 = arith.constant 0 : i32
    %c0_i32_1 = arith.constant 0 : i32
    return %c0_i32, %c0_i32_0 : i32, i32
  }
  func.func @transform_14(%arg0: i32) -> (i32, i32) {
    %c0_i32 = arith.constant 0 : i32
    %c0_i32_0 = arith.constant 0 : i32
    %c0_i32_1 = arith.constant 0 : i32
    return %c0_i32, %c0_i32_0 : i32, i32
  }
  func.func @transform_15(%arg0: i32) -> (i32, i32) {
    %c0_i32 = arith.constant 0 : i32
    %c0_i32_0 = arith.constant 0 : i32
    %c0_i32_1 = arith.constant 0 : i32
    return %c0_i32, %c0_i32_0 : i32, i32
  }
  func.func @transform_16(%arg0: i32) -> (i32, i32) {
    %c0_i32 = arith.constant 0 : i32
    %c0_i32_0 = arith.constant 0 : i32
    %c0_i32_1 = arith.constant 0 : i32
    return %c0_i32, %c0_i32_0 : i32, i32
  }
  func.func @transform_17(%arg0: i32) -> (i32, i32, i32) {
    %c0_i32 = arith.constant 0 : i32
    %c0_i32_0 = arith.constant 0 : i32
    %c0_i32_1 = arith.constant 0 : i32
    %c0_i32_2 = arith.constant 0 : i32
    return %c0_i32, %c0_i32_0, %c0_i32_1 : i32, i32, i32
  }
  func.func @transform_18(%arg0: i32) -> (i32, i32) {
    %c0_i32 = arith.constant 0 : i32
    %c0_i32_0 = arith.constant 0 : i32
    %c0_i32_1 = arith.constant 0 : i32
    return %c0_i32, %c0_i32_0 : i32, i32
  }
  func.func @transform_19(%arg0: i32) -> (i32, i32) {
    %c0_i32 = arith.constant 0 : i32
    %c0_i32_0 = arith.constant 0 : i32
    %c0_i32_1 = arith.constant 0 : i32
    return %c0_i32, %c0_i32_0 : i32, i32
  }
  func.func @transform_20(%arg0: i32) -> (i32, i32) {
    %c0_i32 = arith.constant 0 : i32
    %c0_i32_0 = arith.constant 0 : i32
    %c0_i32_1 = arith.constant 0 : i32
    return %c0_i32, %c0_i32_0 : i32, i32
  }
  func.func @transform_21(%arg0: i32) -> (i32, i32) {
    %c0_i32 = arith.constant 0 : i32
    %c0_i32_0 = arith.constant 0 : i32
    %c0_i32_1 = arith.constant 0 : i32
    return %c0_i32, %c0_i32_0 : i32, i32
  }
  func.func @transform_22(%arg0: i32) -> (i32, i32, i32) {
    %c0_i32 = arith.constant 0 : i32
    %c0_i32_0 = arith.constant 0 : i32
    %c0_i32_1 = arith.constant 0 : i32
    %c0_i32_2 = arith.constant 0 : i32
    return %c0_i32, %c0_i32_0, %c0_i32_1 : i32, i32, i32
  }
  func.func @transform_23(%arg0: i32) -> (i32, i32) {
    %c0_i32 = arith.constant 0 : i32
    %c0_i32_0 = arith.constant 0 : i32
    %c0_i32_1 = arith.constant 0 : i32
    return %c0_i32, %c0_i32_0 : i32, i32
  }
  func.func @transform_24(%arg0: i32) -> (i32, i32) {
    %c0_i32 = arith.constant 0 : i32
    %c0_i32_0 = arith.constant 0 : i32
    %c0_i32_1 = arith.constant 0 : i32
    return %c0_i32, %c0_i32_0 : i32, i32
  }
  func.func @transform_25(%arg0: i32) -> (i32, i32) {
    %c0_i32 = arith.constant 0 : i32
    %c0_i32_0 = arith.constant 0 : i32
    %c0_i32_1 = arith.constant 0 : i32
    return %c0_i32, %c0_i32_0 : i32, i32
  }
  func.func @transform_26(%arg0: i32) -> (i32, i32) {
    %c0_i32 = arith.constant 0 : i32
    %c0_i32_0 = arith.constant 0 : i32
    %c0_i32_1 = arith.constant 0 : i32
    return %c0_i32, %c0_i32_0 : i32, i32
  }
  func.func @transform_27(%arg0: i32) -> (i32, i32, i32) {
    %c0_i32 = arith.constant 0 : i32
    %c0_i32_0 = arith.constant 0 : i32
    %c0_i32_1 = arith.constant 0 : i32
    return %arg0, %c0_i32, %c0_i32_0 : i32, i32, i32
  }
}

</mosaic_0001>

<llo_original>
// kernel: tpu_custom_call.1
$region0: #{tpu_custom_call.1}
  #allocation0 [shape = 'u32[]', space=smem, size = 0x4, offset = 0x4, fixed_abs, tag = 'smem constant byte address 0x4 - core index']
  #allocation1 [shape = 'u32[144,128]{1,0:T(1,128)}', space=vmem, size = 0x12000, scoped, tag = 'internal scratch']
  %s0 = inlined_call_operand.hbm [shape: f32[2,2,128], index: 0, kind: input, shape index: {}]
  %s1 = inlined_call_operand.hbm [shape: f32[2,4,128], index: 1, kind: input, shape index: {}]
  %s2 = inlined_call_operand.hbm [shape: f32[2,8,128], index: 2, kind: input, shape index: {}]
  %s3 = inlined_call_operand.hbm [shape: f32[2,16,128], index: 3, kind: input, shape index: {}]
  %s4 = inlined_call_operand.hbm [shape: f32[2,32,128], index: 4, kind: input, shape index: {}]
  %s5 = inlined_call_operand.hbm [shape: bf16[128,256], index: 5, kind: input, shape index: {}]
  %s6 = inlined_call_operand.hbm [shape: f32[4,4], index: 6, kind: input, shape index: {}]
  %s7 = inlined_call_operand.hbm [shape: bf16[9,128,128], index: 7, kind: input, shape index: {}]
  %s8 = inlined_call_operand.hbm [shape: bf16[128,128], index: 8, kind: input, shape index: {}]
  %s9 = inlined_call_operand.hbm [shape: f32[8,128], index: 9, kind: input, shape index: {}]
  %s10 = inlined_call_operand.hbm [shape: bf16[128,256], index: 10, kind: input, shape index: {}]
  %s11 = inlined_call_operand.hbm [shape: f32[8,8], index: 11, kind: input, shape index: {}]
  %s12 = inlined_call_operand.hbm [shape: bf16[9,128,128], index: 12, kind: input, shape index: {}]
  %s13 = inlined_call_operand.hbm [shape: bf16[128,128], index: 13, kind: input, shape index: {}]
  %s14 = inlined_call_operand.hbm [shape: f32[8,128], index: 14, kind: input, shape index: {}]
  %s15 = inlined_call_operand.hbm [shape: bf16[128,256], index: 15, kind: input, shape index: {}]
  %s16 = inlined_call_operand.hbm [shape: f32[16,16], index: 16, kind: input, shape index: {}]
  %s17 = inlined_call_operand.hbm [shape: bf16[9,128,128], index: 17, kind: input, shape index: {}]
  %s18 = inlined_call_operand.vmem [shape: bf16[128,128], index: 18, kind: input, shape index: {}]
  %s19 = inlined_call_operand.hbm [shape: f32[8,128], index: 19, kind: input, shape index: {}]
  %s20 = inlined_call_operand.hbm [shape: bf16[128,256], index: 20, kind: input, shape index: {}]
  %s21 = inlined_call_operand.hbm [shape: f32[32,32], index: 21, kind: input, shape index: {}]
  %s22 = inlined_call_operand.hbm [shape: bf16[9,128,128], index: 22, kind: input, shape index: {}]
  %s23 = inlined_call_operand.hbm [shape: bf16[128,128], index: 23, kind: input, shape index: {}]
  %s24 = inlined_call_operand.vmem [shape: f32[8,128], index: 24, kind: input, shape index: {}]
  %s25 = inlined_call_operand.hbm [shape: bf16[128,128], index: 25, kind: input, shape index: {}]
  %s26 = inlined_call_operand.vmem [shape: f32[1,128], index: 26, kind: input, shape index: {}]
  %s27 = inlined_call_operand.hbm [shape: f32[2,32,128], index: 27, kind: output, shape index: {}]
  %s28 = sld [smem:[#allocation0]]
  $region237: #{tpu_custom_call.1} parent=0
    _
  %s30 = ssub.s32 1, %s28
  %s31 = scalar_select 0, %s30, %s28
  $region1: #{tpu_custom_call.1} parent=0
    #allocation2 [shape = 'u8[2048]{0}', space=vmem, size = 0x800, scoped, tag = 'input window, operand 0']
    #allocation3 [shape = 's32[2]{0}', space=sflag, size = 0x8, scoped, tag = 'scoped memory for tpu_custom_call.1']
    #allocation4 [shape = 's32[2]{0}', space=sflag, size = 0x8, scoped, tag = 'scoped memory for tpu_custom_call.1']
    #allocation5 [shape = 'u8[4096]{0}', space=vmem, size = 0x1000, scoped, tag = 'input window, operand 1']
    #allocation6 [shape = 's32[2]{0}', space=sflag, size = 0x8, scoped, tag = 'scoped memory for tpu_custom_call.1']
    #allocation7 [shape = 'u8[8192]{0}', space=vmem, size = 0x2000, scoped, tag = 'input window, operand 2']
    #allocation8 [shape = 'u8[16384]{0}', space=vmem, size = 0x4000, scoped, tag = 'input window, operand 3']
    #allocation9 [shape = 's32[2]{0}', space=sflag, size = 0x8, scoped, tag = 'scoped memory for tpu_custom_call.1']
    #allocation10 [shape = 'u8[32768]{0}', space=vmem, size = 0x8000, scoped, tag = 'input window, operand 4']
    #allocation11 [shape = 'u8[65536]{0}', space=vmem, size = 0x10000, scoped, tag = 'input window, operand 5, single buffered']
    #allocation12 [shape = 's32[1]{0}', space=sflag, size = 0x4, scoped, tag = 'scoped memory for tpu_custom_call.1']
    #allocation13 [shape = 'u8[2048]{0}', space=vmem, size = 0x800, scoped, tag = 'input window, operand 6, single buffered']
    #allocation14 [shape = 'u8[294912]{0}', space=vmem, size = 0x48000, scoped, tag = 'input window, operand 7, single buffered']
    #allocation15 [shape = 's32[1]{0}', space=sflag, size = 0x4, scoped, tag = 'scoped memory for tpu_custom_call.1']
    #allocation16 [shape = 'u8[32768]{0}', space=vmem, size = 0x8000, scoped, tag = 'input window, operand 8, single buffered']
    #allocation17 [shape = 'u8[4096]{0}', space=vmem, size = 0x1000, scoped, tag = 'input window, operand 9, single buffered']
    #allocation18 [shape = 's32[1]{0}', space=sflag, size = 0x4, scoped, tag = 'scoped memory for tpu_custom_call.1']
    #allocation19 [shape = 'u8[65536]{0}', space=vmem, size = 0x10000, scoped, tag = 'input window, operand 10, single buffered']
    #allocation20 [shape = 'u8[4096]{0}', space=vmem, size = 0x1000, scoped, tag = 'input window, operand 11, single buffered']
    #allocation21 [shape = 's32[1]{0}', space=sflag, size = 0x4, scoped, tag = 'scoped memory for tpu_custom_call.1']
    #allocation22 [shape = 'u8[294912]{0}', space=vmem, size = 0x48000, scoped, tag = 'input window, operand 12, single buffered']
    #allocation23 [shape = 'u8[32768]{0}', space=vmem, size = 0x8000, scoped, tag = 'input window, operand 13, single buffered']
    #allocation24 [shape = 's32[1]{0}', space=sflag, size = 0x4, scoped, tag = 'scoped memory for tpu_custom_call.1']
    #allocation25 [shape = 'u8[4096]{0}', space=vmem, size = 0x1000, scoped, tag = 'input window, operand 14, single buffered']
    #allocation26 [shape = 'u8[65536]{0}', space=vmem, size = 0x10000, scoped, tag = 'input window, operand 15, single buffered']
    #allocation27 [shape = 's32[1]{0}', space=sflag, size = 0x4, scoped, tag = 'scoped memory for tpu_custom_call.1']
    #allocation28 [shape = 'u8[8192]{0}', space=vmem, size = 0x2000, scoped, tag = 'input window, operand 16, single buffered']
    #allocation29 [shape = 'u8[294912]{0}', space=vmem, size = 0x48000, scoped, tag = 'input window, operand 17, single buffered']
    #allocation30 [shape = 's32[1]{0}', space=sflag, size = 0x4, scoped, tag = 'scoped memory for tpu_custom_call.1']
    #allocation31 [shape = 'u8[4096]{0}', space=vmem, size = 0x1000, scoped, tag = 'input window, operand 19, single buffered']
    #allocation32 [shape = 'u8[65536]{0}', space=vmem, size = 0x10000, scoped, tag = 'input window, operand 20, single buffered']
    #allocation33 [shape = 's32[1]{0}', space=sflag, size = 0x4, scoped, tag = 'scoped memory for tpu_custom_call.1']
    #allocation34 [shape = 'u8[16384]{0}', space=vmem, size = 0x4000, scoped, tag = 'input window, operand 21, single buffered']
    #allocation35 [shape = 'u8[294912]{0}', space=vmem, size = 0x48000, scoped, tag = 'input window, operand 22, single buffered']
    #allocation36 [shape = 's32[1]{0}', space=sflag, size = 0x4, scoped, tag = 'scoped memory for tpu_custom_call.1']
    #allocation37 [shape = 'u8[32768]{0}', space=vmem, size = 0x8000, scoped, tag = 'input window, operand 23, single buffered']
    #allocation38 [shape = 'u8[32768]{0}', space=vmem, size = 0x8000, scoped, tag = 'input window, operand 25, single buffered']
    #allocation39 [shape = 's32[1]{0}', space=sflag, size = 0x4, scoped, tag = 'scoped memory for tpu_custom_call.1']
    #allocation40 [shape = 'u8[32768]{0}', space=vmem, size = 0x8000, scoped, tag = 'output window, operand 0']
    %32 = vsyncpa [#allocation3], 0
    %s33 = scalar_lea.sflag [#allocation3], 1
    %34 = vsyncpa %s33, 0
    %35 = vsyncpa [#allocation6], 0
    %s36 = scalar_lea.sflag [#allocation6], 1
    %37 = vsyncpa %s36, 0
    %38 = vsyncpa [#allocation9], 0
    %s39 = scalar_lea.sflag [#allocation9], 1
    %40 = vsyncpa %s39, 0
    %41 = vsyncpa [#allocation12], 0
    %42 = vsyncpa [#allocation15], 0
    %43 = vsyncpa [#allocation18], 0
    %44 = vsyncpa [#allocation21], 0
    %45 = vsyncpa [#allocation24], 0
    %46 = vsyncpa [#allocation27], 0
    %47 = vsyncpa [#allocation30], 0
    %48 = vsyncpa [#allocation33], 0
    %49 = vsyncpa [#allocation36], 0
    %50 = vsyncpa [#allocation39], 0
    %51 = vsyncpa [#allocation4], 0
    %s52 = scalar_lea.sflag [#allocation4], 1
    %53 = vsyncpa %s52, 0
    loop: start=0, step=1, limit=4
    $region2: #{tpu_custom_call.1} parent=1 // loop_pre_header
      _
    $region3: #{tpu_custom_call.1} parent=1 // loop_header
      %s55 = sphi 0, %s59
      %p56 = scmp.ge.s32.totalorder %s55, 4
      %s65 = sphi 0, %s67
      %s68 = sphi 0, %s65
      %s69 = sphi 0, %s68
      %s85 = sphi 0, %s69
      %s91 = sphi 0, %s93
      %s94 = sphi 0, %s91
      %s95 = sphi 0, %s94
      %s111 = sphi 0, %s95
      %s117 = sphi 0, %s119
      %s120 = sphi 0, %s117
      %s121 = sphi 0, %s120
      %s137 = sphi 0, %s121
      %s143 = sphi 0, %s145
      %s146 = sphi 0, %s143
      %s147 = sphi 0, %s146
      %s163 = sphi 0, %s147
      %s169 = sphi 0, %s171
      %s172 = sphi 0, %s169
      %s173 = sphi 0, %s172
      %s189 = sphi 0, %s173
      %s193 = sphi 0, %s193
      %s195 = sphi 0, %s193
      %s196 = sphi 0, %s195
      %s210 = sphi 0, %s196
      %s214 = sphi 0, %s214
      %s216 = sphi 0, %s214
      %s217 = sphi 0, %s216
      %s231 = sphi 0, %s217
      %s235 = sphi 0, %s235
      %s237 = sphi 0, %s235
      %s238 = sphi 0, %s237
      %s252 = sphi 0, %s238
      %s256 = sphi 0, %s256
      %s258 = sphi 0, %s256
      %s259 = sphi 0, %s258
      %s273 = sphi 0, %s259
      %s277 = sphi 0, %s277
      %s279 = sphi 0, %s277
      %s280 = sphi 0, %s279
      %s294 = sphi 0, %s280
      %s298 = sphi 0, %s298
      %s300 = sphi 0, %s298
      %s301 = sphi 0, %s300
      %s315 = sphi 0, %s301
      %s319 = sphi 0, %s319
      %s321 = sphi 0, %s319
      %s322 = sphi 0, %s321
      %s336 = sphi 0, %s322
      %s340 = sphi 0, %s340
      %s342 = sphi 0, %s340
      %s343 = sphi 0, %s342
      %s357 = sphi 0, %s343
      %s361 = sphi 0, %s361
      %s363 = sphi 0, %s361
      %s364 = sphi 0, %s363
      %s378 = sphi 0, %s364
      %s382 = sphi 0, %s382
      %s384 = sphi 0, %s382
      %s385 = sphi 0, %s384
      %s399 = sphi 0, %s385
      %s403 = sphi 0, %s403
      %s405 = sphi 0, %s403
      %s406 = sphi 0, %s405
      %s420 = sphi 0, %s406
      %s424 = sphi 0, %s424
      %s426 = sphi 0, %s424
      %s427 = sphi 0, %s426
      %s441 = sphi 0, %s427
      %s445 = sphi 0, %s445
      %s447 = sphi 0, %s445
      %s448 = sphi 0, %s447
      %s462 = sphi 0, %s448
      %s466 = sphi 0, %s466
      %s468 = sphi 0, %s466
      %s469 = sphi 0, %s468
      %s483 = sphi 0, %s469
      %s487 = sphi 0, %s487
      %s489 = sphi 0, %s487
      %s490 = sphi 0, %s489
      %s504 = sphi 0, %s490
      %s508 = sphi 0, %s508
      %s510 = sphi 0, %s508
      %s511 = sphi 0, %s510
      %s525 = sphi 0, %s511
      %s529 = sphi 0, %s529
      %s531 = sphi 0, %s529
      %s532 = sphi 0, %s531
      %s546 = sphi 0, %s532
      %s550 = sphi 0, %s550
      %s552 = sphi 0, %s550
      %s553 = sphi 0, %s552
      %s567 = sphi 0, %s553
      %s571 = sphi 0, %s571
      %s573 = sphi 0, %s571
      %s574 = sphi 0, %s573
      %s588 = sphi 0, %s574
      %s592 = sphi 0, %s592
      %s594 = sphi 0, %s592
      %s595 = sphi 0, %s594
      %s609 = sphi 0, %s595
      %s613 = sphi 0, %s613
      %s615 = sphi 0, %s613
      %s616 = sphi 0, %s615
      %s630 = sphi 0, %s616
      %s634 = sphi 0, %s634
      %s636 = sphi 0, %s634
      %s637 = sphi 0, %s636
      %s651 = sphi 0, %s637
      %s657 = sphi 0, %s659
      %s660 = sphi 0, %s657
      %s661 = sphi 0, %s660
      %s677 = sphi 0, %s661
    $region4: #{tpu_custom_call.1} parent=1 // loop_header_branch
      %58 = sbr.rel (%p56) target = $region8
    $region5: #{tpu_custom_call.1} parent=1 // loop_body
      %s60 = ssub.s32 %s55, 1
      %s61 = ssub.s32 %s55, 2
      %s62 = sadd.s32 %s55, 1
      %s63 = ssub.s32 %s55, %s62
      %p64 = scmp.eq.s32.totalorder %s63, 0
      %s66 = sadd.s32 %s65, 1
      %s67 = scalar_select %p64, %s65, %s66
      %p70 = pneg %p64
      %p71 = scmp.eq.s32.totalorder %s55, 1
      %p72 = por %p70, %p71
      %p73 = scmp.ne.s32.totalorder %s65, %s68
      %p74 = scmp.eq.s32.totalorder %s55, 0
      %p75 = por %p73, %p74
      %p76 = scmp.ne.s32.totalorder %s65, %s68
      %p77 = scmp.eq.s32.totalorder %s60, 1
      %p78 = por %p76, %p77
      %p79 = scmp.ne.s32.totalorder %s68, %s69
      %p80 = scmp.eq.s32.totalorder %s60, 0
      %p81 = por %p79, %p80
      %p82 = scmp.ne.s32.totalorder %s68, %s69
      %p83 = scmp.eq.s32.totalorder %s61, 1
      %p84 = por %p82, %p83
      %p86 = scmp.ne.s32.totalorder %s69, %s85
      %p87 = scmp.eq.s32.totalorder %s61, 0
      %p88 = por %p86, %p87
      %s89 = ssub.s32 %s55, %s62
      %p90 = scmp.eq.s32.totalorder %s89, 0
      %s92 = sadd.s32 %s91, 1
      %s93 = scalar_select %p90, %s91, %s92
      %p96 = pneg %p90
      %p97 = scmp.eq.s32.totalorder %s55, 1
      %p98 = por %p96, %p97
      %p99 = scmp.ne.s32.totalorder %s91, %s94
      %p100 = scmp.eq.s32.totalorder %s55, 0
      %p101 = por %p99, %p100
      %p102 = scmp.ne.s32.totalorder %s91, %s94
      %p103 = scmp.eq.s32.totalorder %s60, 1
      %p104 = por %p102, %p103
      %p105 = scmp.ne.s32.totalorder %s94, %s95
      %p106 = scmp.eq.s32.totalorder %s60, 0
      %p107 = por %p105, %p106
      %p108 = scmp.ne.s32.totalorder %s94, %s95
      %p109 = scmp.eq.s32.totalorder %s61, 1
      %p110 = por %p108, %p109
      %p112 = scmp.ne.s32.totalorder %s95, %s111
      %p113 = scmp.eq.s32.totalorder %s61, 0
      %p114 = por %p112, %p113
      %s115 = ssub.s32 %s55, %s62
      %p116 = scmp.eq.s32.totalorder %s115, 0
      %s118 = sadd.s32 %s117, 1
      %s119 = scalar_select %p116, %s117, %s118
      %p122 = pneg %p116
      %p123 = scmp.eq.s32.totalorder %s55, 1
      %p124 = por %p122, %p123
      %p125 = scmp.ne.s32.totalorder %s117, %s120
      %p126 = scmp.eq.s32.totalorder %s55, 0
      %p127 = por %p125, %p126
      %p128 = scmp.ne.s32.totalorder %s117, %s120
      %p129 = scmp.eq.s32.totalorder %s60, 1
      %p130 = por %p128, %p129
      %p131 = scmp.ne.s32.totalorder %s120, %s121
      %p132 = scmp.eq.s32.totalorder %s60, 0
      %p133 = por %p131, %p132
      %p134 = scmp.ne.s32.totalorder %s120, %s121
      %p135 = scmp.eq.s32.totalorder %s61, 1
      %p136 = por %p134, %p135
      %p138 = scmp.ne.s32.totalorder %s121, %s137
      %p139 = scmp.eq.s32.totalorder %s61, 0
      %p140 = por %p138, %p139
      %s141 = ssub.s32 %s55, %s62
      %p142 = scmp.eq.s32.totalorder %s141, 0
      %s144 = sadd.s32 %s143, 1
      %s145 = scalar_select %p142, %s143, %s144
      %p148 = pneg %p142
      %p149 = scmp.eq.s32.totalorder %s55, 1
      %p150 = por %p148, %p149
      %p151 = scmp.ne.s32.totalorder %s143, %s146
      %p152 = scmp.eq.s32.totalorder %s55, 0
      %p153 = por %p151, %p152
      %p154 = scmp.ne.s32.totalorder %s143, %s146
      %p155 = scmp.eq.s32.totalorder %s60, 1
      %p156 = por %p154, %p155
      %p157 = scmp.ne.s32.totalorder %s146, %s147
      %p158 = scmp.eq.s32.totalorder %s60, 0
      %p159 = por %p157, %p158
      %p160 = scmp.ne.s32.totalorder %s146, %s147
      %p161 = scmp.eq.s32.totalorder %s61, 1
      %p162 = por %p160, %p161
      %p164 = scmp.ne.s32.totalorder %s147, %s163
      %p165 = scmp.eq.s32.totalorder %s61, 0
      %p166 = por %p164, %p165
      %s167 = ssub.s32 %s55, %s62
      %p168 = scmp.eq.s32.totalorder %s167, 0
      %s170 = sadd.s32 %s169, 1
      %s171 = scalar_select %p168, %s169, %s170
      %p174 = pneg %p168
      %p175 = scmp.eq.s32.totalorder %s55, 1
      %p176 = por %p174, %p175
      %p177 = scmp.ne.s32.totalorder %s169, %s172
      %p178 = scmp.eq.s32.totalorder %s55, 0
      %p179 = por %p177, %p178
      %p180 = scmp.ne.s32.totalorder %s169, %s172
      %p181 = scmp.eq.s32.totalorder %s60, 1
      %p182 = por %p180, %p181
      %p183 = scmp.ne.s32.totalorder %s172, %s173
      %p184 = scmp.eq.s32.totalorder %s60, 0
      %p185 = por %p183, %p184
      %p186 = scmp.ne.s32.totalorder %s172, %s173
      %p187 = scmp.eq.s32.totalorder %s61, 1
      %p188 = por %p186, %p187
      %p190 = scmp.ne.s32.totalorder %s173, %s189
      %p191 = scmp.eq.s32.totalorder %s61, 0
      %p192 = por %p190, %p191
      %s194 = sadd.s32 %s193, 1
      %p197 = scmp.eq.s32.totalorder %s55, 1
      %p198 = scmp.ne.s32.totalorder %s193, %s195
      %p199 = scmp.eq.s32.totalorder %s55, 0
      %p200 = por %p198, %p199
      %p201 = scmp.ne.s32.totalorder %s193, %s195
      %p202 = scmp.eq.s32.totalorder %s60, 1
      %p203 = por %p201, %p202
      %p204 = scmp.ne.s32.totalorder %s195, %s196
      %p205 = scmp.eq.s32.totalorder %s60, 0
      %p206 = por %p204, %p205
      %p207 = scmp.ne.s32.totalorder %s195, %s196
      %p208 = scmp.eq.s32.totalorder %s61, 1
      %p209 = por %p207, %p208
      %p211 = scmp.ne.s32.totalorder %s196, %s210
      %p212 = scmp.eq.s32.totalorder %s61, 0
      %p213 = por %p211, %p212
      %s215 = sadd.s32 %s214, 1
      %p218 = scmp.eq.s32.totalorder %s55, 1
      %p219 = scmp.ne.s32.totalorder %s214, %s216
      %p220 = scmp.eq.s32.totalorder %s55, 0
      %p221 = por %p219, %p220
      %p222 = scmp.ne.s32.totalorder %s214, %s216
      %p223 = scmp.eq.s32.totalorder %s60, 1
      %p224 = por %p222, %p223
      %p225 = scmp.ne.s32.totalorder %s216, %s217
      %p226 = scmp.eq.s32.totalorder %s60, 0
      %p227 = por %p225, %p226
      %p228 = scmp.ne.s32.totalorder %s216, %s217
      %p229 = scmp.eq.s32.totalorder %s61, 1
      %p230 = por %p228, %p229
      %p232 = scmp.ne.s32.totalorder %s217, %s231
      %p233 = scmp.eq.s32.totalorder %s61, 0
      %p234 = por %p232, %p233
      %s236 = sadd.s32 %s235, 1
      %p239 = scmp.eq.s32.totalorder %s55, 1
      %p240 = scmp.ne.s32.totalorder %s235, %s237
      %p241 = scmp.eq.s32.totalorder %s55, 0
      %p242 = por %p240, %p241
      %p243 = scmp.ne.s32.totalorder %s235, %s237
      %p244 = scmp.eq.s32.totalorder %s60, 1
      %p245 = por %p243, %p244
      %p246 = scmp.ne.s32.totalorder %s237, %s238
      %p247 = scmp.eq.s32.totalorder %s60, 0
      %p248 = por %p246, %p247
      %p249 = scmp.ne.s32.totalorder %s237, %s238
      %p250 = scmp.eq.s32.totalorder %s61, 1
      %p251 = por %p249, %p250
      %p253 = scmp.ne.s32.totalorder %s238, %s252
      %p254 = scmp.eq.s32.totalorder %s61, 0
      %p255 = por %p253, %p254
      %s257 = sadd.s32 %s256, 1
      %p260 = scmp.eq.s32.totalorder %s55, 1
      %p261 = scmp.ne.s32.totalorder %s256, %s258
      %p262 = scmp.eq.s32.totalorder %s55, 0
      %p263 = por %p261, %p262
      %p264 = scmp.ne.s32.totalorder %s256, %s258
      %p265 = scmp.eq.s32.totalorder %s60, 1
      %p266 = por %p264, %p265
      %p267 = scmp.ne.s32.totalorder %s258, %s259
      %p268 = scmp.eq.s32.totalorder %s60, 0
      %p269 = por %p267, %p268
      %p270 = scmp.ne.s32.totalorder %s258, %s259
      %p271 = scmp.eq.s32.totalorder %s61, 1
      %p272 = por %p270, %p271
      %p274 = scmp.ne.s32.totalorder %s259, %s273
      %p275 = scmp.eq.s32.totalorder %s61, 0
      %p276 = por %p274, %p275
      %s278 = sadd.s32 %s277, 1
      %p281 = scmp.eq.s32.totalorder %s55, 1
      %p282 = scmp.ne.s32.totalorder %s277, %s279
      %p283 = scmp.eq.s32.totalorder %s55, 0
      %p284 = por %p282, %p283
      %p285 = scmp.ne.s32.totalorder %s277, %s279
      %p286 = scmp.eq.s32.totalorder %s60, 1
      %p287 = por %p285, %p286
      %p288 = scmp.ne.s32.totalorder %s279, %s280
      %p289 = scmp.eq.s32.totalorder %s60, 0
      %p290 = por %p288, %p289
      %p291 = scmp.ne.s32.totalorder %s279, %s280
      %p292 = scmp.eq.s32.totalorder %s61, 1
      %p293 = por %p291, %p292
      %p295 = scmp.ne.s32.totalorder %s280, %s294
      %p296 = scmp.eq.s32.totalorder %s61, 0
      %p297 = por %p295, %p296
      %s299 = sadd.s32 %s298, 1
      %p302 = scmp.eq.s32.totalorder %s55, 1
      %p303 = scmp.ne.s32.totalorder %s298, %s300
      %p304 = scmp.eq.s32.totalorder %s55, 0
      %p305 = por %p303, %p304
      %p306 = scmp.ne.s32.totalorder %s298, %s300
      %p307 = scmp.eq.s32.totalorder %s60, 1
      %p308 = por %p306, %p307
      %p309 = scmp.ne.s32.totalorder %s300, %s301
      %p310 = scmp.eq.s32.totalorder %s60, 0
      %p311 = por %p309, %p310
      %p312 = scmp.ne.s32.totalorder %s300, %s301
      %p313 = scmp.eq.s32.totalorder %s61, 1
      %p314 = por %p312, %p313
      %p316 = scmp.ne.s32.totalorder %s301, %s315
      %p317 = scmp.eq.s32.totalorder %s61, 0
      %p318 = por %p316, %p317
      %s320 = sadd.s32 %s319, 1
      %p323 = scmp.eq.s32.totalorder %s55, 1
      %p324 = scmp.ne.s32.totalorder %s319, %s321
      %p325 = scmp.eq.s32.totalorder %s55, 0
      %p326 = por %p324, %p325
      %p327 = scmp.ne.s32.totalorder %s319, %s321
      %p328 = scmp.eq.s32.totalorder %s60, 1
      %p329 = por %p327, %p328
      %p330 = scmp.ne.s32.totalorder %s321, %s322
      %p331 = scmp.eq.s32.totalorder %s60, 0
      %p332 = por %p330, %p331
      %p333 = scmp.ne.s32.totalorder %s321, %s322
      %p334 = scmp.eq.s32.totalorder %s61, 1
      %p335 = por %p333, %p334
      %p337 = scmp.ne.s32.totalorder %s322, %s336
      %p338 = scmp.eq.s32.totalorder %s61, 0
      %p339 = por %p337, %p338
      %s341 = sadd.s32 %s340, 1
      %p344 = scmp.eq.s32.totalorder %s55, 1
      %p345 = scmp.ne.s32.totalorder %s340, %s342
      %p346 = scmp.eq.s32.totalorder %s55, 0
      %p347 = por %p345, %p346
      %p348 = scmp.ne.s32.totalorder %s340, %s342
      %p349 = scmp.eq.s32.totalorder %s60, 1
      %p350 = por %p348, %p349
      %p351 = scmp.ne.s32.totalorder %s342, %s343
      %p352 = scmp.eq.s32.totalorder %s60, 0
      %p353 = por %p351, %p352
      %p354 = scmp.ne.s32.totalorder %s342, %s343
      %p355 = scmp.eq.s32.totalorder %s61, 1
      %p356 = por %p354, %p355
      %p358 = scmp.ne.s32.totalorder %s343, %s357
      %p359 = scmp.eq.s32.totalorder %s61, 0
      %p360 = por %p358, %p359
      %s362 = sadd.s32 %s361, 1
      %p365 = scmp.eq.s32.totalorder %s55, 1
      %p366 = scmp.ne.s32.totalorder %s361, %s363
      %p367 = scmp.eq.s32.totalorder %s55, 0
      %p368 = por %p366, %p367
      %p369 = scmp.ne.s32.totalorder %s361, %s363
      %p370 = scmp.eq.s32.totalorder %s60, 1
      %p371 = por %p369, %p370
      %p372 = scmp.ne.s32.totalorder %s363, %s364
      %p373 = scmp.eq.s32.totalorder %s60, 0
      %p374 = por %p372, %p373
      %p375 = scmp.ne.s32.totalorder %s363, %s364
      %p376 = scmp.eq.s32.totalorder %s61, 1
      %p377 = por %p375, %p376
      %p379 = scmp.ne.s32.totalorder %s364, %s378
      %p380 = scmp.eq.s32.totalorder %s61, 0
      %p381 = por %p379, %p380
      %s383 = sadd.s32 %s382, 1
      %p386 = scmp.eq.s32.totalorder %s55, 1
      %p387 = scmp.ne.s32.totalorder %s382, %s384
      %p388 = scmp.eq.s32.totalorder %s55, 0
      %p389 = por %p387, %p388
      %p390 = scmp.ne.s32.totalorder %s382, %s384
      %p391 = scmp.eq.s32.totalorder %s60, 1
      %p392 = por %p390, %p391
      %p393 = scmp.ne.s32.totalorder %s384, %s385
      %p394 = scmp.eq.s32.totalorder %s60, 0
      %p395 = por %p393, %p394
      %p396 = scmp.ne.s32.totalorder %s384, %s385
      %p397 = scmp.eq.s32.totalorder %s61, 1
      %p398 = por %p396, %p397
      %p400 = scmp.ne.s32.totalorder %s385, %s399
      %p401 = scmp.eq.s32.totalorder %s61, 0
      %p402 = por %p400, %p401
      %s404 = sadd.s32 %s403, 1
      %p407 = scmp.eq.s32.totalorder %s55, 1
      %p408 = scmp.ne.s32.totalorder %s403, %s405
      %p409 = scmp.eq.s32.totalorder %s55, 0
      %p410 = por %p408, %p409
      %p411 = scmp.ne.s32.totalorder %s403, %s405
      %p412 = scmp.eq.s32.totalorder %s60, 1
      %p413 = por %p411, %p412
      %p414 = scmp.ne.s32.totalorder %s405, %s406
      %p415 = scmp.eq.s32.totalorder %s60, 0
      %p416 = por %p414, %p415
      %p417 = scmp.ne.s32.totalorder %s405, %s406
      %p418 = scmp.eq.s32.totalorder %s61, 1
      %p419 = por %p417, %p418
      %p421 = scmp.ne.s32.totalorder %s406, %s420
      %p422 = scmp.eq.s32.totalorder %s61, 0
      %p423 = por %p421, %p422
      %s425 = sadd.s32 %s424, 1
      %p428 = scmp.eq.s32.totalorder %s55, 1
      %p429 = scmp.ne.s32.totalorder %s424, %s426
      %p430 = scmp.eq.s32.totalorder %s55, 0
      %p431 = por %p429, %p430
      %p432 = scmp.ne.s32.totalorder %s424, %s426
      %p433 = scmp.eq.s32.totalorder %s60, 1
      %p434 = por %p432, %p433
      %p435 = scmp.ne.s32.totalorder %s426, %s427
      %p436 = scmp.eq.s32.totalorder %s60, 0
      %p437 = por %p435, %p436
      %p438 = scmp.ne.s32.totalorder %s426, %s427
      %p439 = scmp.eq.s32.totalorder %s61, 1
      %p440 = por %p438, %p439
      %p442 = scmp.ne.s32.totalorder %s427, %s441
      %p443 = scmp.eq.s32.totalorder %s61, 0
      %p444 = por %p442, %p443
      %s446 = sadd.s32 %s445, 1
      %p449 = scmp.eq.s32.totalorder %s55, 1
      %p450 = scmp.ne.s32.totalorder %s445, %s447
      %p451 = scmp.eq.s32.totalorder %s55, 0
      %p452 = por %p450, %p451
      %p453 = scmp.ne.s32.totalorder %s445, %s447
      %p454 = scmp.eq.s32.totalorder %s60, 1
      %p455 = por %p453, %p454
      %p456 = scmp.ne.s32.totalorder %s447, %s448
      %p457 = scmp.eq.s32.totalorder %s60, 0
      %p458 = por %p456, %p457
      %p459 = scmp.ne.s32.totalorder %s447, %s448
      %p460 = scmp.eq.s32.totalorder %s61, 1
      %p461 = por %p459, %p460
      %p463 = scmp.ne.s32.totalorder %s448, %s462
      %p464 = scmp.eq.s32.totalorder %s61, 0
      %p465 = por %p463, %p464
      %s467 = sadd.s32 %s466, 1
      %p470 = scmp.eq.s32.totalorder %s55, 1
      %p471 = scmp.ne.s32.totalorder %s466, %s468
      %p472 = scmp.eq.s32.totalorder %s55, 0
      %p473 = por %p471, %p472
      %p474 = scmp.ne.s32.totalorder %s466, %s468
      %p475 = scmp.eq.s32.totalorder %s60, 1
      %p476 = por %p474, %p475
      %p477 = scmp.ne.s32.totalorder %s468, %s469
      %p478 = scmp.eq.s32.totalorder %s60, 0
      %p479 = por %p477, %p478
      %p480 = scmp.ne.s32.totalorder %s468, %s469
      %p481 = scmp.eq.s32.totalorder %s61, 1
      %p482 = por %p480, %p481
      %p484 = scmp.ne.s32.totalorder %s469, %s483
      %p485 = scmp.eq.s32.totalorder %s61, 0
      %p486 = por %p484, %p485
      %s488 = sadd.s32 %s487, 1
      %p491 = scmp.eq.s32.totalorder %s55, 1
      %p492 = scmp.ne.s32.totalorder %s487, %s489
      %p493 = scmp.eq.s32.totalorder %s55, 0
      %p494 = por %p492, %p493
      %p495 = scmp.ne.s32.totalorder %s487, %s489
      %p496 = scmp.eq.s32.totalorder %s60, 1
      %p497 = por %p495, %p496
      %p498 = scmp.ne.s32.totalorder %s489, %s490
      %p499 = scmp.eq.s32.totalorder %s60, 0
      %p500 = por %p498, %p499
      %p501 = scmp.ne.s32.totalorder %s489, %s490
      %p502 = scmp.eq.s32.totalorder %s61, 1
      %p503 = por %p501, %p502
      %p505 = scmp.ne.s32.totalorder %s490, %s504
      %p506 = scmp.eq.s32.totalorder %s61, 0
      %p507 = por %p505, %p506
      %s509 = sadd.s32 %s508, 1
      %p512 = scmp.eq.s32.totalorder %s55, 1
      %p513 = scmp.ne.s32.totalorder %s508, %s510
      %p514 = scmp.eq.s32.totalorder %s55, 0
      %p515 = por %p513, %p514
      %p516 = scmp.ne.s32.totalorder %s508, %s510
      %p517 = scmp.eq.s32.totalorder %s60, 1
      %p518 = por %p516, %p517
      %p519 = scmp.ne.s32.totalorder %s510, %s511
      %p520 = scmp.eq.s32.totalorder %s60, 0
      %p521 = por %p519, %p520
      %p522 = scmp.ne.s32.totalorder %s510, %s511
      %p523 = scmp.eq.s32.totalorder %s61, 1
      %p524 = por %p522, %p523
      %p526 = scmp.ne.s32.totalorder %s511, %s525
      %p527 = scmp.eq.s32.totalorder %s61, 0
      %p528 = por %p526, %p527
      %s530 = sadd.s32 %s529, 1
      %p533 = scmp.eq.s32.totalorder %s55, 1
      %p534 = scmp.ne.s32.totalorder %s529, %s531
      %p535 = scmp.eq.s32.totalorder %s55, 0
      %p536 = por %p534, %p535
      %p537 = scmp.ne.s32.totalorder %s529, %s531
      %p538 = scmp.eq.s32.totalorder %s60, 1
      %p539 = por %p537, %p538
      %p540 = scmp.ne.s32.totalorder %s531, %s532
      %p541 = scmp.eq.s32.totalorder %s60, 0
      %p542 = por %p540, %p541
      %p543 = scmp.ne.s32.totalorder %s531, %s532
      %p544 = scmp.eq.s32.totalorder %s61, 1
      %p545 = por %p543, %p544
      %p547 = scmp.ne.s32.totalorder %s532, %s546
      %p548 = scmp.eq.s32.totalorder %s61, 0
      %p549 = por %p547, %p548
      %s551 = sadd.s32 %s550, 1
      %p554 = scmp.eq.s32.totalorder %s55, 1
      %p555 = scmp.ne.s32.totalorder %s550, %s552
      %p556 = scmp.eq.s32.totalorder %s55, 0
      %p557 = por %p555, %p556
      %p558 = scmp.ne.s32.totalorder %s550, %s552
      %p559 = scmp.eq.s32.totalorder %s60, 1
      %p560 = por %p558, %p559
      %p561 = scmp.ne.s32.totalorder %s552, %s553
      %p562 = scmp.eq.s32.totalorder %s60, 0
      %p563 = por %p561, %p562
      %p564 = scmp.ne.s32.totalorder %s552, %s553
      %p565 = scmp.eq.s32.totalorder %s61, 1
      %p566 = por %p564, %p565
      %p568 = scmp.ne.s32.totalorder %s553, %s567
      %p569 = scmp.eq.s32.totalorder %s61, 0
      %p570 = por %p568, %p569
      %s572 = sadd.s32 %s571, 1
      %p575 = scmp.eq.s32.totalorder %s55, 1
      %p576 = scmp.ne.s32.totalorder %s571, %s573
      %p577 = scmp.eq.s32.totalorder %s55, 0
      %p578 = por %p576, %p577
      %p579 = scmp.ne.s32.totalorder %s571, %s573
      %p580 = scmp.eq.s32.totalorder %s60, 1
      %p581 = por %p579, %p580
      %p582 = scmp.ne.s32.totalorder %s573, %s574
      %p583 = scmp.eq.s32.totalorder %s60, 0
      %p584 = por %p582, %p583
      %p585 = scmp.ne.s32.totalorder %s573, %s574
      %p586 = scmp.eq.s32.totalorder %s61, 1
      %p587 = por %p585, %p586
      %p589 = scmp.ne.s32.totalorder %s574, %s588
      %p590 = scmp.eq.s32.totalorder %s61, 0
      %p591 = por %p589, %p590
      %s593 = sadd.s32 %s592, 1
      %p596 = scmp.eq.s32.totalorder %s55, 1
      %p597 = scmp.ne.s32.totalorder %s592, %s594
      %p598 = scmp.eq.s32.totalorder %s55, 0
      %p599 = por %p597, %p598
      %p600 = scmp.ne.s32.totalorder %s592, %s594
      %p601 = scmp.eq.s32.totalorder %s60, 1
      %p602 = por %p600, %p601
      %p603 = scmp.ne.s32.totalorder %s594, %s595
      %p604 = scmp.eq.s32.totalorder %s60, 0
      %p605 = por %p603, %p604
      %p606 = scmp.ne.s32.totalorder %s594, %s595
      %p607 = scmp.eq.s32.totalorder %s61, 1
      %p608 = por %p606, %p607
      %p610 = scmp.ne.s32.totalorder %s595, %s609
      %p611 = scmp.eq.s32.totalorder %s61, 0
      %p612 = por %p610, %p611
      %s614 = sadd.s32 %s613, 1
      %p617 = scmp.eq.s32.totalorder %s55, 1
      %p618 = scmp.ne.s32.totalorder %s613, %s615
      %p619 = scmp.eq.s32.totalorder %s55, 0
      %p620 = por %p618, %p619
      %p621 = scmp.ne.s32.totalorder %s613, %s615
      %p622 = scmp.eq.s32.totalorder %s60, 1
      %p623 = por %p621, %p622
      %p624 = scmp.ne.s32.totalorder %s615, %s616
      %p625 = scmp.eq.s32.totalorder %s60, 0
      %p626 = por %p624, %p625
      %p627 = scmp.ne.s32.totalorder %s615, %s616
      %p628 = scmp.eq.s32.totalorder %s61, 1
      %p629 = por %p627, %p628
      %p631 = scmp.ne.s32.totalorder %s616, %s630
      %p632 = scmp.eq.s32.totalorder %s61, 0
      %p633 = por %p631, %p632
      %s635 = sadd.s32 %s634, 1
      %p638 = scmp.eq.s32.totalorder %s55, 1
      %p639 = scmp.ne.s32.totalorder %s634, %s636
      %p640 = scmp.eq.s32.totalorder %s55, 0
      %p641 = por %p639, %p640
      %p642 = scmp.ne.s32.totalorder %s634, %s636
      %p643 = scmp.eq.s32.totalorder %s60, 1
      %p644 = por %p642, %p643
      %p645 = scmp.ne.s32.totalorder %s636, %s637
      %p646 = scmp.eq.s32.totalorder %s60, 0
      %p647 = por %p645, %p646
      %p648 = scmp.ne.s32.totalorder %s636, %s637
      %p649 = scmp.eq.s32.totalorder %s61, 1
      %p650 = por %p648, %p649
      %p652 = scmp.ne.s32.totalorder %s637, %s651
      %p653 = scmp.eq.s32.totalorder %s61, 0
      %p654 = por %p652, %p653
      %s655 = ssub.s32 %s55, %s62
      %p656 = scmp.eq.s32.totalorder %s655, 0
      %s658 = sadd.s32 %s657, 1
      %s659 = scalar_select %p656, %s657, %s658
      %p662 = pneg %p656
      %p663 = scmp.eq.s32.totalorder %s55, 1
      %p664 = por %p662, %p663
      %p665 = scmp.ne.s32.totalorder %s657, %s660
      %p666 = scmp.eq.s32.totalorder %s55, 0
      %p667 = por %p665, %p666
      %p668 = scmp.ne.s32.totalorder %s657, %s660
      %p669 = scmp.eq.s32.totalorder %s60, 1
      %p670 = por %p668, %p669
      %p671 = scmp.ne.s32.totalorder %s660, %s661
      %p672 = scmp.eq.s32.totalorder %s60, 0
      %p673 = por %p671, %p672
      %p674 = scmp.ne.s32.totalorder %s660, %s661
      %p675 = scmp.eq.s32.totalorder %s61, 1
      %p676 = por %p674, %p675
      %p678 = scmp.ne.s32.totalorder %s661, %s677
      %p679 = scmp.eq.s32.totalorder %s61, 0
      %p680 = por %p678, %p679
      %p681 = scmp.le.s32.totalorder 1, %s55
      %p682 = scmp.lt.s32.totalorder %s55, 3
      %p683 = pnand %p681, %p682
      %p684 = pneg %p683
      // Predicated region
      $region9: #{tpu_custom_call.1} parent=5 // pred_check
        _
      $region10: #{tpu_custom_call.1} parent=5 // pred_check_branch
        %686 = sbr.rel (%p683) target = $region12
      $region11: #{tpu_custom_call.1} parent=5 // pred_region
        %s687 = ssub.s32 %s55, 1
        // Predicated region
        $region13: #{tpu_custom_call.1} parent=11 // pred_check
          %p688 = pneg %p206
        $region14: #{tpu_custom_call.1} parent=11 // pred_check_branch
          %690 = sbr.rel (%p688) target = $region16
        $region15: #{tpu_custom_call.1} parent=11 // pred_region
          %s692 = ssub.s32 2048, 2048
          %693 = vsyncadd [#allocation12], %s692
          %s694 = sshll.u32 [#allocation11], 4
          %s695 = int_to_ptr.vmem [resolvable:$true] %s694
          %700 = dma.hbm_to_vmem [thread:$0]  %s5, 2048, %s695, [#allocation12], 128, 128, 8
        $region16: #{tpu_custom_call.1} parent=11 // pred_fallthru
          _
        // Predicated region
        $region17: #{tpu_custom_call.1} parent=11 // pred_check
          %p701 = pneg %p227
        $region18: #{tpu_custom_call.1} parent=11 // pred_check_branch
          %703 = sbr.rel (%p701) target = $region20
        $region19: #{tpu_custom_call.1} parent=11 // pred_region
          %s705 = ssub.s32 64, 64
          %706 = vsyncadd [#allocation12], %s705
          %s708 = sshll.u32 [#allocation13], 4
          %s709 = int_to_ptr.vmem [resolvable:$true] %s708
          %711 = dma.hbm_to_vmem [thread:$0]  %s6, 64, %s709, [#allocation12]
        $region20: #{tpu_custom_call.1} parent=11 // pred_fallthru
          _
        // Predicated region
        $region21: #{tpu_custom_call.1} parent=11 // pred_check
          %p712 = pneg %p248
        $region22: #{tpu_custom_call.1} parent=11 // pred_check_branch
          %714 = sbr.rel (%p712) target = $region24
        $region23: #{tpu_custom_call.1} parent=11 // pred_region
          %s716 = ssub.s32 9216, 9216
          %717 = vsyncadd [#allocation15], %s716
          %s718 = sshll.u32 [#allocation14], 4
          %s719 = int_to_ptr.vmem [resolvable:$true] %s718
          %724 = dma.hbm_to_vmem [thread:$0]  %s7, 9216, %s719, [#allocation15], 64, 64, 4
        $region24: #{tpu_custom_call.1} parent=11 // pred_fallthru
          _
        // Predicated region
        $region25: #{tpu_custom_call.1} parent=11 // pred_check
          %p725 = pneg %p269
        $region26: #{tpu_custom_call.1} parent=11 // pred_check_branch
          %727 = sbr.rel (%p725) target = $region28
        $region27: #{tpu_custom_call.1} parent=11 // pred_region
          %s729 = ssub.s32 1024, 1024
          %730 = vsyncadd [#allocation15], %s729
          %s731 = sshll.u32 [#allocation16], 4
          %s732 = int_to_ptr.vmem [resolvable:$true] %s731
          %737 = dma.hbm_to_vmem [thread:$0]  %s8, 1024, %s732, [#allocation15], 64, 64, 4
        $region28: #{tpu_custom_call.1} parent=11 // pred_fallthru
          _
        // Predicated region
        $region29: #{tpu_custom_call.1} parent=11 // pred_check
          %p738 = pneg %p290
        $region30: #{tpu_custom_call.1} parent=11 // pred_check_branch
          %740 = sbr.rel (%p738) target = $region32
        $region31: #{tpu_custom_call.1} parent=11 // pred_region
          %s742 = ssub.s32 128, 128
          %743 = vsyncadd [#allocation18], %s742
          %s745 = sshll.u32 [#allocation17], 4
          %s746 = int_to_ptr.vmem [resolvable:$true] %s745
          %748 = dma.hbm_to_vmem [thread:$0]  %s9, 128, %s746, [#allocation18]
        $region32: #{tpu_custom_call.1} parent=11 // pred_fallthru
          _
        // Predicated region
        $region33: #{tpu_custom_call.1} parent=11 // pred_check
          %p749 = pneg %p311
        $region34: #{tpu_custom_call.1} parent=11 // pred_check_branch
          %751 = sbr.rel (%p749) target = $region36
        $region35: #{tpu_custom_call.1} parent=11 // pred_region
          %s753 = ssub.s32 2048, 2048
          %754 = vsyncadd [#allocation18], %s753
          %s755 = sshll.u32 [#allocation19], 4
          %s756 = int_to_ptr.vmem [resolvable:$true] %s755
          %761 = dma.hbm_to_vmem [thread:$0]  %s10, 2048, %s756, [#allocation18], 128, 128, 8
        $region36: #{tpu_custom_call.1} parent=11 // pred_fallthru
          _
        // Predicated region
        $region37: #{tpu_custom_call.1} parent=11 // pred_check
          %p762 = pneg %p332
        $region38: #{tpu_custom_call.1} parent=11 // pred_check_branch
          %764 = sbr.rel (%p762) target = $region40
        $region39: #{tpu_custom_call.1} parent=11 // pred_region
          %s766 = ssub.s32 128, 128
          %767 = vsyncadd [#allocation21], %s766
          %s769 = sshll.u32 [#allocation20], 4
          %s770 = int_to_ptr.vmem [resolvable:$true] %s769
          %772 = dma.hbm_to_vmem [thread:$0]  %s11, 128, %s770, [#allocation21]
        $region40: #{tpu_custom_call.1} parent=11 // pred_fallthru
          _
        // Predicated region
        $region41: #{tpu_custom_call.1} parent=11 // pred_check
          %p773 = pneg %p353
        $region42: #{tpu_custom_call.1} parent=11 // pred_check_branch
          %775 = sbr.rel (%p773) target = $region44
        $region43: #{tpu_custom_call.1} parent=11 // pred_region
          %s777 = ssub.s32 9216, 9216
          %778 = vsyncadd [#allocation21], %s777
          %s779 = sshll.u32 [#allocation22], 4
          %s780 = int_to_ptr.vmem [resolvable:$true] %s779
          %785 = dma.hbm_to_vmem [thread:$0]  %s12, 9216, %s780, [#allocation21], 64, 64, 4
        $region44: #{tpu_custom_call.1} parent=11 // pred_fallthru
          _
        // Predicated region
        $region45: #{tpu_custom_call.1} parent=11 // pred_check
          %p786 = pneg %p374
        $region46: #{tpu_custom_call.1} parent=11 // pred_check_branch
          %788 = sbr.rel (%p786) target = $region48
        $region47: #{tpu_custom_call.1} parent=11 // pred_region
          %s790 = ssub.s32 1024, 1024
          %791 = vsyncadd [#allocation24], %s790
          %s792 = sshll.u32 [#allocation23], 4
          %s793 = int_to_ptr.vmem [resolvable:$true] %s792
          %798 = dma.hbm_to_vmem [thread:$0]  %s13, 1024, %s793, [#allocation24], 64, 64, 4
        $region48: #{tpu_custom_call.1} parent=11 // pred_fallthru
          _
        // Predicated region
        $region49: #{tpu_custom_call.1} parent=11 // pred_check
          %p799 = pneg %p395
        $region50: #{tpu_custom_call.1} parent=11 // pred_check_branch
          %801 = sbr.rel (%p799) target = $region52
        $region51: #{tpu_custom_call.1} parent=11 // pred_region
          %s803 = ssub.s32 128, 128
          %804 = vsyncadd [#allocation24], %s803
          %s806 = sshll.u32 [#allocation25], 4
          %s807 = int_to_ptr.vmem [resolvable:$true] %s806
          %809 = dma.hbm_to_vmem [thread:$0]  %s14, 128, %s807, [#allocation24]
        $region52: #{tpu_custom_call.1} parent=11 // pred_fallthru
          _
        // Predicated region
        $region53: #{tpu_custom_call.1} parent=11 // pred_check
          %p810 = pneg %p416
        $region54: #{tpu_custom_call.1} parent=11 // pred_check_branch
          %812 = sbr.rel (%p810) target = $region56
        $region55: #{tpu_custom_call.1} parent=11 // pred_region
          %s814 = ssub.s32 2048, 2048
          %815 = vsyncadd [#allocation27], %s814
          %s816 = sshll.u32 [#allocation26], 4
          %s817 = int_to_ptr.vmem [resolvable:$true] %s816
          %822 = dma.hbm_to_vmem [thread:$0]  %s15, 2048, %s817, [#allocation27], 128, 128, 8
        $region56: #{tpu_custom_call.1} parent=11 // pred_fallthru
          _
        // Predicated region
        $region57: #{tpu_custom_call.1} parent=11 // pred_check
          %p823 = pneg %p437
        $region58: #{tpu_custom_call.1} parent=11 // pred_check_branch
          %825 = sbr.rel (%p823) target = $region60
        $region59: #{tpu_custom_call.1} parent=11 // pred_region
          %s827 = ssub.s32 256, 256
          %828 = vsyncadd [#allocation27], %s827
          %s829 = sshll.u32 [#allocation28], 4
          %s830 = int_to_ptr.vmem [resolvable:$true] %s829
          %835 = dma.hbm_to_vmem [thread:$0]  %s16, 256, %s830, [#allocation27], 128, 128, 8
        $region60: #{tpu_custom_call.1} parent=11 // pred_fallthru
          _
        // Predicated region
        $region61: #{tpu_custom_call.1} parent=11 // pred_check
          %p836 = pneg %p458
        $region62: #{tpu_custom_call.1} parent=11 // pred_check_branch
          %838 = sbr.rel (%p836) target = $region64
        $region63: #{tpu_custom_call.1} parent=11 // pred_region
          %s840 = ssub.s32 9216, 9216
          %841 = vsyncadd [#allocation30], %s840
          %s842 = sshll.u32 [#allocation29], 4
          %s843 = int_to_ptr.vmem [resolvable:$true] %s842
          %848 = dma.hbm_to_vmem [thread:$0]  %s17, 9216, %s843, [#allocation30], 64, 64, 4
        $region64: #{tpu_custom_call.1} parent=11 // pred_fallthru
          _
        // Predicated region
        $region65: #{tpu_custom_call.1} parent=11 // pred_check
          %p849 = pneg %p479
        $region66: #{tpu_custom_call.1} parent=11 // pred_check_branch
          %851 = sbr.rel (%p849) target = $region68
        $region67: #{tpu_custom_call.1} parent=11 // pred_region
          _
        $region68: #{tpu_custom_call.1} parent=11 // pred_fallthru
          _
        // Predicated region
        $region69: #{tpu_custom_call.1} parent=11 // pred_check
          %p852 = pneg %p500
        $region70: #{tpu_custom_call.1} parent=11 // pred_check_branch
          %854 = sbr.rel (%p852) target = $region72
        $region71: #{tpu_custom_call.1} parent=11 // pred_region
          %s856 = ssub.s32 128, 128
          %857 = vsyncadd [#allocation30], %s856
          %s859 = sshll.u32 [#allocation31], 4
          %s860 = int_to_ptr.vmem [resolvable:$true] %s859
          %862 = dma.hbm_to_vmem [thread:$0]  %s19, 128, %s860, [#allocation30]
        $region72: #{tpu_custom_call.1} parent=11 // pred_fallthru
          _
        // Predicated region
        $region73: #{tpu_custom_call.1} parent=11 // pred_check
          %p863 = pneg %p521
        $region74: #{tpu_custom_call.1} parent=11 // pred_check_branch
          %865 = sbr.rel (%p863) target = $region76
        $region75: #{tpu_custom_call.1} parent=11 // pred_region
          %s867 = ssub.s32 2048, 2048
          %868 = vsyncadd [#allocation33], %s867
          %s869 = sshll.u32 [#allocation32], 4
          %s870 = int_to_ptr.vmem [resolvable:$true] %s869
          %875 = dma.hbm_to_vmem [thread:$0]  %s20, 2048, %s870, [#allocation33], 128, 128, 8
        $region76: #{tpu_custom_call.1} parent=11 // pred_fallthru
          _
        // Predicated region
        $region77: #{tpu_custom_call.1} parent=11 // pred_check
          %p876 = pneg %p542
        $region78: #{tpu_custom_call.1} parent=11 // pred_check_branch
          %878 = sbr.rel (%p876) target = $region80
        $region79: #{tpu_custom_call.1} parent=11 // pred_region
          %s880 = ssub.s32 512, 512
          %881 = vsyncadd [#allocation33], %s880
          %s882 = sshll.u32 [#allocation34], 4
          %s883 = int_to_ptr.vmem [resolvable:$true] %s882
          %888 = dma.hbm_to_vmem [thread:$0]  %s21, 512, %s883, [#allocation33], 128, 128, 8
        $region80: #{tpu_custom_call.1} parent=11 // pred_fallthru
          _
        // Predicated region
        $region81: #{tpu_custom_call.1} parent=11 // pred_check
          %p889 = pneg %p563
        $region82: #{tpu_custom_call.1} parent=11 // pred_check_branch
          %891 = sbr.rel (%p889) target = $region84
        $region83: #{tpu_custom_call.1} parent=11 // pred_region
          %s893 = ssub.s32 9216, 9216
          %894 = vsyncadd [#allocation36], %s893
          %s895 = sshll.u32 [#allocation35], 4
          %s896 = int_to_ptr.vmem [resolvable:$true] %s895
          %901 = dma.hbm_to_vmem [thread:$0]  %s22, 9216, %s896, [#allocation36], 64, 64, 4
        $region84: #{tpu_custom_call.1} parent=11 // pred_fallthru
          _
        // Predicated region
        $region85: #{tpu_custom_call.1} parent=11 // pred_check
          %p902 = pneg %p584
        $region86: #{tpu_custom_call.1} parent=11 // pred_check_branch
          %904 = sbr.rel (%p902) target = $region88
        $region87: #{tpu_custom_call.1} parent=11 // pred_region
          %s906 = ssub.s32 1024, 1024
          %907 = vsyncadd [#allocation36], %s906
          %s908 = sshll.u32 [#allocation37], 4
          %s909 = int_to_ptr.vmem [resolvable:$true] %s908
          %914 = dma.hbm_to_vmem [thread:$0]  %s23, 1024, %s909, [#allocation36], 64, 64, 4
        $region88: #{tpu_custom_call.1} parent=11 // pred_fallthru
          _
        // Predicated region
        $region89: #{tpu_custom_call.1} parent=11 // pred_check
          %p915 = pneg %p605
        $region90: #{tpu_custom_call.1} parent=11 // pred_check_branch
          %917 = sbr.rel (%p915) target = $region92
        $region91: #{tpu_custom_call.1} parent=11 // pred_region
          _
        $region92: #{tpu_custom_call.1} parent=11 // pred_fallthru
          _
        // Predicated region
        $region93: #{tpu_custom_call.1} parent=11 // pred_check
          %p918 = pneg %p626
        $region94: #{tpu_custom_call.1} parent=11 // pred_check_branch
          %920 = sbr.rel (%p918) target = $region96
        $region95: #{tpu_custom_call.1} parent=11 // pred_region
          %s922 = ssub.s32 1024, 1024
          %923 = vsyncadd [#allocation39], %s922
          %s924 = sshll.u32 [#allocation38], 4
          %s925 = int_to_ptr.vmem [resolvable:$true] %s924
          %930 = dma.hbm_to_vmem [thread:$0]  %s25, 1024, %s925, [#allocation39], 64, 64, 4
        $region96: #{tpu_custom_call.1} parent=11 // pred_fallthru
          _
        // Predicated region
        $region97: #{tpu_custom_call.1} parent=11 // pred_check
          %p931 = pneg %p647
        $region98: #{tpu_custom_call.1} parent=11 // pred_check_branch
          %933 = sbr.rel (%p931) target = $region100
        $region99: #{tpu_custom_call.1} parent=11 // pred_region
          _
        $region100: #{tpu_custom_call.1} parent=11 // pred_fallthru
          _
      $region12: #{tpu_custom_call.1} parent=5 // pred_fallthru
        _
      %p934 = scmp.lt.s32.totalorder %s55, 2
      // Predicated region
      $region101: #{tpu_custom_call.1} parent=5 // pred_check
        %p935 = pneg %p934
      $region102: #{tpu_custom_call.1} parent=5 // pred_check_branch
        %937 = sbr.rel (%p935) target = $region104
      $region103: #{tpu_custom_call.1} parent=5 // pred_region
        // Predicated region
        $region105: #{tpu_custom_call.1} parent=103 // pred_check
          %p938 = pneg %p75
        $region106: #{tpu_custom_call.1} parent=103 // pred_check_branch
          %940 = sbr.rel (%p938) target = $region108
        $region107: #{tpu_custom_call.1} parent=103 // pred_region
          %s941 = sand.u32 %s65, 1
          %s942 = scalar_lea.sflag [#allocation3], %s941
          %s943 = sand.u32 %s65, 1
          %s944 = smul.addr %s943, 2
          %s945 = scalar_lea.vmem [#allocation2], %s944
          %s947 = ssub.s32 32, 32
          %948 = vsyncadd %s942, %s947
          %s949 = smul.addr %s55, 32
          %s950 = scalar_lea.hbm %s0, %s949
          %s952 = sshll.u32 %s945, 4
          %s953 = int_to_ptr.vmem [resolvable:$true] %s952
          %955 = dma.hbm_to_vmem [thread:$0]  %s950, 32, %s953, %s942
        $region108: #{tpu_custom_call.1} parent=103 // pred_fallthru
          _
        // Predicated region
        $region109: #{tpu_custom_call.1} parent=103 // pred_check
          %p956 = pneg %p101
        $region110: #{tpu_custom_call.1} parent=103 // pred_check_branch
          %958 = sbr.rel (%p956) target = $region112
        $region111: #{tpu_custom_call.1} parent=103 // pred_region
          %s959 = sand.u32 %s55, 1
          %s960 = scalar_lea.sflag [#allocation6], %s959
          %s961 = sand.u32 %s91, 1
          %s962 = smul.addr %s961, 4
          %s963 = scalar_lea.vmem [#allocation5], %s962
          %s965 = ssub.s32 64, 64
          %966 = vsyncadd %s960, %s965
          %s967 = smul.addr %s55, 64
          %s968 = scalar_lea.hbm %s1, %s967
          %s970 = sshll.u32 %s963, 4
          %s971 = int_to_ptr.vmem [resolvable:$true] %s970
          %973 = dma.hbm_to_vmem [thread:$0]  %s968, 64, %s971, %s960
        $region112: #{tpu_custom_call.1} parent=103 // pred_fallthru
          _
        // Predicated region
        $region113: #{tpu_custom_call.1} parent=103 // pred_check
          %p974 = pneg %p127
        $region114: #{tpu_custom_call.1} parent=103 // pred_check_branch
          %976 = sbr.rel (%p974) target = $region116
        $region115: #{tpu_custom_call.1} parent=103 // pred_region
          %s977 = sand.u32 %s55, 1
          %s978 = scalar_lea.sflag [#allocation6], %s977
          %s979 = sand.u32 %s117, 1
          %s980 = smul.addr %s979, 8
          %s981 = scalar_lea.vmem [#allocation7], %s980
          %s983 = ssub.s32 128, 128
          %984 = vsyncadd %s978, %s983
          %s985 = smul.addr %s55, 128
          %s986 = scalar_lea.hbm %s2, %s985
          %s988 = sshll.u32 %s981, 4
          %s989 = int_to_ptr.vmem [resolvable:$true] %s988
          %991 = dma.hbm_to_vmem [thread:$0]  %s986, 128, %s989, %s978
        $region116: #{tpu_custom_call.1} parent=103 // pred_fallthru
          _
        // Predicated region
        $region117: #{tpu_custom_call.1} parent=103 // pred_check
          %p992 = pneg %p153
        $region118: #{tpu_custom_call.1} parent=103 // pred_check_branch
          %994 = sbr.rel (%p992) target = $region120
        $region119: #{tpu_custom_call.1} parent=103 // pred_region
          %s995 = sand.u32 %s55, 1
          %s996 = scalar_lea.sflag [#allocation9], %s995
          %s997 = sand.u32 %s143, 1
          %s998 = smul.addr %s997, 16
          %s999 = scalar_lea.vmem [#allocation8], %s998
          %s1001 = ssub.s32 256, 256
          %1002 = vsyncadd %s996, %s1001
          %s1003 = smul.addr %s55, 2
          %s1004 = smul.addr %s1003, 128
          %s1005 = scalar_lea.hbm %s3, %s1004
          %s1006 = sshll.u32 %s999, 4
          %s1007 = int_to_ptr.vmem [resolvable:$true] %s1006
          %1012 = dma.hbm_to_vmem [thread:$0]  %s1005, 256, %s1007, %s996, 128, 128, 8
        $region120: #{tpu_custom_call.1} parent=103 // pred_fallthru
          _
        // Predicated region
        $region121: #{tpu_custom_call.1} parent=103 // pred_check
          %p1013 = pneg %p179
        $region122: #{tpu_custom_call.1} parent=103 // pred_check_branch
          %1015 = sbr.rel (%p1013) target = $region124
        $region123: #{tpu_custom_call.1} parent=103 // pred_region
          %s1016 = sand.u32 %s55, 1
          %s1017 = scalar_lea.sflag [#allocation9], %s1016
          %s1018 = sand.u32 %s169, 1
          %s1019 = smul.addr %s1018, 32
          %s1020 = scalar_lea.vmem [#allocation10], %s1019
          %s1022 = ssub.s32 512, 512
          %1023 = vsyncadd %s1017, %s1022
          %s1024 = smul.addr %s55, 4
          %s1025 = smul.addr %s1024, 128
          %s1026 = scalar_lea.hbm %s4, %s1025
          %s1027 = sshll.u32 %s1020, 4
          %s1028 = int_to_ptr.vmem [resolvable:$true] %s1027
          %1033 = dma.hbm_to_vmem [thread:$0]  %s1026, 512, %s1028, %s1017, 128, 128, 8
        $region124: #{tpu_custom_call.1} parent=103 // pred_fallthru
          _
      $region104: #{tpu_custom_call.1} parent=5 // pred_fallthru
        _
      %p1034 = scmp.le.s32.totalorder 1, %s55
      %p1035 = scmp.lt.s32.totalorder %s55, 3
      %p1036 = pnand %p1034, %p1035
      %p1037 = pneg %p1036
      // Predicated region
      $region125: #{tpu_custom_call.1} parent=5 // pred_check
        _
      $region126: #{tpu_custom_call.1} parent=5 // pred_check_branch
        %1039 = sbr.rel (%p1036) target = $region128
      $region127: #{tpu_custom_call.1} parent=5 // pred_region
        %s1040 = ssub.s32 %s55, 1
        %s1041 = sand.u32 %s68, 1
        %s1042 = scalar_lea.sflag [#allocation3], %s1041
        %s1043 = sand.u32 %s68, 1
        %s1044 = smul.addr %s1043, 2
        %s1045 = scalar_lea.vmem [#allocation2], %s1044
        // Predicated region
        $region129: #{tpu_custom_call.1} parent=127 // pred_check
          %p1046 = pneg %p81
        $region130: #{tpu_custom_call.1} parent=127 // pred_check_branch
          %1048 = sbr.rel (%p1046) target = $region132
        $region131: #{tpu_custom_call.1} parent=127 // pred_region
          %1049 = dma.done %s1042, 32
        $region132: #{tpu_custom_call.1} parent=127 // pred_fallthru
          _
        %s1050 = sand.u32 %s60, 1
        %s1051 = scalar_lea.sflag [#allocation6], %s1050
        %s1052 = sand.u32 %s94, 1
        %s1053 = smul.addr %s1052, 4
        %s1054 = scalar_lea.vmem [#allocation5], %s1053
        // Predicated region
        $region133: #{tpu_custom_call.1} parent=127 // pred_check
          %p1055 = pneg %p107
        $region134: #{tpu_custom_call.1} parent=127 // pred_check_branch
          %1057 = sbr.rel (%p1055) target = $region136
        $region135: #{tpu_custom_call.1} parent=127 // pred_region
          %1058 = dma.done %s1051, 64
        $region136: #{tpu_custom_call.1} parent=127 // pred_fallthru
          _
        %s1059 = sand.u32 %s60, 1
        %s1060 = scalar_lea.sflag [#allocation6], %s1059
        %s1061 = sand.u32 %s120, 1
        %s1062 = smul.addr %s1061, 8
        %s1063 = scalar_lea.vmem [#allocation7], %s1062
        // Predicated region
        $region137: #{tpu_custom_call.1} parent=127 // pred_check
          %p1064 = pneg %p133
        $region138: #{tpu_custom_call.1} parent=127 // pred_check_branch
          %1066 = sbr.rel (%p1064) target = $region140
        $region139: #{tpu_custom_call.1} parent=127 // pred_region
          %1067 = dma.done %s1060, 128
        $region140: #{tpu_custom_call.1} parent=127 // pred_fallthru
          _
        %s1068 = sand.u32 %s60, 1
        %s1069 = scalar_lea.sflag [#allocation9], %s1068
        %s1070 = sand.u32 %s146, 1
        %s1071 = smul.addr %s1070, 16
        %s1072 = scalar_lea.vmem [#allocation8], %s1071
        // Predicated region
        $region141: #{tpu_custom_call.1} parent=127 // pred_check
          %p1073 = pneg %p159
        $region142: #{tpu_custom_call.1} parent=127 // pred_check_branch
          %1075 = sbr.rel (%p1073) target = $region144
        $region143: #{tpu_custom_call.1} parent=127 // pred_region
          %1076 = dma.done %s1069, 256
        $region144: #{tpu_custom_call.1} parent=127 // pred_fallthru
          _
        %s1077 = sand.u32 %s60, 1
        %s1078 = scalar_lea.sflag [#allocation9], %s1077
        %s1079 = sand.u32 %s172, 1
        %s1080 = smul.addr %s1079, 32
        %s1081 = scalar_lea.vmem [#allocation10], %s1080
        // Predicated region
        $region145: #{tpu_custom_call.1} parent=127 // pred_check
          %p1082 = pneg %p185
        $region146: #{tpu_custom_call.1} parent=127 // pred_check_branch
          %1084 = sbr.rel (%p1082) target = $region148
        $region147: #{tpu_custom_call.1} parent=127 // pred_region
          %1085 = dma.done %s1078, 512
        $region148: #{tpu_custom_call.1} parent=127 // pred_fallthru
          _
        // Predicated region
        $region149: #{tpu_custom_call.1} parent=127 // pred_check
          %p1086 = pneg %p206
        $region150: #{tpu_custom_call.1} parent=127 // pred_check_branch
          %1088 = sbr.rel (%p1086) target = $region152
        $region151: #{tpu_custom_call.1} parent=127 // pred_region
          %1089 = dma.done [#allocation12], 2048
        $region152: #{tpu_custom_call.1} parent=127 // pred_fallthru
          _
        // Predicated region
        $region153: #{tpu_custom_call.1} parent=127 // pred_check
          %p1090 = pneg %p227
        $region154: #{tpu_custom_call.1} parent=127 // pred_check_branch
          %1092 = sbr.rel (%p1090) target = $region156
        $region155: #{tpu_custom_call.1} parent=127 // pred_region
          %1093 = dma.done [#allocation12], 64
        $region156: #{tpu_custom_call.1} parent=127 // pred_fallthru
          _
        // Predicated region
        $region157: #{tpu_custom_call.1} parent=127 // pred_check
          %p1094 = pneg %p248
        $region158: #{tpu_custom_call.1} parent=127 // pred_check_branch
          %1096 = sbr.rel (%p1094) target = $region160
        $region159: #{tpu_custom_call.1} parent=127 // pred_region
          %1097 = dma.done [#allocation15], 9216
        $region160: #{tpu_custom_call.1} parent=127 // pred_fallthru
          _
        // Predicated region
        $region161: #{tpu_custom_call.1} parent=127 // pred_check
          %p1098 = pneg %p269
        $region162: #{tpu_custom_call.1} parent=127 // pred_check_branch
          %1100 = sbr.rel (%p1098) target = $region164
        $region163: #{tpu_custom_call.1} parent=127 // pred_region
          %1101 = dma.done [#allocation15], 1024
        $region164: #{tpu_custom_call.1} parent=127 // pred_fallthru
          _
        // Predicated region
        $region165: #{tpu_custom_call.1} parent=127 // pred_check
          %p1102 = pneg %p290
        $region166: #{tpu_custom_call.1} parent=127 // pred_check_branch
          %1104 = sbr.rel (%p1102) target = $region168
        $region167: #{tpu_custom_call.1} parent=127 // pred_region
          %1105 = dma.done [#allocation18], 128
        $region168: #{tpu_custom_call.1} parent=127 // pred_fallthru
          _
        // Predicated region
        $region169: #{tpu_custom_call.1} parent=127 // pred_check
          %p1106 = pneg %p311
        $region170: #{tpu_custom_call.1} parent=127 // pred_check_branch
          %1108 = sbr.rel (%p1106) target = $region172
        $region171: #{tpu_custom_call.1} parent=127 // pred_region
          %1109 = dma.done [#allocation18], 2048
        $region172: #{tpu_custom_call.1} parent=127 // pred_fallthru
          _
        // Predicated region
        $region173: #{tpu_custom_call.1} parent=127 // pred_check
          %p1110 = pneg %p332
        $region174: #{tpu_custom_call.1} parent=127 // pred_check_branch
          %1112 = sbr.rel (%p1110) target = $region176
        $region175: #{tpu_custom_call.1} parent=127 // pred_region
          %1113 = dma.done [#allocation21], 128
        $region176: #{tpu_custom_call.1} parent=127 // pred_fallthru
          _
        // Predicated region
        $region177: #{tpu_custom_call.1} parent=127 // pred_check
          %p1114 = pneg %p353
        $region178: #{tpu_custom_call.1} parent=127 // pred_check_branch
          %1116 = sbr.rel (%p1114) target = $region180
        $region179: #{tpu_custom_call.1} parent=127 // pred_region
          %1117 = dma.done [#allocation21], 9216
        $region180: #{tpu_custom_call.1} parent=127 // pred_fallthru
          _
        // Predicated region
        $region181: #{tpu_custom_call.1} parent=127 // pred_check
          %p1118 = pneg %p374
        $region182: #{tpu_custom_call.1} parent=127 // pred_check_branch
          %1120 = sbr.rel (%p1118) target = $region184
        $region183: #{tpu_custom_call.1} parent=127 // pred_region
          %1121 = dma.done [#allocation24], 1024
        $region184: #{tpu_custom_call.1} parent=127 // pred_fallthru
          _
        // Predicated region
        $region185: #{tpu_custom_call.1} parent=127 // pred_check
          %p1122 = pneg %p395
        $region186: #{tpu_custom_call.1} parent=127 // pred_check_branch
          %1124 = sbr.rel (%p1122) target = $region188
        $region187: #{tpu_custom_call.1} parent=127 // pred_region
          %1125 = dma.done [#allocation24], 128
        $region188: #{tpu_custom_call.1} parent=127 // pred_fallthru
          _
        // Predicated region
        $region189: #{tpu_custom_call.1} parent=127 // pred_check
          %p1126 = pneg %p416
        $region190: #{tpu_custom_call.1} parent=127 // pred_check_branch
          %1128 = sbr.rel (%p1126) target = $region192
        $region191: #{tpu_custom_call.1} parent=127 // pred_region
          %1129 = dma.done [#allocation27], 2048
        $region192: #{tpu_custom_call.1} parent=127 // pred_fallthru
          _
        // Predicated region
        $region193: #{tpu_custom_call.1} parent=127 // pred_check
          %p1130 = pneg %p437
        $region194: #{tpu_custom_call.1} parent=127 // pred_check_branch
          %1132 = sbr.rel (%p1130) target = $region196
        $region195: #{tpu_custom_call.1} parent=127 // pred_region
          %1133 = dma.done [#allocation27], 256
        $region196: #{tpu_custom_call.1} parent=127 // pred_fallthru
          _
        // Predicated region
        $region197: #{tpu_custom_call.1} parent=127 // pred_check
          %p1134 = pneg %p458
        $region198: #{tpu_custom_call.1} parent=127 // pred_check_branch
          %1136 = sbr.rel (%p1134) target = $region200
        $region199: #{tpu_custom_call.1} parent=127 // pred_region
          %1137 = dma.done [#allocation30], 9216
        $region200: #{tpu_custom_call.1} parent=127 // pred_fallthru
          _
        // Predicated region
        $region201: #{tpu_custom_call.1} parent=127 // pred_check
          %p1138 = pneg %p500
        $region202: #{tpu_custom_call.1} parent=127 // pred_check_branch
          %1140 = sbr.rel (%p1138) target = $region204
        $region203: #{tpu_custom_call.1} parent=127 // pred_region
          %1141 = dma.done [#allocation30], 128
        $region204: #{tpu_custom_call.1} parent=127 // pred_fallthru
          _
        // Predicated region
        $region205: #{tpu_custom_call.1} parent=127 // pred_check
          %p1142 = pneg %p521
        $region206: #{tpu_custom_call.1} parent=127 // pred_check_branch
          %1144 = sbr.rel (%p1142) target = $region208
        $region207: #{tpu_custom_call.1} parent=127 // pred_region
          %1145 = dma.done [#allocation33], 2048
        $region208: #{tpu_custom_call.1} parent=127 // pred_fallthru
          _
        // Predicated region
        $region209: #{tpu_custom_call.1} parent=127 // pred_check
          %p1146 = pneg %p542
        $region210: #{tpu_custom_call.1} parent=127 // pred_check_branch
          %1148 = sbr.rel (%p1146) target = $region212
        $region211: #{tpu_custom_call.1} parent=127 // pred_region
          %1149 = dma.done [#allocation33], 512
        $region212: #{tpu_custom_call.1} parent=127 // pred_fallthru
          _
        // Predicated region
        $region213: #{tpu_custom_call.1} parent=127 // pred_check
          %p1150 = pneg %p563
        $region214: #{tpu_custom_call.1} parent=127 // pred_check_branch
          %1152 = sbr.rel (%p1150) target = $region216
        $region215: #{tpu_custom_call.1} parent=127 // pred_region
          %1153 = dma.done [#allocation36], 9216
        $region216: #{tpu_custom_call.1} parent=127 // pred_fallthru
          _
        // Predicated region
        $region217: #{tpu_custom_call.1} parent=127 // pred_check
          %p1154 = pneg %p584
        $region218: #{tpu_custom_call.1} parent=127 // pred_check_branch
          %1156 = sbr.rel (%p1154) target = $region220
        $region219: #{tpu_custom_call.1} parent=127 // pred_region
          %1157 = dma.done [#allocation36], 1024
        $region220: #{tpu_custom_call.1} parent=127 // pred_fallthru
          _
        // Predicated region
        $region221: #{tpu_custom_call.1} parent=127 // pred_check
          %p1158 = pneg %p626
        $region222: #{tpu_custom_call.1} parent=127 // pred_check_branch
          %1160 = sbr.rel (%p1158) target = $region224
        $region223: #{tpu_custom_call.1} parent=127 // pred_region
          %1161 = dma.done [#allocation39], 1024
        $region224: #{tpu_custom_call.1} parent=127 // pred_fallthru
          _
        %s1162 = sand.u32 %s68, 1
        %s1163 = scalar_lea.sflag [#allocation3], %s1162
        %s1164 = sand.u32 %s68, 1
        %s1165 = smul.addr %s1164, 2
        %s1166 = scalar_lea.vmem [#allocation2], %s1165
        %p1167 = pneg %p81
        %p1168 = pneg %p78
        %s1169 = sand.u32 %s60, 1
        %s1170 = scalar_lea.sflag [#allocation6], %s1169
        %s1171 = sand.u32 %s94, 1
        %s1172 = smul.addr %s1171, 4
        %s1173 = scalar_lea.vmem [#allocation5], %s1172
        %p1174 = pneg %p107
        %p1175 = pneg %p104
        %s1176 = sand.u32 %s60, 1
        %s1177 = scalar_lea.sflag [#allocation6], %s1176
        %s1178 = sand.u32 %s120, 1
        %s1179 = smul.addr %s1178, 8
        %s1180 = scalar_lea.vmem [#allocation7], %s1179
        %p1181 = pneg %p133
        %p1182 = pneg %p130
        %s1183 = sand.u32 %s60, 1
        %s1184 = scalar_lea.sflag [#allocation9], %s1183
        %s1185 = sand.u32 %s146, 1
        %s1186 = smul.addr %s1185, 16
        %s1187 = scalar_lea.vmem [#allocation8], %s1186
        %p1188 = pneg %p159
        %p1189 = pneg %p156
        %s1190 = sand.u32 %s60, 1
        %s1191 = scalar_lea.sflag [#allocation9], %s1190
        %s1192 = sand.u32 %s172, 1
        %s1193 = smul.addr %s1192, 32
        %s1194 = scalar_lea.vmem [#allocation10], %s1193
        %p1195 = pneg %p185
        %p1196 = pneg %p182
        %p1197 = pneg %p206
        %p1198 = pneg %p203
        %p1199 = pneg %p227
        %p1200 = pneg %p224
        %p1201 = pneg %p248
        %p1202 = pneg %p245
        %p1203 = pneg %p269
        %p1204 = pneg %p266
        %p1205 = pneg %p290
        %p1206 = pneg %p287
        %p1207 = pneg %p311
        %p1208 = pneg %p308
        %p1209 = pneg %p332
        %p1210 = pneg %p329
        %p1211 = pneg %p353
        %p1212 = pneg %p350
        %p1213 = pneg %p374
        %p1214 = pneg %p371
        %p1215 = pneg %p395
        %p1216 = pneg %p392
        %p1217 = pneg %p416
        %p1218 = pneg %p413
        %p1219 = pneg %p437
        %p1220 = pneg %p434
        %p1221 = pneg %p458
        %p1222 = pneg %p455
        %p1223 = pneg %p479
        %p1224 = pneg %p476
        %p1225 = pneg %p500
        %p1226 = pneg %p497
        %p1227 = pneg %p521
        %p1228 = pneg %p518
        %p1229 = pneg %p542
        %p1230 = pneg %p539
        %p1231 = pneg %p563
        %p1232 = pneg %p560
        %p1233 = pneg %p584
        %p1234 = pneg %p581
        %p1235 = pneg %p605
        %p1236 = pneg %p602
        %p1237 = pneg %p626
        %p1238 = pneg %p623
        %p1239 = pneg %p647
        %p1240 = pneg %p644
        %p1241 = pneg %p673
        %p1242 = pneg %p670
        %s1243 = sand.u32 %s660, 1
        %s1244 = scalar_lea.sflag [#allocation4], %s1243
        %s1245 = sand.u32 %s660, 1
        %s1246 = smul.addr %s1245, 32
        %s1247 = scalar_lea.vmem [#allocation40], %s1246
        %v1249 = vld [vmem:[%s1045] sm:$0x3]
        %v1250 = vld [vmem:[%s1054] sm:$0xf]
        %v1251 = vld [vmem:[#allocation17] sm:$0xff]
        %v1252 = vld [vmem:[#allocation16] sm:$0xf]
        %v1253 = vld [vmem:[#allocation16 + $0x4] sm:$0xf]
        %v1254 = vld [vmem:[#allocation16 + $0x8] sm:$0xf]
        %v1255 = vld [vmem:[#allocation16 + $0xc] sm:$0xf]
        %v1256 = vld [vmem:[#allocation16 + $0x10] sm:$0xf]
        %v1257 = vld [vmem:[#allocation16 + $0x14] sm:$0xf]
        %v1258 = vld [vmem:[#allocation16 + $0x18] sm:$0xf]
        %v1259 = vld [vmem:[#allocation16 + $0x1c] sm:$0xf]
        %v1260 = vld [vmem:[#allocation16 + $0x20] sm:$0xf]
        %v1261 = vld [vmem:[#allocation16 + $0x24] sm:$0xf]
        %v1262 = vld [vmem:[#allocation16 + $0x28] sm:$0xf]
        %v1263 = vld [vmem:[#allocation16 + $0x2c] sm:$0xf]
        %v1264 = vld [vmem:[#allocation16 + $0x30] sm:$0xf]
        %v1265 = vld [vmem:[#allocation16 + $0x34] sm:$0xf]
        %v1266 = vld [vmem:[#allocation16 + $0x38] sm:$0xf]
        %v1267 = vld [vmem:[#allocation16 + $0x3c] sm:$0xf]
        %v1268 = vunpack.c.l.bf16 %v1252
        %v1269 = vunpack.c.l.bf16 %v1253
        %v1270 = vunpack.c.l.bf16 %v1254
        %v1271 = vunpack.c.l.bf16 %v1255
        %v1272 = vunpack.c.l.bf16 %v1256
        %v1273 = vunpack.c.l.bf16 %v1257
        %v1274 = vunpack.c.l.bf16 %v1258
        %v1275 = vunpack.c.l.bf16 %v1259
        %v1276 = vunpack.c.l.bf16 %v1260
        %v1277 = vunpack.c.l.bf16 %v1261
        %v1278 = vunpack.c.l.bf16 %v1262
        %v1279 = vunpack.c.l.bf16 %v1263
        %v1280 = vunpack.c.l.bf16 %v1264
        %v1281 = vunpack.c.l.bf16 %v1265
        %v1282 = vunpack.c.l.bf16 %v1266
        %v1283 = vunpack.c.l.bf16 %v1267
        %v1284 = vpack.c.bf16 %v1249, %v1249
        %v1285 = vld [vmem:[#allocation11] sm:$0xff]
        %v1286 = vld [vmem:[#allocation11 + $0x8] sm:$0xff]
        %v1287 = vld [vmem:[#allocation11 + $0x10] sm:$0xff]
        %v1288 = vld [vmem:[#allocation11 + $0x18] sm:$0xff]
        %v1289 = vld [vmem:[#allocation11 + $0x20] sm:$0xff]
        %v1290 = vld [vmem:[#allocation11 + $0x28] sm:$0xff]
        %v1291 = vld [vmem:[#allocation11 + $0x30] sm:$0xff]
        %v1292 = vld [vmem:[#allocation11 + $0x38] sm:$0xff]
        %v1293 = vld [vmem:[#allocation11 + $0x40] sm:$0xff]
        %v1294 = vld [vmem:[#allocation11 + $0x48] sm:$0xff]
        %v1295 = vld [vmem:[#allocation11 + $0x50] sm:$0xff]
        %v1296 = vld [vmem:[#allocation11 + $0x58] sm:$0xff]
        %v1297 = vld [vmem:[#allocation11 + $0x60] sm:$0xff]
        %v1298 = vld [vmem:[#allocation11 + $0x68] sm:$0xff]
        %v1299 = vld [vmem:[#allocation11 + $0x70] sm:$0xff]
        %v1300 = vld [vmem:[#allocation11 + $0x78] sm:$0xff]
        %v1317 = vunpack.c.l.b16 %v1285
        %v1318 = vunpack.c.h.b16 %v1285
        %v1319 = vunpack.c.l.b16 %v1286
        %v1320 = vunpack.c.h.b16 %v1286
        %v1321 = vunpack.c.l.b16 %v1287
        %v1322 = vunpack.c.h.b16 %v1287
        %v1323 = vunpack.c.l.b16 %v1288
        %v1324 = vunpack.c.h.b16 %v1288
        %v1325 = vunpack.c.l.b16 %v1289
        %v1326 = vunpack.c.h.b16 %v1289
        %v1327 = vunpack.c.l.b16 %v1290
        %v1328 = vunpack.c.h.b16 %v1290
        %v1329 = vunpack.c.l.b16 %v1291
        %v1330 = vunpack.c.h.b16 %v1291
        %v1331 = vunpack.c.l.b16 %v1292
        %v1332 = vunpack.c.h.b16 %v1292
        %v1333 = vunpack.c.l.b16 %v1293
        %v1334 = vunpack.c.h.b16 %v1293
        %v1335 = vunpack.c.l.b16 %v1294
        %v1336 = vunpack.c.h.b16 %v1294
        %v1337 = vunpack.c.l.b16 %v1295
        %v1338 = vunpack.c.h.b16 %v1295
        %v1339 = vunpack.c.l.b16 %v1296
        %v1340 = vunpack.c.h.b16 %v1296
        %v1341 = vunpack.c.l.b16 %v1297
        %v1342 = vunpack.c.h.b16 %v1297
        %v1343 = vunpack.c.l.b16 %v1298
        %v1344 = vunpack.c.h.b16 %v1298
        %v1345 = vunpack.c.l.b16 %v1299
        %v1346 = vunpack.c.h.b16 %v1299
        %v1347 = vunpack.c.l.b16 %v1300
        %v1348 = vunpack.c.h.b16 %v1300
        %v1349 = vpack.c.b16 %v1319, %v1317
        %v1350 = vpack.c.b16 %v1320, %v1318
        %v1351 = vpack.c.b16 %v1323, %v1321
        %v1352 = vpack.c.b16 %v1324, %v1322
        %v1353 = vpack.c.b16 %v1327, %v1325
        %v1354 = vpack.c.b16 %v1328, %v1326
        %v1355 = vpack.c.b16 %v1331, %v1329
        %v1356 = vpack.c.b16 %v1332, %v1330
        %v1357 = vpack.c.b16 %v1335, %v1333
        %v1358 = vpack.c.b16 %v1336, %v1334
        %v1359 = vpack.c.b16 %v1339, %v1337
        %v1360 = vpack.c.b16 %v1340, %v1338
        %v1361 = vpack.c.b16 %v1343, %v1341
        %v1362 = vpack.c.b16 %v1344, %v1342
        %v1363 = vpack.c.b16 %v1347, %v1345
        %v1364 = vpack.c.b16 %v1348, %v1346
        %1381 = vmatprep.subr.bf16.mxu0 %v1350
        %1382 = vmatpush1.bf16.msra.mxu0 %v1349
        %1383 = vmatprep.subr.bf16.mxu0 %v1352
        %1384 = vmatpush1.bf16.msra.mxu0 %v1351
        %1385 = vmatprep.subr.bf16.mxu0 %v1354
        %1386 = vmatpush1.bf16.msra.mxu0 %v1353
        %1387 = vmatprep.subr.bf16.mxu0 %v1356
        %1388 = vmatpush1.bf16.msra.mxu0 %v1355
        %1389 = vmatprep.subr.bf16.mxu0 %v1358
        %1390 = vmatpush1.bf16.msra.mxu0 %v1357
        %1391 = vmatprep.subr.bf16.mxu0 %v1360
        %1392 = vmatpush1.bf16.msra.mxu0 %v1359
        %1393 = vmatprep.subr.bf16.mxu0 %v1362
        %1394 = vmatpush1.bf16.msra.mxu0 %v1361
        %1395 = vmatprep.subr.bf16.mxu0 %v1364
        %1396 = vmatpush1.bf16.msra.mxu0 %v1363
        %1397 = vmatprep.subr.bf16.mxu0 0
        %1398 = vmatpush1.bf16.msra.mxu0 0
        %1399 = vmatprep.subr.bf16.mxu0 0
        %1400 = vmatpush1.bf16.msra.mxu0 0
        %1401 = vmatprep.subr.bf16.mxu0 0
        %1402 = vmatpush1.bf16.msra.mxu0 0
        %1403 = vmatprep.subr.bf16.mxu0 0
        %1404 = vmatpush1.bf16.msra.mxu0 0
        %1405 = vmatprep.subr.bf16.mxu0 0
        %1406 = vmatpush1.bf16.msra.mxu0 0
        %1407 = vmatprep.subr.bf16.mxu0 0
        %1408 = vmatpush1.bf16.msra.mxu0 0
        %1409 = vmatprep.subr.bf16.mxu0 0
        %1410 = vmatpush1.bf16.msra.mxu0 0
        %1411 = vmatprep.subr.bf16.mxu0 0
        %1412 = vmatpush1.bf16.msra.mxu0 0
        %1413 = vmatprep.mubr.bf16.mxu0 0
        %1414 = vmatmul.mubr.bf16.gmra.mrb[0].mxu0 %v1284
        %v1415 = vpop.f32.mrb[0].mxu0
        %v1416 = vadd.f32 0.0, %v1415
        %v1417 = vpop.f32.mrb[0].mxu0
        %v1418 = vadd.f32 0.0, %v1417
        %v1419 = vpop.f32.mrb[0].mxu0
        %v1420 = vpop.f32.mrb[0].mxu0
        %1421 = vdwg.mxu0
        %v1423 = vrot.slane %v1418, 6
        %vm1425 = vcmask 1041408
        %v1426 = vsel %vm1425, %v1416, %v1423
        %v1427 = vld [vmem:[#allocation13] sm:$0xf]
        %v1428 = vlaneseq
        %v1429 = vshrl.u32 %v1428, 7
        %v1430 = vsub.s32 0, %v1429
        %v1431 = vrot.slane %v1251, %v1430
        %vm1432 = vcmask 31744
        %v1434 = vsel %vm1432, %v1427, 0
        %vm1436 = vcmask 1043456
        %v1438 = vsel %vm1436, %v1426, 0
        %1440 = vmatprep.subr.mxu0 0.0
        %1441 = vmatpush1.msra.mxu0 %v1438
        %1442 = vmatprep.subr.mxu0 0.0
        %1443 = vmatpush1.msra.mxu0 0.0
        %1444 = vmatprep.subr.mxu0 0.0
        %1445 = vmatpush1.msra.mxu0 0.0
        %1446 = vmatprep.subr.mxu0 0.0
        %1447 = vmatpush1.msra.mxu0 0.0
        %1448 = vmatprep.subr.mxu0 0.0
        %1449 = vmatpush1.msra.mxu0 0.0
        %1450 = vmatprep.subr.mxu0 0.0
        %1451 = vmatpush1.msra.mxu0 0.0
        %1452 = vmatprep.subr.mxu0 0.0
        %1453 = vmatpush1.msra.mxu0 0.0
        %1454 = vmatprep.subr.mxu0 0.0
        %1455 = vmatpush1.msra.mxu0 0.0
        %1456 = vmatprep.subr.mxu0 0.0
        %1457 = vmatpush1.msra.mxu0 0.0
        %1458 = vmatprep.subr.mxu0 0.0
        %1459 = vmatpush1.msra.mxu0 0.0
        %1460 = vmatprep.subr.mxu0 0.0
        %1461 = vmatpush1.msra.mxu0 0.0
        %1462 = vmatprep.subr.mxu0 0.0
        %1463 = vmatpush1.msra.mxu0 0.0
        %1464 = vmatprep.subr.mxu0 0.0
        %1465 = vmatpush1.msra.mxu0 0.0
        %1466 = vmatprep.subr.mxu0 0.0
        %1467 = vmatpush1.msra.mxu0 0.0
        %1468 = vmatprep.subr.mxu0 0.0
        %1469 = vmatpush1.msra.mxu0 0.0
        %1470 = vmatprep.subr.mxu0 0.0
        %1471 = vmatpush1.msra.mxu0 0.0
        %1472 = vmatprep.subr.mxu0 0.0
        %1473 = vmatpush1.msra.mxu0 0.0
        %1474 = vmatprep.subr.mxu0 0.0
        %1475 = vmatpush1.msra.mxu0 0.0
        %1476 = vmatprep.subr.mxu0 0.0
        %1477 = vmatpush1.msra.mxu0 0.0
        %1478 = vmatprep.subr.mxu0 0.0
        %1479 = vmatpush1.msra.mxu0 0.0
        %1480 = vmatprep.subr.mxu0 0.0
        %1481 = vmatpush1.msra.mxu0 0.0
        %1482 = vmatprep.subr.mxu0 0.0
        %1483 = vmatpush1.msra.mxu0 0.0
        %1484 = vmatprep.subr.mxu0 0.0
        %1485 = vmatpush1.msra.mxu0 0.0
        %1486 = vmatprep.subr.mxu0 0.0
        %1487 = vmatpush1.msra.mxu0 0.0
        %1488 = vmatprep.subr.mxu0 0.0
        %1489 = vmatpush1.msra.mxu0 0.0
        %1490 = vmatprep.subr.mxu0 0.0
        %1491 = vmatpush1.msra.mxu0 0.0
        %1492 = vmatprep.subr.mxu0 0.0
        %1493 = vmatpush1.msra.mxu0 0.0
        %1494 = vmatprep.subr.mxu0 0.0
        %1495 = vmatpush1.msra.mxu0 0.0
        %1496 = vmatprep.subr.mxu0 0.0
        %1497 = vmatpush1.msra.mxu0 0.0
        %1498 = vmatprep.subr.mxu0 0.0
        %1499 = vmatpush1.msra.mxu0 0.0
        %1500 = vmatprep.subr.mxu0 0.0
        %1501 = vmatpush1.msra.mxu0 0.0
        %1502 = vmatprep.subr.mxu0 0.0
        %1503 = vmatpush1.msra.mxu0 0.0
        %1504 = vmatprep.mubr.f32.mxu0 0.0
        %1505 = vmatmul.mubr.f32.gmra.mrb[0].mxu0 %v1434
        %v1506 = vpop.f32.mrb[0].mxu0
        %v1507 = vadd.f32 %v1431, %v1506
        %v1508 = vpop.f32.mrb[0].mxu0
        %1509 = vdwg.mxu0
        %v1511 = vrot.slane %v1507, 7
        %vm1513 = vcmask 1040384
        %v1514 = vsel %vm1513, 0.0, %v1511
        %v1515 = vrot.slane %v1507, 1
        %vm1517 = vcmask 1042432
        %v1518 = vsel %vm1517, %v1515, 0.0
        %v1519 = vpack.c.bf16 %v1514, %v1514
        %v1520 = vld [vmem:[#allocation14] sm:$0xf]
        %v1521 = vld [vmem:[#allocation14 + $0x4] sm:$0xf]
        %v1522 = vld [vmem:[#allocation14 + $0x8] sm:$0xf]
        %v1523 = vld [vmem:[#allocation14 + $0xc] sm:$0xf]
        %v1524 = vld [vmem:[#allocation14 + $0x10] sm:$0xf]
        %v1525 = vld [vmem:[#allocation14 + $0x14] sm:$0xf]
        %v1526 = vld [vmem:[#allocation14 + $0x18] sm:$0xf]
        %v1527 = vld [vmem:[#allocation14 + $0x1c] sm:$0xf]
        %v1528 = vld [vmem:[#allocation14 + $0x20] sm:$0xf]
        %v1529 = vld [vmem:[#allocation14 + $0x24] sm:$0xf]
        %v1530 = vld [vmem:[#allocation14 + $0x28] sm:$0xf]
        %v1531 = vld [vmem:[#allocation14 + $0x2c] sm:$0xf]
        %v1532 = vld [vmem:[#allocation14 + $0x30] sm:$0xf]
        %v1533 = vld [vmem:[#allocation14 + $0x34] sm:$0xf]
        %v1534 = vld [vmem:[#allocation14 + $0x38] sm:$0xf]
        %v1535 = vld [vmem:[#allocation14 + $0x3c] sm:$0xf]
        %v1536 = vpack.c.bf16 %v1507, %v1507
        %s1537 = scalar_lea.vmem [#allocation14], 64
        %v1538 = vld [vmem:[%s1537] sm:$0xf]
        %v1539 = vld [vmem:[%s1537 + $0x4] sm:$0xf]
        %v1540 = vld [vmem:[%s1537 + $0x8] sm:$0xf]
        %v1541 = vld [vmem:[%s1537 + $0xc] sm:$0xf]
        %v1542 = vld [vmem:[%s1537 + $0x10] sm:$0xf]
        %v1543 = vld [vmem:[%s1537 + $0x14] sm:$0xf]
        %v1544 = vld [vmem:[%s1537 + $0x18] sm:$0xf]
        %v1545 = vld [vmem:[%s1537 + $0x1c] sm:$0xf]
        %v1546 = vld [vmem:[%s1537 + $0x20] sm:$0xf]
        %v1547 = vld [vmem:[%s1537 + $0x24] sm:$0xf]
        %v1548 = vld [vmem:[%s1537 + $0x28] sm:$0xf]
        %v1549 = vld [vmem:[%s1537 + $0x2c] sm:$0xf]
        %v1550 = vld [vmem:[%s1537 + $0x30] sm:$0xf]
        %v1551 = vld [vmem:[%s1537 + $0x34] sm:$0xf]
        %v1552 = vld [vmem:[%s1537 + $0x38] sm:$0xf]
        %v1553 = vld [vmem:[%s1537 + $0x3c] sm:$0xf]
        %v1570 = vunpack.c.l.b16 %v1538
        %v1571 = vunpack.c.l.b16 %v1539
        %v1572 = vunpack.c.l.b16 %v1540
        %v1573 = vunpack.c.l.b16 %v1541
        %v1574 = vunpack.c.l.b16 %v1542
        %v1575 = vunpack.c.l.b16 %v1543
        %v1576 = vunpack.c.l.b16 %v1544
        %v1577 = vunpack.c.l.b16 %v1545
        %v1578 = vunpack.c.l.b16 %v1546
        %v1579 = vunpack.c.l.b16 %v1547
        %v1580 = vunpack.c.l.b16 %v1548
        %v1581 = vunpack.c.l.b16 %v1549
        %v1582 = vunpack.c.l.b16 %v1550
        %v1583 = vunpack.c.l.b16 %v1551
        %v1584 = vunpack.c.l.b16 %v1552
        %v1585 = vunpack.c.l.b16 %v1553
        %v1586 = vpack.c.b16 %v1571, %v1570
        %v1587 = vpack.c.b16 %v1573, %v1572
        %v1588 = vpack.c.b16 %v1575, %v1574
        %v1589 = vpack.c.b16 %v1577, %v1576
        %v1590 = vpack.c.b16 %v1579, %v1578
        %v1591 = vpack.c.b16 %v1581, %v1580
        %v1592 = vpack.c.b16 %v1583, %v1582
        %v1593 = vpack.c.b16 %v1585, %v1584
        %1602 = vmatprep.subr.bf16.mxu0 0
        %1603 = vmatpush1.bf16.msra.mxu0 %v1586
        %1604 = vmatprep.subr.bf16.mxu0 0
        %1605 = vmatpush1.bf16.msra.mxu0 %v1587
        %1606 = vmatprep.subr.bf16.mxu0 0
        %1607 = vmatpush1.bf16.msra.mxu0 %v1588
        %1608 = vmatprep.subr.bf16.mxu0 0
        %1609 = vmatpush1.bf16.msra.mxu0 %v1589
        %1610 = vmatprep.subr.bf16.mxu0 0
        %1611 = vmatpush1.bf16.msra.mxu0 %v1590
        %1612 = vmatprep.subr.bf16.mxu0 0
        %1613 = vmatpush1.bf16.msra.mxu0 %v1591
        %1614 = vmatprep.subr.bf16.mxu0 0
        %1615 = vmatpush1.bf16.msra.mxu0 %v1592
        %1616 = vmatprep.subr.bf16.mxu0 0
        %1617 = vmatpush1.bf16.msra.mxu0 %v1593
        %1618 = vmatprep.subr.bf16.mxu0 0
        %1619 = vmatpush1.bf16.msra.mxu0 0
        %1620 = vmatprep.subr.bf16.mxu0 0
        %1621 = vmatpush1.bf16.msra.mxu0 0
        %1622 = vmatprep.subr.bf16.mxu0 0
        %1623 = vmatpush1.bf16.msra.mxu0 0
        %1624 = vmatprep.subr.bf16.mxu0 0
        %1625 = vmatpush1.bf16.msra.mxu0 0
        %1626 = vmatprep.subr.bf16.mxu0 0
        %1627 = vmatpush1.bf16.msra.mxu0 0
        %1628 = vmatprep.subr.bf16.mxu0 0
        %1629 = vmatpush1.bf16.msra.mxu0 0
        %1630 = vmatprep.subr.bf16.mxu0 0
        %1631 = vmatpush1.bf16.msra.mxu0 0
        %1632 = vmatprep.subr.bf16.mxu0 0
        %1633 = vmatpush1.bf16.msra.mxu0 0
        %1634 = vmatprep.mubr.bf16.mxu0 0
        %1635 = vmatmul.mubr.bf16.gmra.mrb[0].mxu0 %v1536
        %v1636 = vpop.f32.mrb[0].mxu0
        %v1637 = vadd.f32 0.0, %v1636
        %v1638 = vpop.f32.mrb[0].mxu0
        %v1639 = vpop.f32.mrb[0].mxu0
        %v1640 = vpop.f32.mrb[0].mxu0
        %1641 = vdwg.mxu0
        %v1658 = vunpack.c.l.b16 %v1520
        %v1659 = vunpack.c.l.b16 %v1521
        %v1660 = vunpack.c.l.b16 %v1522
        %v1661 = vunpack.c.l.b16 %v1523
        %v1662 = vunpack.c.l.b16 %v1524
        %v1663 = vunpack.c.l.b16 %v1525
        %v1664 = vunpack.c.l.b16 %v1526
        %v1665 = vunpack.c.l.b16 %v1527
        %v1666 = vunpack.c.l.b16 %v1528
        %v1667 = vunpack.c.l.b16 %v1529
        %v1668 = vunpack.c.l.b16 %v1530
        %v1669 = vunpack.c.l.b16 %v1531
        %v1670 = vunpack.c.l.b16 %v1532
        %v1671 = vunpack.c.l.b16 %v1533
        %v1672 = vunpack.c.l.b16 %v1534
        %v1673 = vunpack.c.l.b16 %v1535
        %v1674 = vpack.c.b16 %v1659, %v1658
        %v1675 = vpack.c.b16 %v1661, %v1660
        %v1676 = vpack.c.b16 %v1663, %v1662
        %v1677 = vpack.c.b16 %v1665, %v1664
        %v1678 = vpack.c.b16 %v1667, %v1666
        %v1679 = vpack.c.b16 %v1669, %v1668
        %v1680 = vpack.c.b16 %v1671, %v1670
        %v1681 = vpack.c.b16 %v1673, %v1672
        %1690 = vmatprep.subr.bf16.mxu0 0
        %1691 = vmatpush1.bf16.msra.mxu0 %v1674
        %1692 = vmatprep.subr.bf16.mxu0 0
        %1693 = vmatpush1.bf16.msra.mxu0 %v1675
        %1694 = vmatprep.subr.bf16.mxu0 0
        %1695 = vmatpush1.bf16.msra.mxu0 %v1676
        %1696 = vmatprep.subr.bf16.mxu0 0
        %1697 = vmatpush1.bf16.msra.mxu0 %v1677
        %1698 = vmatprep.subr.bf16.mxu0 0
        %1699 = vmatpush1.bf16.msra.mxu0 %v1678
        %1700 = vmatprep.subr.bf16.mxu0 0
        %1701 = vmatpush1.bf16.msra.mxu0 %v1679
        %1702 = vmatprep.subr.bf16.mxu0 0
        %1703 = vmatpush1.bf16.msra.mxu0 %v1680
        %1704 = vmatprep.subr.bf16.mxu0 0
        %1705 = vmatpush1.bf16.msra.mxu0 %v1681
        %1706 = vmatprep.subr.bf16.mxu0 0
        %1707 = vmatpush1.bf16.msra.mxu0 0
        %1708 = vmatprep.subr.bf16.mxu0 0
        %1709 = vmatpush1.bf16.msra.mxu0 0
        %1710 = vmatprep.subr.bf16.mxu0 0
        %1711 = vmatpush1.bf16.msra.mxu0 0
        %1712 = vmatprep.subr.bf16.mxu0 0
        %1713 = vmatpush1.bf16.msra.mxu0 0
        %1714 = vmatprep.subr.bf16.mxu0 0
        %1715 = vmatpush1.bf16.msra.mxu0 0
        %1716 = vmatprep.subr.bf16.mxu0 0
        %1717 = vmatpush1.bf16.msra.mxu0 0
        %1718 = vmatprep.subr.bf16.mxu0 0
        %1719 = vmatpush1.bf16.msra.mxu0 0
        %1720 = vmatprep.subr.bf16.mxu0 0
        %1721 = vmatpush1.bf16.msra.mxu0 0
        %1722 = vmatprep.mubr.bf16.mxu0 0
        %1723 = vmatmul.mubr.bf16.gmra.mrb[0].mxu0 %v1519
        %v1724 = vpop.f32.mrb[0].mxu0
        %v1725 = vadd.f32 %v1637, %v1724
        %v1726 = vpop.f32.mrb[0].mxu0
        %v1727 = vpop.f32.mrb[0].mxu0
        %v1728 = vpop.f32.mrb[0].mxu0
        %1729 = vdwg.mxu0
        %v1730 = vpack.c.bf16 %v1518, %v1518
        %s1731 = scalar_lea.vmem [#allocation14], 128
        %v1732 = vld [vmem:[%s1731] sm:$0xf]
        %v1733 = vld [vmem:[%s1731 + $0x4] sm:$0xf]
        %v1734 = vld [vmem:[%s1731 + $0x8] sm:$0xf]
        %v1735 = vld [vmem:[%s1731 + $0xc] sm:$0xf]
        %v1736 = vld [vmem:[%s1731 + $0x10] sm:$0xf]
        %v1737 = vld [vmem:[%s1731 + $0x14] sm:$0xf]
        %v1738 = vld [vmem:[%s1731 + $0x18] sm:$0xf]
        %v1739 = vld [vmem:[%s1731 + $0x1c] sm:$0xf]
        %v1740 = vld [vmem:[%s1731 + $0x20] sm:$0xf]
        %v1741 = vld [vmem:[%s1731 + $0x24] sm:$0xf]
        %v1742 = vld [vmem:[%s1731 + $0x28] sm:$0xf]
        %v1743 = vld [vmem:[%s1731 + $0x2c] sm:$0xf]
        %v1744 = vld [vmem:[%s1731 + $0x30] sm:$0xf]
        %v1745 = vld [vmem:[%s1731 + $0x34] sm:$0xf]
        %v1746 = vld [vmem:[%s1731 + $0x38] sm:$0xf]
        %v1747 = vld [vmem:[%s1731 + $0x3c] sm:$0xf]
        %v1764 = vunpack.c.l.b16 %v1732
        %v1765 = vunpack.c.l.b16 %v1733
        %v1766 = vunpack.c.l.b16 %v1734
        %v1767 = vunpack.c.l.b16 %v1735
        %v1768 = vunpack.c.l.b16 %v1736
        %v1769 = vunpack.c.l.b16 %v1737
        %v1770 = vunpack.c.l.b16 %v1738
        %v1771 = vunpack.c.l.b16 %v1739
        %v1772 = vunpack.c.l.b16 %v1740
        %v1773 = vunpack.c.l.b16 %v1741
        %v1774 = vunpack.c.l.b16 %v1742
        %v1775 = vunpack.c.l.b16 %v1743
        %v1776 = vunpack.c.l.b16 %v1744
        %v1777 = vunpack.c.l.b16 %v1745
        %v1778 = vunpack.c.l.b16 %v1746
        %v1779 = vunpack.c.l.b16 %v1747
        %v1780 = vpack.c.b16 %v1765, %v1764
        %v1781 = vpack.c.b16 %v1767, %v1766
        %v1782 = vpack.c.b16 %v1769, %v1768
        %v1783 = vpack.c.b16 %v1771, %v1770
        %v1784 = vpack.c.b16 %v1773, %v1772
        %v1785 = vpack.c.b16 %v1775, %v1774
        %v1786 = vpack.c.b16 %v1777, %v1776
        %v1787 = vpack.c.b16 %v1779, %v1778
        %1796 = vmatprep.subr.bf16.mxu0 0
        %1797 = vmatpush1.bf16.msra.mxu0 %v1780
        %1798 = vmatprep.subr.bf16.mxu0 0
        %1799 = vmatpush1.bf16.msra.mxu0 %v1781
        %1800 = vmatprep.subr.bf16.mxu0 0
        %1801 = vmatpush1.bf16.msra.mxu0 %v1782
        %1802 = vmatprep.subr.bf16.mxu0 0
        %1803 = vmatpush1.bf16.msra.mxu0 %v1783
        %1804 = vmatprep.subr.bf16.mxu0 0
        %1805 = vmatpush1.bf16.msra.mxu0 %v1784
        %1806 = vmatprep.subr.bf16.mxu0 0
        %1807 = vmatpush1.bf16.msra.mxu0 %v1785
        %1808 = vmatprep.subr.bf16.mxu0 0
        %1809 = vmatpush1.bf16.msra.mxu0 %v1786
        %1810 = vmatprep.subr.bf16.mxu0 0
        %1811 = vmatpush1.bf16.msra.mxu0 %v1787
        %1812 = vmatprep.subr.bf16.mxu0 0
        %1813 = vmatpush1.bf16.msra.mxu0 0
        %1814 = vmatprep.subr.bf16.mxu0 0
        %1815 = vmatpush1.bf16.msra.mxu0 0
        %1816 = vmatprep.subr.bf16.mxu0 0
        %1817 = vmatpush1.bf16.msra.mxu0 0
        %1818 = vmatprep.subr.bf16.mxu0 0
        %1819 = vmatpush1.bf16.msra.mxu0 0
        %1820 = vmatprep.subr.bf16.mxu0 0
        %1821 = vmatpush1.bf16.msra.mxu0 0
        %1822 = vmatprep.subr.bf16.mxu0 0
        %1823 = vmatpush1.bf16.msra.mxu0 0
        %1824 = vmatprep.subr.bf16.mxu0 0
        %1825 = vmatpush1.bf16.msra.mxu0 0
        %1826 = vmatprep.subr.bf16.mxu0 0
        %1827 = vmatpush1.bf16.msra.mxu0 0
        %1828 = vmatprep.mubr.bf16.mxu0 0
        %1829 = vmatmul.mubr.bf16.gmra.mrb[0].mxu0 %v1730
        %v1830 = vpop.f32.mrb[0].mxu0
        %v1831 = vadd.f32 0.0, %v1830
        %v1832 = vpop.f32.mrb[0].mxu0
        %v1833 = vpop.f32.mrb[0].mxu0
        %v1834 = vpop.f32.mrb[0].mxu0
        %1835 = vdwg.mxu0
        %v1836 = vadd.f32 %v1725, %v1831
        %v1838 = vrot.slane %v1250, 7
        %v1840 = vsel %vm1513, 0.0, %v1838
        %v1841 = vrot.slane %v1250, 1
        %v1843 = vsel %vm1517, %v1841, 0.0
        %v1844 = vpack.c.bf16 %v1840, %v1840
        %s1845 = scalar_lea.vmem [#allocation14], 192
        %v1846 = vld [vmem:[%s1845] sm:$0xf]
        %v1847 = vld [vmem:[%s1845 + $0x4] sm:$0xf]
        %v1848 = vld [vmem:[%s1845 + $0x8] sm:$0xf]
        %v1849 = vld [vmem:[%s1845 + $0xc] sm:$0xf]
        %v1850 = vld [vmem:[%s1845 + $0x10] sm:$0xf]
        %v1851 = vld [vmem:[%s1845 + $0x14] sm:$0xf]
        %v1852 = vld [vmem:[%s1845 + $0x18] sm:$0xf]
        %v1853 = vld [vmem:[%s1845 + $0x1c] sm:$0xf]
        %v1854 = vld [vmem:[%s1845 + $0x20] sm:$0xf]
        %v1855 = vld [vmem:[%s1845 + $0x24] sm:$0xf]
        %v1856 = vld [vmem:[%s1845 + $0x28] sm:$0xf]
        %v1857 = vld [vmem:[%s1845 + $0x2c] sm:$0xf]
        %v1858 = vld [vmem:[%s1845 + $0x30] sm:$0xf]
        %v1859 = vld [vmem:[%s1845 + $0x34] sm:$0xf]
        %v1860 = vld [vmem:[%s1845 + $0x38] sm:$0xf]
        %v1861 = vld [vmem:[%s1845 + $0x3c] sm:$0xf]
        %v1862 = vpack.c.bf16 %v1250, %v1250
        %s1863 = scalar_lea.vmem [#allocation14], 256
        %v1864 = vld [vmem:[%s1863] sm:$0xf]
        %v1865 = vld [vmem:[%s1863 + $0x4] sm:$0xf]
        %v1866 = vld [vmem:[%s1863 + $0x8] sm:$0xf]
        %v1867 = vld [vmem:[%s1863 + $0xc] sm:$0xf]
        %v1868 = vld [vmem:[%s1863 + $0x10] sm:$0xf]
        %v1869 = vld [vmem:[%s1863 + $0x14] sm:$0xf]
        %v1870 = vld [vmem:[%s1863 + $0x18] sm:$0xf]
        %v1871 = vld [vmem:[%s1863 + $0x1c] sm:$0xf]
        %v1872 = vld [vmem:[%s1863 + $0x20] sm:$0xf]
        %v1873 = vld [vmem:[%s1863 + $0x24] sm:$0xf]
        %v1874 = vld [vmem:[%s1863 + $0x28] sm:$0xf]
        %v1875 = vld [vmem:[%s1863 + $0x2c] sm:$0xf]
        %v1876 = vld [vmem:[%s1863 + $0x30] sm:$0xf]
        %v1877 = vld [vmem:[%s1863 + $0x34] sm:$0xf]
        %v1878 = vld [vmem:[%s1863 + $0x38] sm:$0xf]
        %v1879 = vld [vmem:[%s1863 + $0x3c] sm:$0xf]
        %v1896 = vunpack.c.l.b16 %v1864
        %v1897 = vunpack.c.l.b16 %v1865
        %v1898 = vunpack.c.l.b16 %v1866
        %v1899 = vunpack.c.l.b16 %v1867
        %v1900 = vunpack.c.l.b16 %v1868
        %v1901 = vunpack.c.l.b16 %v1869
        %v1902 = vunpack.c.l.b16 %v1870
        %v1903 = vunpack.c.l.b16 %v1871
        %v1904 = vunpack.c.l.b16 %v1872
        %v1905 = vunpack.c.l.b16 %v1873
        %v1906 = vunpack.c.l.b16 %v1874
        %v1907 = vunpack.c.l.b16 %v1875
        %v1908 = vunpack.c.l.b16 %v1876
        %v1909 = vunpack.c.l.b16 %v1877
        %v1910 = vunpack.c.l.b16 %v1878
        %v1911 = vunpack.c.l.b16 %v1879
        %v1912 = vpack.c.b16 %v1897, %v1896
        %v1913 = vpack.c.b16 %v1899, %v1898
        %v1914 = vpack.c.b16 %v1901, %v1900
        %v1915 = vpack.c.b16 %v1903, %v1902
        %v1916 = vpack.c.b16 %v1905, %v1904
        %v1917 = vpack.c.b16 %v1907, %v1906
        %v1918 = vpack.c.b16 %v1909, %v1908
        %v1919 = vpack.c.b16 %v1911, %v1910
        %1928 = vmatprep.subr.bf16.mxu0 0
        %1929 = vmatpush1.bf16.msra.mxu0 %v1912
        %1930 = vmatprep.subr.bf16.mxu0 0
        %1931 = vmatpush1.bf16.msra.mxu0 %v1913
        %1932 = vmatprep.subr.bf16.mxu0 0
        %1933 = vmatpush1.bf16.msra.mxu0 %v1914
        %1934 = vmatprep.subr.bf16.mxu0 0
        %1935 = vmatpush1.bf16.msra.mxu0 %v1915
        %1936 = vmatprep.subr.bf16.mxu0 0
        %1937 = vmatpush1.bf16.msra.mxu0 %v1916
        %1938 = vmatprep.subr.bf16.mxu0 0
        %1939 = vmatpush1.bf16.msra.mxu0 %v1917
        %1940 = vmatprep.subr.bf16.mxu0 0
        %1941 = vmatpush1.bf16.msra.mxu0 %v1918
        %1942 = vmatprep.subr.bf16.mxu0 0
        %1943 = vmatpush1.bf16.msra.mxu0 %v1919
        %1944 = vmatprep.subr.bf16.mxu0 0
        %1945 = vmatpush1.bf16.msra.mxu0 0
        %1946 = vmatprep.subr.bf16.mxu0 0
        %1947 = vmatpush1.bf16.msra.mxu0 0
        %1948 = vmatprep.subr.bf16.mxu0 0
        %1949 = vmatpush1.bf16.msra.mxu0 0
        %1950 = vmatprep.subr.bf16.mxu0 0
        %1951 = vmatpush1.bf16.msra.mxu0 0
        %1952 = vmatprep.subr.bf16.mxu0 0
        %1953 = vmatpush1.bf16.msra.mxu0 0
        %1954 = vmatprep.subr.bf16.mxu0 0
        %1955 = vmatpush1.bf16.msra.mxu0 0
        %1956 = vmatprep.subr.bf16.mxu0 0
        %1957 = vmatpush1.bf16.msra.mxu0 0
        %1958 = vmatprep.subr.bf16.mxu0 0
        %1959 = vmatpush1.bf16.msra.mxu0 0
        %1960 = vmatprep.mubr.bf16.mxu0 0
        %1961 = vmatmul.mubr.bf16.gmra.mrb[0].mxu0 %v1862
        %v1962 = vpop.f32.mrb[0].mxu0
        %v1963 = vadd.f32 0.0, %v1962
        %v1964 = vpop.f32.mrb[0].mxu0
        %v1965 = vpop.f32.mrb[0].mxu0
        %v1966 = vpop.f32.mrb[0].mxu0
        %1967 = vdwg.mxu0
        %v1984 = vunpack.c.l.b16 %v1846
        %v1985 = vunpack.c.l.b16 %v1847
        %v1986 = vunpack.c.l.b16 %v1848
        %v1987 = vunpack.c.l.b16 %v1849
        %v1988 = vunpack.c.l.b16 %v1850
        %v1989 = vunpack.c.l.b16 %v1851
        %v1990 = vunpack.c.l.b16 %v1852
        %v1991 = vunpack.c.l.b16 %v1853
        %v1992 = vunpack.c.l.b16 %v1854
        %v1993 = vunpack.c.l.b16 %v1855
        %v1994 = vunpack.c.l.b16 %v1856
        %v1995 = vunpack.c.l.b16 %v1857
        %v1996 = vunpack.c.l.b16 %v1858
        %v1997 = vunpack.c.l.b16 %v1859
        %v1998 = vunpack.c.l.b16 %v1860
        %v1999 = vunpack.c.l.b16 %v1861
        %v2000 = vpack.c.b16 %v1985, %v1984
        %v2001 = vpack.c.b16 %v1987, %v1986
        %v2002 = vpack.c.b16 %v1989, %v1988
        %v2003 = vpack.c.b16 %v1991, %v1990
        %v2004 = vpack.c.b16 %v1993, %v1992
        %v2005 = vpack.c.b16 %v1995, %v1994
        %v2006 = vpack.c.b16 %v1997, %v1996
        %v2007 = vpack.c.b16 %v1999, %v1998
        %2016 = vmatprep.subr.bf16.mxu0 0
        %2017 = vmatpush1.bf16.msra.mxu0 %v2000
        %2018 = vmatprep.subr.bf16.mxu0 0
        %2019 = vmatpush1.bf16.msra.mxu0 %v2001
        %2020 = vmatprep.subr.bf16.mxu0 0
        %2021 = vmatpush1.bf16.msra.mxu0 %v2002
        %2022 = vmatprep.subr.bf16.mxu0 0
        %2023 = vmatpush1.bf16.msra.mxu0 %v2003
        %2024 = vmatprep.subr.bf16.mxu0 0
        %2025 = vmatpush1.bf16.msra.mxu0 %v2004
        %2026 = vmatprep.subr.bf16.mxu0 0
        %2027 = vmatpush1.bf16.msra.mxu0 %v2005
        %2028 = vmatprep.subr.bf16.mxu0 0
        %2029 = vmatpush1.bf16.msra.mxu0 %v2006
        %2030 = vmatprep.subr.bf16.mxu0 0
        %2031 = vmatpush1.bf16.msra.mxu0 %v2007
        %2032 = vmatprep.subr.bf16.mxu0 0
        %2033 = vmatpush1.bf16.msra.mxu0 0
        %2034 = vmatprep.subr.bf16.mxu0 0
        %2035 = vmatpush1.bf16.msra.mxu0 0
        %2036 = vmatprep.subr.bf16.mxu0 0
        %2037 = vmatpush1.bf16.msra.mxu0 0
        %2038 = vmatprep.subr.bf16.mxu0 0
        %2039 = vmatpush1.bf16.msra.mxu0 0
        %2040 = vmatprep.subr.bf16.mxu0 0
        %2041 = vmatpush1.bf16.msra.mxu0 0
        %2042 = vmatprep.subr.bf16.mxu0 0
        %2043 = vmatpush1.bf16.msra.mxu0 0
        %2044 = vmatprep.subr.bf16.mxu0 0
        %2045 = vmatpush1.bf16.msra.mxu0 0
        %2046 = vmatprep.subr.bf16.mxu0 0
        %2047 = vmatpush1.bf16.msra.mxu0 0
        %2048 = vmatprep.mubr.bf16.mxu0 0
        %2049 = vmatmul.mubr.bf16.gmra.mrb[0].mxu0 %v1844
        %v2050 = vpop.f32.mrb[0].mxu0
        %v2051 = vadd.f32 %v1963, %v2050
        %v2052 = vpop.f32.mrb[0].mxu0
        %v2053 = vpop.f32.mrb[0].mxu0
        %v2054 = vpop.f32.mrb[0].mxu0
        %2055 = vdwg.mxu0
        %v2056 = vpack.c.bf16 %v1843, %v1843
        %s2057 = scalar_lea.vmem [#allocation14], 320
        %v2058 = vld [vmem:[%s2057] sm:$0xf]
        %v2059 = vld [vmem:[%s2057 + $0x4] sm:$0xf]
        %v2060 = vld [vmem:[%s2057 + $0x8] sm:$0xf]
        %v2061 = vld [vmem:[%s2057 + $0xc] sm:$0xf]
        %v2062 = vld [vmem:[%s2057 + $0x10] sm:$0xf]
        %v2063 = vld [vmem:[%s2057 + $0x14] sm:$0xf]
        %v2064 = vld [vmem:[%s2057 + $0x18] sm:$0xf]
        %v2065 = vld [vmem:[%s2057 + $0x1c] sm:$0xf]
        %v2066 = vld [vmem:[%s2057 + $0x20] sm:$0xf]
        %v2067 = vld [vmem:[%s2057 + $0x24] sm:$0xf]
        %v2068 = vld [vmem:[%s2057 + $0x28] sm:$0xf]
        %v2069 = vld [vmem:[%s2057 + $0x2c] sm:$0xf]
        %v2070 = vld [vmem:[%s2057 + $0x30] sm:$0xf]
        %v2071 = vld [vmem:[%s2057 + $0x34] sm:$0xf]
        %v2072 = vld [vmem:[%s2057 + $0x38] sm:$0xf]
        %v2073 = vld [vmem:[%s2057 + $0x3c] sm:$0xf]
        %v2090 = vunpack.c.l.b16 %v2058
        %v2091 = vunpack.c.l.b16 %v2059
        %v2092 = vunpack.c.l.b16 %v2060
        %v2093 = vunpack.c.l.b16 %v2061
        %v2094 = vunpack.c.l.b16 %v2062
        %v2095 = vunpack.c.l.b16 %v2063
        %v2096 = vunpack.c.l.b16 %v2064
        %v2097 = vunpack.c.l.b16 %v2065
        %v2098 = vunpack.c.l.b16 %v2066
        %v2099 = vunpack.c.l.b16 %v2067
        %v2100 = vunpack.c.l.b16 %v2068
        %v2101 = vunpack.c.l.b16 %v2069
        %v2102 = vunpack.c.l.b16 %v2070
        %v2103 = vunpack.c.l.b16 %v2071
        %v2104 = vunpack.c.l.b16 %v2072
        %v2105 = vunpack.c.l.b16 %v2073
        %v2106 = vpack.c.b16 %v2091, %v2090
        %v2107 = vpack.c.b16 %v2093, %v2092
        %v2108 = vpack.c.b16 %v2095, %v2094
        %v2109 = vpack.c.b16 %v2097, %v2096
        %v2110 = vpack.c.b16 %v2099, %v2098
        %v2111 = vpack.c.b16 %v2101, %v2100
        %v2112 = vpack.c.b16 %v2103, %v2102
        %v2113 = vpack.c.b16 %v2105, %v2104
        %2122 = vmatprep.subr.bf16.mxu0 0
        %2123 = vmatpush1.bf16.msra.mxu0 %v2106
        %2124 = vmatprep.subr.bf16.mxu0 0
        %2125 = vmatpush1.bf16.msra.mxu0 %v2107
        %2126 = vmatprep.subr.bf16.mxu0 0
        %2127 = vmatpush1.bf16.msra.mxu0 %v2108
        %2128 = vmatprep.subr.bf16.mxu0 0
        %2129 = vmatpush1.bf16.msra.mxu0 %v2109
        %2130 = vmatprep.subr.bf16.mxu0 0
        %2131 = vmatpush1.bf16.msra.mxu0 %v2110
        %2132 = vmatprep.subr.bf16.mxu0 0
        %2133 = vmatpush1.bf16.msra.mxu0 %v2111
        %2134 = vmatprep.subr.bf16.mxu0 0
        %2135 = vmatpush1.bf16.msra.mxu0 %v2112
        %2136 = vmatprep.subr.bf16.mxu0 0
        %2137 = vmatpush1.bf16.msra.mxu0 %v2113
        %2138 = vmatprep.subr.bf16.mxu0 0
        %2139 = vmatpush1.bf16.msra.mxu0 0
        %2140 = vmatprep.subr.bf16.mxu0 0
        %2141 = vmatpush1.bf16.msra.mxu0 0
        %2142 = vmatprep.subr.bf16.mxu0 0
        %2143 = vmatpush1.bf16.msra.mxu0 0
        %2144 = vmatprep.subr.bf16.mxu0 0
        %2145 = vmatpush1.bf16.msra.mxu0 0
        %2146 = vmatprep.subr.bf16.mxu0 0
        %2147 = vmatpush1.bf16.msra.mxu0 0
        %2148 = vmatprep.subr.bf16.mxu0 0
        %2149 = vmatpush1.bf16.msra.mxu0 0
        %2150 = vmatprep.subr.bf16.mxu0 0
        %2151 = vmatpush1.bf16.msra.mxu0 0
        %2152 = vmatprep.subr.bf16.mxu0 0
        %2153 = vmatpush1.bf16.msra.mxu0 0
        %2154 = vmatprep.mubr.bf16.mxu0 0
        %2155 = vmatmul.mubr.bf16.gmra.mrb[0].mxu0 %v2056
        %v2156 = vpop.f32.mrb[0].mxu0
        %v2157 = vadd.f32 0.0, %v2156
        %v2158 = vpop.f32.mrb[0].mxu0
        %v2159 = vpop.f32.mrb[0].mxu0
        %v2160 = vpop.f32.mrb[0].mxu0
        %2161 = vdwg.mxu0
        %v2162 = vadd.f32 %v2051, %v2157
        %v2163 = vadd.f32 %v1836, %v2162
        %v2164 = vsel %vm1436, %v2163, 0.0
        %v2165 = vrot.slane %v2164, 4
        %v2166 = vadd.f32 %v2164, %v2165
        %v2167 = vrot.slane %v2166, 2
        %v2168 = vadd.f32 %v2166, %v2167
        %v2169 = vrot.slane %v2168, 1
        %v2170 = vadd.f32 %v2168, %v2169
        %2171 = vmatprep.subr.mxu0 0.0
        %2172 = vmatpush1.msra.mxu0 %v1268
        %2173 = vmatprep.subr.mxu0 0.0
        %2174 = vmatpush1.msra.mxu0 %v1269
        %2175 = vmatprep.subr.mxu0 0.0
        %2176 = vmatpush1.msra.mxu0 %v1270
        %2177 = vmatprep.subr.mxu0 0.0
        %2178 = vmatpush1.msra.mxu0 %v1271
        %2179 = vmatprep.subr.mxu0 0.0
        %2180 = vmatpush1.msra.mxu0 %v1272
        %2181 = vmatprep.subr.mxu0 0.0
        %2182 = vmatpush1.msra.mxu0 %v1273
        %2183 = vmatprep.subr.mxu0 0.0
        %2184 = vmatpush1.msra.mxu0 %v1274
        %2185 = vmatprep.subr.mxu0 0.0
        %2186 = vmatpush1.msra.mxu0 %v1275
        %2187 = vmatprep.subr.mxu0 0.0
        %2188 = vmatpush1.msra.mxu0 %v1276
        %2189 = vmatprep.subr.mxu0 0.0
        %2190 = vmatpush1.msra.mxu0 %v1277
        %2191 = vmatprep.subr.mxu0 0.0
        %2192 = vmatpush1.msra.mxu0 %v1278
        %2193 = vmatprep.subr.mxu0 0.0
        %2194 = vmatpush1.msra.mxu0 %v1279
        %2195 = vmatprep.subr.mxu0 0.0
        %2196 = vmatpush1.msra.mxu0 %v1280
        %2197 = vmatprep.subr.mxu0 0.0
        %2198 = vmatpush1.msra.mxu0 %v1281
        %2199 = vmatprep.subr.mxu0 0.0
        %2200 = vmatpush1.msra.mxu0 %v1282
        %2201 = vmatprep.subr.mxu0 0.0
        %2202 = vmatpush1.msra.mxu0 %v1283
        %2203 = vmatprep.subr.mxu0 0.0
        %2204 = vmatpush1.msra.mxu0 0.0
        %2205 = vmatprep.subr.mxu0 0.0
        %2206 = vmatpush1.msra.mxu0 0.0
        %2207 = vmatprep.subr.mxu0 0.0
        %2208 = vmatpush1.msra.mxu0 0.0
        %2209 = vmatprep.subr.mxu0 0.0
        %2210 = vmatpush1.msra.mxu0 0.0
        %2211 = vmatprep.subr.mxu0 0.0
        %2212 = vmatpush1.msra.mxu0 0.0
        %2213 = vmatprep.subr.mxu0 0.0
        %2214 = vmatpush1.msra.mxu0 0.0
        %2215 = vmatprep.subr.mxu0 0.0
        %2216 = vmatpush1.msra.mxu0 0.0
        %2217 = vmatprep.subr.mxu0 0.0
        %2218 = vmatpush1.msra.mxu0 0.0
        %2219 = vmatprep.subr.mxu0 0.0
        %2220 = vmatpush1.msra.mxu0 0.0
        %2221 = vmatprep.subr.mxu0 0.0
        %2222 = vmatpush1.msra.mxu0 0.0
        %2223 = vmatprep.subr.mxu0 0.0
        %2224 = vmatpush1.msra.mxu0 0.0
        %2225 = vmatprep.subr.mxu0 0.0
        %2226 = vmatpush1.msra.mxu0 0.0
        %2227 = vmatprep.subr.mxu0 0.0
        %2228 = vmatpush1.msra.mxu0 0.0
        %2229 = vmatprep.subr.mxu0 0.0
        %2230 = vmatpush1.msra.mxu0 0.0
        %2231 = vmatprep.subr.mxu0 0.0
        %2232 = vmatpush1.msra.mxu0 0.0
        %2233 = vmatprep.subr.mxu0 0.0
        %2234 = vmatpush1.msra.mxu0 0.0
        %2235 = vmatprep.mubr.f32.mxu0 0.0
        %2236 = vmatmul.mubr.f32.gmra.mrb[0].mxu0 %v2170
        %v2237 = vpop.f32.mrb[0].mxu0
        %v2238 = vadd.f32 0.0, %v2237
        %v2239 = vpop.f32.mrb[0].mxu0
        %2240 = vdwg.mxu0
        %v2241 = vlaneseq
        %v2242 = vshrl.u32 %v2241, 7
        %v2243 = vsub.s32 0, %v2242
        %v2244 = vrot.slane %v2238, %v2243
        %v2245 = vsub.f32 %v2163, %v2244
        %v2246 = vmul.f32 %v2245, %v2245
        %v2247 = vsel %vm1436, %v2246, 0.0
        %v2248 = vrot.slane %v2247, 4
        %v2249 = vadd.f32 %v2247, %v2248
        %v2250 = vrot.slane %v2249, 2
        %v2251 = vadd.f32 %v2249, %v2250
        %v2252 = vrot.slane %v2251, 1
        %v2253 = vadd.f32 %v2251, %v2252
        %2254 = vmatprep.subr.mxu0 0.0
        %2255 = vmatpush1.msra.mxu0 %v1268
        %2256 = vmatprep.subr.mxu0 0.0
        %2257 = vmatpush1.msra.mxu0 %v1269
        %2258 = vmatprep.subr.mxu0 0.0
        %2259 = vmatpush1.msra.mxu0 %v1270
        %2260 = vmatprep.subr.mxu0 0.0
        %2261 = vmatpush1.msra.mxu0 %v1271
        %2262 = vmatprep.subr.mxu0 0.0
        %2263 = vmatpush1.msra.mxu0 %v1272
        %2264 = vmatprep.subr.mxu0 0.0
        %2265 = vmatpush1.msra.mxu0 %v1273
        %2266 = vmatprep.subr.mxu0 0.0
        %2267 = vmatpush1.msra.mxu0 %v1274
        %2268 = vmatprep.subr.mxu0 0.0
        %2269 = vmatpush1.msra.mxu0 %v1275
        %2270 = vmatprep.subr.mxu0 0.0
        %2271 = vmatpush1.msra.mxu0 %v1276
        %2272 = vmatprep.subr.mxu0 0.0
        %2273 = vmatpush1.msra.mxu0 %v1277
        %2274 = vmatprep.subr.mxu0 0.0
        %2275 = vmatpush1.msra.mxu0 %v1278
        %2276 = vmatprep.subr.mxu0 0.0
        %2277 = vmatpush1.msra.mxu0 %v1279
        %2278 = vmatprep.subr.mxu0 0.0
        %2279 = vmatpush1.msra.mxu0 %v1280
        %2280 = vmatprep.subr.mxu0 0.0
        %2281 = vmatpush1.msra.mxu0 %v1281
        %2282 = vmatprep.subr.mxu0 0.0
        %2283 = vmatpush1.msra.mxu0 %v1282
        %2284 = vmatprep.subr.mxu0 0.0
        %2285 = vmatpush1.msra.mxu0 %v1283
        %2286 = vmatprep.subr.mxu0 0.0
        %2287 = vmatpush1.msra.mxu0 0.0
        %2288 = vmatprep.subr.mxu0 0.0
        %2289 = vmatpush1.msra.mxu0 0.0
        %2290 = vmatprep.subr.mxu0 0.0
        %2291 = vmatpush1.msra.mxu0 0.0
        %2292 = vmatprep.subr.mxu0 0.0
        %2293 = vmatpush1.msra.mxu0 0.0
        %2294 = vmatprep.subr.mxu0 0.0
        %2295 = vmatpush1.msra.mxu0 0.0
        %2296 = vmatprep.subr.mxu0 0.0
        %2297 = vmatpush1.msra.mxu0 0.0
        %2298 = vmatprep.subr.mxu0 0.0
        %2299 = vmatpush1.msra.mxu0 0.0
        %2300 = vmatprep.subr.mxu0 0.0
        %2301 = vmatpush1.msra.mxu0 0.0
        %2302 = vmatprep.subr.mxu0 0.0
        %2303 = vmatpush1.msra.mxu0 0.0
        %2304 = vmatprep.subr.mxu0 0.0
        %2305 = vmatpush1.msra.mxu0 0.0
        %2306 = vmatprep.subr.mxu0 0.0
        %2307 = vmatpush1.msra.mxu0 0.0
        %2308 = vmatprep.subr.mxu0 0.0
        %2309 = vmatpush1.msra.mxu0 0.0
        %2310 = vmatprep.subr.mxu0 0.0
        %2311 = vmatpush1.msra.mxu0 0.0
        %2312 = vmatprep.subr.mxu0 0.0
        %2313 = vmatpush1.msra.mxu0 0.0
        %2314 = vmatprep.subr.mxu0 0.0
        %2315 = vmatpush1.msra.mxu0 0.0
        %2316 = vmatprep.subr.mxu0 0.0
        %2317 = vmatpush1.msra.mxu0 0.0
        %2318 = vmatprep.mubr.f32.mxu0 0.0
        %2319 = vmatmul.mubr.f32.gmra.mrb[0].mxu0 %v2253
        %v2320 = vpop.f32.mrb[0].mxu0
        %v2321 = vadd.f32 1e-05, %v2320
        %v2322 = vpop.f32.mrb[0].mxu0
        %2323 = vdwg.mxu0
        %v2324 = vrsqrt.pop %v2321
        %v2325 = vlaneseq
        %v2326 = vshrl.u32 %v2325, 7
        %v2327 = vsub.s32 0, %v2326
        %v2328 = vrot.slane %v2324, %v2327
        %v2329 = vmul.f32 %v2245, %v2328
        %v2330 = vlaneseq
        %v2331 = vshrl.u32 %v2330, 7
        %v2332 = vsub.s32 1, %v2331
        %v2333 = vrot.slane %v1251, %v2332
        %v2334 = vmul.f32 %v2329, %v2333
        %v2335 = vlaneseq
        %v2336 = vshrl.u32 %v2335, 7
        %v2337 = vsub.s32 2, %v2336
        %v2338 = vrot.slane %v1251, %v2337
        %v2339 = vadd.f32 %v2334, %v2338
        %vm2340 = vcmp.gt.f32.partialorder %v2339, 0.0
        %v2341 = vmul.f32 %v2339, 1.442695
        %v2342 = vpow.pop %v2341
        %v2343 = vsub.f32 %v2342, 1.0
        %v2344 = vmul.f32 %v2343, 1.6732632
        %v2345 = vsel %vm2340, %v2339, %v2344
        %v2346 = vmul.f32 %v2345, 1.050701
        %v2348 = vrot.slane %v2346, 7
        %v2350 = vsel %vm1513, 0.0, %v2348
        %v2351 = vrot.slane %v2346, 1
        %v2353 = vsel %vm1517, %v2351, 0.0
        %v2354 = vpack.c.bf16 %v2350, %v2350
        %s2355 = scalar_lea.vmem [#allocation14], 384
        %v2356 = vld [vmem:[%s2355] sm:$0xf]
        %v2357 = vld [vmem:[%s2355 + $0x4] sm:$0xf]
        %v2358 = vld [vmem:[%s2355 + $0x8] sm:$0xf]
        %v2359 = vld [vmem:[%s2355 + $0xc] sm:$0xf]
        %v2360 = vld [vmem:[%s2355 + $0x10] sm:$0xf]
        %v2361 = vld [vmem:[%s2355 + $0x14] sm:$0xf]
        %v2362 = vld [vmem:[%s2355 + $0x18] sm:$0xf]
        %v2363 = vld [vmem:[%s2355 + $0x1c] sm:$0xf]
        %v2364 = vld [vmem:[%s2355 + $0x20] sm:$0xf]
        %v2365 = vld [vmem:[%s2355 + $0x24] sm:$0xf]
        %v2366 = vld [vmem:[%s2355 + $0x28] sm:$0xf]
        %v2367 = vld [vmem:[%s2355 + $0x2c] sm:$0xf]
        %v2368 = vld [vmem:[%s2355 + $0x30] sm:$0xf]
        %v2369 = vld [vmem:[%s2355 + $0x34] sm:$0xf]
        %v2370 = vld [vmem:[%s2355 + $0x38] sm:$0xf]
        %v2371 = vld [vmem:[%s2355 + $0x3c] sm:$0xf]
        %v2372 = vpack.c.bf16 %v2346, %v2346
        %s2373 = scalar_lea.vmem [#allocation14], 448
        %v2374 = vld [vmem:[%s2373] sm:$0xf]
        %v2375 = vld [vmem:[%s2373 + $0x4] sm:$0xf]
        %v2376 = vld [vmem:[%s2373 + $0x8] sm:$0xf]
        %v2377 = vld [vmem:[%s2373 + $0xc] sm:$0xf]
        %v2378 = vld [vmem:[%s2373 + $0x10] sm:$0xf]
        %v2379 = vld [vmem:[%s2373 + $0x14] sm:$0xf]
        %v2380 = vld [vmem:[%s2373 + $0x18] sm:$0xf]
        %v2381 = vld [vmem:[%s2373 + $0x1c] sm:$0xf]
        %v2382 = vld [vmem:[%s2373 + $0x20] sm:$0xf]
        %v2383 = vld [vmem:[%s2373 + $0x24] sm:$0xf]
        %v2384 = vld [vmem:[%s2373 + $0x28] sm:$0xf]
        %v2385 = vld [vmem:[%s2373 + $0x2c] sm:$0xf]
        %v2386 = vld [vmem:[%s2373 + $0x30] sm:$0xf]
        %v2387 = vld [vmem:[%s2373 + $0x34] sm:$0xf]
        %v2388 = vld [vmem:[%s2373 + $0x38] sm:$0xf]
        %v2389 = vld [vmem:[%s2373 + $0x3c] sm:$0xf]
        %v2406 = vunpack.c.l.b16 %v2374
        %v2407 = vunpack.c.l.b16 %v2375
        %v2408 = vunpack.c.l.b16 %v2376
        %v2409 = vunpack.c.l.b16 %v2377
        %v2410 = vunpack.c.l.b16 %v2378
        %v2411 = vunpack.c.l.b16 %v2379
        %v2412 = vunpack.c.l.b16 %v2380
        %v2413 = vunpack.c.l.b16 %v2381
        %v2414 = vunpack.c.l.b16 %v2382
        %v2415 = vunpack.c.l.b16 %v2383
        %v2416 = vunpack.c.l.b16 %v2384
        %v2417 = vunpack.c.l.b16 %v2385
        %v2418 = vunpack.c.l.b16 %v2386
        %v2419 = vunpack.c.l.b16 %v2387
        %v2420 = vunpack.c.l.b16 %v2388
        %v2421 = vunpack.c.l.b16 %v2389
        %v2422 = vpack.c.b16 %v2407, %v2406
        %v2423 = vpack.c.b16 %v2409, %v2408
        %v2424 = vpack.c.b16 %v2411, %v2410
        %v2425 = vpack.c.b16 %v2413, %v2412
        %v2426 = vpack.c.b16 %v2415, %v2414
        %v2427 = vpack.c.b16 %v2417, %v2416
        %v2428 = vpack.c.b16 %v2419, %v2418
        %v2429 = vpack.c.b16 %v2421, %v2420
        %2438 = vmatprep.subr.bf16.mxu0 0
        %2439 = vmatpush1.bf16.msra.mxu0 %v2422
        %2440 = vmatprep.subr.bf16.mxu0 0
        %2441 = vmatpush1.bf16.msra.mxu0 %v2423
        %2442 = vmatprep.subr.bf16.mxu0 0
        %2443 = vmatpush1.bf16.msra.mxu0 %v2424
        %2444 = vmatprep.subr.bf16.mxu0 0
        %2445 = vmatpush1.bf16.msra.mxu0 %v2425
        %2446 = vmatprep.subr.bf16.mxu0 0
        %2447 = vmatpush1.bf16.msra.mxu0 %v2426
        %2448 = vmatprep.subr.bf16.mxu0 0
        %2449 = vmatpush1.bf16.msra.mxu0 %v2427
        %2450 = vmatprep.subr.bf16.mxu0 0
        %2451 = vmatpush1.bf16.msra.mxu0 %v2428
        %2452 = vmatprep.subr.bf16.mxu0 0
        %2453 = vmatpush1.bf16.msra.mxu0 %v2429
        %2454 = vmatprep.subr.bf16.mxu0 0
        %2455 = vmatpush1.bf16.msra.mxu0 0
        %2456 = vmatprep.subr.bf16.mxu0 0
        %2457 = vmatpush1.bf16.msra.mxu0 0
        %2458 = vmatprep.subr.bf16.mxu0 0
        %2459 = vmatpush1.bf16.msra.mxu0 0
        %2460 = vmatprep.subr.bf16.mxu0 0
        %2461 = vmatpush1.bf16.msra.mxu0 0
        %2462 = vmatprep.subr.bf16.mxu0 0
        %2463 = vmatpush1.bf16.msra.mxu0 0
        %2464 = vmatprep.subr.bf16.mxu0 0
        %2465 = vmatpush1.bf16.msra.mxu0 0
        %2466 = vmatprep.subr.bf16.mxu0 0
        %2467 = vmatpush1.bf16.msra.mxu0 0
        %2468 = vmatprep.subr.bf16.mxu0 0
        %2469 = vmatpush1.bf16.msra.mxu0 0
        %2470 = vmatprep.mubr.bf16.mxu0 0
        %2471 = vmatmul.mubr.bf16.gmra.mrb[0].mxu0 %v2372
        %v2472 = vpop.f32.mrb[0].mxu0
        %v2473 = vadd.f32 0.0, %v2472
        %v2474 = vpop.f32.mrb[0].mxu0
        %v2475 = vpop.f32.mrb[0].mxu0
        %v2476 = vpop.f32.mrb[0].mxu0
        %2477 = vdwg.mxu0
        %v2494 = vunpack.c.l.b16 %v2356
        %v2495 = vunpack.c.l.b16 %v2357
        %v2496 = vunpack.c.l.b16 %v2358
        %v2497 = vunpack.c.l.b16 %v2359
        %v2498 = vunpack.c.l.b16 %v2360
        %v2499 = vunpack.c.l.b16 %v2361
        %v2500 = vunpack.c.l.b16 %v2362
        %v2501 = vunpack.c.l.b16 %v2363
        %v2502 = vunpack.c.l.b16 %v2364
        %v2503 = vunpack.c.l.b16 %v2365
        %v2504 = vunpack.c.l.b16 %v2366
        %v2505 = vunpack.c.l.b16 %v2367
        %v2506 = vunpack.c.l.b16 %v2368
        %v2507 = vunpack.c.l.b16 %v2369
        %v2508 = vunpack.c.l.b16 %v2370
        %v2509 = vunpack.c.l.b16 %v2371
        %v2510 = vpack.c.b16 %v2495, %v2494
        %v2511 = vpack.c.b16 %v2497, %v2496
        %v2512 = vpack.c.b16 %v2499, %v2498
        %v2513 = vpack.c.b16 %v2501, %v2500
        %v2514 = vpack.c.b16 %v2503, %v2502
        %v2515 = vpack.c.b16 %v2505, %v2504
        %v2516 = vpack.c.b16 %v2507, %v2506
        %v2517 = vpack.c.b16 %v2509, %v2508
        %2526 = vmatprep.subr.bf16.mxu0 0
        %2527 = vmatpush1.bf16.msra.mxu0 %v2510
        %2528 = vmatprep.subr.bf16.mxu0 0
        %2529 = vmatpush1.bf16.msra.mxu0 %v2511
        %2530 = vmatprep.subr.bf16.mxu0 0
        %2531 = vmatpush1.bf16.msra.mxu0 %v2512
        %2532 = vmatprep.subr.bf16.mxu0 0
        %2533 = vmatpush1.bf16.msra.mxu0 %v2513
        %2534 = vmatprep.subr.bf16.mxu0 0
        %2535 = vmatpush1.bf16.msra.mxu0 %v2514
        %2536 = vmatprep.subr.bf16.mxu0 0
        %2537 = vmatpush1.bf16.msra.mxu0 %v2515
        %2538 = vmatprep.subr.bf16.mxu0 0
        %2539 = vmatpush1.bf16.msra.mxu0 %v2516
        %2540 = vmatprep.subr.bf16.mxu0 0
        %2541 = vmatpush1.bf16.msra.mxu0 %v2517
        %2542 = vmatprep.subr.bf16.mxu0 0
        %2543 = vmatpush1.bf16.msra.mxu0 0
        %2544 = vmatprep.subr.bf16.mxu0 0
        %2545 = vmatpush1.bf16.msra.mxu0 0
        %2546 = vmatprep.subr.bf16.mxu0 0
        %2547 = vmatpush1.bf16.msra.mxu0 0
        %2548 = vmatprep.subr.bf16.mxu0 0
        %2549 = vmatpush1.bf16.msra.mxu0 0
        %2550 = vmatprep.subr.bf16.mxu0 0
        %2551 = vmatpush1.bf16.msra.mxu0 0
        %2552 = vmatprep.subr.bf16.mxu0 0
        %2553 = vmatpush1.bf16.msra.mxu0 0
        %2554 = vmatprep.subr.bf16.mxu0 0
        %2555 = vmatpush1.bf16.msra.mxu0 0
        %2556 = vmatprep.subr.bf16.mxu0 0
        %2557 = vmatpush1.bf16.msra.mxu0 0
        %2558 = vmatprep.mubr.bf16.mxu0 0
        %2559 = vmatmul.mubr.bf16.gmra.mrb[0].mxu0 %v2354
        %v2560 = vpop.f32.mrb[0].mxu0
        %v2561 = vadd.f32 %v2473, %v2560
        %v2562 = vpop.f32.mrb[0].mxu0
        %v2563 = vpop.f32.mrb[0].mxu0
        %v2564 = vpop.f32.mrb[0].mxu0
        %2565 = vdwg.mxu0
        %v2566 = vpack.c.bf16 %v2353, %v2353
        %s2567 = scalar_lea.vmem [#allocation14], 512
        %v2568 = vld [vmem:[%s2567] sm:$0xf]
        %v2569 = vld [vmem:[%s2567 + $0x4] sm:$0xf]
        %v2570 = vld [vmem:[%s2567 + $0x8] sm:$0xf]
        %v2571 = vld [vmem:[%s2567 + $0xc] sm:$0xf]
        %v2572 = vld [vmem:[%s2567 + $0x10] sm:$0xf]
        %v2573 = vld [vmem:[%s2567 + $0x14] sm:$0xf]
        %v2574 = vld [vmem:[%s2567 + $0x18] sm:$0xf]
        %v2575 = vld [vmem:[%s2567 + $0x1c] sm:$0xf]
        %v2576 = vld [vmem:[%s2567 + $0x20] sm:$0xf]
        %v2577 = vld [vmem:[%s2567 + $0x24] sm:$0xf]
        %v2578 = vld [vmem:[%s2567 + $0x28] sm:$0xf]
        %v2579 = vld [vmem:[%s2567 + $0x2c] sm:$0xf]
        %v2580 = vld [vmem:[%s2567 + $0x30] sm:$0xf]
        %v2581 = vld [vmem:[%s2567 + $0x34] sm:$0xf]
        %v2582 = vld [vmem:[%s2567 + $0x38] sm:$0xf]
        %v2583 = vld [vmem:[%s2567 + $0x3c] sm:$0xf]
        %v2600 = vunpack.c.l.b16 %v2568
        %v2601 = vunpack.c.l.b16 %v2569
        %v2602 = vunpack.c.l.b16 %v2570
        %v2603 = vunpack.c.l.b16 %v2571
        %v2604 = vunpack.c.l.b16 %v2572
        %v2605 = vunpack.c.l.b16 %v2573
        %v2606 = vunpack.c.l.b16 %v2574
        %v2607 = vunpack.c.l.b16 %v2575
        %v2608 = vunpack.c.l.b16 %v2576
        %v2609 = vunpack.c.l.b16 %v2577
        %v2610 = vunpack.c.l.b16 %v2578
        %v2611 = vunpack.c.l.b16 %v2579
        %v2612 = vunpack.c.l.b16 %v2580
        %v2613 = vunpack.c.l.b16 %v2581
        %v2614 = vunpack.c.l.b16 %v2582
        %v2615 = vunpack.c.l.b16 %v2583
        %v2616 = vpack.c.b16 %v2601, %v2600
        %v2617 = vpack.c.b16 %v2603, %v2602
        %v2618 = vpack.c.b16 %v2605, %v2604
        %v2619 = vpack.c.b16 %v2607, %v2606
        %v2620 = vpack.c.b16 %v2609, %v2608
        %v2621 = vpack.c.b16 %v2611, %v2610
        %v2622 = vpack.c.b16 %v2613, %v2612
        %v2623 = vpack.c.b16 %v2615, %v2614
        %2632 = vmatprep.subr.bf16.mxu0 0
        %2633 = vmatpush1.bf16.msra.mxu0 %v2616
        %2634 = vmatprep.subr.bf16.mxu0 0
        %2635 = vmatpush1.bf16.msra.mxu0 %v2617
        %2636 = vmatprep.subr.bf16.mxu0 0
        %2637 = vmatpush1.bf16.msra.mxu0 %v2618
        %2638 = vmatprep.subr.bf16.mxu0 0
        %2639 = vmatpush1.bf16.msra.mxu0 %v2619
        %2640 = vmatprep.subr.bf16.mxu0 0
        %2641 = vmatpush1.bf16.msra.mxu0 %v2620
        %2642 = vmatprep.subr.bf16.mxu0 0
        %2643 = vmatpush1.bf16.msra.mxu0 %v2621
        %2644 = vmatprep.subr.bf16.mxu0 0
        %2645 = vmatpush1.bf16.msra.mxu0 %v2622
        %2646 = vmatprep.subr.bf16.mxu0 0
        %2647 = vmatpush1.bf16.msra.mxu0 %v2623
        %2648 = vmatprep.subr.bf16.mxu0 0
        %2649 = vmatpush1.bf16.msra.mxu0 0
        %2650 = vmatprep.subr.bf16.mxu0 0
        %2651 = vmatpush1.bf16.msra.mxu0 0
        %2652 = vmatprep.subr.bf16.mxu0 0
        %2653 = vmatpush1.bf16.msra.mxu0 0
        %2654 = vmatprep.subr.bf16.mxu0 0
        %2655 = vmatpush1.bf16.msra.mxu0 0
        %2656 = vmatprep.subr.bf16.mxu0 0
        %2657 = vmatpush1.bf16.msra.mxu0 0
        %2658 = vmatprep.subr.bf16.mxu0 0
        %2659 = vmatpush1.bf16.msra.mxu0 0
        %2660 = vmatprep.subr.bf16.mxu0 0
        %2661 = vmatpush1.bf16.msra.mxu0 0
        %2662 = vmatprep.subr.bf16.mxu0 0
        %2663 = vmatpush1.bf16.msra.mxu0 0
        %2664 = vmatprep.mubr.bf16.mxu0 0
        %2665 = vmatmul.mubr.bf16.gmra.mrb[0].mxu0 %v2566
        %v2666 = vpop.f32.mrb[0].mxu0
        %v2667 = vadd.f32 0.0, %v2666
        %v2668 = vpop.f32.mrb[0].mxu0
        %v2669 = vpop.f32.mrb[0].mxu0
        %v2670 = vpop.f32.mrb[0].mxu0
        %2671 = vdwg.mxu0
        %v2672 = vadd.f32 %v2561, %v2667
        %v2673 = vsel %vm1436, %v2672, 0.0
        %v2674 = vrot.slane %v2673, 4
        %v2675 = vadd.f32 %v2673, %v2674
        %v2676 = vrot.slane %v2675, 2
        %v2677 = vadd.f32 %v2675, %v2676
        %v2678 = vrot.slane %v2677, 1
        %v2679 = vadd.f32 %v2677, %v2678
        %2680 = vmatprep.subr.mxu0 0.0
        %2681 = vmatpush1.msra.mxu0 %v1268
        %2682 = vmatprep.subr.mxu0 0.0
        %2683 = vmatpush1.msra.mxu0 %v1269
        %2684 = vmatprep.subr.mxu0 0.0
        %2685 = vmatpush1.msra.mxu0 %v1270
        %2686 = vmatprep.subr.mxu0 0.0
        %2687 = vmatpush1.msra.mxu0 %v1271
        %2688 = vmatprep.subr.mxu0 0.0
        %2689 = vmatpush1.msra.mxu0 %v1272
        %2690 = vmatprep.subr.mxu0 0.0
        %2691 = vmatpush1.msra.mxu0 %v1273
        %2692 = vmatprep.subr.mxu0 0.0
        %2693 = vmatpush1.msra.mxu0 %v1274
        %2694 = vmatprep.subr.mxu0 0.0
        %2695 = vmatpush1.msra.mxu0 %v1275
        %2696 = vmatprep.subr.mxu0 0.0
        %2697 = vmatpush1.msra.mxu0 %v1276
        %2698 = vmatprep.subr.mxu0 0.0
        %2699 = vmatpush1.msra.mxu0 %v1277
        %2700 = vmatprep.subr.mxu0 0.0
        %2701 = vmatpush1.msra.mxu0 %v1278
        %2702 = vmatprep.subr.mxu0 0.0
        %2703 = vmatpush1.msra.mxu0 %v1279
        %2704 = vmatprep.subr.mxu0 0.0
        %2705 = vmatpush1.msra.mxu0 %v1280
        %2706 = vmatprep.subr.mxu0 0.0
        %2707 = vmatpush1.msra.mxu0 %v1281
        %2708 = vmatprep.subr.mxu0 0.0
        %2709 = vmatpush1.msra.mxu0 %v1282
        %2710 = vmatprep.subr.mxu0 0.0
        %2711 = vmatpush1.msra.mxu0 %v1283
        %2712 = vmatprep.subr.mxu0 0.0
        %2713 = vmatpush1.msra.mxu0 0.0
        %2714 = vmatprep.subr.mxu0 0.0
        %2715 = vmatpush1.msra.mxu0 0.0
        %2716 = vmatprep.subr.mxu0 0.0
        %2717 = vmatpush1.msra.mxu0 0.0
        %2718 = vmatprep.subr.mxu0 0.0
        %2719 = vmatpush1.msra.mxu0 0.0
        %2720 = vmatprep.subr.mxu0 0.0
        %2721 = vmatpush1.msra.mxu0 0.0
        %2722 = vmatprep.subr.mxu0 0.0
        %2723 = vmatpush1.msra.mxu0 0.0
        %2724 = vmatprep.subr.mxu0 0.0
        %2725 = vmatpush1.msra.mxu0 0.0
        %2726 = vmatprep.subr.mxu0 0.0
        %2727 = vmatpush1.msra.mxu0 0.0
        %2728 = vmatprep.subr.mxu0 0.0
        %2729 = vmatpush1.msra.mxu0 0.0
        %2730 = vmatprep.subr.mxu0 0.0
        %2731 = vmatpush1.msra.mxu0 0.0
        %2732 = vmatprep.subr.mxu0 0.0
        %2733 = vmatpush1.msra.mxu0 0.0
        %2734 = vmatprep.subr.mxu0 0.0
        %2735 = vmatpush1.msra.mxu0 0.0
        %2736 = vmatprep.subr.mxu0 0.0
        %2737 = vmatpush1.msra.mxu0 0.0
        %2738 = vmatprep.subr.mxu0 0.0
        %2739 = vmatpush1.msra.mxu0 0.0
        %2740 = vmatprep.subr.mxu0 0.0
        %2741 = vmatpush1.msra.mxu0 0.0
        %2742 = vmatprep.subr.mxu0 0.0
        %2743 = vmatpush1.msra.mxu0 0.0
        %2744 = vmatprep.mubr.f32.mxu0 0.0
        %2745 = vmatmul.mubr.f32.gmra.mrb[0].mxu0 %v2679
        %v2746 = vpop.f32.mrb[0].mxu0
        %v2747 = vadd.f32 0.0, %v2746
        %v2748 = vpop.f32.mrb[0].mxu0
        %2749 = vdwg.mxu0
        %v2750 = vlaneseq
        %v2751 = vshrl.u32 %v2750, 7
        %v2752 = vsub.s32 0, %v2751
        %v2753 = vrot.slane %v2747, %v2752
        %v2754 = vsub.f32 %v2672, %v2753
        %v2755 = vmul.f32 %v2754, %v2754
        %v2756 = vsel %vm1436, %v2755, 0.0
        %v2757 = vrot.slane %v2756, 4
        %v2758 = vadd.f32 %v2756, %v2757
        %v2759 = vrot.slane %v2758, 2
        %v2760 = vadd.f32 %v2758, %v2759
        %v2761 = vrot.slane %v2760, 1
        %v2762 = vadd.f32 %v2760, %v2761
        %2763 = vmatprep.subr.mxu0 0.0
        %2764 = vmatpush1.msra.mxu0 %v1268
        %2765 = vmatprep.subr.mxu0 0.0
        %2766 = vmatpush1.msra.mxu0 %v1269
        %2767 = vmatprep.subr.mxu0 0.0
        %2768 = vmatpush1.msra.mxu0 %v1270
        %2769 = vmatprep.subr.mxu0 0.0
        %2770 = vmatpush1.msra.mxu0 %v1271
        %2771 = vmatprep.subr.mxu0 0.0
        %2772 = vmatpush1.msra.mxu0 %v1272
        %2773 = vmatprep.subr.mxu0 0.0
        %2774 = vmatpush1.msra.mxu0 %v1273
        %2775 = vmatprep.subr.mxu0 0.0
        %2776 = vmatpush1.msra.mxu0 %v1274
        %2777 = vmatprep.subr.mxu0 0.0
        %2778 = vmatpush1.msra.mxu0 %v1275
        %2779 = vmatprep.subr.mxu0 0.0
        %2780 = vmatpush1.msra.mxu0 %v1276
        %2781 = vmatprep.subr.mxu0 0.0
        %2782 = vmatpush1.msra.mxu0 %v1277
        %2783 = vmatprep.subr.mxu0 0.0
        %2784 = vmatpush1.msra.mxu0 %v1278
        %2785 = vmatprep.subr.mxu0 0.0
        %2786 = vmatpush1.msra.mxu0 %v1279
        %2787 = vmatprep.subr.mxu0 0.0
        %2788 = vmatpush1.msra.mxu0 %v1280
        %2789 = vmatprep.subr.mxu0 0.0
        %2790 = vmatpush1.msra.mxu0 %v1281
        %2791 = vmatprep.subr.mxu0 0.0
        %2792 = vmatpush1.msra.mxu0 %v1282
        %2793 = vmatprep.subr.mxu0 0.0
        %2794 = vmatpush1.msra.mxu0 %v1283
        %2795 = vmatprep.subr.mxu0 0.0
        %2796 = vmatpush1.msra.mxu0 0.0
        %2797 = vmatprep.subr.mxu0 0.0
        %2798 = vmatpush1.msra.mxu0 0.0
        %2799 = vmatprep.subr.mxu0 0.0
        %2800 = vmatpush1.msra.mxu0 0.0
        %2801 = vmatprep.subr.mxu0 0.0
        %2802 = vmatpush1.msra.mxu0 0.0
        %2803 = vmatprep.subr.mxu0 0.0
        %2804 = vmatpush1.msra.mxu0 0.0
        %2805 = vmatprep.subr.mxu0 0.0
        %2806 = vmatpush1.msra.mxu0 0.0
        %2807 = vmatprep.subr.mxu0 0.0
        %2808 = vmatpush1.msra.mxu0 0.0
        %2809 = vmatprep.subr.mxu0 0.0
        %2810 = vmatpush1.msra.mxu0 0.0
        %2811 = vmatprep.subr.mxu0 0.0
        %2812 = vmatpush1.msra.mxu0 0.0
        %2813 = vmatprep.subr.mxu0 0.0
        %2814 = vmatpush1.msra.mxu0 0.0
        %2815 = vmatprep.subr.mxu0 0.0
        %2816 = vmatpush1.msra.mxu0 0.0
        %2817 = vmatprep.subr.mxu0 0.0
        %2818 = vmatpush1.msra.mxu0 0.0
        %2819 = vmatprep.subr.mxu0 0.0
        %2820 = vmatpush1.msra.mxu0 0.0
        %2821 = vmatprep.subr.mxu0 0.0
        %2822 = vmatpush1.msra.mxu0 0.0
        %2823 = vmatprep.subr.mxu0 0.0
        %2824 = vmatpush1.msra.mxu0 0.0
        %2825 = vmatprep.subr.mxu0 0.0
        %2826 = vmatpush1.msra.mxu0 0.0
        %2827 = vmatprep.mubr.f32.mxu0 0.0
        %2828 = vmatmul.mubr.f32.gmra.mrb[0].mxu0 %v2762
        %v2829 = vpop.f32.mrb[0].mxu0
        %v2830 = vadd.f32 1e-05, %v2829
        %v2831 = vpop.f32.mrb[0].mxu0
        %2832 = vdwg.mxu0
        %v2833 = vrsqrt.pop %v2830
        %v2834 = vlaneseq
        %v2835 = vshrl.u32 %v2834, 7
        %v2836 = vsub.s32 0, %v2835
        %v2837 = vrot.slane %v2833, %v2836
        %v2838 = vmul.f32 %v2754, %v2837
        %v2839 = vlaneseq
        %v2840 = vshrl.u32 %v2839, 7
        %v2841 = vsub.s32 3, %v2840
        %v2842 = vrot.slane %v1251, %v2841
        %v2843 = vmul.f32 %v2838, %v2842
        %v2844 = vlaneseq
        %v2845 = vshrl.u32 %v2844, 7
        %v2846 = vsub.s32 4, %v2845
        %v2847 = vrot.slane %v1251, %v2846
        %v2848 = vadd.f32 %v2843, %v2847
        %vm2849 = vcmp.gt.f32.partialorder %v2848, 0.0
        %v2850 = vmul.f32 %v2848, 1.442695
        %v2851 = vpow.pop %v2850
        %v2852 = vsub.f32 %v2851, 1.0
        %v2853 = vmul.f32 %v2852, 1.6732632
        %v2854 = vsel %vm2849, %v2848, %v2853
        %v2855 = vmul.f32 %v2854, 1.050701
        %v2856 = vld [vmem:[%s1063] sm:$0xff]
        %v2857 = vld [vmem:[#allocation25] sm:$0xff]
        %v2858 = vld [vmem:[#allocation23] sm:$0xf]
        %v2859 = vld [vmem:[#allocation23 + $0x4] sm:$0xf]
        %v2860 = vld [vmem:[#allocation23 + $0x8] sm:$0xf]
        %v2861 = vld [vmem:[#allocation23 + $0xc] sm:$0xf]
        %v2862 = vld [vmem:[#allocation23 + $0x10] sm:$0xf]
        %v2863 = vld [vmem:[#allocation23 + $0x14] sm:$0xf]
        %v2864 = vld [vmem:[#allocation23 + $0x18] sm:$0xf]
        %v2865 = vld [vmem:[#allocation23 + $0x1c] sm:$0xf]
        %v2866 = vld [vmem:[#allocation23 + $0x20] sm:$0xf]
        %v2867 = vld [vmem:[#allocation23 + $0x24] sm:$0xf]
        %v2868 = vld [vmem:[#allocation23 + $0x28] sm:$0xf]
        %v2869 = vld [vmem:[#allocation23 + $0x2c] sm:$0xf]
        %v2870 = vld [vmem:[#allocation23 + $0x30] sm:$0xf]
        %v2871 = vld [vmem:[#allocation23 + $0x34] sm:$0xf]
        %v2872 = vld [vmem:[#allocation23 + $0x38] sm:$0xf]
        %v2873 = vld [vmem:[#allocation23 + $0x3c] sm:$0xf]
        %v2874 = vunpack.c.l.bf16 %v2858
        %v2875 = vunpack.c.l.bf16 %v2859
        %v2876 = vunpack.c.l.bf16 %v2860
        %v2877 = vunpack.c.l.bf16 %v2861
        %v2878 = vunpack.c.l.bf16 %v2862
        %v2879 = vunpack.c.l.bf16 %v2863
        %v2880 = vunpack.c.l.bf16 %v2864
        %v2881 = vunpack.c.l.bf16 %v2865
        %v2882 = vunpack.c.l.bf16 %v2866
        %v2883 = vunpack.c.l.bf16 %v2867
        %v2884 = vunpack.c.l.bf16 %v2868
        %v2885 = vunpack.c.l.bf16 %v2869
        %v2886 = vunpack.c.l.bf16 %v2870
        %v2887 = vunpack.c.l.bf16 %v2871
        %v2888 = vunpack.c.l.bf16 %v2872
        %v2889 = vunpack.c.l.bf16 %v2873
        %v2890 = vpack.c.bf16 %v2855, %v2855
        %v2891 = vld [vmem:[#allocation19] sm:$0xff]
        %v2892 = vld [vmem:[#allocation19 + $0x8] sm:$0xff]
        %v2893 = vld [vmem:[#allocation19 + $0x10] sm:$0xff]
        %v2894 = vld [vmem:[#allocation19 + $0x18] sm:$0xff]
        %v2895 = vld [vmem:[#allocation19 + $0x20] sm:$0xff]
        %v2896 = vld [vmem:[#allocation19 + $0x28] sm:$0xff]
        %v2897 = vld [vmem:[#allocation19 + $0x30] sm:$0xff]
        %v2898 = vld [vmem:[#allocation19 + $0x38] sm:$0xff]
        %v2899 = vld [vmem:[#allocation19 + $0x40] sm:$0xff]
        %v2900 = vld [vmem:[#allocation19 + $0x48] sm:$0xff]
        %v2901 = vld [vmem:[#allocation19 + $0x50] sm:$0xff]
        %v2902 = vld [vmem:[#allocation19 + $0x58] sm:$0xff]
        %v2903 = vld [vmem:[#allocation19 + $0x60] sm:$0xff]
        %v2904 = vld [vmem:[#allocation19 + $0x68] sm:$0xff]
        %v2905 = vld [vmem:[#allocation19 + $0x70] sm:$0xff]
        %v2906 = vld [vmem:[#allocation19 + $0x78] sm:$0xff]
        %v2923 = vunpack.c.l.b16 %v2891
        %v2924 = vunpack.c.h.b16 %v2891
        %v2925 = vunpack.c.l.b16 %v2892
        %v2926 = vunpack.c.h.b16 %v2892
        %v2927 = vunpack.c.l.b16 %v2893
        %v2928 = vunpack.c.h.b16 %v2893
        %v2929 = vunpack.c.l.b16 %v2894
        %v2930 = vunpack.c.h.b16 %v2894
        %v2931 = vunpack.c.l.b16 %v2895
        %v2932 = vunpack.c.h.b16 %v2895
        %v2933 = vunpack.c.l.b16 %v2896
        %v2934 = vunpack.c.h.b16 %v2896
        %v2935 = vunpack.c.l.b16 %v2897
        %v2936 = vunpack.c.h.b16 %v2897
        %v2937 = vunpack.c.l.b16 %v2898
        %v2938 = vunpack.c.h.b16 %v2898
        %v2939 = vunpack.c.l.b16 %v2899
        %v2940 = vunpack.c.h.b16 %v2899
        %v2941 = vunpack.c.l.b16 %v2900
        %v2942 = vunpack.c.h.b16 %v2900
        %v2943 = vunpack.c.l.b16 %v2901
        %v2944 = vunpack.c.h.b16 %v2901
        %v2945 = vunpack.c.l.b16 %v2902
        %v2946 = vunpack.c.h.b16 %v2902
        %v2947 = vunpack.c.l.b16 %v2903
        %v2948 = vunpack.c.h.b16 %v2903
        %v2949 = vunpack.c.l.b16 %v2904
        %v2950 = vunpack.c.h.b16 %v2904
        %v2951 = vunpack.c.l.b16 %v2905
        %v2952 = vunpack.c.h.b16 %v2905
        %v2953 = vunpack.c.l.b16 %v2906
        %v2954 = vunpack.c.h.b16 %v2906
        %v2955 = vpack.c.b16 %v2925, %v2923
        %v2956 = vpack.c.b16 %v2926, %v2924
        %v2957 = vpack.c.b16 %v2929, %v2927
        %v2958 = vpack.c.b16 %v2930, %v2928
        %v2959 = vpack.c.b16 %v2933, %v2931
        %v2960 = vpack.c.b16 %v2934, %v2932
        %v2961 = vpack.c.b16 %v2937, %v2935
        %v2962 = vpack.c.b16 %v2938, %v2936
        %v2963 = vpack.c.b16 %v2941, %v2939
        %v2964 = vpack.c.b16 %v2942, %v2940
        %v2965 = vpack.c.b16 %v2945, %v2943
        %v2966 = vpack.c.b16 %v2946, %v2944
        %v2967 = vpack.c.b16 %v2949, %v2947
        %v2968 = vpack.c.b16 %v2950, %v2948
        %v2969 = vpack.c.b16 %v2953, %v2951
        %v2970 = vpack.c.b16 %v2954, %v2952
        %2987 = vmatprep.subr.bf16.mxu0 %v2956
        %2988 = vmatpush1.bf16.msra.mxu0 %v2955
        %2989 = vmatprep.subr.bf16.mxu0 %v2958
        %2990 = vmatpush1.bf16.msra.mxu0 %v2957
        %2991 = vmatprep.subr.bf16.mxu0 %v2960
        %2992 = vmatpush1.bf16.msra.mxu0 %v2959
        %2993 = vmatprep.subr.bf16.mxu0 %v2962
        %2994 = vmatpush1.bf16.msra.mxu0 %v2961
        %2995 = vmatprep.subr.bf16.mxu0 %v2964
        %2996 = vmatpush1.bf16.msra.mxu0 %v2963
        %2997 = vmatprep.subr.bf16.mxu0 %v2966
        %2998 = vmatpush1.bf16.msra.mxu0 %v2965
        %2999 = vmatprep.subr.bf16.mxu0 %v2968
        %3000 = vmatpush1.bf16.msra.mxu0 %v2967
        %3001 = vmatprep.subr.bf16.mxu0 %v2970
        %3002 = vmatpush1.bf16.msra.mxu0 %v2969
        %3003 = vmatprep.subr.bf16.mxu0 0
        %3004 = vmatpush1.bf16.msra.mxu0 0
        %3005 = vmatprep.subr.bf16.mxu0 0
        %3006 = vmatpush1.bf16.msra.mxu0 0
        %3007 = vmatprep.subr.bf16.mxu0 0
        %3008 = vmatpush1.bf16.msra.mxu0 0
        %3009 = vmatprep.subr.bf16.mxu0 0
        %3010 = vmatpush1.bf16.msra.mxu0 0
        %3011 = vmatprep.subr.bf16.mxu0 0
        %3012 = vmatpush1.bf16.msra.mxu0 0
        %3013 = vmatprep.subr.bf16.mxu0 0
        %3014 = vmatpush1.bf16.msra.mxu0 0
        %3015 = vmatprep.subr.bf16.mxu0 0
        %3016 = vmatpush1.bf16.msra.mxu0 0
        %3017 = vmatprep.subr.bf16.mxu0 0
        %3018 = vmatpush1.bf16.msra.mxu0 0
        %3019 = vmatprep.mubr.bf16.mxu0 0
        %3020 = vmatmul.mubr.bf16.gmra.mrb[0].mxu0 %v2890
        %v3021 = vpop.f32.mrb[0].mxu0
        %v3022 = vadd.f32 0.0, %v3021
        %v3023 = vpop.f32.mrb[0].mxu0
        %v3024 = vadd.f32 0.0, %v3023
        %v3025 = vpop.f32.mrb[0].mxu0
        %v3026 = vpop.f32.mrb[0].mxu0
        %3027 = vdwg.mxu0
        %v3029 = vrot.slane %v3024, 4
        %v3031 = vsel %vm1436, %v3022, %v3029
        %v3032 = vld [vmem:[#allocation20] sm:$0xff]
        %v3033 = vlaneseq
        %v3034 = vshrl.u32 %v3033, 7
        %v3035 = vsub.s32 0, %v3034
        %v3036 = vrot.slane %v2857, %v3035
        %vm3037 = vcmask 64512
        %v3039 = vsel %vm3037, %v3032, 0
        %3041 = vmatprep.subr.mxu0 0.0
        %3042 = vmatpush1.msra.mxu0 %v3031
        %3043 = vmatprep.subr.mxu0 0.0
        %3044 = vmatpush1.msra.mxu0 0.0
        %3045 = vmatprep.subr.mxu0 0.0
        %3046 = vmatpush1.msra.mxu0 0.0
        %3047 = vmatprep.subr.mxu0 0.0
        %3048 = vmatpush1.msra.mxu0 0.0
        %3049 = vmatprep.subr.mxu0 0.0
        %3050 = vmatpush1.msra.mxu0 0.0
        %3051 = vmatprep.subr.mxu0 0.0
        %3052 = vmatpush1.msra.mxu0 0.0
        %3053 = vmatprep.subr.mxu0 0.0
        %3054 = vmatpush1.msra.mxu0 0.0
        %3055 = vmatprep.subr.mxu0 0.0
        %3056 = vmatpush1.msra.mxu0 0.0
        %3057 = vmatprep.subr.mxu0 0.0
        %3058 = vmatpush1.msra.mxu0 0.0
        %3059 = vmatprep.subr.mxu0 0.0
        %3060 = vmatpush1.msra.mxu0 0.0
        %3061 = vmatprep.subr.mxu0 0.0
        %3062 = vmatpush1.msra.mxu0 0.0
        %3063 = vmatprep.subr.mxu0 0.0
        %3064 = vmatpush1.msra.mxu0 0.0
        %3065 = vmatprep.subr.mxu0 0.0
        %3066 = vmatpush1.msra.mxu0 0.0
        %3067 = vmatprep.subr.mxu0 0.0
        %3068 = vmatpush1.msra.mxu0 0.0
        %3069 = vmatprep.subr.mxu0 0.0
        %3070 = vmatpush1.msra.mxu0 0.0
        %3071 = vmatprep.subr.mxu0 0.0
        %3072 = vmatpush1.msra.mxu0 0.0
        %3073 = vmatprep.subr.mxu0 0.0
        %3074 = vmatpush1.msra.mxu0 0.0
        %3075 = vmatprep.subr.mxu0 0.0
        %3076 = vmatpush1.msra.mxu0 0.0
        %3077 = vmatprep.subr.mxu0 0.0
        %3078 = vmatpush1.msra.mxu0 0.0
        %3079 = vmatprep.subr.mxu0 0.0
        %3080 = vmatpush1.msra.mxu0 0.0
        %3081 = vmatprep.subr.mxu0 0.0
        %3082 = vmatpush1.msra.mxu0 0.0
        %3083 = vmatprep.subr.mxu0 0.0
        %3084 = vmatpush1.msra.mxu0 0.0
        %3085 = vmatprep.subr.mxu0 0.0
        %3086 = vmatpush1.msra.mxu0 0.0
        %3087 = vmatprep.subr.mxu0 0.0
        %3088 = vmatpush1.msra.mxu0 0.0
        %3089 = vmatprep.subr.mxu0 0.0
        %3090 = vmatpush1.msra.mxu0 0.0
        %3091 = vmatprep.subr.mxu0 0.0
        %3092 = vmatpush1.msra.mxu0 0.0
        %3093 = vmatprep.subr.mxu0 0.0
        %3094 = vmatpush1.msra.mxu0 0.0
        %3095 = vmatprep.subr.mxu0 0.0
        %3096 = vmatpush1.msra.mxu0 0.0
        %3097 = vmatprep.subr.mxu0 0.0
        %3098 = vmatpush1.msra.mxu0 0.0
        %3099 = vmatprep.subr.mxu0 0.0
        %3100 = vmatpush1.msra.mxu0 0.0
        %3101 = vmatprep.subr.mxu0 0.0
        %3102 = vmatpush1.msra.mxu0 0.0
        %3103 = vmatprep.subr.mxu0 0.0
        %3104 = vmatpush1.msra.mxu0 0.0
        %3105 = vmatprep.mubr.f32.mxu0 0.0
        %3106 = vmatmul.mubr.f32.gmra.mrb[0].mxu0 %v3039
        %v3107 = vpop.f32.mrb[0].mxu0
        %v3108 = vadd.f32 %v3036, %v3107
        %v3109 = vpop.f32.mrb[0].mxu0
        %3110 = vdwg.mxu0
        %v3112 = vrot.slane %v3108, 7
        %v3114 = vsel %vm1513, 0.0, %v3112
        %v3115 = vrot.slane %v3108, 1
        %vm3117 = vcmask 1046528
        %v3118 = vsel %vm3117, %v3115, 0.0
        %v3119 = vpack.c.bf16 %v3114, %v3114
        %v3120 = vld [vmem:[#allocation22] sm:$0xf]
        %v3121 = vld [vmem:[#allocation22 + $0x4] sm:$0xf]
        %v3122 = vld [vmem:[#allocation22 + $0x8] sm:$0xf]
        %v3123 = vld [vmem:[#allocation22 + $0xc] sm:$0xf]
        %v3124 = vld [vmem:[#allocation22 + $0x10] sm:$0xf]
        %v3125 = vld [vmem:[#allocation22 + $0x14] sm:$0xf]
        %v3126 = vld [vmem:[#allocation22 + $0x18] sm:$0xf]
        %v3127 = vld [vmem:[#allocation22 + $0x1c] sm:$0xf]
        %v3128 = vld [vmem:[#allocation22 + $0x20] sm:$0xf]
        %v3129 = vld [vmem:[#allocation22 + $0x24] sm:$0xf]
        %v3130 = vld [vmem:[#allocation22 + $0x28] sm:$0xf]
        %v3131 = vld [vmem:[#allocation22 + $0x2c] sm:$0xf]
        %v3132 = vld [vmem:[#allocation22 + $0x30] sm:$0xf]
        %v3133 = vld [vmem:[#allocation22 + $0x34] sm:$0xf]
        %v3134 = vld [vmem:[#allocation22 + $0x38] sm:$0xf]
        %v3135 = vld [vmem:[#allocation22 + $0x3c] sm:$0xf]
        %v3136 = vpack.c.bf16 %v3108, %v3108
        %s3137 = scalar_lea.vmem [#allocation22], 64
        %v3138 = vld [vmem:[%s3137] sm:$0xf]
        %v3139 = vld [vmem:[%s3137 + $0x4] sm:$0xf]
        %v3140 = vld [vmem:[%s3137 + $0x8] sm:$0xf]
        %v3141 = vld [vmem:[%s3137 + $0xc] sm:$0xf]
        %v3142 = vld [vmem:[%s3137 + $0x10] sm:$0xf]
        %v3143 = vld [vmem:[%s3137 + $0x14] sm:$0xf]
        %v3144 = vld [vmem:[%s3137 + $0x18] sm:$0xf]
        %v3145 = vld [vmem:[%s3137 + $0x1c] sm:$0xf]
        %v3146 = vld [vmem:[%s3137 + $0x20] sm:$0xf]
        %v3147 = vld [vmem:[%s3137 + $0x24] sm:$0xf]
        %v3148 = vld [vmem:[%s3137 + $0x28] sm:$0xf]
        %v3149 = vld [vmem:[%s3137 + $0x2c] sm:$0xf]
        %v3150 = vld [vmem:[%s3137 + $0x30] sm:$0xf]
        %v3151 = vld [vmem:[%s3137 + $0x34] sm:$0xf]
        %v3152 = vld [vmem:[%s3137 + $0x38] sm:$0xf]
        %v3153 = vld [vmem:[%s3137 + $0x3c] sm:$0xf]
        %v3170 = vunpack.c.l.b16 %v3138
        %v3171 = vunpack.c.l.b16 %v3139
        %v3172 = vunpack.c.l.b16 %v3140
        %v3173 = vunpack.c.l.b16 %v3141
        %v3174 = vunpack.c.l.b16 %v3142
        %v3175 = vunpack.c.l.b16 %v3143
        %v3176 = vunpack.c.l.b16 %v3144
        %v3177 = vunpack.c.l.b16 %v3145
        %v3178 = vunpack.c.l.b16 %v3146
        %v3179 = vunpack.c.l.b16 %v3147
        %v3180 = vunpack.c.l.b16 %v3148
        %v3181 = vunpack.c.l.b16 %v3149
        %v3182 = vunpack.c.l.b16 %v3150
        %v3183 = vunpack.c.l.b16 %v3151
        %v3184 = vunpack.c.l.b16 %v3152
        %v3185 = vunpack.c.l.b16 %v3153
        %v3186 = vpack.c.b16 %v3171, %v3170
        %v3187 = vpack.c.b16 %v3173, %v3172
        %v3188 = vpack.c.b16 %v3175, %v3174
        %v3189 = vpack.c.b16 %v3177, %v3176
        %v3190 = vpack.c.b16 %v3179, %v3178
        %v3191 = vpack.c.b16 %v3181, %v3180
        %v3192 = vpack.c.b16 %v3183, %v3182
        %v3193 = vpack.c.b16 %v3185, %v3184
        %3202 = vmatprep.subr.bf16.mxu0 0
        %3203 = vmatpush1.bf16.msra.mxu0 %v3186
        %3204 = vmatprep.subr.bf16.mxu0 0
        %3205 = vmatpush1.bf16.msra.mxu0 %v3187
        %3206 = vmatprep.subr.bf16.mxu0 0
        %3207 = vmatpush1.bf16.msra.mxu0 %v3188
        %3208 = vmatprep.subr.bf16.mxu0 0
        %3209 = vmatpush1.bf16.msra.mxu0 %v3189
        %3210 = vmatprep.subr.bf16.mxu0 0
        %3211 = vmatpush1.bf16.msra.mxu0 %v3190
        %3212 = vmatprep.subr.bf16.mxu0 0
        %3213 = vmatpush1.bf16.msra.mxu0 %v3191
        %3214 = vmatprep.subr.bf16.mxu0 0
        %3215 = vmatpush1.bf16.msra.mxu0 %v3192
        %3216 = vmatprep.subr.bf16.mxu0 0
        %3217 = vmatpush1.bf16.msra.mxu0 %v3193
        %3218 = vmatprep.subr.bf16.mxu0 0
        %3219 = vmatpush1.bf16.msra.mxu0 0
        %3220 = vmatprep.subr.bf16.mxu0 0
        %3221 = vmatpush1.bf16.msra.mxu0 0
        %3222 = vmatprep.subr.bf16.mxu0 0
        %3223 = vmatpush1.bf16.msra.mxu0 0
        %3224 = vmatprep.subr.bf16.mxu0 0
        %3225 = vmatpush1.bf16.msra.mxu0 0
        %3226 = vmatprep.subr.bf16.mxu0 0
        %3227 = vmatpush1.bf16.msra.mxu0 0
        %3228 = vmatprep.subr.bf16.mxu0 0
        %3229 = vmatpush1.bf16.msra.mxu0 0
        %3230 = vmatprep.subr.bf16.mxu0 0
        %3231 = vmatpush1.bf16.msra.mxu0 0
        %3232 = vmatprep.subr.bf16.mxu0 0
        %3233 = vmatpush1.bf16.msra.mxu0 0
        %3234 = vmatprep.mubr.bf16.mxu0 0
        %3235 = vmatmul.mubr.bf16.gmra.mrb[0].mxu0 %v3136
        %v3236 = vpop.f32.mrb[0].mxu0
        %v3237 = vadd.f32 0.0, %v3236
        %v3238 = vpop.f32.mrb[0].mxu0
        %v3239 = vpop.f32.mrb[0].mxu0
        %v3240 = vpop.f32.mrb[0].mxu0
        %3241 = vdwg.mxu0
        %v3258 = vunpack.c.l.b16 %v3120
        %v3259 = vunpack.c.l.b16 %v3121
        %v3260 = vunpack.c.l.b16 %v3122
        %v3261 = vunpack.c.l.b16 %v3123
        %v3262 = vunpack.c.l.b16 %v3124
        %v3263 = vunpack.c.l.b16 %v3125
        %v3264 = vunpack.c.l.b16 %v3126
        %v3265 = vunpack.c.l.b16 %v3127
        %v3266 = vunpack.c.l.b16 %v3128
        %v3267 = vunpack.c.l.b16 %v3129
        %v3268 = vunpack.c.l.b16 %v3130
        %v3269 = vunpack.c.l.b16 %v3131
        %v3270 = vunpack.c.l.b16 %v3132
        %v3271 = vunpack.c.l.b16 %v3133
        %v3272 = vunpack.c.l.b16 %v3134
        %v3273 = vunpack.c.l.b16 %v3135
        %v3274 = vpack.c.b16 %v3259, %v3258
        %v3275 = vpack.c.b16 %v3261, %v3260
        %v3276 = vpack.c.b16 %v3263, %v3262
        %v3277 = vpack.c.b16 %v3265, %v3264
        %v3278 = vpack.c.b16 %v3267, %v3266
        %v3279 = vpack.c.b16 %v3269, %v3268
        %v3280 = vpack.c.b16 %v3271, %v3270
        %v3281 = vpack.c.b16 %v3273, %v3272
        %3290 = vmatprep.subr.bf16.mxu0 0
        %3291 = vmatpush1.bf16.msra.mxu0 %v3274
        %3292 = vmatprep.subr.bf16.mxu0 0
        %3293 = vmatpush1.bf16.msra.mxu0 %v3275
        %3294 = vmatprep.subr.bf16.mxu0 0
        %3295 = vmatpush1.bf16.msra.mxu0 %v3276
        %3296 = vmatprep.subr.bf16.mxu0 0
        %3297 = vmatpush1.bf16.msra.mxu0 %v3277
        %3298 = vmatprep.subr.bf16.mxu0 0
        %3299 = vmatpush1.bf16.msra.mxu0 %v3278
        %3300 = vmatprep.subr.bf16.mxu0 0
        %3301 = vmatpush1.bf16.msra.mxu0 %v3279
        %3302 = vmatprep.subr.bf16.mxu0 0
        %3303 = vmatpush1.bf16.msra.mxu0 %v3280
        %3304 = vmatprep.subr.bf16.mxu0 0
        %3305 = vmatpush1.bf16.msra.mxu0 %v3281
        %3306 = vmatprep.subr.bf16.mxu0 0
        %3307 = vmatpush1.bf16.msra.mxu0 0
        %3308 = vmatprep.subr.bf16.mxu0 0
        %3309 = vmatpush1.bf16.msra.mxu0 0
        %3310 = vmatprep.subr.bf16.mxu0 0
        %3311 = vmatpush1.bf16.msra.mxu0 0
        %3312 = vmatprep.subr.bf16.mxu0 0
        %3313 = vmatpush1.bf16.msra.mxu0 0
        %3314 = vmatprep.subr.bf16.mxu0 0
        %3315 = vmatpush1.bf16.msra.mxu0 0
        %3316 = vmatprep.subr.bf16.mxu0 0
        %3317 = vmatpush1.bf16.msra.mxu0 0
        %3318 = vmatprep.subr.bf16.mxu0 0
        %3319 = vmatpush1.bf16.msra.mxu0 0
        %3320 = vmatprep.subr.bf16.mxu0 0
        %3321 = vmatpush1.bf16.msra.mxu0 0
        %3322 = vmatprep.mubr.bf16.mxu0 0
        %3323 = vmatmul.mubr.bf16.gmra.mrb[0].mxu0 %v3119
        %v3324 = vpop.f32.mrb[0].mxu0
        %v3325 = vadd.f32 %v3237, %v3324
        %v3326 = vpop.f32.mrb[0].mxu0
        %v3327 = vpop.f32.mrb[0].mxu0
        %v3328 = vpop.f32.mrb[0].mxu0
        %3329 = vdwg.mxu0
        %v3330 = vpack.c.bf16 %v3118, %v3118
        %s3331 = scalar_lea.vmem [#allocation22], 128
        %v3332 = vld [vmem:[%s3331] sm:$0xf]
        %v3333 = vld [vmem:[%s3331 + $0x4] sm:$0xf]
        %v3334 = vld [vmem:[%s3331 + $0x8] sm:$0xf]
        %v3335 = vld [vmem:[%s3331 + $0xc] sm:$0xf]
        %v3336 = vld [vmem:[%s3331 + $0x10] sm:$0xf]
        %v3337 = vld [vmem:[%s3331 + $0x14] sm:$0xf]
        %v3338 = vld [vmem:[%s3331 + $0x18] sm:$0xf]
        %v3339 = vld [vmem:[%s3331 + $0x1c] sm:$0xf]
        %v3340 = vld [vmem:[%s3331 + $0x20] sm:$0xf]
        %v3341 = vld [vmem:[%s3331 + $0x24] sm:$0xf]
        %v3342 = vld [vmem:[%s3331 + $0x28] sm:$0xf]
        %v3343 = vld [vmem:[%s3331 + $0x2c] sm:$0xf]
        %v3344 = vld [vmem:[%s3331 + $0x30] sm:$0xf]
        %v3345 = vld [vmem:[%s3331 + $0x34] sm:$0xf]
        %v3346 = vld [vmem:[%s3331 + $0x38] sm:$0xf]
        %v3347 = vld [vmem:[%s3331 + $0x3c] sm:$0xf]
        %v3364 = vunpack.c.l.b16 %v3332
        %v3365 = vunpack.c.l.b16 %v3333
        %v3366 = vunpack.c.l.b16 %v3334
        %v3367 = vunpack.c.l.b16 %v3335
        %v3368 = vunpack.c.l.b16 %v3336
        %v3369 = vunpack.c.l.b16 %v3337
        %v3370 = vunpack.c.l.b16 %v3338
        %v3371 = vunpack.c.l.b16 %v3339
        %v3372 = vunpack.c.l.b16 %v3340
        %v3373 = vunpack.c.l.b16 %v3341
        %v3374 = vunpack.c.l.b16 %v3342
        %v3375 = vunpack.c.l.b16 %v3343
        %v3376 = vunpack.c.l.b16 %v3344
        %v3377 = vunpack.c.l.b16 %v3345
        %v3378 = vunpack.c.l.b16 %v3346
        %v3379 = vunpack.c.l.b16 %v3347
        %v3380 = vpack.c.b16 %v3365, %v3364
        %v3381 = vpack.c.b16 %v3367, %v3366
        %v3382 = vpack.c.b16 %v3369, %v3368
        %v3383 = vpack.c.b16 %v3371, %v3370
        %v3384 = vpack.c.b16 %v3373, %v3372
        %v3385 = vpack.c.b16 %v3375, %v3374
        %v3386 = vpack.c.b16 %v3377, %v3376
        %v3387 = vpack.c.b16 %v3379, %v3378
        %3396 = vmatprep.subr.bf16.mxu0 0
        %3397 = vmatpush1.bf16.msra.mxu0 %v3380
        %3398 = vmatprep.subr.bf16.mxu0 0
        %3399 = vmatpush1.bf16.msra.mxu0 %v3381
        %3400 = vmatprep.subr.bf16.mxu0 0
        %3401 = vmatpush1.bf16.msra.mxu0 %v3382
        %3402 = vmatprep.subr.bf16.mxu0 0
        %3403 = vmatpush1.bf16.msra.mxu0 %v3383
        %3404 = vmatprep.subr.bf16.mxu0 0
        %3405 = vmatpush1.bf16.msra.mxu0 %v3384
        %3406 = vmatprep.subr.bf16.mxu0 0
        %3407 = vmatpush1.bf16.msra.mxu0 %v3385
        %3408 = vmatprep.subr.bf16.mxu0 0
        %3409 = vmatpush1.bf16.msra.mxu0 %v3386
        %3410 = vmatprep.subr.bf16.mxu0 0
        %3411 = vmatpush1.bf16.msra.mxu0 %v3387
        %3412 = vmatprep.subr.bf16.mxu0 0
        %3413 = vmatpush1.bf16.msra.mxu0 0
        %3414 = vmatprep.subr.bf16.mxu0 0
        %3415 = vmatpush1.bf16.msra.mxu0 0
        %3416 = vmatprep.subr.bf16.mxu0 0
        %3417 = vmatpush1.bf16.msra.mxu0 0
        %3418 = vmatprep.subr.bf16.mxu0 0
        %3419 = vmatpush1.bf16.msra.mxu0 0
        %3420 = vmatprep.subr.bf16.mxu0 0
        %3421 = vmatpush1.bf16.msra.mxu0 0
        %3422 = vmatprep.subr.bf16.mxu0 0
        %3423 = vmatpush1.bf16.msra.mxu0 0
        %3424 = vmatprep.subr.bf16.mxu0 0
        %3425 = vmatpush1.bf16.msra.mxu0 0
        %3426 = vmatprep.subr.bf16.mxu0 0
        %3427 = vmatpush1.bf16.msra.mxu0 0
        %3428 = vmatprep.mubr.bf16.mxu0 0
        %3429 = vmatmul.mubr.bf16.gmra.mrb[0].mxu0 %v3330
        %v3430 = vpop.f32.mrb[0].mxu0
        %v3431 = vadd.f32 0.0, %v3430
        %v3432 = vpop.f32.mrb[0].mxu0
        %v3433 = vpop.f32.mrb[0].mxu0
        %v3434 = vpop.f32.mrb[0].mxu0
        %3435 = vdwg.mxu0
        %v3436 = vadd.f32 %v3325, %v3431
        %v3438 = vrot.slane %v2856, 7
        %v3440 = vsel %vm1513, 0.0, %v3438
        %v3441 = vrot.slane %v2856, 1
        %v3443 = vsel %vm3117, %v3441, 0.0
        %v3444 = vpack.c.bf16 %v3440, %v3440
        %s3445 = scalar_lea.vmem [#allocation22], 192
        %v3446 = vld [vmem:[%s3445] sm:$0xf]
        %v3447 = vld [vmem:[%s3445 + $0x4] sm:$0xf]
        %v3448 = vld [vmem:[%s3445 + $0x8] sm:$0xf]
        %v3449 = vld [vmem:[%s3445 + $0xc] sm:$0xf]
        %v3450 = vld [vmem:[%s3445 + $0x10] sm:$0xf]
        %v3451 = vld [vmem:[%s3445 + $0x14] sm:$0xf]
        %v3452 = vld [vmem:[%s3445 + $0x18] sm:$0xf]
        %v3453 = vld [vmem:[%s3445 + $0x1c] sm:$0xf]
        %v3454 = vld [vmem:[%s3445 + $0x20] sm:$0xf]
        %v3455 = vld [vmem:[%s3445 + $0x24] sm:$0xf]
        %v3456 = vld [vmem:[%s3445 + $0x28] sm:$0xf]
        %v3457 = vld [vmem:[%s3445 + $0x2c] sm:$0xf]
        %v3458 = vld [vmem:[%s3445 + $0x30] sm:$0xf]
        %v3459 = vld [vmem:[%s3445 + $0x34] sm:$0xf]
        %v3460 = vld [vmem:[%s3445 + $0x38] sm:$0xf]
        %v3461 = vld [vmem:[%s3445 + $0x3c] sm:$0xf]
        %v3462 = vpack.c.bf16 %v2856, %v2856
        %s3463 = scalar_lea.vmem [#allocation22], 256
        %v3464 = vld [vmem:[%s3463] sm:$0xf]
        %v3465 = vld [vmem:[%s3463 + $0x4] sm:$0xf]
        %v3466 = vld [vmem:[%s3463 + $0x8] sm:$0xf]
        %v3467 = vld [vmem:[%s3463 + $0xc] sm:$0xf]
        %v3468 = vld [vmem:[%s3463 + $0x10] sm:$0xf]
        %v3469 = vld [vmem:[%s3463 + $0x14] sm:$0xf]
        %v3470 = vld [vmem:[%s3463 + $0x18] sm:$0xf]
        %v3471 = vld [vmem:[%s3463 + $0x1c] sm:$0xf]
        %v3472 = vld [vmem:[%s3463 + $0x20] sm:$0xf]
        %v3473 = vld [vmem:[%s3463 + $0x24] sm:$0xf]
        %v3474 = vld [vmem:[%s3463 + $0x28] sm:$0xf]
        %v3475 = vld [vmem:[%s3463 + $0x2c] sm:$0xf]
        %v3476 = vld [vmem:[%s3463 + $0x30] sm:$0xf]
        %v3477 = vld [vmem:[%s3463 + $0x34] sm:$0xf]
        %v3478 = vld [vmem:[%s3463 + $0x38] sm:$0xf]
        %v3479 = vld [vmem:[%s3463 + $0x3c] sm:$0xf]
        %v3496 = vunpack.c.l.b16 %v3464
        %v3497 = vunpack.c.l.b16 %v3465
        %v3498 = vunpack.c.l.b16 %v3466
        %v3499 = vunpack.c.l.b16 %v3467
        %v3500 = vunpack.c.l.b16 %v3468
        %v3501 = vunpack.c.l.b16 %v3469
        %v3502 = vunpack.c.l.b16 %v3470
        %v3503 = vunpack.c.l.b16 %v3471
        %v3504 = vunpack.c.l.b16 %v3472
        %v3505 = vunpack.c.l.b16 %v3473
        %v3506 = vunpack.c.l.b16 %v3474
        %v3507 = vunpack.c.l.b16 %v3475
        %v3508 = vunpack.c.l.b16 %v3476
        %v3509 = vunpack.c.l.b16 %v3477
        %v3510 = vunpack.c.l.b16 %v3478
        %v3511 = vunpack.c.l.b16 %v3479
        %v3512 = vpack.c.b16 %v3497, %v3496
        %v3513 = vpack.c.b16 %v3499, %v3498
        %v3514 = vpack.c.b16 %v3501, %v3500
        %v3515 = vpack.c.b16 %v3503, %v3502
        %v3516 = vpack.c.b16 %v3505, %v3504
        %v3517 = vpack.c.b16 %v3507, %v3506
        %v3518 = vpack.c.b16 %v3509, %v3508
        %v3519 = vpack.c.b16 %v3511, %v3510
        %3528 = vmatprep.subr.bf16.mxu0 0
        %3529 = vmatpush1.bf16.msra.mxu0 %v3512
        %3530 = vmatprep.subr.bf16.mxu0 0
        %3531 = vmatpush1.bf16.msra.mxu0 %v3513
        %3532 = vmatprep.subr.bf16.mxu0 0
        %3533 = vmatpush1.bf16.msra.mxu0 %v3514
        %3534 = vmatprep.subr.bf16.mxu0 0
        %3535 = vmatpush1.bf16.msra.mxu0 %v3515
        %3536 = vmatprep.subr.bf16.mxu0 0
        %3537 = vmatpush1.bf16.msra.mxu0 %v3516
        %3538 = vmatprep.subr.bf16.mxu0 0
        %3539 = vmatpush1.bf16.msra.mxu0 %v3517
        %3540 = vmatprep.subr.bf16.mxu0 0
        %3541 = vmatpush1.bf16.msra.mxu0 %v3518
        %3542 = vmatprep.subr.bf16.mxu0 0
        %3543 = vmatpush1.bf16.msra.mxu0 %v3519
        %3544 = vmatprep.subr.bf16.mxu0 0
        %3545 = vmatpush1.bf16.msra.mxu0 0
        %3546 = vmatprep.subr.bf16.mxu0 0
        %3547 = vmatpush1.bf16.msra.mxu0 0
        %3548 = vmatprep.subr.bf16.mxu0 0
        %3549 = vmatpush1.bf16.msra.mxu0 0
        %3550 = vmatprep.subr.bf16.mxu0 0
        %3551 = vmatpush1.bf16.msra.mxu0 0
        %3552 = vmatprep.subr.bf16.mxu0 0
        %3553 = vmatpush1.bf16.msra.mxu0 0
        %3554 = vmatprep.subr.bf16.mxu0 0
        %3555 = vmatpush1.bf16.msra.mxu0 0
        %3556 = vmatprep.subr.bf16.mxu0 0
        %3557 = vmatpush1.bf16.msra.mxu0 0
        %3558 = vmatprep.subr.bf16.mxu0 0
        %3559 = vmatpush1.bf16.msra.mxu0 0
        %3560 = vmatprep.mubr.bf16.mxu0 0
        %3561 = vmatmul.mubr.bf16.gmra.mrb[0].mxu0 %v3462
        %v3562 = vpop.f32.mrb[0].mxu0
        %v3563 = vadd.f32 0.0, %v3562
        %v3564 = vpop.f32.mrb[0].mxu0
        %v3565 = vpop.f32.mrb[0].mxu0
        %v3566 = vpop.f32.mrb[0].mxu0
        %3567 = vdwg.mxu0
        %v3584 = vunpack.c.l.b16 %v3446
        %v3585 = vunpack.c.l.b16 %v3447
        %v3586 = vunpack.c.l.b16 %v3448
        %v3587 = vunpack.c.l.b16 %v3449
        %v3588 = vunpack.c.l.b16 %v3450
        %v3589 = vunpack.c.l.b16 %v3451
        %v3590 = vunpack.c.l.b16 %v3452
        %v3591 = vunpack.c.l.b16 %v3453
        %v3592 = vunpack.c.l.b16 %v3454
        %v3593 = vunpack.c.l.b16 %v3455
        %v3594 = vunpack.c.l.b16 %v3456
        %v3595 = vunpack.c.l.b16 %v3457
        %v3596 = vunpack.c.l.b16 %v3458
        %v3597 = vunpack.c.l.b16 %v3459
        %v3598 = vunpack.c.l.b16 %v3460
        %v3599 = vunpack.c.l.b16 %v3461
        %v3600 = vpack.c.b16 %v3585, %v3584
        %v3601 = vpack.c.b16 %v3587, %v3586
        %v3602 = vpack.c.b16 %v3589, %v3588
        %v3603 = vpack.c.b16 %v3591, %v3590
        %v3604 = vpack.c.b16 %v3593, %v3592
        %v3605 = vpack.c.b16 %v3595, %v3594
        %v3606 = vpack.c.b16 %v3597, %v3596
        %v3607 = vpack.c.b16 %v3599, %v3598
        %3616 = vmatprep.subr.bf16.mxu0 0
        %3617 = vmatpush1.bf16.msra.mxu0 %v3600
        %3618 = vmatprep.subr.bf16.mxu0 0
        %3619 = vmatpush1.bf16.msra.mxu0 %v3601
        %3620 = vmatprep.subr.bf16.mxu0 0
        %3621 = vmatpush1.bf16.msra.mxu0 %v3602
        %3622 = vmatprep.subr.bf16.mxu0 0
        %3623 = vmatpush1.bf16.msra.mxu0 %v3603
        %3624 = vmatprep.subr.bf16.mxu0 0
        %3625 = vmatpush1.bf16.msra.mxu0 %v3604
        %3626 = vmatprep.subr.bf16.mxu0 0
        %3627 = vmatpush1.bf16.msra.mxu0 %v3605
        %3628 = vmatprep.subr.bf16.mxu0 0
        %3629 = vmatpush1.bf16.msra.mxu0 %v3606
        %3630 = vmatprep.subr.bf16.mxu0 0
        %3631 = vmatpush1.bf16.msra.mxu0 %v3607
        %3632 = vmatprep.subr.bf16.mxu0 0
        %3633 = vmatpush1.bf16.msra.mxu0 0
        %3634 = vmatprep.subr.bf16.mxu0 0
        %3635 = vmatpush1.bf16.msra.mxu0 0
        %3636 = vmatprep.subr.bf16.mxu0 0
        %3637 = vmatpush1.bf16.msra.mxu0 0
        %3638 = vmatprep.subr.bf16.mxu0 0
        %3639 = vmatpush1.bf16.msra.mxu0 0
        %3640 = vmatprep.subr.bf16.mxu0 0
        %3641 = vmatpush1.bf16.msra.mxu0 0
        %3642 = vmatprep.subr.bf16.mxu0 0
        %3643 = vmatpush1.bf16.msra.mxu0 0
        %3644 = vmatprep.subr.bf16.mxu0 0
        %3645 = vmatpush1.bf16.msra.mxu0 0
        %3646 = vmatprep.subr.bf16.mxu0 0
        %3647 = vmatpush1.bf16.msra.mxu0 0
        %3648 = vmatprep.mubr.bf16.mxu0 0
        %3649 = vmatmul.mubr.bf16.gmra.mrb[0].mxu0 %v3444
        %v3650 = vpop.f32.mrb[0].mxu0
        %v3651 = vadd.f32 %v3563, %v3650
        %v3652 = vpop.f32.mrb[0].mxu0
        %v3653 = vpop.f32.mrb[0].mxu0
        %v3654 = vpop.f32.mrb[0].mxu0
        %3655 = vdwg.mxu0
        %v3656 = vpack.c.bf16 %v3443, %v3443
        %s3657 = scalar_lea.vmem [#allocation22], 320
        %v3658 = vld [vmem:[%s3657] sm:$0xf]
        %v3659 = vld [vmem:[%s3657 + $0x4] sm:$0xf]
        %v3660 = vld [vmem:[%s3657 + $0x8] sm:$0xf]
        %v3661 = vld [vmem:[%s3657 + $0xc] sm:$0xf]
        %v3662 = vld [vmem:[%s3657 + $0x10] sm:$0xf]
        %v3663 = vld [vmem:[%s3657 + $0x14] sm:$0xf]
        %v3664 = vld [vmem:[%s3657 + $0x18] sm:$0xf]
        %v3665 = vld [vmem:[%s3657 + $0x1c] sm:$0xf]
        %v3666 = vld [vmem:[%s3657 + $0x20] sm:$0xf]
        %v3667 = vld [vmem:[%s3657 + $0x24] sm:$0xf]
        %v3668 = vld [vmem:[%s3657 + $0x28] sm:$0xf]
        %v3669 = vld [vmem:[%s3657 + $0x2c] sm:$0xf]
        %v3670 = vld [vmem:[%s3657 + $0x30] sm:$0xf]
        %v3671 = vld [vmem:[%s3657 + $0x34] sm:$0xf]
        %v3672 = vld [vmem:[%s3657 + $0x38] sm:$0xf]
        %v3673 = vld [vmem:[%s3657 + $0x3c] sm:$0xf]
        %v3690 = vunpack.c.l.b16 %v3658
        %v3691 = vunpack.c.l.b16 %v3659
        %v3692 = vunpack.c.l.b16 %v3660
        %v3693 = vunpack.c.l.b16 %v3661
        %v3694 = vunpack.c.l.b16 %v3662
        %v3695 = vunpack.c.l.b16 %v3663
        %v3696 = vunpack.c.l.b16 %v3664
        %v3697 = vunpack.c.l.b16 %v3665
        %v3698 = vunpack.c.l.b16 %v3666
        %v3699 = vunpack.c.l.b16 %v3667
        %v3700 = vunpack.c.l.b16 %v3668
        %v3701 = vunpack.c.l.b16 %v3669
        %v3702 = vunpack.c.l.b16 %v3670
        %v3703 = vunpack.c.l.b16 %v3671
        %v3704 = vunpack.c.l.b16 %v3672
        %v3705 = vunpack.c.l.b16 %v3673
        %v3706 = vpack.c.b16 %v3691, %v3690
        %v3707 = vpack.c.b16 %v3693, %v3692
        %v3708 = vpack.c.b16 %v3695, %v3694
        %v3709 = vpack.c.b16 %v3697, %v3696
        %v3710 = vpack.c.b16 %v3699, %v3698
        %v3711 = vpack.c.b16 %v3701, %v3700
        %v3712 = vpack.c.b16 %v3703, %v3702
        %v3713 = vpack.c.b16 %v3705, %v3704
        %3722 = vmatprep.subr.bf16.mxu0 0
        %3723 = vmatpush1.bf16.msra.mxu0 %v3706
        %3724 = vmatprep.subr.bf16.mxu0 0
        %3725 = vmatpush1.bf16.msra.mxu0 %v3707
        %3726 = vmatprep.subr.bf16.mxu0 0
        %3727 = vmatpush1.bf16.msra.mxu0 %v3708
        %3728 = vmatprep.subr.bf16.mxu0 0
        %3729 = vmatpush1.bf16.msra.mxu0 %v3709
        %3730 = vmatprep.subr.bf16.mxu0 0
        %3731 = vmatpush1.bf16.msra.mxu0 %v3710
        %3732 = vmatprep.subr.bf16.mxu0 0
        %3733 = vmatpush1.bf16.msra.mxu0 %v3711
        %3734 = vmatprep.subr.bf16.mxu0 0
        %3735 = vmatpush1.bf16.msra.mxu0 %v3712
        %3736 = vmatprep.subr.bf16.mxu0 0
        %3737 = vmatpush1.bf16.msra.mxu0 %v3713
        %3738 = vmatprep.subr.bf16.mxu0 0
        %3739 = vmatpush1.bf16.msra.mxu0 0
        %3740 = vmatprep.subr.bf16.mxu0 0
        %3741 = vmatpush1.bf16.msra.mxu0 0
        %3742 = vmatprep.subr.bf16.mxu0 0
        %3743 = vmatpush1.bf16.msra.mxu0 0
        %3744 = vmatprep.subr.bf16.mxu0 0
        %3745 = vmatpush1.bf16.msra.mxu0 0
        %3746 = vmatprep.subr.bf16.mxu0 0
        %3747 = vmatpush1.bf16.msra.mxu0 0
        %3748 = vmatprep.subr.bf16.mxu0 0
        %3749 = vmatpush1.bf16.msra.mxu0 0
        %3750 = vmatprep.subr.bf16.mxu0 0
        %3751 = vmatpush1.bf16.msra.mxu0 0
        %3752 = vmatprep.subr.bf16.mxu0 0
        %3753 = vmatpush1.bf16.msra.mxu0 0
        %3754 = vmatprep.mubr.bf16.mxu0 0
        %3755 = vmatmul.mubr.bf16.gmra.mrb[0].mxu0 %v3656
        %v3756 = vpop.f32.mrb[0].mxu0
        %v3757 = vadd.f32 0.0, %v3756
        %v3758 = vpop.f32.mrb[0].mxu0
        %v3759 = vpop.f32.mrb[0].mxu0
        %v3760 = vpop.f32.mrb[0].mxu0
        %3761 = vdwg.mxu0
        %v3762 = vadd.f32 %v3651, %v3757
        %v3763 = vadd.f32 %v3436, %v3762
        %v3764 = vrot.slane %v3763, 4
        %v3765 = vadd.f32 %v3763, %v3764
        %v3766 = vrot.slane %v3765, 2
        %v3767 = vadd.f32 %v3765, %v3766
        %v3768 = vrot.slane %v3767, 1
        %v3769 = vadd.f32 %v3767, %v3768
        %3770 = vmatprep.subr.mxu0 0.0
        %3771 = vmatpush1.msra.mxu0 %v2874
        %3772 = vmatprep.subr.mxu0 0.0
        %3773 = vmatpush1.msra.mxu0 %v2875
        %3774 = vmatprep.subr.mxu0 0.0
        %3775 = vmatpush1.msra.mxu0 %v2876
        %3776 = vmatprep.subr.mxu0 0.0
        %3777 = vmatpush1.msra.mxu0 %v2877
        %3778 = vmatprep.subr.mxu0 0.0
        %3779 = vmatpush1.msra.mxu0 %v2878
        %3780 = vmatprep.subr.mxu0 0.0
        %3781 = vmatpush1.msra.mxu0 %v2879
        %3782 = vmatprep.subr.mxu0 0.0
        %3783 = vmatpush1.msra.mxu0 %v2880
        %3784 = vmatprep.subr.mxu0 0.0
        %3785 = vmatpush1.msra.mxu0 %v2881
        %3786 = vmatprep.subr.mxu0 0.0
        %3787 = vmatpush1.msra.mxu0 %v2882
        %3788 = vmatprep.subr.mxu0 0.0
        %3789 = vmatpush1.msra.mxu0 %v2883
        %3790 = vmatprep.subr.mxu0 0.0
        %3791 = vmatpush1.msra.mxu0 %v2884
        %3792 = vmatprep.subr.mxu0 0.0
        %3793 = vmatpush1.msra.mxu0 %v2885
        %3794 = vmatprep.subr.mxu0 0.0
        %3795 = vmatpush1.msra.mxu0 %v2886
        %3796 = vmatprep.subr.mxu0 0.0
        %3797 = vmatpush1.msra.mxu0 %v2887
        %3798 = vmatprep.subr.mxu0 0.0
        %3799 = vmatpush1.msra.mxu0 %v2888
        %3800 = vmatprep.subr.mxu0 0.0
        %3801 = vmatpush1.msra.mxu0 %v2889
        %3802 = vmatprep.subr.mxu0 0.0
        %3803 = vmatpush1.msra.mxu0 0.0
        %3804 = vmatprep.subr.mxu0 0.0
        %3805 = vmatpush1.msra.mxu0 0.0
        %3806 = vmatprep.subr.mxu0 0.0
        %3807 = vmatpush1.msra.mxu0 0.0
        %3808 = vmatprep.subr.mxu0 0.0
        %3809 = vmatpush1.msra.mxu0 0.0
        %3810 = vmatprep.subr.mxu0 0.0
        %3811 = vmatpush1.msra.mxu0 0.0
        %3812 = vmatprep.subr.mxu0 0.0
        %3813 = vmatpush1.msra.mxu0 0.0
        %3814 = vmatprep.subr.mxu0 0.0
        %3815 = vmatpush1.msra.mxu0 0.0
        %3816 = vmatprep.subr.mxu0 0.0
        %3817 = vmatpush1.msra.mxu0 0.0
        %3818 = vmatprep.subr.mxu0 0.0
        %3819 = vmatpush1.msra.mxu0 0.0
        %3820 = vmatprep.subr.mxu0 0.0
        %3821 = vmatpush1.msra.mxu0 0.0
        %3822 = vmatprep.subr.mxu0 0.0
        %3823 = vmatpush1.msra.mxu0 0.0
        %3824 = vmatprep.subr.mxu0 0.0
        %3825 = vmatpush1.msra.mxu0 0.0
        %3826 = vmatprep.subr.mxu0 0.0
        %3827 = vmatpush1.msra.mxu0 0.0
        %3828 = vmatprep.subr.mxu0 0.0
        %3829 = vmatpush1.msra.mxu0 0.0
        %3830 = vmatprep.subr.mxu0 0.0
        %3831 = vmatpush1.msra.mxu0 0.0
        %3832 = vmatprep.subr.mxu0 0.0
        %3833 = vmatpush1.msra.mxu0 0.0
        %3834 = vmatprep.mubr.f32.mxu0 0.0
        %3835 = vmatmul.mubr.f32.gmra.mrb[0].mxu0 %v3769
        %v3836 = vpop.f32.mrb[0].mxu0
        %v3837 = vadd.f32 0.0, %v3836
        %v3838 = vpop.f32.mrb[0].mxu0
        %3839 = vdwg.mxu0
        %v3840 = vlaneseq
        %v3841 = vshrl.u32 %v3840, 7
        %v3842 = vsub.s32 0, %v3841
        %v3843 = vrot.slane %v3837, %v3842
        %v3844 = vsub.f32 %v3763, %v3843
        %v3845 = vmul.f32 %v3844, %v3844
        %v3846 = vrot.slane %v3845, 4
        %v3847 = vadd.f32 %v3845, %v3846
        %v3848 = vrot.slane %v3847, 2
        %v3849 = vadd.f32 %v3847, %v3848
        %v3850 = vrot.slane %v3849, 1
        %v3851 = vadd.f32 %v3849, %v3850
        %3852 = vmatprep.subr.mxu0 0.0
        %3853 = vmatpush1.msra.mxu0 %v2874
        %3854 = vmatprep.subr.mxu0 0.0
        %3855 = vmatpush1.msra.mxu0 %v2875
        %3856 = vmatprep.subr.mxu0 0.0
        %3857 = vmatpush1.msra.mxu0 %v2876
        %3858 = vmatprep.subr.mxu0 0.0
        %3859 = vmatpush1.msra.mxu0 %v2877
        %3860 = vmatprep.subr.mxu0 0.0
        %3861 = vmatpush1.msra.mxu0 %v2878
        %3862 = vmatprep.subr.mxu0 0.0
        %3863 = vmatpush1.msra.mxu0 %v2879
        %3864 = vmatprep.subr.mxu0 0.0
        %3865 = vmatpush1.msra.mxu0 %v2880
        %3866 = vmatprep.subr.mxu0 0.0
        %3867 = vmatpush1.msra.mxu0 %v2881
        %3868 = vmatprep.subr.mxu0 0.0
        %3869 = vmatpush1.msra.mxu0 %v2882
        %3870 = vmatprep.subr.mxu0 0.0
        %3871 = vmatpush1.msra.mxu0 %v2883
        %3872 = vmatprep.subr.mxu0 0.0
        %3873 = vmatpush1.msra.mxu0 %v2884
        %3874 = vmatprep.subr.mxu0 0.0
        %3875 = vmatpush1.msra.mxu0 %v2885
        %3876 = vmatprep.subr.mxu0 0.0
        %3877 = vmatpush1.msra.mxu0 %v2886
        %3878 = vmatprep.subr.mxu0 0.0
        %3879 = vmatpush1.msra.mxu0 %v2887
        %3880 = vmatprep.subr.mxu0 0.0
        %3881 = vmatpush1.msra.mxu0 %v2888
        %3882 = vmatprep.subr.mxu0 0.0
        %3883 = vmatpush1.msra.mxu0 %v2889
        %3884 = vmatprep.subr.mxu0 0.0
        %3885 = vmatpush1.msra.mxu0 0.0
        %3886 = vmatprep.subr.mxu0 0.0
        %3887 = vmatpush1.msra.mxu0 0.0
        %3888 = vmatprep.subr.mxu0 0.0
        %3889 = vmatpush1.msra.mxu0 0.0
        %3890 = vmatprep.subr.mxu0 0.0
        %3891 = vmatpush1.msra.mxu0 0.0
        %3892 = vmatprep.subr.mxu0 0.0
        %3893 = vmatpush1.msra.mxu0 0.0
        %3894 = vmatprep.subr.mxu0 0.0
        %3895 = vmatpush1.msra.mxu0 0.0
        %3896 = vmatprep.subr.mxu0 0.0
        %3897 = vmatpush1.msra.mxu0 0.0
        %3898 = vmatprep.subr.mxu0 0.0
        %3899 = vmatpush1.msra.mxu0 0.0
        %3900 = vmatprep.subr.mxu0 0.0
        %3901 = vmatpush1.msra.mxu0 0.0
        %3902 = vmatprep.subr.mxu0 0.0
        %3903 = vmatpush1.msra.mxu0 0.0
        %3904 = vmatprep.subr.mxu0 0.0
        %3905 = vmatpush1.msra.mxu0 0.0
        %3906 = vmatprep.subr.mxu0 0.0
        %3907 = vmatpush1.msra.mxu0 0.0
        %3908 = vmatprep.subr.mxu0 0.0
        %3909 = vmatpush1.msra.mxu0 0.0
        %3910 = vmatprep.subr.mxu0 0.0
        %3911 = vmatpush1.msra.mxu0 0.0
        %3912 = vmatprep.subr.mxu0 0.0
        %3913 = vmatpush1.msra.mxu0 0.0
        %3914 = vmatprep.subr.mxu0 0.0
        %3915 = vmatpush1.msra.mxu0 0.0
        %3916 = vmatprep.mubr.f32.mxu0 0.0
        %3917 = vmatmul.mubr.f32.gmra.mrb[0].mxu0 %v3851
        %v3918 = vpop.f32.mrb[0].mxu0
        %v3919 = vadd.f32 1e-05, %v3918
        %v3920 = vpop.f32.mrb[0].mxu0
        %3921 = vdwg.mxu0
        %v3922 = vrsqrt.pop %v3919
        %v3923 = vlaneseq
        %v3924 = vshrl.u32 %v3923, 7
        %v3925 = vsub.s32 0, %v3924
        %v3926 = vrot.slane %v3922, %v3925
        %v3927 = vmul.f32 %v3844, %v3926
        %v3928 = vlaneseq
        %v3929 = vshrl.u32 %v3928, 7
        %v3930 = vsub.s32 1, %v3929
        %v3931 = vrot.slane %v2857, %v3930
        %v3932 = vmul.f32 %v3927, %v3931
        %v3933 = vlaneseq
        %v3934 = vshrl.u32 %v3933, 7
        %v3935 = vsub.s32 2, %v3934
        %v3936 = vrot.slane %v2857, %v3935
        %v3937 = vadd.f32 %v3932, %v3936
        %vm3938 = vcmp.gt.f32.partialorder %v3937, 0.0
        %v3939 = vmul.f32 %v3937, 1.442695
        %v3940 = vpow.pop %v3939
        %v3941 = vsub.f32 %v3940, 1.0
        %v3942 = vmul.f32 %v3941, 1.6732632
        %v3943 = vsel %vm3938, %v3937, %v3942
        %v3944 = vmul.f32 %v3943, 1.050701
        %v3946 = vrot.slane %v3944, 7
        %v3948 = vsel %vm1513, 0.0, %v3946
        %v3949 = vrot.slane %v3944, 1
        %v3951 = vsel %vm3117, %v3949, 0.0
        %v3952 = vpack.c.bf16 %v3948, %v3948
        %s3953 = scalar_lea.vmem [#allocation22], 384
        %v3954 = vld [vmem:[%s3953] sm:$0xf]
        %v3955 = vld [vmem:[%s3953 + $0x4] sm:$0xf]
        %v3956 = vld [vmem:[%s3953 + $0x8] sm:$0xf]
        %v3957 = vld [vmem:[%s3953 + $0xc] sm:$0xf]
        %v3958 = vld [vmem:[%s3953 + $0x10] sm:$0xf]
        %v3959 = vld [vmem:[%s3953 + $0x14] sm:$0xf]
        %v3960 = vld [vmem:[%s3953 + $0x18] sm:$0xf]
        %v3961 = vld [vmem:[%s3953 + $0x1c] sm:$0xf]
        %v3962 = vld [vmem:[%s3953 + $0x20] sm:$0xf]
        %v3963 = vld [vmem:[%s3953 + $0x24] sm:$0xf]
        %v3964 = vld [vmem:[%s3953 + $0x28] sm:$0xf]
        %v3965 = vld [vmem:[%s3953 + $0x2c] sm:$0xf]
        %v3966 = vld [vmem:[%s3953 + $0x30] sm:$0xf]
        %v3967 = vld [vmem:[%s3953 + $0x34] sm:$0xf]
        %v3968 = vld [vmem:[%s3953 + $0x38] sm:$0xf]
        %v3969 = vld [vmem:[%s3953 + $0x3c] sm:$0xf]
        %v3970 = vpack.c.bf16 %v3944, %v3944
        %s3971 = scalar_lea.vmem [#allocation22], 448
        %v3972 = vld [vmem:[%s3971] sm:$0xf]
        %v3973 = vld [vmem:[%s3971 + $0x4] sm:$0xf]
        %v3974 = vld [vmem:[%s3971 + $0x8] sm:$0xf]
        %v3975 = vld [vmem:[%s3971 + $0xc] sm:$0xf]
        %v3976 = vld [vmem:[%s3971 + $0x10] sm:$0xf]
        %v3977 = vld [vmem:[%s3971 + $0x14] sm:$0xf]
        %v3978 = vld [vmem:[%s3971 + $0x18] sm:$0xf]
        %v3979 = vld [vmem:[%s3971 + $0x1c] sm:$0xf]
        %v3980 = vld [vmem:[%s3971 + $0x20] sm:$0xf]
        %v3981 = vld [vmem:[%s3971 + $0x24] sm:$0xf]
        %v3982 = vld [vmem:[%s3971 + $0x28] sm:$0xf]
        %v3983 = vld [vmem:[%s3971 + $0x2c] sm:$0xf]
        %v3984 = vld [vmem:[%s3971 + $0x30] sm:$0xf]
        %v3985 = vld [vmem:[%s3971 + $0x34] sm:$0xf]
        %v3986 = vld [vmem:[%s3971 + $0x38] sm:$0xf]
        %v3987 = vld [vmem:[%s3971 + $0x3c] sm:$0xf]
        %v4004 = vunpack.c.l.b16 %v3972
        %v4005 = vunpack.c.l.b16 %v3973
        %v4006 = vunpack.c.l.b16 %v3974
        %v4007 = vunpack.c.l.b16 %v3975
        %v4008 = vunpack.c.l.b16 %v3976
        %v4009 = vunpack.c.l.b16 %v3977
        %v4010 = vunpack.c.l.b16 %v3978
        %v4011 = vunpack.c.l.b16 %v3979
        %v4012 = vunpack.c.l.b16 %v3980
        %v4013 = vunpack.c.l.b16 %v3981
        %v4014 = vunpack.c.l.b16 %v3982
        %v4015 = vunpack.c.l.b16 %v3983
        %v4016 = vunpack.c.l.b16 %v3984
        %v4017 = vunpack.c.l.b16 %v3985
        %v4018 = vunpack.c.l.b16 %v3986
        %v4019 = vunpack.c.l.b16 %v3987
        %v4020 = vpack.c.b16 %v4005, %v4004
        %v4021 = vpack.c.b16 %v4007, %v4006
        %v4022 = vpack.c.b16 %v4009, %v4008
        %v4023 = vpack.c.b16 %v4011, %v4010
        %v4024 = vpack.c.b16 %v4013, %v4012
        %v4025 = vpack.c.b16 %v4015, %v4014
        %v4026 = vpack.c.b16 %v4017, %v4016
        %v4027 = vpack.c.b16 %v4019, %v4018
        %4036 = vmatprep.subr.bf16.mxu0 0
        %4037 = vmatpush1.bf16.msra.mxu0 %v4020
        %4038 = vmatprep.subr.bf16.mxu0 0
        %4039 = vmatpush1.bf16.msra.mxu0 %v4021
        %4040 = vmatprep.subr.bf16.mxu0 0
        %4041 = vmatpush1.bf16.msra.mxu0 %v4022
        %4042 = vmatprep.subr.bf16.mxu0 0
        %4043 = vmatpush1.bf16.msra.mxu0 %v4023
        %4044 = vmatprep.subr.bf16.mxu0 0
        %4045 = vmatpush1.bf16.msra.mxu0 %v4024
        %4046 = vmatprep.subr.bf16.mxu0 0
        %4047 = vmatpush1.bf16.msra.mxu0 %v4025
        %4048 = vmatprep.subr.bf16.mxu0 0
        %4049 = vmatpush1.bf16.msra.mxu0 %v4026
        %4050 = vmatprep.subr.bf16.mxu0 0
        %4051 = vmatpush1.bf16.msra.mxu0 %v4027
        %4052 = vmatprep.subr.bf16.mxu0 0
        %4053 = vmatpush1.bf16.msra.mxu0 0
        %4054 = vmatprep.subr.bf16.mxu0 0
        %4055 = vmatpush1.bf16.msra.mxu0 0
        %4056 = vmatprep.subr.bf16.mxu0 0
        %4057 = vmatpush1.bf16.msra.mxu0 0
        %4058 = vmatprep.subr.bf16.mxu0 0
        %4059 = vmatpush1.bf16.msra.mxu0 0
        %4060 = vmatprep.subr.bf16.mxu0 0
        %4061 = vmatpush1.bf16.msra.mxu0 0
        %4062 = vmatprep.subr.bf16.mxu0 0
        %4063 = vmatpush1.bf16.msra.mxu0 0
        %4064 = vmatprep.subr.bf16.mxu0 0
        %4065 = vmatpush1.bf16.msra.mxu0 0
        %4066 = vmatprep.subr.bf16.mxu0 0
        %4067 = vmatpush1.bf16.msra.mxu0 0
        %4068 = vmatprep.mubr.bf16.mxu0 0
        %4069 = vmatmul.mubr.bf16.gmra.mrb[0].mxu0 %v3970
        %v4070 = vpop.f32.mrb[0].mxu0
        %v4071 = vadd.f32 0.0, %v4070
        %v4072 = vpop.f32.mrb[0].mxu0
        %v4073 = vpop.f32.mrb[0].mxu0
        %v4074 = vpop.f32.mrb[0].mxu0
        %4075 = vdwg.mxu0
        %v4092 = vunpack.c.l.b16 %v3954
        %v4093 = vunpack.c.l.b16 %v3955
        %v4094 = vunpack.c.l.b16 %v3956
        %v4095 = vunpack.c.l.b16 %v3957
        %v4096 = vunpack.c.l.b16 %v3958
        %v4097 = vunpack.c.l.b16 %v3959
        %v4098 = vunpack.c.l.b16 %v3960
        %v4099 = vunpack.c.l.b16 %v3961
        %v4100 = vunpack.c.l.b16 %v3962
        %v4101 = vunpack.c.l.b16 %v3963
        %v4102 = vunpack.c.l.b16 %v3964
        %v4103 = vunpack.c.l.b16 %v3965
        %v4104 = vunpack.c.l.b16 %v3966
        %v4105 = vunpack.c.l.b16 %v3967
        %v4106 = vunpack.c.l.b16 %v3968
        %v4107 = vunpack.c.l.b16 %v3969
        %v4108 = vpack.c.b16 %v4093, %v4092
        %v4109 = vpack.c.b16 %v4095, %v4094
        %v4110 = vpack.c.b16 %v4097, %v4096
        %v4111 = vpack.c.b16 %v4099, %v4098
        %v4112 = vpack.c.b16 %v4101, %v4100
        %v4113 = vpack.c.b16 %v4103, %v4102
        %v4114 = vpack.c.b16 %v4105, %v4104
        %v4115 = vpack.c.b16 %v4107, %v4106
        %4124 = vmatprep.subr.bf16.mxu0 0
        %4125 = vmatpush1.bf16.msra.mxu0 %v4108
        %4126 = vmatprep.subr.bf16.mxu0 0
        %4127 = vmatpush1.bf16.msra.mxu0 %v4109
        %4128 = vmatprep.subr.bf16.mxu0 0
        %4129 = vmatpush1.bf16.msra.mxu0 %v4110
        %4130 = vmatprep.subr.bf16.mxu0 0
        %4131 = vmatpush1.bf16.msra.mxu0 %v4111
        %4132 = vmatprep.subr.bf16.mxu0 0
        %4133 = vmatpush1.bf16.msra.mxu0 %v4112
        %4134 = vmatprep.subr.bf16.mxu0 0
        %4135 = vmatpush1.bf16.msra.mxu0 %v4113
        %4136 = vmatprep.subr.bf16.mxu0 0
        %4137 = vmatpush1.bf16.msra.mxu0 %v4114
        %4138 = vmatprep.subr.bf16.mxu0 0
        %4139 = vmatpush1.bf16.msra.mxu0 %v4115
        %4140 = vmatprep.subr.bf16.mxu0 0
        %4141 = vmatpush1.bf16.msra.mxu0 0
        %4142 = vmatprep.subr.bf16.mxu0 0
        %4143 = vmatpush1.bf16.msra.mxu0 0
        %4144 = vmatprep.subr.bf16.mxu0 0
        %4145 = vmatpush1.bf16.msra.mxu0 0
        %4146 = vmatprep.subr.bf16.mxu0 0
        %4147 = vmatpush1.bf16.msra.mxu0 0
        %4148 = vmatprep.subr.bf16.mxu0 0
        %4149 = vmatpush1.bf16.msra.mxu0 0
        %4150 = vmatprep.subr.bf16.mxu0 0
        %4151 = vmatpush1.bf16.msra.mxu0 0
        %4152 = vmatprep.subr.bf16.mxu0 0
        %4153 = vmatpush1.bf16.msra.mxu0 0
        %4154 = vmatprep.subr.bf16.mxu0 0
        %4155 = vmatpush1.bf16.msra.mxu0 0
        %4156 = vmatprep.mubr.bf16.mxu0 0
        %4157 = vmatmul.mubr.bf16.gmra.mrb[0].mxu0 %v3952
        %v4158 = vpop.f32.mrb[0].mxu0
        %v4159 = vadd.f32 %v4071, %v4158
        %v4160 = vpop.f32.mrb[0].mxu0
        %v4161 = vpop.f32.mrb[0].mxu0
        %v4162 = vpop.f32.mrb[0].mxu0
        %4163 = vdwg.mxu0
        %v4164 = vpack.c.bf16 %v3951, %v3951
        %s4165 = scalar_lea.vmem [#allocation22], 512
        %v4166 = vld [vmem:[%s4165] sm:$0xf]
        %v4167 = vld [vmem:[%s4165 + $0x4] sm:$0xf]
        %v4168 = vld [vmem:[%s4165 + $0x8] sm:$0xf]
        %v4169 = vld [vmem:[%s4165 + $0xc] sm:$0xf]
        %v4170 = vld [vmem:[%s4165 + $0x10] sm:$0xf]
        %v4171 = vld [vmem:[%s4165 + $0x14] sm:$0xf]
        %v4172 = vld [vmem:[%s4165 + $0x18] sm:$0xf]
        %v4173 = vld [vmem:[%s4165 + $0x1c] sm:$0xf]
        %v4174 = vld [vmem:[%s4165 + $0x20] sm:$0xf]
        %v4175 = vld [vmem:[%s4165 + $0x24] sm:$0xf]
        %v4176 = vld [vmem:[%s4165 + $0x28] sm:$0xf]
        %v4177 = vld [vmem:[%s4165 + $0x2c] sm:$0xf]
        %v4178 = vld [vmem:[%s4165 + $0x30] sm:$0xf]
        %v4179 = vld [vmem:[%s4165 + $0x34] sm:$0xf]
        %v4180 = vld [vmem:[%s4165 + $0x38] sm:$0xf]
        %v4181 = vld [vmem:[%s4165 + $0x3c] sm:$0xf]
        %v4198 = vunpack.c.l.b16 %v4166
        %v4199 = vunpack.c.l.b16 %v4167
        %v4200 = vunpack.c.l.b16 %v4168
        %v4201 = vunpack.c.l.b16 %v4169
        %v4202 = vunpack.c.l.b16 %v4170
        %v4203 = vunpack.c.l.b16 %v4171
        %v4204 = vunpack.c.l.b16 %v4172
        %v4205 = vunpack.c.l.b16 %v4173
        %v4206 = vunpack.c.l.b16 %v4174
        %v4207 = vunpack.c.l.b16 %v4175
        %v4208 = vunpack.c.l.b16 %v4176
        %v4209 = vunpack.c.l.b16 %v4177
        %v4210 = vunpack.c.l.b16 %v4178
        %v4211 = vunpack.c.l.b16 %v4179
        %v4212 = vunpack.c.l.b16 %v4180
        %v4213 = vunpack.c.l.b16 %v4181
        %v4214 = vpack.c.b16 %v4199, %v4198
        %v4215 = vpack.c.b16 %v4201, %v4200
        %v4216 = vpack.c.b16 %v4203, %v4202
        %v4217 = vpack.c.b16 %v4205, %v4204
        %v4218 = vpack.c.b16 %v4207, %v4206
        %v4219 = vpack.c.b16 %v4209, %v4208
        %v4220 = vpack.c.b16 %v4211, %v4210
        %v4221 = vpack.c.b16 %v4213, %v4212
        %4230 = vmatprep.subr.bf16.mxu0 0
        %4231 = vmatpush1.bf16.msra.mxu0 %v4214
        %4232 = vmatprep.subr.bf16.mxu0 0
        %4233 = vmatpush1.bf16.msra.mxu0 %v4215
        %4234 = vmatprep.subr.bf16.mxu0 0
        %4235 = vmatpush1.bf16.msra.mxu0 %v4216
        %4236 = vmatprep.subr.bf16.mxu0 0
        %4237 = vmatpush1.bf16.msra.mxu0 %v4217
        %4238 = vmatprep.subr.bf16.mxu0 0
        %4239 = vmatpush1.bf16.msra.mxu0 %v4218
        %4240 = vmatprep.subr.bf16.mxu0 0
        %4241 = vmatpush1.bf16.msra.mxu0 %v4219
        %4242 = vmatprep.subr.bf16.mxu0 0
        %4243 = vmatpush1.bf16.msra.mxu0 %v4220
        %4244 = vmatprep.subr.bf16.mxu0 0
        %4245 = vmatpush1.bf16.msra.mxu0 %v4221
        %4246 = vmatprep.subr.bf16.mxu0 0
        %4247 = vmatpush1.bf16.msra.mxu0 0
        %4248 = vmatprep.subr.bf16.mxu0 0
        %4249 = vmatpush1.bf16.msra.mxu0 0
        %4250 = vmatprep.subr.bf16.mxu0 0
        %4251 = vmatpush1.bf16.msra.mxu0 0
        %4252 = vmatprep.subr.bf16.mxu0 0
        %4253 = vmatpush1.bf16.msra.mxu0 0
        %4254 = vmatprep.subr.bf16.mxu0 0
        %4255 = vmatpush1.bf16.msra.mxu0 0
        %4256 = vmatprep.subr.bf16.mxu0 0
        %4257 = vmatpush1.bf16.msra.mxu0 0
        %4258 = vmatprep.subr.bf16.mxu0 0
        %4259 = vmatpush1.bf16.msra.mxu0 0
        %4260 = vmatprep.subr.bf16.mxu0 0
        %4261 = vmatpush1.bf16.msra.mxu0 0
        %4262 = vmatprep.mubr.bf16.mxu0 0
        %4263 = vmatmul.mubr.bf16.gmra.mrb[0].mxu0 %v4164
        %v4264 = vpop.f32.mrb[0].mxu0
        %v4265 = vadd.f32 0.0, %v4264
        %v4266 = vpop.f32.mrb[0].mxu0
        %v4267 = vpop.f32.mrb[0].mxu0
        %v4268 = vpop.f32.mrb[0].mxu0
        %4269 = vdwg.mxu0
        %v4270 = vadd.f32 %v4159, %v4265
        %v4271 = vrot.slane %v4270, 4
        %v4272 = vadd.f32 %v4270, %v4271
        %v4273 = vrot.slane %v4272, 2
        %v4274 = vadd.f32 %v4272, %v4273
        %v4275 = vrot.slane %v4274, 1
        %v4276 = vadd.f32 %v4274, %v4275
        %4277 = vmatprep.subr.mxu0 0.0
        %4278 = vmatpush1.msra.mxu0 %v2874
        %4279 = vmatprep.subr.mxu0 0.0
        %4280 = vmatpush1.msra.mxu0 %v2875
        %4281 = vmatprep.subr.mxu0 0.0
        %4282 = vmatpush1.msra.mxu0 %v2876
        %4283 = vmatprep.subr.mxu0 0.0
        %4284 = vmatpush1.msra.mxu0 %v2877
        %4285 = vmatprep.subr.mxu0 0.0
        %4286 = vmatpush1.msra.mxu0 %v2878
        %4287 = vmatprep.subr.mxu0 0.0
        %4288 = vmatpush1.msra.mxu0 %v2879
        %4289 = vmatprep.subr.mxu0 0.0
        %4290 = vmatpush1.msra.mxu0 %v2880
        %4291 = vmatprep.subr.mxu0 0.0
        %4292 = vmatpush1.msra.mxu0 %v2881
        %4293 = vmatprep.subr.mxu0 0.0
        %4294 = vmatpush1.msra.mxu0 %v2882
        %4295 = vmatprep.subr.mxu0 0.0
        %4296 = vmatpush1.msra.mxu0 %v2883
        %4297 = vmatprep.subr.mxu0 0.0
        %4298 = vmatpush1.msra.mxu0 %v2884
        %4299 = vmatprep.subr.mxu0 0.0
        %4300 = vmatpush1.msra.mxu0 %v2885
        %4301 = vmatprep.subr.mxu0 0.0
        %4302 = vmatpush1.msra.mxu0 %v2886
        %4303 = vmatprep.subr.mxu0 0.0
        %4304 = vmatpush1.msra.mxu0 %v2887
        %4305 = vmatprep.subr.mxu0 0.0
        %4306 = vmatpush1.msra.mxu0 %v2888
        %4307 = vmatprep.subr.mxu0 0.0
        %4308 = vmatpush1.msra.mxu0 %v2889
        %4309 = vmatprep.subr.mxu0 0.0
        %4310 = vmatpush1.msra.mxu0 0.0
        %4311 = vmatprep.subr.mxu0 0.0
        %4312 = vmatpush1.msra.mxu0 0.0
        %4313 = vmatprep.subr.mxu0 0.0
        %4314 = vmatpush1.msra.mxu0 0.0
        %4315 = vmatprep.subr.mxu0 0.0
        %4316 = vmatpush1.msra.mxu0 0.0
        %4317 = vmatprep.subr.mxu0 0.0
        %4318 = vmatpush1.msra.mxu0 0.0
        %4319 = vmatprep.subr.mxu0 0.0
        %4320 = vmatpush1.msra.mxu0 0.0
        %4321 = vmatprep.subr.mxu0 0.0
        %4322 = vmatpush1.msra.mxu0 0.0
        %4323 = vmatprep.subr.mxu0 0.0
        %4324 = vmatpush1.msra.mxu0 0.0
        %4325 = vmatprep.subr.mxu0 0.0
        %4326 = vmatpush1.msra.mxu0 0.0
        %4327 = vmatprep.subr.mxu0 0.0
        %4328 = vmatpush1.msra.mxu0 0.0
        %4329 = vmatprep.subr.mxu0 0.0
        %4330 = vmatpush1.msra.mxu0 0.0
        %4331 = vmatprep.subr.mxu0 0.0
        %4332 = vmatpush1.msra.mxu0 0.0
        %4333 = vmatprep.subr.mxu0 0.0
        %4334 = vmatpush1.msra.mxu0 0.0
        %4335 = vmatprep.subr.mxu0 0.0
        %4336 = vmatpush1.msra.mxu0 0.0
        %4337 = vmatprep.subr.mxu0 0.0
        %4338 = vmatpush1.msra.mxu0 0.0
        %4339 = vmatprep.subr.mxu0 0.0
        %4340 = vmatpush1.msra.mxu0 0.0
        %4341 = vmatprep.mubr.f32.mxu0 0.0
        %4342 = vmatmul.mubr.f32.gmra.mrb[0].mxu0 %v4276
        %v4343 = vpop.f32.mrb[0].mxu0
        %v4344 = vadd.f32 0.0, %v4343
        %v4345 = vpop.f32.mrb[0].mxu0
        %4346 = vdwg.mxu0
        %v4347 = vlaneseq
        %v4348 = vshrl.u32 %v4347, 7
        %v4349 = vsub.s32 0, %v4348
        %v4350 = vrot.slane %v4344, %v4349
        %v4351 = vsub.f32 %v4270, %v4350
        %v4352 = vmul.f32 %v4351, %v4351
        %v4353 = vrot.slane %v4352, 4
        %v4354 = vadd.f32 %v4352, %v4353
        %v4355 = vrot.slane %v4354, 2
        %v4356 = vadd.f32 %v4354, %v4355
        %v4357 = vrot.slane %v4356, 1
        %v4358 = vadd.f32 %v4356, %v4357
        %4359 = vmatprep.subr.mxu0 0.0
        %4360 = vmatpush1.msra.mxu0 %v2874
        %4361 = vmatprep.subr.mxu0 0.0
        %4362 = vmatpush1.msra.mxu0 %v2875
        %4363 = vmatprep.subr.mxu0 0.0
        %4364 = vmatpush1.msra.mxu0 %v2876
        %4365 = vmatprep.subr.mxu0 0.0
        %4366 = vmatpush1.msra.mxu0 %v2877
        %4367 = vmatprep.subr.mxu0 0.0
        %4368 = vmatpush1.msra.mxu0 %v2878
        %4369 = vmatprep.subr.mxu0 0.0
        %4370 = vmatpush1.msra.mxu0 %v2879
        %4371 = vmatprep.subr.mxu0 0.0
        %4372 = vmatpush1.msra.mxu0 %v2880
        %4373 = vmatprep.subr.mxu0 0.0
        %4374 = vmatpush1.msra.mxu0 %v2881
        %4375 = vmatprep.subr.mxu0 0.0
        %4376 = vmatpush1.msra.mxu0 %v2882
        %4377 = vmatprep.subr.mxu0 0.0
        %4378 = vmatpush1.msra.mxu0 %v2883
        %4379 = vmatprep.subr.mxu0 0.0
        %4380 = vmatpush1.msra.mxu0 %v2884
        %4381 = vmatprep.subr.mxu0 0.0
        %4382 = vmatpush1.msra.mxu0 %v2885
        %4383 = vmatprep.subr.mxu0 0.0
        %4384 = vmatpush1.msra.mxu0 %v2886
        %4385 = vmatprep.subr.mxu0 0.0
        %4386 = vmatpush1.msra.mxu0 %v2887
        %4387 = vmatprep.subr.mxu0 0.0
        %4388 = vmatpush1.msra.mxu0 %v2888
        %4389 = vmatprep.subr.mxu0 0.0
        %4390 = vmatpush1.msra.mxu0 %v2889
        %4391 = vmatprep.subr.mxu0 0.0
        %4392 = vmatpush1.msra.mxu0 0.0
        %4393 = vmatprep.subr.mxu0 0.0
        %4394 = vmatpush1.msra.mxu0 0.0
        %4395 = vmatprep.subr.mxu0 0.0
        %4396 = vmatpush1.msra.mxu0 0.0
        %4397 = vmatprep.subr.mxu0 0.0
        %4398 = vmatpush1.msra.mxu0 0.0
        %4399 = vmatprep.subr.mxu0 0.0
        %4400 = vmatpush1.msra.mxu0 0.0
        %4401 = vmatprep.subr.mxu0 0.0
        %4402 = vmatpush1.msra.mxu0 0.0
        %4403 = vmatprep.subr.mxu0 0.0
        %4404 = vmatpush1.msra.mxu0 0.0
        %4405 = vmatprep.subr.mxu0 0.0
        %4406 = vmatpush1.msra.mxu0 0.0
        %4407 = vmatprep.subr.mxu0 0.0
        %4408 = vmatpush1.msra.mxu0 0.0
        %4409 = vmatprep.subr.mxu0 0.0
        %4410 = vmatpush1.msra.mxu0 0.0
        %4411 = vmatprep.subr.mxu0 0.0
        %4412 = vmatpush1.msra.mxu0 0.0
        %4413 = vmatprep.subr.mxu0 0.0
        %4414 = vmatpush1.msra.mxu0 0.0
        %4415 = vmatprep.subr.mxu0 0.0
        %4416 = vmatpush1.msra.mxu0 0.0
        %4417 = vmatprep.subr.mxu0 0.0
        %4418 = vmatpush1.msra.mxu0 0.0
        %4419 = vmatprep.subr.mxu0 0.0
        %4420 = vmatpush1.msra.mxu0 0.0
        %4421 = vmatprep.subr.mxu0 0.0
        %4422 = vmatpush1.msra.mxu0 0.0
        %4423 = vmatprep.mubr.f32.mxu0 0.0
        %4424 = vmatmul.mubr.f32.gmra.mrb[0].mxu0 %v4358
        %v4425 = vpop.f32.mrb[0].mxu0
        %v4426 = vadd.f32 1e-05, %v4425
        %v4427 = vpop.f32.mrb[0].mxu0
        %4428 = vdwg.mxu0
        %v4429 = vrsqrt.pop %v4426
        %v4430 = vlaneseq
        %v4431 = vshrl.u32 %v4430, 7
        %v4432 = vsub.s32 0, %v4431
        %v4433 = vrot.slane %v4429, %v4432
        %v4434 = vmul.f32 %v4351, %v4433
        %v4435 = vlaneseq
        %v4436 = vshrl.u32 %v4435, 7
        %v4437 = vsub.s32 3, %v4436
        %v4438 = vrot.slane %v2857, %v4437
        %v4439 = vmul.f32 %v4434, %v4438
        %v4440 = vlaneseq
        %v4441 = vshrl.u32 %v4440, 7
        %v4442 = vsub.s32 4, %v4441
        %v4443 = vrot.slane %v2857, %v4442
        %v4444 = vadd.f32 %v4439, %v4443
        %vm4445 = vcmp.gt.f32.partialorder %v4444, 0.0
        %v4446 = vmul.f32 %v4444, 1.442695
        %v4447 = vpow.pop %v4446
        %v4448 = vsub.f32 %v4447, 1.0
        %v4449 = vmul.f32 %v4448, 1.6732632
        %v4450 = vsel %vm4445, %v4444, %v4449
        %v4451 = vmul.f32 %v4450, 1.050701
        %v4452 = vld [vmem:[%s1072] sm:$0xff]
        %v4453 = vld [vmem:[%s1072 + $0x8] sm:$0xff]
        %v4454 = vld [vmem:[#allocation31] sm:$0xff]
        %v4455 = vld [vmem:[%s18] sm:$0xf]
        %v4456 = vld [vmem:[%s18 + $0x4] sm:$0xf]
        %v4457 = vld [vmem:[%s18 + $0x8] sm:$0xf]
        %v4458 = vld [vmem:[%s18 + $0xc] sm:$0xf]
        %v4459 = vld [vmem:[%s18 + $0x10] sm:$0xf]
        %v4460 = vld [vmem:[%s18 + $0x14] sm:$0xf]
        %v4461 = vld [vmem:[%s18 + $0x18] sm:$0xf]
        %v4462 = vld [vmem:[%s18 + $0x1c] sm:$0xf]
        %v4463 = vld [vmem:[%s18 + $0x20] sm:$0xf]
        %v4464 = vld [vmem:[%s18 + $0x24] sm:$0xf]
        %v4465 = vld [vmem:[%s18 + $0x28] sm:$0xf]
        %v4466 = vld [vmem:[%s18 + $0x2c] sm:$0xf]
        %v4467 = vld [vmem:[%s18 + $0x30] sm:$0xf]
        %v4468 = vld [vmem:[%s18 + $0x34] sm:$0xf]
        %v4469 = vld [vmem:[%s18 + $0x38] sm:$0xf]
        %v4470 = vld [vmem:[%s18 + $0x3c] sm:$0xf]
        %v4471 = vunpack.c.l.bf16 %v4455
        %v4472 = vunpack.c.l.bf16 %v4456
        %v4473 = vunpack.c.l.bf16 %v4457
        %v4474 = vunpack.c.l.bf16 %v4458
        %v4475 = vunpack.c.l.bf16 %v4459
        %v4476 = vunpack.c.l.bf16 %v4460
        %v4477 = vunpack.c.l.bf16 %v4461
        %v4478 = vunpack.c.l.bf16 %v4462
        %v4479 = vunpack.c.l.bf16 %v4463
        %v4480 = vunpack.c.l.bf16 %v4464
        %v4481 = vunpack.c.l.bf16 %v4465
        %v4482 = vunpack.c.l.bf16 %v4466
        %v4483 = vunpack.c.l.bf16 %v4467
        %v4484 = vunpack.c.l.bf16 %v4468
        %v4485 = vunpack.c.l.bf16 %v4469
        %v4486 = vunpack.c.l.bf16 %v4470
        %v4487 = vpack.c.bf16 %v4451, %v4451
        %v4488 = vld [vmem:[#allocation26] sm:$0xff]
        %v4489 = vld [vmem:[#allocation26 + $0x8] sm:$0xff]
        %v4490 = vld [vmem:[#allocation26 + $0x10] sm:$0xff]
        %v4491 = vld [vmem:[#allocation26 + $0x18] sm:$0xff]
        %v4492 = vld [vmem:[#allocation26 + $0x20] sm:$0xff]
        %v4493 = vld [vmem:[#allocation26 + $0x28] sm:$0xff]
        %v4494 = vld [vmem:[#allocation26 + $0x30] sm:$0xff]
        %v4495 = vld [vmem:[#allocation26 + $0x38] sm:$0xff]
        %v4496 = vld [vmem:[#allocation26 + $0x40] sm:$0xff]
        %v4497 = vld [vmem:[#allocation26 + $0x48] sm:$0xff]
        %v4498 = vld [vmem:[#allocation26 + $0x50] sm:$0xff]
        %v4499 = vld [vmem:[#allocation26 + $0x58] sm:$0xff]
        %v4500 = vld [vmem:[#allocation26 + $0x60] sm:$0xff]
        %v4501 = vld [vmem:[#allocation26 + $0x68] sm:$0xff]
        %v4502 = vld [vmem:[#allocation26 + $0x70] sm:$0xff]
        %v4503 = vld [vmem:[#allocation26 + $0x78] sm:$0xff]
        %v4520 = vunpack.c.l.b16 %v4488
        %v4521 = vunpack.c.h.b16 %v4488
        %v4522 = vunpack.c.l.b16 %v4489
        %v4523 = vunpack.c.h.b16 %v4489
        %v4524 = vunpack.c.l.b16 %v4490
        %v4525 = vunpack.c.h.b16 %v4490
        %v4526 = vunpack.c.l.b16 %v4491
        %v4527 = vunpack.c.h.b16 %v4491
        %v4528 = vunpack.c.l.b16 %v4492
        %v4529 = vunpack.c.h.b16 %v4492
        %v4530 = vunpack.c.l.b16 %v4493
        %v4531 = vunpack.c.h.b16 %v4493
        %v4532 = vunpack.c.l.b16 %v4494
        %v4533 = vunpack.c.h.b16 %v4494
        %v4534 = vunpack.c.l.b16 %v4495
        %v4535 = vunpack.c.h.b16 %v4495
        %v4536 = vunpack.c.l.b16 %v4496
        %v4537 = vunpack.c.h.b16 %v4496
        %v4538 = vunpack.c.l.b16 %v4497
        %v4539 = vunpack.c.h.b16 %v4497
        %v4540 = vunpack.c.l.b16 %v4498
        %v4541 = vunpack.c.h.b16 %v4498
        %v4542 = vunpack.c.l.b16 %v4499
        %v4543 = vunpack.c.h.b16 %v4499
        %v4544 = vunpack.c.l.b16 %v4500
        %v4545 = vunpack.c.h.b16 %v4500
        %v4546 = vunpack.c.l.b16 %v4501
        %v4547 = vunpack.c.h.b16 %v4501
        %v4548 = vunpack.c.l.b16 %v4502
        %v4549 = vunpack.c.h.b16 %v4502
        %v4550 = vunpack.c.l.b16 %v4503
        %v4551 = vunpack.c.h.b16 %v4503
        %v4552 = vpack.c.b16 %v4522, %v4520
        %v4553 = vpack.c.b16 %v4523, %v4521
        %v4554 = vpack.c.b16 %v4526, %v4524
        %v4555 = vpack.c.b16 %v4527, %v4525
        %v4556 = vpack.c.b16 %v4530, %v4528
        %v4557 = vpack.c.b16 %v4531, %v4529
        %v4558 = vpack.c.b16 %v4534, %v4532
        %v4559 = vpack.c.b16 %v4535, %v4533
        %v4560 = vpack.c.b16 %v4538, %v4536
        %v4561 = vpack.c.b16 %v4539, %v4537
        %v4562 = vpack.c.b16 %v4542, %v4540
        %v4563 = vpack.c.b16 %v4543, %v4541
        %v4564 = vpack.c.b16 %v4546, %v4544
        %v4565 = vpack.c.b16 %v4547, %v4545
        %v4566 = vpack.c.b16 %v4550, %v4548
        %v4567 = vpack.c.b16 %v4551, %v4549
        %4584 = vmatprep.subr.bf16.mxu0 %v4553
        %4585 = vmatpush1.bf16.msra.mxu0 %v4552
        %4586 = vmatprep.subr.bf16.mxu0 %v4555
        %4587 = vmatpush1.bf16.msra.mxu0 %v4554
        %4588 = vmatprep.subr.bf16.mxu0 %v4557
        %4589 = vmatpush1.bf16.msra.mxu0 %v4556
        %4590 = vmatprep.subr.bf16.mxu0 %v4559
        %4591 = vmatpush1.bf16.msra.mxu0 %v4558
        %4592 = vmatprep.subr.bf16.mxu0 %v4561
        %4593 = vmatpush1.bf16.msra.mxu0 %v4560
        %4594 = vmatprep.subr.bf16.mxu0 %v4563
        %4595 = vmatpush1.bf16.msra.mxu0 %v4562
        %4596 = vmatprep.subr.bf16.mxu0 %v4565
        %4597 = vmatpush1.bf16.msra.mxu0 %v4564
        %4598 = vmatprep.subr.bf16.mxu0 %v4567
        %4599 = vmatpush1.bf16.msra.mxu0 %v4566
        %4600 = vmatprep.subr.bf16.mxu0 0
        %4601 = vmatpush1.bf16.msra.mxu0 0
        %4602 = vmatprep.subr.bf16.mxu0 0
        %4603 = vmatpush1.bf16.msra.mxu0 0
        %4604 = vmatprep.subr.bf16.mxu0 0
        %4605 = vmatpush1.bf16.msra.mxu0 0
        %4606 = vmatprep.subr.bf16.mxu0 0
        %4607 = vmatpush1.bf16.msra.mxu0 0
        %4608 = vmatprep.subr.bf16.mxu0 0
        %4609 = vmatpush1.bf16.msra.mxu0 0
        %4610 = vmatprep.subr.bf16.mxu0 0
        %4611 = vmatpush1.bf16.msra.mxu0 0
        %4612 = vmatprep.subr.bf16.mxu0 0
        %4613 = vmatpush1.bf16.msra.mxu0 0
        %4614 = vmatprep.subr.bf16.mxu0 0
        %4615 = vmatpush1.bf16.msra.mxu0 0
        %4616 = vmatprep.mubr.bf16.mxu0 0
        %4617 = vmatmul.mubr.bf16.gmra.mrb[0].mxu0 %v4487
        %v4618 = vpop.f32.mrb[0].mxu0
        %v4619 = vadd.f32 0.0, %v4618
        %v4620 = vpop.f32.mrb[0].mxu0
        %v4621 = vadd.f32 0.0, %v4620
        %v4622 = vpop.f32.mrb[0].mxu0
        %v4623 = vpop.f32.mrb[0].mxu0
        %4624 = vdwg.mxu0
        %v4625 = vld [vmem:[#allocation28] sm:$0xff]
        %v4626 = vld [vmem:[#allocation28 + $0x8] sm:$0xff]
        %v4627 = vlaneseq
        %v4628 = vshrl.u32 %v4627, 7
        %v4629 = vsub.s32 0, %v4628
        %v4630 = vrot.slane %v4454, %v4629
        %vm4631 = vcmask 130048
        %v4633 = vsel %vm4631, %v4625, 0
        %v4636 = vsel %vm4631, %v4626, 0
        %4638 = vmatprep.subr.mxu0 0.0
        %4639 = vmatpush1.msra.mxu0 %v4619
        %4640 = vmatprep.subr.mxu0 0.0
        %4641 = vmatpush1.msra.mxu0 %v4621
        %4642 = vmatprep.subr.mxu0 0.0
        %4643 = vmatpush1.msra.mxu0 0.0
        %4644 = vmatprep.subr.mxu0 0.0
        %4645 = vmatpush1.msra.mxu0 0.0
        %4646 = vmatprep.subr.mxu0 0.0
        %4647 = vmatpush1.msra.mxu0 0.0
        %4648 = vmatprep.subr.mxu0 0.0
        %4649 = vmatpush1.msra.mxu0 0.0
        %4650 = vmatprep.subr.mxu0 0.0
        %4651 = vmatpush1.msra.mxu0 0.0
        %4652 = vmatprep.subr.mxu0 0.0
        %4653 = vmatpush1.msra.mxu0 0.0
        %4654 = vmatprep.subr.mxu0 0.0
        %4655 = vmatpush1.msra.mxu0 0.0
        %4656 = vmatprep.subr.mxu0 0.0
        %4657 = vmatpush1.msra.mxu0 0.0
        %4658 = vmatprep.subr.mxu0 0.0
        %4659 = vmatpush1.msra.mxu0 0.0
        %4660 = vmatprep.subr.mxu0 0.0
        %4661 = vmatpush1.msra.mxu0 0.0
        %4662 = vmatprep.subr.mxu0 0.0
        %4663 = vmatpush1.msra.mxu0 0.0
        %4664 = vmatprep.subr.mxu0 0.0
        %4665 = vmatpush1.msra.mxu0 0.0
        %4666 = vmatprep.subr.mxu0 0.0
        %4667 = vmatpush1.msra.mxu0 0.0
        %4668 = vmatprep.subr.mxu0 0.0
        %4669 = vmatpush1.msra.mxu0 0.0
        %4670 = vmatprep.subr.mxu0 0.0
        %4671 = vmatpush1.msra.mxu0 0.0
        %4672 = vmatprep.subr.mxu0 0.0
        %4673 = vmatpush1.msra.mxu0 0.0
        %4674 = vmatprep.subr.mxu0 0.0
        %4675 = vmatpush1.msra.mxu0 0.0
        %4676 = vmatprep.subr.mxu0 0.0
        %4677 = vmatpush1.msra.mxu0 0.0
        %4678 = vmatprep.subr.mxu0 0.0
        %4679 = vmatpush1.msra.mxu0 0.0
        %4680 = vmatprep.subr.mxu0 0.0
        %4681 = vmatpush1.msra.mxu0 0.0
        %4682 = vmatprep.subr.mxu0 0.0
        %4683 = vmatpush1.msra.mxu0 0.0
        %4684 = vmatprep.subr.mxu0 0.0
        %4685 = vmatpush1.msra.mxu0 0.0
        %4686 = vmatprep.subr.mxu0 0.0
        %4687 = vmatpush1.msra.mxu0 0.0
        %4688 = vmatprep.subr.mxu0 0.0
        %4689 = vmatpush1.msra.mxu0 0.0
        %4690 = vmatprep.subr.mxu0 0.0
        %4691 = vmatpush1.msra.mxu0 0.0
        %4692 = vmatprep.subr.mxu0 0.0
        %4693 = vmatpush1.msra.mxu0 0.0
        %4694 = vmatprep.subr.mxu0 0.0
        %4695 = vmatpush1.msra.mxu0 0.0
        %4696 = vmatprep.subr.mxu0 0.0
        %4697 = vmatpush1.msra.mxu0 0.0
        %4698 = vmatprep.subr.mxu0 0.0
        %4699 = vmatpush1.msra.mxu0 0.0
        %4700 = vmatprep.subr.mxu0 0.0
        %4701 = vmatpush1.msra.mxu0 0.0
        %4702 = vmatprep.mubr.f32.mxu0 0.0
        %4703 = vmatmul.mubr.f32.gmra.mrb[0].mxu0 %v4633
        %v4704 = vpop.f32.mrb[0].mxu0
        %v4705 = vadd.f32 %v4630, %v4704
        %v4706 = vpop.f32.mrb[0].mxu0
        %4707 = vmatprep.mubr.f32.mxu0 0.0
        %4708 = vmatmul.mubr.f32.gmra.mrb[0].mxu0 %v4636
        %v4709 = vpop.f32.mrb[0].mxu0
        %v4710 = vadd.f32 %v4630, %v4709
        %v4711 = vpop.f32.mrb[0].mxu0
        %4712 = vdwg.mxu0
        %v4715 = vrot.slane %v4705, 7
        %v4716 = vrot.slane %v4710, 7
        %v4717 = vsel %vm1513, %v4715, %v4716
        %v4720 = vsel %vm1513, 0.0, %v4715
        %v4721 = vrot.slane %v4705, 1
        %v4722 = vrot.slane %v4710, 1
        %v4723 = vsel %vm3117, %v4721, %v4722
        %v4726 = vsel %vm3117, %v4722, 0.0
        %v4727 = vpack.c.bf16 %v4717, %v4720
        %v4728 = vld [vmem:[#allocation29] sm:$0xf]
        %v4729 = vld [vmem:[#allocation29 + $0x4] sm:$0xf]
        %v4730 = vld [vmem:[#allocation29 + $0x8] sm:$0xf]
        %v4731 = vld [vmem:[#allocation29 + $0xc] sm:$0xf]
        %v4732 = vld [vmem:[#allocation29 + $0x10] sm:$0xf]
        %v4733 = vld [vmem:[#allocation29 + $0x14] sm:$0xf]
        %v4734 = vld [vmem:[#allocation29 + $0x18] sm:$0xf]
        %v4735 = vld [vmem:[#allocation29 + $0x1c] sm:$0xf]
        %v4736 = vld [vmem:[#allocation29 + $0x20] sm:$0xf]
        %v4737 = vld [vmem:[#allocation29 + $0x24] sm:$0xf]
        %v4738 = vld [vmem:[#allocation29 + $0x28] sm:$0xf]
        %v4739 = vld [vmem:[#allocation29 + $0x2c] sm:$0xf]
        %v4740 = vld [vmem:[#allocation29 + $0x30] sm:$0xf]
        %v4741 = vld [vmem:[#allocation29 + $0x34] sm:$0xf]
        %v4742 = vld [vmem:[#allocation29 + $0x38] sm:$0xf]
        %v4743 = vld [vmem:[#allocation29 + $0x3c] sm:$0xf]
        %v4744 = vpack.c.bf16 %v4710, %v4705
        %s4745 = scalar_lea.vmem [#allocation29], 64
        %v4746 = vld [vmem:[%s4745] sm:$0xf]
        %v4747 = vld [vmem:[%s4745 + $0x4] sm:$0xf]
        %v4748 = vld [vmem:[%s4745 + $0x8] sm:$0xf]
        %v4749 = vld [vmem:[%s4745 + $0xc] sm:$0xf]
        %v4750 = vld [vmem:[%s4745 + $0x10] sm:$0xf]
        %v4751 = vld [vmem:[%s4745 + $0x14] sm:$0xf]
        %v4752 = vld [vmem:[%s4745 + $0x18] sm:$0xf]
        %v4753 = vld [vmem:[%s4745 + $0x1c] sm:$0xf]
        %v4754 = vld [vmem:[%s4745 + $0x20] sm:$0xf]
        %v4755 = vld [vmem:[%s4745 + $0x24] sm:$0xf]
        %v4756 = vld [vmem:[%s4745 + $0x28] sm:$0xf]
        %v4757 = vld [vmem:[%s4745 + $0x2c] sm:$0xf]
        %v4758 = vld [vmem:[%s4745 + $0x30] sm:$0xf]
        %v4759 = vld [vmem:[%s4745 + $0x34] sm:$0xf]
        %v4760 = vld [vmem:[%s4745 + $0x38] sm:$0xf]
        %v4761 = vld [vmem:[%s4745 + $0x3c] sm:$0xf]
        %v4778 = vunpack.c.l.b16 %v4746
        %v4779 = vunpack.c.l.b16 %v4747
        %v4780 = vunpack.c.l.b16 %v4748
        %v4781 = vunpack.c.l.b16 %v4749
        %v4782 = vunpack.c.l.b16 %v4750
        %v4783 = vunpack.c.l.b16 %v4751
        %v4784 = vunpack.c.l.b16 %v4752
        %v4785 = vunpack.c.l.b16 %v4753
        %v4786 = vunpack.c.l.b16 %v4754
        %v4787 = vunpack.c.l.b16 %v4755
        %v4788 = vunpack.c.l.b16 %v4756
        %v4789 = vunpack.c.l.b16 %v4757
        %v4790 = vunpack.c.l.b16 %v4758
        %v4791 = vunpack.c.l.b16 %v4759
        %v4792 = vunpack.c.l.b16 %v4760
        %v4793 = vunpack.c.l.b16 %v4761
        %v4794 = vpack.c.b16 %v4779, %v4778
        %v4795 = vpack.c.b16 %v4781, %v4780
        %v4796 = vpack.c.b16 %v4783, %v4782
        %v4797 = vpack.c.b16 %v4785, %v4784
        %v4798 = vpack.c.b16 %v4787, %v4786
        %v4799 = vpack.c.b16 %v4789, %v4788
        %v4800 = vpack.c.b16 %v4791, %v4790
        %v4801 = vpack.c.b16 %v4793, %v4792
        %4810 = vmatprep.subr.bf16.mxu0 0
        %4811 = vmatpush1.bf16.msra.mxu0 %v4794
        %4812 = vmatprep.subr.bf16.mxu0 0
        %4813 = vmatpush1.bf16.msra.mxu0 %v4795
        %4814 = vmatprep.subr.bf16.mxu0 0
        %4815 = vmatpush1.bf16.msra.mxu0 %v4796
        %4816 = vmatprep.subr.bf16.mxu0 0
        %4817 = vmatpush1.bf16.msra.mxu0 %v4797
        %4818 = vmatprep.subr.bf16.mxu0 0
        %4819 = vmatpush1.bf16.msra.mxu0 %v4798
        %4820 = vmatprep.subr.bf16.mxu0 0
        %4821 = vmatpush1.bf16.msra.mxu0 %v4799
        %4822 = vmatprep.subr.bf16.mxu0 0
        %4823 = vmatpush1.bf16.msra.mxu0 %v4800
        %4824 = vmatprep.subr.bf16.mxu0 0
        %4825 = vmatpush1.bf16.msra.mxu0 %v4801
        %4826 = vmatprep.subr.bf16.mxu0 0
        %4827 = vmatpush1.bf16.msra.mxu0 0
        %4828 = vmatprep.subr.bf16.mxu0 0
        %4829 = vmatpush1.bf16.msra.mxu0 0
        %4830 = vmatprep.subr.bf16.mxu0 0
        %4831 = vmatpush1.bf16.msra.mxu0 0
        %4832 = vmatprep.subr.bf16.mxu0 0
        %4833 = vmatpush1.bf16.msra.mxu0 0
        %4834 = vmatprep.subr.bf16.mxu0 0
        %4835 = vmatpush1.bf16.msra.mxu0 0
        %4836 = vmatprep.subr.bf16.mxu0 0
        %4837 = vmatpush1.bf16.msra.mxu0 0
        %4838 = vmatprep.subr.bf16.mxu0 0
        %4839 = vmatpush1.bf16.msra.mxu0 0
        %4840 = vmatprep.subr.bf16.mxu0 0
        %4841 = vmatpush1.bf16.msra.mxu0 0
        %4842 = vmatprep.mubr.bf16.mxu0 0
        %4843 = vmatmul.mubr.bf16.gmra.mrb[0].mxu0 %v4744
        %v4844 = vpop.f32.mrb[0].mxu0
        %v4845 = vadd.f32 0.0, %v4844
        %v4846 = vpop.f32.mrb[0].mxu0
        %v4847 = vpop.f32.mrb[0].mxu0
        %v4848 = vadd.f32 0.0, %v4847
        %v4849 = vpop.f32.mrb[0].mxu0
        %4850 = vdwg.mxu0
        %v4867 = vunpack.c.l.b16 %v4728
        %v4868 = vunpack.c.l.b16 %v4729
        %v4869 = vunpack.c.l.b16 %v4730
        %v4870 = vunpack.c.l.b16 %v4731
        %v4871 = vunpack.c.l.b16 %v4732
        %v4872 = vunpack.c.l.b16 %v4733
        %v4873 = vunpack.c.l.b16 %v4734
        %v4874 = vunpack.c.l.b16 %v4735
        %v4875 = vunpack.c.l.b16 %v4736
        %v4876 = vunpack.c.l.b16 %v4737
        %v4877 = vunpack.c.l.b16 %v4738
        %v4878 = vunpack.c.l.b16 %v4739
        %v4879 = vunpack.c.l.b16 %v4740
        %v4880 = vunpack.c.l.b16 %v4741
        %v4881 = vunpack.c.l.b16 %v4742
        %v4882 = vunpack.c.l.b16 %v4743
        %v4883 = vpack.c.b16 %v4868, %v4867
        %v4884 = vpack.c.b16 %v4870, %v4869
        %v4885 = vpack.c.b16 %v4872, %v4871
        %v4886 = vpack.c.b16 %v4874, %v4873
        %v4887 = vpack.c.b16 %v4876, %v4875
        %v4888 = vpack.c.b16 %v4878, %v4877
        %v4889 = vpack.c.b16 %v4880, %v4879
        %v4890 = vpack.c.b16 %v4882, %v4881
        %4899 = vmatprep.subr.bf16.mxu0 0
        %4900 = vmatpush1.bf16.msra.mxu0 %v4883
        %4901 = vmatprep.subr.bf16.mxu0 0
        %4902 = vmatpush1.bf16.msra.mxu0 %v4884
        %4903 = vmatprep.subr.bf16.mxu0 0
        %4904 = vmatpush1.bf16.msra.mxu0 %v4885
        %4905 = vmatprep.subr.bf16.mxu0 0
        %4906 = vmatpush1.bf16.msra.mxu0 %v4886
        %4907 = vmatprep.subr.bf16.mxu0 0
        %4908 = vmatpush1.bf16.msra.mxu0 %v4887
        %4909 = vmatprep.subr.bf16.mxu0 0
        %4910 = vmatpush1.bf16.msra.mxu0 %v4888
        %4911 = vmatprep.subr.bf16.mxu0 0
        %4912 = vmatpush1.bf16.msra.mxu0 %v4889
        %4913 = vmatprep.subr.bf16.mxu0 0
        %4914 = vmatpush1.bf16.msra.mxu0 %v4890
        %4915 = vmatprep.subr.bf16.mxu0 0
        %4916 = vmatpush1.bf16.msra.mxu0 0
        %4917 = vmatprep.subr.bf16.mxu0 0
        %4918 = vmatpush1.bf16.msra.mxu0 0
        %4919 = vmatprep.subr.bf16.mxu0 0
        %4920 = vmatpush1.bf16.msra.mxu0 0
        %4921 = vmatprep.subr.bf16.mxu0 0
        %4922 = vmatpush1.bf16.msra.mxu0 0
        %4923 = vmatprep.subr.bf16.mxu0 0
        %4924 = vmatpush1.bf16.msra.mxu0 0
        %4925 = vmatprep.subr.bf16.mxu0 0
        %4926 = vmatpush1.bf16.msra.mxu0 0
        %4927 = vmatprep.subr.bf16.mxu0 0
        %4928 = vmatpush1.bf16.msra.mxu0 0
        %4929 = vmatprep.subr.bf16.mxu0 0
        %4930 = vmatpush1.bf16.msra.mxu0 0
        %4931 = vmatprep.mubr.bf16.mxu0 0
        %4932 = vmatmul.mubr.bf16.gmra.mrb[0].mxu0 %v4727
        %v4933 = vpop.f32.mrb[0].mxu0
        %v4934 = vadd.f32 %v4845, %v4933
        %v4935 = vpop.f32.mrb[0].mxu0
        %v4936 = vpop.f32.mrb[0].mxu0
        %v4937 = vadd.f32 %v4848, %v4936
        %v4938 = vpop.f32.mrb[0].mxu0
        %4939 = vdwg.mxu0
        %v4940 = vpack.c.bf16 %v4726, %v4723
        %s4941 = scalar_lea.vmem [#allocation29], 128
        %v4942 = vld [vmem:[%s4941] sm:$0xf]
        %v4943 = vld [vmem:[%s4941 + $0x4] sm:$0xf]
        %v4944 = vld [vmem:[%s4941 + $0x8] sm:$0xf]
        %v4945 = vld [vmem:[%s4941 + $0xc] sm:$0xf]
        %v4946 = vld [vmem:[%s4941 + $0x10] sm:$0xf]
        %v4947 = vld [vmem:[%s4941 + $0x14] sm:$0xf]
        %v4948 = vld [vmem:[%s4941 + $0x18] sm:$0xf]
        %v4949 = vld [vmem:[%s4941 + $0x1c] sm:$0xf]
        %v4950 = vld [vmem:[%s4941 + $0x20] sm:$0xf]
        %v4951 = vld [vmem:[%s4941 + $0x24] sm:$0xf]
        %v4952 = vld [vmem:[%s4941 + $0x28] sm:$0xf]
        %v4953 = vld [vmem:[%s4941 + $0x2c] sm:$0xf]
        %v4954 = vld [vmem:[%s4941 + $0x30] sm:$0xf]
        %v4955 = vld [vmem:[%s4941 + $0x34] sm:$0xf]
        %v4956 = vld [vmem:[%s4941 + $0x38] sm:$0xf]
        %v4957 = vld [vmem:[%s4941 + $0x3c] sm:$0xf]
        %v4974 = vunpack.c.l.b16 %v4942
        %v4975 = vunpack.c.l.b16 %v4943
        %v4976 = vunpack.c.l.b16 %v4944
        %v4977 = vunpack.c.l.b16 %v4945
        %v4978 = vunpack.c.l.b16 %v4946
        %v4979 = vunpack.c.l.b16 %v4947
        %v4980 = vunpack.c.l.b16 %v4948
        %v4981 = vunpack.c.l.b16 %v4949
        %v4982 = vunpack.c.l.b16 %v4950
        %v4983 = vunpack.c.l.b16 %v4951
        %v4984 = vunpack.c.l.b16 %v4952
        %v4985 = vunpack.c.l.b16 %v4953
        %v4986 = vunpack.c.l.b16 %v4954
        %v4987 = vunpack.c.l.b16 %v4955
        %v4988 = vunpack.c.l.b16 %v4956
        %v4989 = vunpack.c.l.b16 %v4957
        %v4990 = vpack.c.b16 %v4975, %v4974
        %v4991 = vpack.c.b16 %v4977, %v4976
        %v4992 = vpack.c.b16 %v4979, %v4978
        %v4993 = vpack.c.b16 %v4981, %v4980
        %v4994 = vpack.c.b16 %v4983, %v4982
        %v4995 = vpack.c.b16 %v4985, %v4984
        %v4996 = vpack.c.b16 %v4987, %v4986
        %v4997 = vpack.c.b16 %v4989, %v4988
        %5006 = vmatprep.subr.bf16.mxu0 0
        %5007 = vmatpush1.bf16.msra.mxu0 %v4990
        %5008 = vmatprep.subr.bf16.mxu0 0
        %5009 = vmatpush1.bf16.msra.mxu0 %v4991
        %5010 = vmatprep.subr.bf16.mxu0 0
        %5011 = vmatpush1.bf16.msra.mxu0 %v4992
        %5012 = vmatprep.subr.bf16.mxu0 0
        %5013 = vmatpush1.bf16.msra.mxu0 %v4993
        %5014 = vmatprep.subr.bf16.mxu0 0
        %5015 = vmatpush1.bf16.msra.mxu0 %v4994
        %5016 = vmatprep.subr.bf16.mxu0 0
        %5017 = vmatpush1.bf16.msra.mxu0 %v4995
        %5018 = vmatprep.subr.bf16.mxu0 0
        %5019 = vmatpush1.bf16.msra.mxu0 %v4996
        %5020 = vmatprep.subr.bf16.mxu0 0
        %5021 = vmatpush1.bf16.msra.mxu0 %v4997
        %5022 = vmatprep.subr.bf16.mxu0 0
        %5023 = vmatpush1.bf16.msra.mxu0 0
        %5024 = vmatprep.subr.bf16.mxu0 0
        %5025 = vmatpush1.bf16.msra.mxu0 0
        %5026 = vmatprep.subr.bf16.mxu0 0
        %5027 = vmatpush1.bf16.msra.mxu0 0
        %5028 = vmatprep.subr.bf16.mxu0 0
        %5029 = vmatpush1.bf16.msra.mxu0 0
        %5030 = vmatprep.subr.bf16.mxu0 0
        %5031 = vmatpush1.bf16.msra.mxu0 0
        %5032 = vmatprep.subr.bf16.mxu0 0
        %5033 = vmatpush1.bf16.msra.mxu0 0
        %5034 = vmatprep.subr.bf16.mxu0 0
        %5035 = vmatpush1.bf16.msra.mxu0 0
        %5036 = vmatprep.subr.bf16.mxu0 0
        %5037 = vmatpush1.bf16.msra.mxu0 0
        %5038 = vmatprep.mubr.bf16.mxu0 0
        %5039 = vmatmul.mubr.bf16.gmra.mrb[0].mxu0 %v4940
        %v5040 = vpop.f32.mrb[0].mxu0
        %v5041 = vadd.f32 0.0, %v5040
        %v5042 = vpop.f32.mrb[0].mxu0
        %v5043 = vpop.f32.mrb[0].mxu0
        %v5044 = vadd.f32 0.0, %v5043
        %v5045 = vpop.f32.mrb[0].mxu0
        %5046 = vdwg.mxu0
        %v5047 = vadd.f32 %v4934, %v5041
        %v5048 = vadd.f32 %v4937, %v5044
        %v5051 = vrot.slane %v4452, 7
        %v5052 = vrot.slane %v4453, 7
        %v5053 = vsel %vm1513, %v5051, %v5052
        %v5056 = vsel %vm1513, 0.0, %v5051
        %v5057 = vrot.slane %v4452, 1
        %v5058 = vrot.slane %v4453, 1
        %v5059 = vsel %vm3117, %v5057, %v5058
        %v5062 = vsel %vm3117, %v5058, 0.0
        %v5063 = vpack.c.bf16 %v5053, %v5056
        %s5064 = scalar_lea.vmem [#allocation29], 192
        %v5065 = vld [vmem:[%s5064] sm:$0xf]
        %v5066 = vld [vmem:[%s5064 + $0x4] sm:$0xf]
        %v5067 = vld [vmem:[%s5064 + $0x8] sm:$0xf]
        %v5068 = vld [vmem:[%s5064 + $0xc] sm:$0xf]
        %v5069 = vld [vmem:[%s5064 + $0x10] sm:$0xf]
        %v5070 = vld [vmem:[%s5064 + $0x14] sm:$0xf]
        %v5071 = vld [vmem:[%s5064 + $0x18] sm:$0xf]
        %v5072 = vld [vmem:[%s5064 + $0x1c] sm:$0xf]
        %v5073 = vld [vmem:[%s5064 + $0x20] sm:$0xf]
        %v5074 = vld [vmem:[%s5064 + $0x24] sm:$0xf]
        %v5075 = vld [vmem:[%s5064 + $0x28] sm:$0xf]
        %v5076 = vld [vmem:[%s5064 + $0x2c] sm:$0xf]
        %v5077 = vld [vmem:[%s5064 + $0x30] sm:$0xf]
        %v5078 = vld [vmem:[%s5064 + $0x34] sm:$0xf]
        %v5079 = vld [vmem:[%s5064 + $0x38] sm:$0xf]
        %v5080 = vld [vmem:[%s5064 + $0x3c] sm:$0xf]
        %v5081 = vpack.c.bf16 %v4453, %v4452
        %s5082 = scalar_lea.vmem [#allocation29], 256
        %v5083 = vld [vmem:[%s5082] sm:$0xf]
        %v5084 = vld [vmem:[%s5082 + $0x4] sm:$0xf]
        %v5085 = vld [vmem:[%s5082 + $0x8] sm:$0xf]
        %v5086 = vld [vmem:[%s5082 + $0xc] sm:$0xf]
        %v5087 = vld [vmem:[%s5082 + $0x10] sm:$0xf]
        %v5088 = vld [vmem:[%s5082 + $0x14] sm:$0xf]
        %v5089 = vld [vmem:[%s5082 + $0x18] sm:$0xf]
        %v5090 = vld [vmem:[%s5082 + $0x1c] sm:$0xf]
        %v5091 = vld [vmem:[%s5082 + $0x20] sm:$0xf]
        %v5092 = vld [vmem:[%s5082 + $0x24] sm:$0xf]
        %v5093 = vld [vmem:[%s5082 + $0x28] sm:$0xf]
        %v5094 = vld [vmem:[%s5082 + $0x2c] sm:$0xf]
        %v5095 = vld [vmem:[%s5082 + $0x30] sm:$0xf]
        %v5096 = vld [vmem:[%s5082 + $0x34] sm:$0xf]
        %v5097 = vld [vmem:[%s5082 + $0x38] sm:$0xf]
        %v5098 = vld [vmem:[%s5082 + $0x3c] sm:$0xf]
        %v5115 = vunpack.c.l.b16 %v5083
        %v5116 = vunpack.c.l.b16 %v5084
        %v5117 = vunpack.c.l.b16 %v5085
        %v5118 = vunpack.c.l.b16 %v5086
        %v5119 = vunpack.c.l.b16 %v5087
        %v5120 = vunpack.c.l.b16 %v5088
        %v5121 = vunpack.c.l.b16 %v5089
        %v5122 = vunpack.c.l.b16 %v5090
        %v5123 = vunpack.c.l.b16 %v5091
        %v5124 = vunpack.c.l.b16 %v5092
        %v5125 = vunpack.c.l.b16 %v5093
        %v5126 = vunpack.c.l.b16 %v5094
        %v5127 = vunpack.c.l.b16 %v5095
        %v5128 = vunpack.c.l.b16 %v5096
        %v5129 = vunpack.c.l.b16 %v5097
        %v5130 = vunpack.c.l.b16 %v5098
        %v5131 = vpack.c.b16 %v5116, %v5115
        %v5132 = vpack.c.b16 %v5118, %v5117
        %v5133 = vpack.c.b16 %v5120, %v5119
        %v5134 = vpack.c.b16 %v5122, %v5121
        %v5135 = vpack.c.b16 %v5124, %v5123
        %v5136 = vpack.c.b16 %v5126, %v5125
        %v5137 = vpack.c.b16 %v5128, %v5127
        %v5138 = vpack.c.b16 %v5130, %v5129
        %5147 = vmatprep.subr.bf16.mxu0 0
        %5148 = vmatpush1.bf16.msra.mxu0 %v5131
        %5149 = vmatprep.subr.bf16.mxu0 0
        %5150 = vmatpush1.bf16.msra.mxu0 %v5132
        %5151 = vmatprep.subr.bf16.mxu0 0
        %5152 = vmatpush1.bf16.msra.mxu0 %v5133
        %5153 = vmatprep.subr.bf16.mxu0 0
        %5154 = vmatpush1.bf16.msra.mxu0 %v5134
        %5155 = vmatprep.subr.bf16.mxu0 0
        %5156 = vmatpush1.bf16.msra.mxu0 %v5135
        %5157 = vmatprep.subr.bf16.mxu0 0
        %5158 = vmatpush1.bf16.msra.mxu0 %v5136
        %5159 = vmatprep.subr.bf16.mxu0 0
        %5160 = vmatpush1.bf16.msra.mxu0 %v5137
        %5161 = vmatprep.subr.bf16.mxu0 0
        %5162 = vmatpush1.bf16.msra.mxu0 %v5138
        %5163 = vmatprep.subr.bf16.mxu0 0
        %5164 = vmatpush1.bf16.msra.mxu0 0
        %5165 = vmatprep.subr.bf16.mxu0 0
        %5166 = vmatpush1.bf16.msra.mxu0 0
        %5167 = vmatprep.subr.bf16.mxu0 0
        %5168 = vmatpush1.bf16.msra.mxu0 0
        %5169 = vmatprep.subr.bf16.mxu0 0
        %5170 = vmatpush1.bf16.msra.mxu0 0
        %5171 = vmatprep.subr.bf16.mxu0 0
        %5172 = vmatpush1.bf16.msra.mxu0 0
        %5173 = vmatprep.subr.bf16.mxu0 0
        %5174 = vmatpush1.bf16.msra.mxu0 0
        %5175 = vmatprep.subr.bf16.mxu0 0
        %5176 = vmatpush1.bf16.msra.mxu0 0
        %5177 = vmatprep.subr.bf16.mxu0 0
        %5178 = vmatpush1.bf16.msra.mxu0 0
        %5179 = vmatprep.mubr.bf16.mxu0 0
        %5180 = vmatmul.mubr.bf16.gmra.mrb[0].mxu0 %v5081
        %v5181 = vpop.f32.mrb[0].mxu0
        %v5182 = vadd.f32 0.0, %v5181
        %v5183 = vpop.f32.mrb[0].mxu0
        %v5184 = vpop.f32.mrb[0].mxu0
        %v5185 = vadd.f32 0.0, %v5184
        %v5186 = vpop.f32.mrb[0].mxu0
        %5187 = vdwg.mxu0
        %v5204 = vunpack.c.l.b16 %v5065
        %v5205 = vunpack.c.l.b16 %v5066
        %v5206 = vunpack.c.l.b16 %v5067
        %v5207 = vunpack.c.l.b16 %v5068
        %v5208 = vunpack.c.l.b16 %v5069
        %v5209 = vunpack.c.l.b16 %v5070
        %v5210 = vunpack.c.l.b16 %v5071
        %v5211 = vunpack.c.l.b16 %v5072
        %v5212 = vunpack.c.l.b16 %v5073
        %v5213 = vunpack.c.l.b16 %v5074
        %v5214 = vunpack.c.l.b16 %v5075
        %v5215 = vunpack.c.l.b16 %v5076
        %v5216 = vunpack.c.l.b16 %v5077
        %v5217 = vunpack.c.l.b16 %v5078
        %v5218 = vunpack.c.l.b16 %v5079
        %v5219 = vunpack.c.l.b16 %v5080
        %v5220 = vpack.c.b16 %v5205, %v5204
        %v5221 = vpack.c.b16 %v5207, %v5206
        %v5222 = vpack.c.b16 %v5209, %v5208
        %v5223 = vpack.c.b16 %v5211, %v5210
        %v5224 = vpack.c.b16 %v5213, %v5212
        %v5225 = vpack.c.b16 %v5215, %v5214
        %v5226 = vpack.c.b16 %v5217, %v5216
        %v5227 = vpack.c.b16 %v5219, %v5218
        %5236 = vmatprep.subr.bf16.mxu0 0
        %5237 = vmatpush1.bf16.msra.mxu0 %v5220
        %5238 = vmatprep.subr.bf16.mxu0 0
        %5239 = vmatpush1.bf16.msra.mxu0 %v5221
        %5240 = vmatprep.subr.bf16.mxu0 0
        %5241 = vmatpush1.bf16.msra.mxu0 %v5222
        %5242 = vmatprep.subr.bf16.mxu0 0
        %5243 = vmatpush1.bf16.msra.mxu0 %v5223
        %5244 = vmatprep.subr.bf16.mxu0 0
        %5245 = vmatpush1.bf16.msra.mxu0 %v5224
        %5246 = vmatprep.subr.bf16.mxu0 0
        %5247 = vmatpush1.bf16.msra.mxu0 %v5225
        %5248 = vmatprep.subr.bf16.mxu0 0
        %5249 = vmatpush1.bf16.msra.mxu0 %v5226
        %5250 = vmatprep.subr.bf16.mxu0 0
        %5251 = vmatpush1.bf16.msra.mxu0 %v5227
        %5252 = vmatprep.subr.bf16.mxu0 0
        %5253 = vmatpush1.bf16.msra.mxu0 0
        %5254 = vmatprep.subr.bf16.mxu0 0
        %5255 = vmatpush1.bf16.msra.mxu0 0
        %5256 = vmatprep.subr.bf16.mxu0 0
        %5257 = vmatpush1.bf16.msra.mxu0 0
        %5258 = vmatprep.subr.bf16.mxu0 0
        %5259 = vmatpush1.bf16.msra.mxu0 0
        %5260 = vmatprep.subr.bf16.mxu0 0
        %5261 = vmatpush1.bf16.msra.mxu0 0
        %5262 = vmatprep.subr.bf16.mxu0 0
        %5263 = vmatpush1.bf16.msra.mxu0 0
        %5264 = vmatprep.subr.bf16.mxu0 0
        %5265 = vmatpush1.bf16.msra.mxu0 0
        %5266 = vmatprep.subr.bf16.mxu0 0
        %5267 = vmatpush1.bf16.msra.mxu0 0
        %5268 = vmatprep.mubr.bf16.mxu0 0
        %5269 = vmatmul.mubr.bf16.gmra.mrb[0].mxu0 %v5063
        %v5270 = vpop.f32.mrb[0].mxu0
        %v5271 = vadd.f32 %v5182, %v5270
        %v5272 = vpop.f32.mrb[0].mxu0
        %v5273 = vpop.f32.mrb[0].mxu0
        %v5274 = vadd.f32 %v5185, %v5273
        %v5275 = vpop.f32.mrb[0].mxu0
        %5276 = vdwg.mxu0
        %v5277 = vpack.c.bf16 %v5062, %v5059
        %s5278 = scalar_lea.vmem [#allocation29], 320
        %v5279 = vld [vmem:[%s5278] sm:$0xf]
        %v5280 = vld [vmem:[%s5278 + $0x4] sm:$0xf]
        %v5281 = vld [vmem:[%s5278 + $0x8] sm:$0xf]
        %v5282 = vld [vmem:[%s5278 + $0xc] sm:$0xf]
        %v5283 = vld [vmem:[%s5278 + $0x10] sm:$0xf]
        %v5284 = vld [vmem:[%s5278 + $0x14] sm:$0xf]
        %v5285 = vld [vmem:[%s5278 + $0x18] sm:$0xf]
        %v5286 = vld [vmem:[%s5278 + $0x1c] sm:$0xf]
        %v5287 = vld [vmem:[%s5278 + $0x20] sm:$0xf]
        %v5288 = vld [vmem:[%s5278 + $0x24] sm:$0xf]
        %v5289 = vld [vmem:[%s5278 + $0x28] sm:$0xf]
        %v5290 = vld [vmem:[%s5278 + $0x2c] sm:$0xf]
        %v5291 = vld [vmem:[%s5278 + $0x30] sm:$0xf]
        %v5292 = vld [vmem:[%s5278 + $0x34] sm:$0xf]
        %v5293 = vld [vmem:[%s5278 + $0x38] sm:$0xf]
        %v5294 = vld [vmem:[%s5278 + $0x3c] sm:$0xf]
        %v5311 = vunpack.c.l.b16 %v5279
        %v5312 = vunpack.c.l.b16 %v5280
        %v5313 = vunpack.c.l.b16 %v5281
        %v5314 = vunpack.c.l.b16 %v5282
        %v5315 = vunpack.c.l.b16 %v5283
        %v5316 = vunpack.c.l.b16 %v5284
        %v5317 = vunpack.c.l.b16 %v5285
        %v5318 = vunpack.c.l.b16 %v5286
        %v5319 = vunpack.c.l.b16 %v5287
        %v5320 = vunpack.c.l.b16 %v5288
        %v5321 = vunpack.c.l.b16 %v5289
        %v5322 = vunpack.c.l.b16 %v5290
        %v5323 = vunpack.c.l.b16 %v5291
        %v5324 = vunpack.c.l.b16 %v5292
        %v5325 = vunpack.c.l.b16 %v5293
        %v5326 = vunpack.c.l.b16 %v5294
        %v5327 = vpack.c.b16 %v5312, %v5311
        %v5328 = vpack.c.b16 %v5314, %v5313
        %v5329 = vpack.c.b16 %v5316, %v5315
        %v5330 = vpack.c.b16 %v5318, %v5317
        %v5331 = vpack.c.b16 %v5320, %v5319
        %v5332 = vpack.c.b16 %v5322, %v5321
        %v5333 = vpack.c.b16 %v5324, %v5323
        %v5334 = vpack.c.b16 %v5326, %v5325
        %5343 = vmatprep.subr.bf16.mxu0 0
        %5344 = vmatpush1.bf16.msra.mxu0 %v5327
        %5345 = vmatprep.subr.bf16.mxu0 0
        %5346 = vmatpush1.bf16.msra.mxu0 %v5328
        %5347 = vmatprep.subr.bf16.mxu0 0
        %5348 = vmatpush1.bf16.msra.mxu0 %v5329
        %5349 = vmatprep.subr.bf16.mxu0 0
        %5350 = vmatpush1.bf16.msra.mxu0 %v5330
        %5351 = vmatprep.subr.bf16.mxu0 0
        %5352 = vmatpush1.bf16.msra.mxu0 %v5331
        %5353 = vmatprep.subr.bf16.mxu0 0
        %5354 = vmatpush1.bf16.msra.mxu0 %v5332
        %5355 = vmatprep.subr.bf16.mxu0 0
        %5356 = vmatpush1.bf16.msra.mxu0 %v5333
        %5357 = vmatprep.subr.bf16.mxu0 0
        %5358 = vmatpush1.bf16.msra.mxu0 %v5334
        %5359 = vmatprep.subr.bf16.mxu0 0
        %5360 = vmatpush1.bf16.msra.mxu0 0
        %5361 = vmatprep.subr.bf16.mxu0 0
        %5362 = vmatpush1.bf16.msra.mxu0 0
        %5363 = vmatprep.subr.bf16.mxu0 0
        %5364 = vmatpush1.bf16.msra.mxu0 0
        %5365 = vmatprep.subr.bf16.mxu0 0
        %5366 = vmatpush1.bf16.msra.mxu0 0
        %5367 = vmatprep.subr.bf16.mxu0 0
        %5368 = vmatpush1.bf16.msra.mxu0 0
        %5369 = vmatprep.subr.bf16.mxu0 0
        %5370 = vmatpush1.bf16.msra.mxu0 0
        %5371 = vmatprep.subr.bf16.mxu0 0
        %5372 = vmatpush1.bf16.msra.mxu0 0
        %5373 = vmatprep.subr.bf16.mxu0 0
        %5374 = vmatpush1.bf16.msra.mxu0 0
        %5375 = vmatprep.mubr.bf16.mxu0 0
        %5376 = vmatmul.mubr.bf16.gmra.mrb[0].mxu0 %v5277
        %v5377 = vpop.f32.mrb[0].mxu0
        %v5378 = vadd.f32 0.0, %v5377
        %v5379 = vpop.f32.mrb[0].mxu0
        %v5380 = vpop.f32.mrb[0].mxu0
        %v5381 = vadd.f32 0.0, %v5380
        %v5382 = vpop.f32.mrb[0].mxu0
        %5383 = vdwg.mxu0
        %v5384 = vadd.f32 %v5271, %v5378
        %v5385 = vadd.f32 %v5274, %v5381
        %v5386 = vadd.f32 %v5047, %v5384
        %v5387 = vadd.f32 %v5048, %v5385
        %v5388 = vadd.f32 %v5386, %v5387
        %v5389 = vrot.slane %v5388, 4
        %v5390 = vadd.f32 %v5388, %v5389
        %v5391 = vrot.slane %v5390, 2
        %v5392 = vadd.f32 %v5390, %v5391
        %v5393 = vrot.slane %v5392, 1
        %v5394 = vadd.f32 %v5392, %v5393
        %5395 = vmatprep.subr.mxu0 0.0
        %5396 = vmatpush1.msra.mxu0 %v4471
        %5397 = vmatprep.subr.mxu0 0.0
        %5398 = vmatpush1.msra.mxu0 %v4472
        %5399 = vmatprep.subr.mxu0 0.0
        %5400 = vmatpush1.msra.mxu0 %v4473
        %5401 = vmatprep.subr.mxu0 0.0
        %5402 = vmatpush1.msra.mxu0 %v4474
        %5403 = vmatprep.subr.mxu0 0.0
        %5404 = vmatpush1.msra.mxu0 %v4475
        %5405 = vmatprep.subr.mxu0 0.0
        %5406 = vmatpush1.msra.mxu0 %v4476
        %5407 = vmatprep.subr.mxu0 0.0
        %5408 = vmatpush1.msra.mxu0 %v4477
        %5409 = vmatprep.subr.mxu0 0.0
        %5410 = vmatpush1.msra.mxu0 %v4478
        %5411 = vmatprep.subr.mxu0 0.0
        %5412 = vmatpush1.msra.mxu0 %v4479
        %5413 = vmatprep.subr.mxu0 0.0
        %5414 = vmatpush1.msra.mxu0 %v4480
        %5415 = vmatprep.subr.mxu0 0.0
        %5416 = vmatpush1.msra.mxu0 %v4481
        %5417 = vmatprep.subr.mxu0 0.0
        %5418 = vmatpush1.msra.mxu0 %v4482
        %5419 = vmatprep.subr.mxu0 0.0
        %5420 = vmatpush1.msra.mxu0 %v4483
        %5421 = vmatprep.subr.mxu0 0.0
        %5422 = vmatpush1.msra.mxu0 %v4484
        %5423 = vmatprep.subr.mxu0 0.0
        %5424 = vmatpush1.msra.mxu0 %v4485
        %5425 = vmatprep.subr.mxu0 0.0
        %5426 = vmatpush1.msra.mxu0 %v4486
        %5427 = vmatprep.subr.mxu0 0.0
        %5428 = vmatpush1.msra.mxu0 0.0
        %5429 = vmatprep.subr.mxu0 0.0
        %5430 = vmatpush1.msra.mxu0 0.0
        %5431 = vmatprep.subr.mxu0 0.0
        %5432 = vmatpush1.msra.mxu0 0.0
        %5433 = vmatprep.subr.mxu0 0.0
        %5434 = vmatpush1.msra.mxu0 0.0
        %5435 = vmatprep.subr.mxu0 0.0
        %5436 = vmatpush1.msra.mxu0 0.0
        %5437 = vmatprep.subr.mxu0 0.0
        %5438 = vmatpush1.msra.mxu0 0.0
        %5439 = vmatprep.subr.mxu0 0.0
        %5440 = vmatpush1.msra.mxu0 0.0
        %5441 = vmatprep.subr.mxu0 0.0
        %5442 = vmatpush1.msra.mxu0 0.0
        %5443 = vmatprep.subr.mxu0 0.0
        %5444 = vmatpush1.msra.mxu0 0.0
        %5445 = vmatprep.subr.mxu0 0.0
        %5446 = vmatpush1.msra.mxu0 0.0
        %5447 = vmatprep.subr.mxu0 0.0
        %5448 = vmatpush1.msra.mxu0 0.0
        %5449 = vmatprep.subr.mxu0 0.0
        %5450 = vmatpush1.msra.mxu0 0.0
        %5451 = vmatprep.subr.mxu0 0.0
        %5452 = vmatpush1.msra.mxu0 0.0
        %5453 = vmatprep.subr.mxu0 0.0
        %5454 = vmatpush1.msra.mxu0 0.0
        %5455 = vmatprep.subr.mxu0 0.0
        %5456 = vmatpush1.msra.mxu0 0.0
        %5457 = vmatprep.subr.mxu0 0.0
        %5458 = vmatpush1.msra.mxu0 0.0
        %5459 = vmatprep.mubr.f32.mxu0 0.0
        %5460 = vmatmul.mubr.f32.gmra.mrb[0].mxu0 %v5394
        %v5461 = vpop.f32.mrb[0].mxu0
        %v5462 = vadd.f32 0.0, %v5461
        %v5463 = vpop.f32.mrb[0].mxu0
        %5464 = vdwg.mxu0
        %v5465 = vlaneseq
        %v5466 = vshrl.u32 %v5465, 7
        %v5467 = vsub.s32 0, %v5466
        %v5468 = vrot.slane %v5462, %v5467
        %v5469 = vsub.f32 %v5386, %v5468
        %v5470 = vsub.f32 %v5387, %v5468
        %v5471 = vmul.f32 %v5469, %v5469
        %v5472 = vmul.f32 %v5470, %v5470
        %v5473 = vadd.f32 %v5471, %v5472
        %v5474 = vrot.slane %v5473, 4
        %v5475 = vadd.f32 %v5473, %v5474
        %v5476 = vrot.slane %v5475, 2
        %v5477 = vadd.f32 %v5475, %v5476
        %v5478 = vrot.slane %v5477, 1
        %v5479 = vadd.f32 %v5477, %v5478
        %5480 = vmatprep.subr.mxu0 0.0
        %5481 = vmatpush1.msra.mxu0 %v4471
        %5482 = vmatprep.subr.mxu0 0.0
        %5483 = vmatpush1.msra.mxu0 %v4472
        %5484 = vmatprep.subr.mxu0 0.0
        %5485 = vmatpush1.msra.mxu0 %v4473
        %5486 = vmatprep.subr.mxu0 0.0
        %5487 = vmatpush1.msra.mxu0 %v4474
        %5488 = vmatprep.subr.mxu0 0.0
        %5489 = vmatpush1.msra.mxu0 %v4475
        %5490 = vmatprep.subr.mxu0 0.0
        %5491 = vmatpush1.msra.mxu0 %v4476
        %5492 = vmatprep.subr.mxu0 0.0
        %5493 = vmatpush1.msra.mxu0 %v4477
        %5494 = vmatprep.subr.mxu0 0.0
        %5495 = vmatpush1.msra.mxu0 %v4478
        %5496 = vmatprep.subr.mxu0 0.0
        %5497 = vmatpush1.msra.mxu0 %v4479
        %5498 = vmatprep.subr.mxu0 0.0
        %5499 = vmatpush1.msra.mxu0 %v4480
        %5500 = vmatprep.subr.mxu0 0.0
        %5501 = vmatpush1.msra.mxu0 %v4481
        %5502 = vmatprep.subr.mxu0 0.0
        %5503 = vmatpush1.msra.mxu0 %v4482
        %5504 = vmatprep.subr.mxu0 0.0
        %5505 = vmatpush1.msra.mxu0 %v4483
        %5506 = vmatprep.subr.mxu0 0.0
        %5507 = vmatpush1.msra.mxu0 %v4484
        %5508 = vmatprep.subr.mxu0 0.0
        %5509 = vmatpush1.msra.mxu0 %v4485
        %5510 = vmatprep.subr.mxu0 0.0
        %5511 = vmatpush1.msra.mxu0 %v4486
        %5512 = vmatprep.subr.mxu0 0.0
        %5513 = vmatpush1.msra.mxu0 0.0
        %5514 = vmatprep.subr.mxu0 0.0
        %5515 = vmatpush1.msra.mxu0 0.0
        %5516 = vmatprep.subr.mxu0 0.0
        %5517 = vmatpush1.msra.mxu0 0.0
        %5518 = vmatprep.subr.mxu0 0.0
        %5519 = vmatpush1.msra.mxu0 0.0
        %5520 = vmatprep.subr.mxu0 0.0
        %5521 = vmatpush1.msra.mxu0 0.0
        %5522 = vmatprep.subr.mxu0 0.0
        %5523 = vmatpush1.msra.mxu0 0.0
        %5524 = vmatprep.subr.mxu0 0.0
        %5525 = vmatpush1.msra.mxu0 0.0
        %5526 = vmatprep.subr.mxu0 0.0
        %5527 = vmatpush1.msra.mxu0 0.0
        %5528 = vmatprep.subr.mxu0 0.0
        %5529 = vmatpush1.msra.mxu0 0.0
        %5530 = vmatprep.subr.mxu0 0.0
        %5531 = vmatpush1.msra.mxu0 0.0
        %5532 = vmatprep.subr.mxu0 0.0
        %5533 = vmatpush1.msra.mxu0 0.0
        %5534 = vmatprep.subr.mxu0 0.0
        %5535 = vmatpush1.msra.mxu0 0.0
        %5536 = vmatprep.subr.mxu0 0.0
        %5537 = vmatpush1.msra.mxu0 0.0
        %5538 = vmatprep.subr.mxu0 0.0
        %5539 = vmatpush1.msra.mxu0 0.0
        %5540 = vmatprep.subr.mxu0 0.0
        %5541 = vmatpush1.msra.mxu0 0.0
        %5542 = vmatprep.subr.mxu0 0.0
        %5543 = vmatpush1.msra.mxu0 0.0
        %5544 = vmatprep.mubr.f32.mxu0 0.0
        %5545 = vmatmul.mubr.f32.gmra.mrb[0].mxu0 %v5479
        %v5546 = vpop.f32.mrb[0].mxu0
        %v5547 = vadd.f32 1e-05, %v5546
        %v5548 = vpop.f32.mrb[0].mxu0
        %5549 = vdwg.mxu0
        %v5550 = vrsqrt.pop %v5547
        %v5551 = vlaneseq
        %v5552 = vshrl.u32 %v5551, 7
        %v5553 = vsub.s32 0, %v5552
        %v5554 = vrot.slane %v5550, %v5553
        %v5555 = vmul.f32 %v5469, %v5554
        %v5556 = vmul.f32 %v5470, %v5554
        %v5557 = vlaneseq
        %v5558 = vshrl.u32 %v5557, 7
        %v5559 = vsub.s32 1, %v5558
        %v5560 = vrot.slane %v4454, %v5559
        %v5561 = vmul.f32 %v5555, %v5560
        %v5562 = vmul.f32 %v5556, %v5560
        %v5563 = vlaneseq
        %v5564 = vshrl.u32 %v5563, 7
        %v5565 = vsub.s32 2, %v5564
        %v5566 = vrot.slane %v4454, %v5565
        %v5567 = vadd.f32 %v5561, %v5566
        %v5568 = vadd.f32 %v5562, %v5566
        %vm5569 = vcmp.gt.f32.partialorder %v5567, 0.0
        %vm5570 = vcmp.gt.f32.partialorder %v5568, 0.0
        %v5571 = vmul.f32 %v5567, 1.442695
        %v5572 = vpow.pop %v5571
        %v5573 = vmul.f32 %v5568, 1.442695
        %v5574 = vpow.pop %v5573
        %v5575 = vsub.f32 %v5572, 1.0
        %v5576 = vsub.f32 %v5574, 1.0
        %v5577 = vmul.f32 %v5575, 1.6732632
        %v5578 = vmul.f32 %v5576, 1.6732632
        %v5579 = vsel %vm5569, %v5567, %v5577
        %v5580 = vsel %vm5570, %v5568, %v5578
        %v5581 = vmul.f32 %v5579, 1.050701
        %v5582 = vmul.f32 %v5580, 1.050701
        %v5585 = vrot.slane %v5581, 7
        %v5586 = vrot.slane %v5582, 7
        %v5587 = vsel %vm1513, %v5585, %v5586
        %v5590 = vsel %vm1513, 0.0, %v5585
        %v5591 = vrot.slane %v5581, 1
        %v5592 = vrot.slane %v5582, 1
        %v5593 = vsel %vm3117, %v5591, %v5592
        %v5596 = vsel %vm3117, %v5592, 0.0
        %v5597 = vpack.c.bf16 %v5587, %v5590
        %s5598 = scalar_lea.vmem [#allocation29], 384
        %v5599 = vld [vmem:[%s5598] sm:$0xf]
        %v5600 = vld [vmem:[%s5598 + $0x4] sm:$0xf]
        %v5601 = vld [vmem:[%s5598 + $0x8] sm:$0xf]
        %v5602 = vld [vmem:[%s5598 + $0xc] sm:$0xf]
        %v5603 = vld [vmem:[%s5598 + $0x10] sm:$0xf]
        %v5604 = vld [vmem:[%s5598 + $0x14] sm:$0xf]
        %v5605 = vld [vmem:[%s5598 + $0x18] sm:$0xf]
        %v5606 = vld [vmem:[%s5598 + $0x1c] sm:$0xf]
        %v5607 = vld [vmem:[%s5598 + $0x20] sm:$0xf]
        %v5608 = vld [vmem:[%s5598 + $0x24] sm:$0xf]
        %v5609 = vld [vmem:[%s5598 + $0x28] sm:$0xf]
        %v5610 = vld [vmem:[%s5598 + $0x2c] sm:$0xf]
        %v5611 = vld [vmem:[%s5598 + $0x30] sm:$0xf]
        %v5612 = vld [vmem:[%s5598 + $0x34] sm:$0xf]
        %v5613 = vld [vmem:[%s5598 + $0x38] sm:$0xf]
        %v5614 = vld [vmem:[%s5598 + $0x3c] sm:$0xf]
        %v5615 = vpack.c.bf16 %v5582, %v5581
        %s5616 = scalar_lea.vmem [#allocation29], 448
        %v5617 = vld [vmem:[%s5616] sm:$0xf]
        %v5618 = vld [vmem:[%s5616 + $0x4] sm:$0xf]
        %v5619 = vld [vmem:[%s5616 + $0x8] sm:$0xf]
        %v5620 = vld [vmem:[%s5616 + $0xc] sm:$0xf]
        %v5621 = vld [vmem:[%s5616 + $0x10] sm:$0xf]
        %v5622 = vld [vmem:[%s5616 + $0x14] sm:$0xf]
        %v5623 = vld [vmem:[%s5616 + $0x18] sm:$0xf]
        %v5624 = vld [vmem:[%s5616 + $0x1c] sm:$0xf]
        %v5625 = vld [vmem:[%s5616 + $0x20] sm:$0xf]
        %v5626 = vld [vmem:[%s5616 + $0x24] sm:$0xf]
        %v5627 = vld [vmem:[%s5616 + $0x28] sm:$0xf]
        %v5628 = vld [vmem:[%s5616 + $0x2c] sm:$0xf]
        %v5629 = vld [vmem:[%s5616 + $0x30] sm:$0xf]
        %v5630 = vld [vmem:[%s5616 + $0x34] sm:$0xf]
        %v5631 = vld [vmem:[%s5616 + $0x38] sm:$0xf]
        %v5632 = vld [vmem:[%s5616 + $0x3c] sm:$0xf]
        %v5649 = vunpack.c.l.b16 %v5617
        %v5650 = vunpack.c.l.b16 %v5618
        %v5651 = vunpack.c.l.b16 %v5619
        %v5652 = vunpack.c.l.b16 %v5620
        %v5653 = vunpack.c.l.b16 %v5621
        %v5654 = vunpack.c.l.b16 %v5622
        %v5655 = vunpack.c.l.b16 %v5623
        %v5656 = vunpack.c.l.b16 %v5624
        %v5657 = vunpack.c.l.b16 %v5625
        %v5658 = vunpack.c.l.b16 %v5626
        %v5659 = vunpack.c.l.b16 %v5627
        %v5660 = vunpack.c.l.b16 %v5628
        %v5661 = vunpack.c.l.b16 %v5629
        %v5662 = vunpack.c.l.b16 %v5630
        %v5663 = vunpack.c.l.b16 %v5631
        %v5664 = vunpack.c.l.b16 %v5632
        %v5665 = vpack.c.b16 %v5650, %v5649
        %v5666 = vpack.c.b16 %v5652, %v5651
        %v5667 = vpack.c.b16 %v5654, %v5653
        %v5668 = vpack.c.b16 %v5656, %v5655
        %v5669 = vpack.c.b16 %v5658, %v5657
        %v5670 = vpack.c.b16 %v5660, %v5659
        %v5671 = vpack.c.b16 %v5662, %v5661
        %v5672 = vpack.c.b16 %v5664, %v5663
        %5681 = vmatprep.subr.bf16.mxu0 0
        %5682 = vmatpush1.bf16.msra.mxu0 %v5665
        %5683 = vmatprep.subr.bf16.mxu0 0
        %5684 = vmatpush1.bf16.msra.mxu0 %v5666
        %5685 = vmatprep.subr.bf16.mxu0 0
        %5686 = vmatpush1.bf16.msra.mxu0 %v5667
        %5687 = vmatprep.subr.bf16.mxu0 0
        %5688 = vmatpush1.bf16.msra.mxu0 %v5668
        %5689 = vmatprep.subr.bf16.mxu0 0
        %5690 = vmatpush1.bf16.msra.mxu0 %v5669
        %5691 = vmatprep.subr.bf16.mxu0 0
        %5692 = vmatpush1.bf16.msra.mxu0 %v5670
        %5693 = vmatprep.subr.bf16.mxu0 0
        %5694 = vmatpush1.bf16.msra.mxu0 %v5671
        %5695 = vmatprep.subr.bf16.mxu0 0
        %5696 = vmatpush1.bf16.msra.mxu0 %v5672
        %5697 = vmatprep.subr.bf16.mxu0 0
        %5698 = vmatpush1.bf16.msra.mxu0 0
        %5699 = vmatprep.subr.bf16.mxu0 0
        %5700 = vmatpush1.bf16.msra.mxu0 0
        %5701 = vmatprep.subr.bf16.mxu0 0
        %5702 = vmatpush1.bf16.msra.mxu0 0
        %5703 = vmatprep.subr.bf16.mxu0 0
        %5704 = vmatpush1.bf16.msra.mxu0 0
        %5705 = vmatprep.subr.bf16.mxu0 0
        %5706 = vmatpush1.bf16.msra.mxu0 0
        %5707 = vmatprep.subr.bf16.mxu0 0
        %5708 = vmatpush1.bf16.msra.mxu0 0
        %5709 = vmatprep.subr.bf16.mxu0 0
        %5710 = vmatpush1.bf16.msra.mxu0 0
        %5711 = vmatprep.subr.bf16.mxu0 0
        %5712 = vmatpush1.bf16.msra.mxu0 0
        %5713 = vmatprep.mubr.bf16.mxu0 0
        %5714 = vmatmul.mubr.bf16.gmra.mrb[0].mxu0 %v5615
        %v5715 = vpop.f32.mrb[0].mxu0
        %v5716 = vadd.f32 0.0, %v5715
        %v5717 = vpop.f32.mrb[0].mxu0
        %v5718 = vpop.f32.mrb[0].mxu0
        %v5719 = vadd.f32 0.0, %v5718
        %v5720 = vpop.f32.mrb[0].mxu0
        %5721 = vdwg.mxu0
        %v5738 = vunpack.c.l.b16 %v5599
        %v5739 = vunpack.c.l.b16 %v5600
        %v5740 = vunpack.c.l.b16 %v5601
        %v5741 = vunpack.c.l.b16 %v5602
        %v5742 = vunpack.c.l.b16 %v5603
        %v5743 = vunpack.c.l.b16 %v5604
        %v5744 = vunpack.c.l.b16 %v5605
        %v5745 = vunpack.c.l.b16 %v5606
        %v5746 = vunpack.c.l.b16 %v5607
        %v5747 = vunpack.c.l.b16 %v5608
        %v5748 = vunpack.c.l.b16 %v5609
        %v5749 = vunpack.c.l.b16 %v5610
        %v5750 = vunpack.c.l.b16 %v5611
        %v5751 = vunpack.c.l.b16 %v5612
        %v5752 = vunpack.c.l.b16 %v5613
        %v5753 = vunpack.c.l.b16 %v5614
        %v5754 = vpack.c.b16 %v5739, %v5738
        %v5755 = vpack.c.b16 %v5741, %v5740
        %v5756 = vpack.c.b16 %v5743, %v5742
        %v5757 = vpack.c.b16 %v5745, %v5744
        %v5758 = vpack.c.b16 %v5747, %v5746
        %v5759 = vpack.c.b16 %v5749, %v5748
        %v5760 = vpack.c.b16 %v5751, %v5750
        %v5761 = vpack.c.b16 %v5753, %v5752
        %5770 = vmatprep.subr.bf16.mxu0 0
        %5771 = vmatpush1.bf16.msra.mxu0 %v5754
        %5772 = vmatprep.subr.bf16.mxu0 0
        %5773 = vmatpush1.bf16.msra.mxu0 %v5755
        %5774 = vmatprep.subr.bf16.mxu0 0
        %5775 = vmatpush1.bf16.msra.mxu0 %v5756
        %5776 = vmatprep.subr.bf16.mxu0 0
        %5777 = vmatpush1.bf16.msra.mxu0 %v5757
        %5778 = vmatprep.subr.bf16.mxu0 0
        %5779 = vmatpush1.bf16.msra.mxu0 %v5758
        %5780 = vmatprep.subr.bf16.mxu0 0
        %5781 = vmatpush1.bf16.msra.mxu0 %v5759
        %5782 = vmatprep.subr.bf16.mxu0 0
        %5783 = vmatpush1.bf16.msra.mxu0 %v5760
        %5784 = vmatprep.subr.bf16.mxu0 0
        %5785 = vmatpush1.bf16.msra.mxu0 %v5761
        %5786 = vmatprep.subr.bf16.mxu0 0
        %5787 = vmatpush1.bf16.msra.mxu0 0
        %5788 = vmatprep.subr.bf16.mxu0 0
        %5789 = vmatpush1.bf16.msra.mxu0 0
        %5790 = vmatprep.subr.bf16.mxu0 0
        %5791 = vmatpush1.bf16.msra.mxu0 0
        %5792 = vmatprep.subr.bf16.mxu0 0
        %5793 = vmatpush1.bf16.msra.mxu0 0
        %5794 = vmatprep.subr.bf16.mxu0 0
        %5795 = vmatpush1.bf16.msra.mxu0 0
        %5796 = vmatprep.subr.bf16.mxu0 0
        %5797 = vmatpush1.bf16.msra.mxu0 0
        %5798 = vmatprep.subr.bf16.mxu0 0
        %5799 = vmatpush1.bf16.msra.mxu0 0
        %5800 = vmatprep.subr.bf16.mxu0 0
        %5801 = vmatpush1.bf16.msra.mxu0 0
        %5802 = vmatprep.mubr.bf16.mxu0 0
        %5803 = vmatmul.mubr.bf16.gmra.mrb[0].mxu0 %v5597
        %v5804 = vpop.f32.mrb[0].mxu0
        %v5805 = vadd.f32 %v5716, %v5804
        %v5806 = vpop.f32.mrb[0].mxu0
        %v5807 = vpop.f32.mrb[0].mxu0
        %v5808 = vadd.f32 %v5719, %v5807
        %v5809 = vpop.f32.mrb[0].mxu0
        %5810 = vdwg.mxu0
        %v5811 = vpack.c.bf16 %v5596, %v5593
        %s5812 = scalar_lea.vmem [#allocation29], 512
        %v5813 = vld [vmem:[%s5812] sm:$0xf]
        %v5814 = vld [vmem:[%s5812 + $0x4] sm:$0xf]
        %v5815 = vld [vmem:[%s5812 + $0x8] sm:$0xf]
        %v5816 = vld [vmem:[%s5812 + $0xc] sm:$0xf]
        %v5817 = vld [vmem:[%s5812 + $0x10] sm:$0xf]
        %v5818 = vld [vmem:[%s5812 + $0x14] sm:$0xf]
        %v5819 = vld [vmem:[%s5812 + $0x18] sm:$0xf]
        %v5820 = vld [vmem:[%s5812 + $0x1c] sm:$0xf]
        %v5821 = vld [vmem:[%s5812 + $0x20] sm:$0xf]
        %v5822 = vld [vmem:[%s5812 + $0x24] sm:$0xf]
        %v5823 = vld [vmem:[%s5812 + $0x28] sm:$0xf]
        %v5824 = vld [vmem:[%s5812 + $0x2c] sm:$0xf]
        %v5825 = vld [vmem:[%s5812 + $0x30] sm:$0xf]
        %v5826 = vld [vmem:[%s5812 + $0x34] sm:$0xf]
        %v5827 = vld [vmem:[%s5812 + $0x38] sm:$0xf]
        %v5828 = vld [vmem:[%s5812 + $0x3c] sm:$0xf]
        %v5845 = vunpack.c.l.b16 %v5813
        %v5846 = vunpack.c.l.b16 %v5814
        %v5847 = vunpack.c.l.b16 %v5815
        %v5848 = vunpack.c.l.b16 %v5816
        %v5849 = vunpack.c.l.b16 %v5817
        %v5850 = vunpack.c.l.b16 %v5818
        %v5851 = vunpack.c.l.b16 %v5819
        %v5852 = vunpack.c.l.b16 %v5820
        %v5853 = vunpack.c.l.b16 %v5821
        %v5854 = vunpack.c.l.b16 %v5822
        %v5855 = vunpack.c.l.b16 %v5823
        %v5856 = vunpack.c.l.b16 %v5824
        %v5857 = vunpack.c.l.b16 %v5825
        %v5858 = vunpack.c.l.b16 %v5826
        %v5859 = vunpack.c.l.b16 %v5827
        %v5860 = vunpack.c.l.b16 %v5828
        %v5861 = vpack.c.b16 %v5846, %v5845
        %v5862 = vpack.c.b16 %v5848, %v5847
        %v5863 = vpack.c.b16 %v5850, %v5849
        %v5864 = vpack.c.b16 %v5852, %v5851
        %v5865 = vpack.c.b16 %v5854, %v5853
        %v5866 = vpack.c.b16 %v5856, %v5855
        %v5867 = vpack.c.b16 %v5858, %v5857
        %v5868 = vpack.c.b16 %v5860, %v5859
        %5877 = vmatprep.subr.bf16.mxu0 0
        %5878 = vmatpush1.bf16.msra.mxu0 %v5861
        %5879 = vmatprep.subr.bf16.mxu0 0
        %5880 = vmatpush1.bf16.msra.mxu0 %v5862
        %5881 = vmatprep.subr.bf16.mxu0 0
        %5882 = vmatpush1.bf16.msra.mxu0 %v5863
        %5883 = vmatprep.subr.bf16.mxu0 0
        %5884 = vmatpush1.bf16.msra.mxu0 %v5864
        %5885 = vmatprep.subr.bf16.mxu0 0
        %5886 = vmatpush1.bf16.msra.mxu0 %v5865
        %5887 = vmatprep.subr.bf16.mxu0 0
        %5888 = vmatpush1.bf16.msra.mxu0 %v5866
        %5889 = vmatprep.subr.bf16.mxu0 0
        %5890 = vmatpush1.bf16.msra.mxu0 %v5867
        %5891 = vmatprep.subr.bf16.mxu0 0
        %5892 = vmatpush1.bf16.msra.mxu0 %v5868
        %5893 = vmatprep.subr.bf16.mxu0 0
        %5894 = vmatpush1.bf16.msra.mxu0 0
        %5895 = vmatprep.subr.bf16.mxu0 0
        %5896 = vmatpush1.bf16.msra.mxu0 0
        %5897 = vmatprep.subr.bf16.mxu0 0
        %5898 = vmatpush1.bf16.msra.mxu0 0
        %5899 = vmatprep.subr.bf16.mxu0 0
        %5900 = vmatpush1.bf16.msra.mxu0 0
        %5901 = vmatprep.subr.bf16.mxu0 0
        %5902 = vmatpush1.bf16.msra.mxu0 0
        %5903 = vmatprep.subr.bf16.mxu0 0
        %5904 = vmatpush1.bf16.msra.mxu0 0
        %5905 = vmatprep.subr.bf16.mxu0 0
        %5906 = vmatpush1.bf16.msra.mxu0 0
        %5907 = vmatprep.subr.bf16.mxu0 0
        %5908 = vmatpush1.bf16.msra.mxu0 0
        %5909 = vmatprep.mubr.bf16.mxu0 0
        %5910 = vmatmul.mubr.bf16.gmra.mrb[0].mxu0 %v5811
        %v5911 = vpop.f32.mrb[0].mxu0
        %v5912 = vadd.f32 0.0, %v5911
        %v5913 = vpop.f32.mrb[0].mxu0
        %v5914 = vpop.f32.mrb[0].mxu0
        %v5915 = vadd.f32 0.0, %v5914
        %v5916 = vpop.f32.mrb[0].mxu0
        %5917 = vdwg.mxu0
        %v5918 = vadd.f32 %v5805, %v5912
        %v5919 = vadd.f32 %v5808, %v5915
        %v5920 = vadd.f32 %v5918, %v5919
        %v5921 = vrot.slane %v5920, 4
        %v5922 = vadd.f32 %v5920, %v5921
        %v5923 = vrot.slane %v5922, 2
        %v5924 = vadd.f32 %v5922, %v5923
        %v5925 = vrot.slane %v5924, 1
        %v5926 = vadd.f32 %v5924, %v5925
        %5927 = vmatprep.subr.mxu0 0.0
        %5928 = vmatpush1.msra.mxu0 %v4471
        %5929 = vmatprep.subr.mxu0 0.0
        %5930 = vmatpush1.msra.mxu0 %v4472
        %5931 = vmatprep.subr.mxu0 0.0
        %5932 = vmatpush1.msra.mxu0 %v4473
        %5933 = vmatprep.subr.mxu0 0.0
        %5934 = vmatpush1.msra.mxu0 %v4474
        %5935 = vmatprep.subr.mxu0 0.0
        %5936 = vmatpush1.msra.mxu0 %v4475
        %5937 = vmatprep.subr.mxu0 0.0
        %5938 = vmatpush1.msra.mxu0 %v4476
        %5939 = vmatprep.subr.mxu0 0.0
        %5940 = vmatpush1.msra.mxu0 %v4477
        %5941 = vmatprep.subr.mxu0 0.0
        %5942 = vmatpush1.msra.mxu0 %v4478
        %5943 = vmatprep.subr.mxu0 0.0
        %5944 = vmatpush1.msra.mxu0 %v4479
        %5945 = vmatprep.subr.mxu0 0.0
        %5946 = vmatpush1.msra.mxu0 %v4480
        %5947 = vmatprep.subr.mxu0 0.0
        %5948 = vmatpush1.msra.mxu0 %v4481
        %5949 = vmatprep.subr.mxu0 0.0
        %5950 = vmatpush1.msra.mxu0 %v4482
        %5951 = vmatprep.subr.mxu0 0.0
        %5952 = vmatpush1.msra.mxu0 %v4483
        %5953 = vmatprep.subr.mxu0 0.0
        %5954 = vmatpush1.msra.mxu0 %v4484
        %5955 = vmatprep.subr.mxu0 0.0
        %5956 = vmatpush1.msra.mxu0 %v4485
        %5957 = vmatprep.subr.mxu0 0.0
        %5958 = vmatpush1.msra.mxu0 %v4486
        %5959 = vmatprep.subr.mxu0 0.0
        %5960 = vmatpush1.msra.mxu0 0.0
        %5961 = vmatprep.subr.mxu0 0.0
        %5962 = vmatpush1.msra.mxu0 0.0
        %5963 = vmatprep.subr.mxu0 0.0
        %5964 = vmatpush1.msra.mxu0 0.0
        %5965 = vmatprep.subr.mxu0 0.0
        %5966 = vmatpush1.msra.mxu0 0.0
        %5967 = vmatprep.subr.mxu0 0.0
        %5968 = vmatpush1.msra.mxu0 0.0
        %5969 = vmatprep.subr.mxu0 0.0
        %5970 = vmatpush1.msra.mxu0 0.0
        %5971 = vmatprep.subr.mxu0 0.0
        %5972 = vmatpush1.msra.mxu0 0.0
        %5973 = vmatprep.subr.mxu0 0.0
        %5974 = vmatpush1.msra.mxu0 0.0
        %5975 = vmatprep.subr.mxu0 0.0
        %5976 = vmatpush1.msra.mxu0 0.0
        %5977 = vmatprep.subr.mxu0 0.0
        %5978 = vmatpush1.msra.mxu0 0.0
        %5979 = vmatprep.subr.mxu0 0.0
        %5980 = vmatpush1.msra.mxu0 0.0
        %5981 = vmatprep.subr.mxu0 0.0
        %5982 = vmatpush1.msra.mxu0 0.0
        %5983 = vmatprep.subr.mxu0 0.0
        %5984 = vmatpush1.msra.mxu0 0.0
        %5985 = vmatprep.subr.mxu0 0.0
        %5986 = vmatpush1.msra.mxu0 0.0
        %5987 = vmatprep.subr.mxu0 0.0
        %5988 = vmatpush1.msra.mxu0 0.0
        %5989 = vmatprep.subr.mxu0 0.0
        %5990 = vmatpush1.msra.mxu0 0.0
        %5991 = vmatprep.mubr.f32.mxu0 0.0
        %5992 = vmatmul.mubr.f32.gmra.mrb[0].mxu0 %v5926
        %v5993 = vpop.f32.mrb[0].mxu0
        %v5994 = vadd.f32 0.0, %v5993
        %v5995 = vpop.f32.mrb[0].mxu0
        %5996 = vdwg.mxu0
        %v5997 = vlaneseq
        %v5998 = vshrl.u32 %v5997, 7
        %v5999 = vsub.s32 0, %v5998
        %v6000 = vrot.slane %v5994, %v5999
        %v6001 = vsub.f32 %v5918, %v6000
        %v6002 = vsub.f32 %v5919, %v6000
        %v6003 = vmul.f32 %v6001, %v6001
        %v6004 = vmul.f32 %v6002, %v6002
        %v6005 = vadd.f32 %v6003, %v6004
        %v6006 = vrot.slane %v6005, 4
        %v6007 = vadd.f32 %v6005, %v6006
        %v6008 = vrot.slane %v6007, 2
        %v6009 = vadd.f32 %v6007, %v6008
        %v6010 = vrot.slane %v6009, 1
        %v6011 = vadd.f32 %v6009, %v6010
        %6012 = vmatprep.subr.mxu0 0.0
        %6013 = vmatpush1.msra.mxu0 %v4471
        %6014 = vmatprep.subr.mxu0 0.0
        %6015 = vmatpush1.msra.mxu0 %v4472
        %6016 = vmatprep.subr.mxu0 0.0
        %6017 = vmatpush1.msra.mxu0 %v4473
        %6018 = vmatprep.subr.mxu0 0.0
        %6019 = vmatpush1.msra.mxu0 %v4474
        %6020 = vmatprep.subr.mxu0 0.0
        %6021 = vmatpush1.msra.mxu0 %v4475
        %6022 = vmatprep.subr.mxu0 0.0
        %6023 = vmatpush1.msra.mxu0 %v4476
        %6024 = vmatprep.subr.mxu0 0.0
        %6025 = vmatpush1.msra.mxu0 %v4477
        %6026 = vmatprep.subr.mxu0 0.0
        %6027 = vmatpush1.msra.mxu0 %v4478
        %6028 = vmatprep.subr.mxu0 0.0
        %6029 = vmatpush1.msra.mxu0 %v4479
        %6030 = vmatprep.subr.mxu0 0.0
        %6031 = vmatpush1.msra.mxu0 %v4480
        %6032 = vmatprep.subr.mxu0 0.0
        %6033 = vmatpush1.msra.mxu0 %v4481
        %6034 = vmatprep.subr.mxu0 0.0
        %6035 = vmatpush1.msra.mxu0 %v4482
        %6036 = vmatprep.subr.mxu0 0.0
        %6037 = vmatpush1.msra.mxu0 %v4483
        %6038 = vmatprep.subr.mxu0 0.0
        %6039 = vmatpush1.msra.mxu0 %v4484
        %6040 = vmatprep.subr.mxu0 0.0
        %6041 = vmatpush1.msra.mxu0 %v4485
        %6042 = vmatprep.subr.mxu0 0.0
        %6043 = vmatpush1.msra.mxu0 %v4486
        %6044 = vmatprep.subr.mxu0 0.0
        %6045 = vmatpush1.msra.mxu0 0.0
        %6046 = vmatprep.subr.mxu0 0.0
        %6047 = vmatpush1.msra.mxu0 0.0
        %6048 = vmatprep.subr.mxu0 0.0
        %6049 = vmatpush1.msra.mxu0 0.0
        %6050 = vmatprep.subr.mxu0 0.0
        %6051 = vmatpush1.msra.mxu0 0.0
        %6052 = vmatprep.subr.mxu0 0.0
        %6053 = vmatpush1.msra.mxu0 0.0
        %6054 = vmatprep.subr.mxu0 0.0
        %6055 = vmatpush1.msra.mxu0 0.0
        %6056 = vmatprep.subr.mxu0 0.0
        %6057 = vmatpush1.msra.mxu0 0.0
        %6058 = vmatprep.subr.mxu0 0.0
        %6059 = vmatpush1.msra.mxu0 0.0
        %6060 = vmatprep.subr.mxu0 0.0
        %6061 = vmatpush1.msra.mxu0 0.0
        %6062 = vmatprep.subr.mxu0 0.0
        %6063 = vmatpush1.msra.mxu0 0.0
        %6064 = vmatprep.subr.mxu0 0.0
        %6065 = vmatpush1.msra.mxu0 0.0
        %6066 = vmatprep.subr.mxu0 0.0
        %6067 = vmatpush1.msra.mxu0 0.0
        %6068 = vmatprep.subr.mxu0 0.0
        %6069 = vmatpush1.msra.mxu0 0.0
        %6070 = vmatprep.subr.mxu0 0.0
        %6071 = vmatpush1.msra.mxu0 0.0
        %6072 = vmatprep.subr.mxu0 0.0
        %6073 = vmatpush1.msra.mxu0 0.0
        %6074 = vmatprep.subr.mxu0 0.0
        %6075 = vmatpush1.msra.mxu0 0.0
        %6076 = vmatprep.mubr.f32.mxu0 0.0
        %6077 = vmatmul.mubr.f32.gmra.mrb[0].mxu0 %v6011
        %v6078 = vpop.f32.mrb[0].mxu0
        %v6079 = vadd.f32 1e-05, %v6078
        %v6080 = vpop.f32.mrb[0].mxu0
        %6081 = vdwg.mxu0
        %v6082 = vrsqrt.pop %v6079
        %v6083 = vlaneseq
        %v6084 = vshrl.u32 %v6083, 7
        %v6085 = vsub.s32 0, %v6084
        %v6086 = vrot.slane %v6082, %v6085
        %v6087 = vmul.f32 %v6001, %v6086
        %v6088 = vmul.f32 %v6002, %v6086
        %v6089 = vlaneseq
        %v6090 = vshrl.u32 %v6089, 7
        %v6091 = vsub.s32 3, %v6090
        %v6092 = vrot.slane %v4454, %v6091
        %v6093 = vmul.f32 %v6087, %v6092
        %v6094 = vmul.f32 %v6088, %v6092
        %v6095 = vlaneseq
        %v6096 = vshrl.u32 %v6095, 7
        %v6097 = vsub.s32 4, %v6096
        %v6098 = vrot.slane %v4454, %v6097
        %v6099 = vadd.f32 %v6093, %v6098
        %v6100 = vadd.f32 %v6094, %v6098
        %vm6101 = vcmp.gt.f32.partialorder %v6099, 0.0
        %vm6102 = vcmp.gt.f32.partialorder %v6100, 0.0
        %v6103 = vmul.f32 %v6099, 1.442695
        %v6104 = vpow.pop %v6103
        %v6105 = vmul.f32 %v6100, 1.442695
        %v6106 = vpow.pop %v6105
        %v6107 = vsub.f32 %v6104, 1.0
        %v6108 = vsub.f32 %v6106, 1.0
        %v6109 = vmul.f32 %v6107, 1.6732632
        %v6110 = vmul.f32 %v6108, 1.6732632
        %v6111 = vsel %vm6101, %v6099, %v6109
        %v6112 = vsel %vm6102, %v6100, %v6110
        %v6113 = vmul.f32 %v6111, 1.050701
        %v6114 = vmul.f32 %v6112, 1.050701
        %v6115 = vld [vmem:[%s1081] sm:$0xff]
        %v6116 = vld [vmem:[%s1081 + $0x8] sm:$0xff]
        %v6117 = vld [vmem:[%s1081 + $0x10] sm:$0xff]
        %v6118 = vld [vmem:[%s1081 + $0x18] sm:$0xff]
        %v6119 = vld [vmem:[%s24] sm:$0xff]
        %v6120 = vld [vmem:[#allocation37] sm:$0xf]
        %v6121 = vld [vmem:[#allocation37 + $0x4] sm:$0xf]
        %v6122 = vld [vmem:[#allocation37 + $0x8] sm:$0xf]
        %v6123 = vld [vmem:[#allocation37 + $0xc] sm:$0xf]
        %v6124 = vld [vmem:[#allocation37 + $0x10] sm:$0xf]
        %v6125 = vld [vmem:[#allocation37 + $0x14] sm:$0xf]
        %v6126 = vld [vmem:[#allocation37 + $0x18] sm:$0xf]
        %v6127 = vld [vmem:[#allocation37 + $0x1c] sm:$0xf]
        %v6128 = vld [vmem:[#allocation37 + $0x20] sm:$0xf]
        %v6129 = vld [vmem:[#allocation37 + $0x24] sm:$0xf]
        %v6130 = vld [vmem:[#allocation37 + $0x28] sm:$0xf]
        %v6131 = vld [vmem:[#allocation37 + $0x2c] sm:$0xf]
        %v6132 = vld [vmem:[#allocation37 + $0x30] sm:$0xf]
        %v6133 = vld [vmem:[#allocation37 + $0x34] sm:$0xf]
        %v6134 = vld [vmem:[#allocation37 + $0x38] sm:$0xf]
        %v6135 = vld [vmem:[#allocation37 + $0x3c] sm:$0xf]
        %v6136 = vunpack.c.l.bf16 %v6120
        %v6137 = vunpack.c.l.bf16 %v6121
        %v6138 = vunpack.c.l.bf16 %v6122
        %v6139 = vunpack.c.l.bf16 %v6123
        %v6140 = vunpack.c.l.bf16 %v6124
        %v6141 = vunpack.c.l.bf16 %v6125
        %v6142 = vunpack.c.l.bf16 %v6126
        %v6143 = vunpack.c.l.bf16 %v6127
        %v6144 = vunpack.c.l.bf16 %v6128
        %v6145 = vunpack.c.l.bf16 %v6129
        %v6146 = vunpack.c.l.bf16 %v6130
        %v6147 = vunpack.c.l.bf16 %v6131
        %v6148 = vunpack.c.l.bf16 %v6132
        %v6149 = vunpack.c.l.bf16 %v6133
        %v6150 = vunpack.c.l.bf16 %v6134
        %v6151 = vunpack.c.l.bf16 %v6135
        %v6152 = vpack.c.bf16 %v6114, %v6113
        %v6153 = vld [vmem:[#allocation32] sm:$0xff]
        %v6154 = vld [vmem:[#allocation32 + $0x8] sm:$0xff]
        %v6155 = vld [vmem:[#allocation32 + $0x10] sm:$0xff]
        %v6156 = vld [vmem:[#allocation32 + $0x18] sm:$0xff]
        %v6157 = vld [vmem:[#allocation32 + $0x20] sm:$0xff]
        %v6158 = vld [vmem:[#allocation32 + $0x28] sm:$0xff]
        %v6159 = vld [vmem:[#allocation32 + $0x30] sm:$0xff]
        %v6160 = vld [vmem:[#allocation32 + $0x38] sm:$0xff]
        %v6161 = vld [vmem:[#allocation32 + $0x40] sm:$0xff]
        %v6162 = vld [vmem:[#allocation32 + $0x48] sm:$0xff]
        %v6163 = vld [vmem:[#allocation32 + $0x50] sm:$0xff]
        %v6164 = vld [vmem:[#allocation32 + $0x58] sm:$0xff]
        %v6165 = vld [vmem:[#allocation32 + $0x60] sm:$0xff]
        %v6166 = vld [vmem:[#allocation32 + $0x68] sm:$0xff]
        %v6167 = vld [vmem:[#allocation32 + $0x70] sm:$0xff]
        %v6168 = vld [vmem:[#allocation32 + $0x78] sm:$0xff]
        %v6185 = vunpack.c.l.b16 %v6153
        %v6186 = vunpack.c.h.b16 %v6153
        %v6187 = vunpack.c.l.b16 %v6154
        %v6188 = vunpack.c.h.b16 %v6154
        %v6189 = vunpack.c.l.b16 %v6155
        %v6190 = vunpack.c.h.b16 %v6155
        %v6191 = vunpack.c.l.b16 %v6156
        %v6192 = vunpack.c.h.b16 %v6156
        %v6193 = vunpack.c.l.b16 %v6157
        %v6194 = vunpack.c.h.b16 %v6157
        %v6195 = vunpack.c.l.b16 %v6158
        %v6196 = vunpack.c.h.b16 %v6158
        %v6197 = vunpack.c.l.b16 %v6159
        %v6198 = vunpack.c.h.b16 %v6159
        %v6199 = vunpack.c.l.b16 %v6160
        %v6200 = vunpack.c.h.b16 %v6160
        %v6201 = vunpack.c.l.b16 %v6161
        %v6202 = vunpack.c.h.b16 %v6161
        %v6203 = vunpack.c.l.b16 %v6162
        %v6204 = vunpack.c.h.b16 %v6162
        %v6205 = vunpack.c.l.b16 %v6163
        %v6206 = vunpack.c.h.b16 %v6163
        %v6207 = vunpack.c.l.b16 %v6164
        %v6208 = vunpack.c.h.b16 %v6164
        %v6209 = vunpack.c.l.b16 %v6165
        %v6210 = vunpack.c.h.b16 %v6165
        %v6211 = vunpack.c.l.b16 %v6166
        %v6212 = vunpack.c.h.b16 %v6166
        %v6213 = vunpack.c.l.b16 %v6167
        %v6214 = vunpack.c.h.b16 %v6167
        %v6215 = vunpack.c.l.b16 %v6168
        %v6216 = vunpack.c.h.b16 %v6168
        %v6217 = vpack.c.b16 %v6187, %v6185
        %v6218 = vpack.c.b16 %v6188, %v6186
        %v6219 = vpack.c.b16 %v6191, %v6189
        %v6220 = vpack.c.b16 %v6192, %v6190
        %v6221 = vpack.c.b16 %v6195, %v6193
        %v6222 = vpack.c.b16 %v6196, %v6194
        %v6223 = vpack.c.b16 %v6199, %v6197
        %v6224 = vpack.c.b16 %v6200, %v6198
        %v6225 = vpack.c.b16 %v6203, %v6201
        %v6226 = vpack.c.b16 %v6204, %v6202
        %v6227 = vpack.c.b16 %v6207, %v6205
        %v6228 = vpack.c.b16 %v6208, %v6206
        %v6229 = vpack.c.b16 %v6211, %v6209
        %v6230 = vpack.c.b16 %v6212, %v6210
        %v6231 = vpack.c.b16 %v6215, %v6213
        %v6232 = vpack.c.b16 %v6216, %v6214
        %6249 = vmatprep.subr.bf16.mxu0 %v6218
        %6250 = vmatpush1.bf16.msra.mxu0 %v6217
        %6251 = vmatprep.subr.bf16.mxu0 %v6220
        %6252 = vmatpush1.bf16.msra.mxu0 %v6219
        %6253 = vmatprep.subr.bf16.mxu0 %v6222
        %6254 = vmatpush1.bf16.msra.mxu0 %v6221
        %6255 = vmatprep.subr.bf16.mxu0 %v6224
        %6256 = vmatpush1.bf16.msra.mxu0 %v6223
        %6257 = vmatprep.subr.bf16.mxu0 %v6226
        %6258 = vmatpush1.bf16.msra.mxu0 %v6225
        %6259 = vmatprep.subr.bf16.mxu0 %v6228
        %6260 = vmatpush1.bf16.msra.mxu0 %v6227
        %6261 = vmatprep.subr.bf16.mxu0 %v6230
        %6262 = vmatpush1.bf16.msra.mxu0 %v6229
        %6263 = vmatprep.subr.bf16.mxu0 %v6232
        %6264 = vmatpush1.bf16.msra.mxu0 %v6231
        %6265 = vmatprep.subr.bf16.mxu0 0
        %6266 = vmatpush1.bf16.msra.mxu0 0
        %6267 = vmatprep.subr.bf16.mxu0 0
        %6268 = vmatpush1.bf16.msra.mxu0 0
        %6269 = vmatprep.subr.bf16.mxu0 0
        %6270 = vmatpush1.bf16.msra.mxu0 0
        %6271 = vmatprep.subr.bf16.mxu0 0
        %6272 = vmatpush1.bf16.msra.mxu0 0
        %6273 = vmatprep.subr.bf16.mxu0 0
        %6274 = vmatpush1.bf16.msra.mxu0 0
        %6275 = vmatprep.subr.bf16.mxu0 0
        %6276 = vmatpush1.bf16.msra.mxu0 0
        %6277 = vmatprep.subr.bf16.mxu0 0
        %6278 = vmatpush1.bf16.msra.mxu0 0
        %6279 = vmatprep.subr.bf16.mxu0 0
        %6280 = vmatpush1.bf16.msra.mxu0 0
        %6281 = vmatprep.mubr.bf16.mxu0 0
        %6282 = vmatmul.mubr.bf16.gmra.mrb[0].mxu0 %v6152
        %v6283 = vpop.f32.mrb[0].mxu0
        %v6284 = vadd.f32 0.0, %v6283
        %v6285 = vpop.f32.mrb[0].mxu0
        %v6286 = vadd.f32 0.0, %v6285
        %v6287 = vpop.f32.mrb[0].mxu0
        %v6288 = vadd.f32 0.0, %v6287
        %v6289 = vpop.f32.mrb[0].mxu0
        %v6290 = vadd.f32 0.0, %v6289
        %6291 = vdwg.mxu0
        %v6292 = vld [vmem:[#allocation34] sm:$0xff]
        %v6293 = vld [vmem:[#allocation34 + $0x8] sm:$0xff]
        %v6294 = vld [vmem:[#allocation34 + $0x10] sm:$0xff]
        %v6295 = vld [vmem:[#allocation34 + $0x18] sm:$0xff]
        %v6296 = vlaneseq
        %v6297 = vshrl.u32 %v6296, 7
        %v6298 = vsub.s32 0, %v6297
        %v6299 = vrot.slane %v6119, %v6298
        %vm6300 = vcmask 261120
        %v6302 = vsel %vm6300, %v6292, 0
        %v6305 = vsel %vm6300, %v6293, 0
        %v6308 = vsel %vm6300, %v6294, 0
        %v6311 = vsel %vm6300, %v6295, 0
        %6313 = vmatprep.subr.mxu0 0.0
        %6314 = vmatpush1.msra.mxu0 %v6284
        %6315 = vmatprep.subr.mxu0 0.0
        %6316 = vmatpush1.msra.mxu0 %v6288
        %6317 = vmatprep.subr.mxu0 0.0
        %6318 = vmatpush1.msra.mxu0 %v6286
        %6319 = vmatprep.subr.mxu0 0.0
        %6320 = vmatpush1.msra.mxu0 %v6290
        %6321 = vmatprep.subr.mxu0 0.0
        %6322 = vmatpush1.msra.mxu0 0.0
        %6323 = vmatprep.subr.mxu0 0.0
        %6324 = vmatpush1.msra.mxu0 0.0
        %6325 = vmatprep.subr.mxu0 0.0
        %6326 = vmatpush1.msra.mxu0 0.0
        %6327 = vmatprep.subr.mxu0 0.0
        %6328 = vmatpush1.msra.mxu0 0.0
        %6329 = vmatprep.subr.mxu0 0.0
        %6330 = vmatpush1.msra.mxu0 0.0
        %6331 = vmatprep.subr.mxu0 0.0
        %6332 = vmatpush1.msra.mxu0 0.0
        %6333 = vmatprep.subr.mxu0 0.0
        %6334 = vmatpush1.msra.mxu0 0.0
        %6335 = vmatprep.subr.mxu0 0.0
        %6336 = vmatpush1.msra.mxu0 0.0
        %6337 = vmatprep.subr.mxu0 0.0
        %6338 = vmatpush1.msra.mxu0 0.0
        %6339 = vmatprep.subr.mxu0 0.0
        %6340 = vmatpush1.msra.mxu0 0.0
        %6341 = vmatprep.subr.mxu0 0.0
        %6342 = vmatpush1.msra.mxu0 0.0
        %6343 = vmatprep.subr.mxu0 0.0
        %6344 = vmatpush1.msra.mxu0 0.0
        %6345 = vmatprep.subr.mxu0 0.0
        %6346 = vmatpush1.msra.mxu0 0.0
        %6347 = vmatprep.subr.mxu0 0.0
        %6348 = vmatpush1.msra.mxu0 0.0
        %6349 = vmatprep.subr.mxu0 0.0
        %6350 = vmatpush1.msra.mxu0 0.0
        %6351 = vmatprep.subr.mxu0 0.0
        %6352 = vmatpush1.msra.mxu0 0.0
        %6353 = vmatprep.subr.mxu0 0.0
        %6354 = vmatpush1.msra.mxu0 0.0
        %6355 = vmatprep.subr.mxu0 0.0
        %6356 = vmatpush1.msra.mxu0 0.0
        %6357 = vmatprep.subr.mxu0 0.0
        %6358 = vmatpush1.msra.mxu0 0.0
        %6359 = vmatprep.subr.mxu0 0.0
        %6360 = vmatpush1.msra.mxu0 0.0
        %6361 = vmatprep.subr.mxu0 0.0
        %6362 = vmatpush1.msra.mxu0 0.0
        %6363 = vmatprep.subr.mxu0 0.0
        %6364 = vmatpush1.msra.mxu0 0.0
        %6365 = vmatprep.subr.mxu0 0.0
        %6366 = vmatpush1.msra.mxu0 0.0
        %6367 = vmatprep.subr.mxu0 0.0
        %6368 = vmatpush1.msra.mxu0 0.0
        %6369 = vmatprep.subr.mxu0 0.0
        %6370 = vmatpush1.msra.mxu0 0.0
        %6371 = vmatprep.subr.mxu0 0.0
        %6372 = vmatpush1.msra.mxu0 0.0
        %6373 = vmatprep.subr.mxu0 0.0
        %6374 = vmatpush1.msra.mxu0 0.0
        %6375 = vmatprep.subr.mxu0 0.0
        %6376 = vmatpush1.msra.mxu0 0.0
        %6377 = vmatprep.mubr.f32.mxu0 0.0
        %6378 = vmatmul.mubr.f32.gmra.mrb[0].mxu0 %v6302
        %v6379 = vpop.f32.mrb[0].mxu0
        %v6380 = vadd.f32 %v6299, %v6379
        %v6381 = vpop.f32.mrb[0].mxu0
        %6382 = vmatprep.mubr.f32.mxu0 0.0
        %6383 = vmatmul.mubr.f32.gmra.mrb[0].mxu0 %v6305
        %v6384 = vpop.f32.mrb[0].mxu0
        %v6385 = vadd.f32 %v6299, %v6384
        %v6386 = vpop.f32.mrb[0].mxu0
        %6387 = vmatprep.mubr.f32.mxu0 0.0
        %6388 = vmatmul.mubr.f32.gmra.mrb[0].mxu0 %v6308
        %v6389 = vpop.f32.mrb[0].mxu0
        %v6390 = vadd.f32 %v6299, %v6389
        %v6391 = vpop.f32.mrb[0].mxu0
        %6392 = vmatprep.mubr.f32.mxu0 0.0
        %6393 = vmatmul.mubr.f32.gmra.mrb[0].mxu0 %v6311
        %v6394 = vpop.f32.mrb[0].mxu0
        %v6395 = vadd.f32 %v6299, %v6394
        %v6396 = vpop.f32.mrb[0].mxu0
        %6397 = vdwg.mxu0
        %v6402 = vrot.slane %v6380, 7
        %v6403 = vrot.slane %v6385, 7
        %v6404 = vsel %vm1513, %v6402, %v6403
        %v6405 = vrot.slane %v6390, 7
        %v6406 = vsel %vm1513, %v6403, %v6405
        %v6407 = vrot.slane %v6395, 7
        %v6408 = vsel %vm1513, %v6405, %v6407
        %v6413 = vsel %vm1513, 0.0, %v6402
        %v6414 = vrot.slane %v6380, 1
        %v6415 = vrot.slane %v6385, 1
        %v6416 = vsel %vm3117, %v6414, %v6415
        %v6417 = vrot.slane %v6390, 1
        %v6418 = vsel %vm3117, %v6415, %v6417
        %v6419 = vrot.slane %v6395, 1
        %v6420 = vsel %vm3117, %v6417, %v6419
        %v6425 = vsel %vm3117, %v6419, 0.0
        %v6426 = vpack.c.bf16 %v6404, %v6413
        %v6427 = vpack.c.bf16 %v6408, %v6406
        %v6428 = vld [vmem:[#allocation35] sm:$0xf]
        %v6429 = vld [vmem:[#allocation35 + $0x4] sm:$0xf]
        %v6430 = vld [vmem:[#allocation35 + $0x8] sm:$0xf]
        %v6431 = vld [vmem:[#allocation35 + $0xc] sm:$0xf]
        %v6432 = vld [vmem:[#allocation35 + $0x10] sm:$0xf]
        %v6433 = vld [vmem:[#allocation35 + $0x14] sm:$0xf]
        %v6434 = vld [vmem:[#allocation35 + $0x18] sm:$0xf]
        %v6435 = vld [vmem:[#allocation35 + $0x1c] sm:$0xf]
        %v6436 = vld [vmem:[#allocation35 + $0x20] sm:$0xf]
        %v6437 = vld [vmem:[#allocation35 + $0x24] sm:$0xf]
        %v6438 = vld [vmem:[#allocation35 + $0x28] sm:$0xf]
        %v6439 = vld [vmem:[#allocation35 + $0x2c] sm:$0xf]
        %v6440 = vld [vmem:[#allocation35 + $0x30] sm:$0xf]
        %v6441 = vld [vmem:[#allocation35 + $0x34] sm:$0xf]
        %v6442 = vld [vmem:[#allocation35 + $0x38] sm:$0xf]
        %v6443 = vld [vmem:[#allocation35 + $0x3c] sm:$0xf]
        %v6444 = vpack.c.bf16 %v6385, %v6380
        %v6445 = vpack.c.bf16 %v6395, %v6390
        %s6446 = scalar_lea.vmem [#allocation35], 64
        %v6447 = vld [vmem:[%s6446] sm:$0xf]
        %v6448 = vld [vmem:[%s6446 + $0x4] sm:$0xf]
        %v6449 = vld [vmem:[%s6446 + $0x8] sm:$0xf]
        %v6450 = vld [vmem:[%s6446 + $0xc] sm:$0xf]
        %v6451 = vld [vmem:[%s6446 + $0x10] sm:$0xf]
        %v6452 = vld [vmem:[%s6446 + $0x14] sm:$0xf]
        %v6453 = vld [vmem:[%s6446 + $0x18] sm:$0xf]
        %v6454 = vld [vmem:[%s6446 + $0x1c] sm:$0xf]
        %v6455 = vld [vmem:[%s6446 + $0x20] sm:$0xf]
        %v6456 = vld [vmem:[%s6446 + $0x24] sm:$0xf]
        %v6457 = vld [vmem:[%s6446 + $0x28] sm:$0xf]
        %v6458 = vld [vmem:[%s6446 + $0x2c] sm:$0xf]
        %v6459 = vld [vmem:[%s6446 + $0x30] sm:$0xf]
        %v6460 = vld [vmem:[%s6446 + $0x34] sm:$0xf]
        %v6461 = vld [vmem:[%s6446 + $0x38] sm:$0xf]
        %v6462 = vld [vmem:[%s6446 + $0x3c] sm:$0xf]
        %v6479 = vunpack.c.l.b16 %v6447
        %v6480 = vunpack.c.l.b16 %v6448
        %v6481 = vunpack.c.l.b16 %v6449
        %v6482 = vunpack.c.l.b16 %v6450
        %v6483 = vunpack.c.l.b16 %v6451
        %v6484 = vunpack.c.l.b16 %v6452
        %v6485 = vunpack.c.l.b16 %v6453
        %v6486 = vunpack.c.l.b16 %v6454
        %v6487 = vunpack.c.l.b16 %v6455
        %v6488 = vunpack.c.l.b16 %v6456
        %v6489 = vunpack.c.l.b16 %v6457
        %v6490 = vunpack.c.l.b16 %v6458
        %v6491 = vunpack.c.l.b16 %v6459
        %v6492 = vunpack.c.l.b16 %v6460
        %v6493 = vunpack.c.l.b16 %v6461
        %v6494 = vunpack.c.l.b16 %v6462
        %v6495 = vpack.c.b16 %v6480, %v6479
        %v6496 = vpack.c.b16 %v6482, %v6481
        %v6497 = vpack.c.b16 %v6484, %v6483
        %v6498 = vpack.c.b16 %v6486, %v6485
        %v6499 = vpack.c.b16 %v6488, %v6487
        %v6500 = vpack.c.b16 %v6490, %v6489
        %v6501 = vpack.c.b16 %v6492, %v6491
        %v6502 = vpack.c.b16 %v6494, %v6493
        %6511 = vmatprep.subr.bf16.mxu0 0
        %6512 = vmatpush1.bf16.msra.mxu0 %v6495
        %6513 = vmatprep.subr.bf16.mxu0 0
        %6514 = vmatpush1.bf16.msra.mxu0 %v6496
        %6515 = vmatprep.subr.bf16.mxu0 0
        %6516 = vmatpush1.bf16.msra.mxu0 %v6497
        %6517 = vmatprep.subr.bf16.mxu0 0
        %6518 = vmatpush1.bf16.msra.mxu0 %v6498
        %6519 = vmatprep.subr.bf16.mxu0 0
        %6520 = vmatpush1.bf16.msra.mxu0 %v6499
        %6521 = vmatprep.subr.bf16.mxu0 0
        %6522 = vmatpush1.bf16.msra.mxu0 %v6500
        %6523 = vmatprep.subr.bf16.mxu0 0
        %6524 = vmatpush1.bf16.msra.mxu0 %v6501
        %6525 = vmatprep.subr.bf16.mxu0 0
        %6526 = vmatpush1.bf16.msra.mxu0 %v6502
        %6527 = vmatprep.subr.bf16.mxu0 0
        %6528 = vmatpush1.bf16.msra.mxu0 0
        %6529 = vmatprep.subr.bf16.mxu0 0
        %6530 = vmatpush1.bf16.msra.mxu0 0
        %6531 = vmatprep.subr.bf16.mxu0 0
        %6532 = vmatpush1.bf16.msra.mxu0 0
        %6533 = vmatprep.subr.bf16.mxu0 0
        %6534 = vmatpush1.bf16.msra.mxu0 0
        %6535 = vmatprep.subr.bf16.mxu0 0
        %6536 = vmatpush1.bf16.msra.mxu0 0
        %6537 = vmatprep.subr.bf16.mxu0 0
        %6538 = vmatpush1.bf16.msra.mxu0 0
        %6539 = vmatprep.subr.bf16.mxu0 0
        %6540 = vmatpush1.bf16.msra.mxu0 0
        %6541 = vmatprep.subr.bf16.mxu0 0
        %6542 = vmatpush1.bf16.msra.mxu0 0
        %6543 = vmatprep.mubr.bf16.mxu0 0
        %6544 = vmatmul.mubr.bf16.gmra.mrb[0].mxu0 %v6444
        %v6545 = vpop.f32.mrb[0].mxu0
        %v6546 = vadd.f32 0.0, %v6545
        %v6547 = vpop.f32.mrb[0].mxu0
        %v6548 = vpop.f32.mrb[0].mxu0
        %v6549 = vadd.f32 0.0, %v6548
        %v6550 = vpop.f32.mrb[0].mxu0
        %6551 = vmatprep.mubr.bf16.mxu0 0
        %6552 = vmatmul.mubr.bf16.gmra.mrb[0].mxu0 %v6445
        %v6553 = vpop.f32.mrb[0].mxu0
        %v6554 = vadd.f32 0.0, %v6553
        %v6555 = vpop.f32.mrb[0].mxu0
        %v6556 = vpop.f32.mrb[0].mxu0
        %v6557 = vadd.f32 0.0, %v6556
        %v6558 = vpop.f32.mrb[0].mxu0
        %6559 = vdwg.mxu0
        %v6576 = vunpack.c.l.b16 %v6428
        %v6577 = vunpack.c.l.b16 %v6429
        %v6578 = vunpack.c.l.b16 %v6430
        %v6579 = vunpack.c.l.b16 %v6431
        %v6580 = vunpack.c.l.b16 %v6432
        %v6581 = vunpack.c.l.b16 %v6433
        %v6582 = vunpack.c.l.b16 %v6434
        %v6583 = vunpack.c.l.b16 %v6435
        %v6584 = vunpack.c.l.b16 %v6436
        %v6585 = vunpack.c.l.b16 %v6437
        %v6586 = vunpack.c.l.b16 %v6438
        %v6587 = vunpack.c.l.b16 %v6439
        %v6588 = vunpack.c.l.b16 %v6440
        %v6589 = vunpack.c.l.b16 %v6441
        %v6590 = vunpack.c.l.b16 %v6442
        %v6591 = vunpack.c.l.b16 %v6443
        %v6592 = vpack.c.b16 %v6577, %v6576
        %v6593 = vpack.c.b16 %v6579, %v6578
        %v6594 = vpack.c.b16 %v6581, %v6580
        %v6595 = vpack.c.b16 %v6583, %v6582
        %v6596 = vpack.c.b16 %v6585, %v6584
        %v6597 = vpack.c.b16 %v6587, %v6586
        %v6598 = vpack.c.b16 %v6589, %v6588
        %v6599 = vpack.c.b16 %v6591, %v6590
        %6608 = vmatprep.subr.bf16.mxu0 0
        %6609 = vmatpush1.bf16.msra.mxu0 %v6592
        %6610 = vmatprep.subr.bf16.mxu0 0
        %6611 = vmatpush1.bf16.msra.mxu0 %v6593
        %6612 = vmatprep.subr.bf16.mxu0 0
        %6613 = vmatpush1.bf16.msra.mxu0 %v6594
        %6614 = vmatprep.subr.bf16.mxu0 0
        %6615 = vmatpush1.bf16.msra.mxu0 %v6595
        %6616 = vmatprep.subr.bf16.mxu0 0
        %6617 = vmatpush1.bf16.msra.mxu0 %v6596
        %6618 = vmatprep.subr.bf16.mxu0 0
        %6619 = vmatpush1.bf16.msra.mxu0 %v6597
        %6620 = vmatprep.subr.bf16.mxu0 0
        %6621 = vmatpush1.bf16.msra.mxu0 %v6598
        %6622 = vmatprep.subr.bf16.mxu0 0
        %6623 = vmatpush1.bf16.msra.mxu0 %v6599
        %6624 = vmatprep.subr.bf16.mxu0 0
        %6625 = vmatpush1.bf16.msra.mxu0 0
        %6626 = vmatprep.subr.bf16.mxu0 0
        %6627 = vmatpush1.bf16.msra.mxu0 0
        %6628 = vmatprep.subr.bf16.mxu0 0
        %6629 = vmatpush1.bf16.msra.mxu0 0
        %6630 = vmatprep.subr.bf16.mxu0 0
        %6631 = vmatpush1.bf16.msra.mxu0 0
        %6632 = vmatprep.subr.bf16.mxu0 0
        %6633 = vmatpush1.bf16.msra.mxu0 0
        %6634 = vmatprep.subr.bf16.mxu0 0
        %6635 = vmatpush1.bf16.msra.mxu0 0
        %6636 = vmatprep.subr.bf16.mxu0 0
        %6637 = vmatpush1.bf16.msra.mxu0 0
        %6638 = vmatprep.subr.bf16.mxu0 0
        %6639 = vmatpush1.bf16.msra.mxu0 0
        %6640 = vmatprep.mubr.bf16.mxu0 0
        %6641 = vmatmul.mubr.bf16.gmra.mrb[0].mxu0 %v6426
        %v6642 = vpop.f32.mrb[0].mxu0
        %v6643 = vadd.f32 %v6546, %v6642
        %v6644 = vpop.f32.mrb[0].mxu0
        %v6645 = vpop.f32.mrb[0].mxu0
        %v6646 = vadd.f32 %v6549, %v6645
        %v6647 = vpop.f32.mrb[0].mxu0
        %6648 = vmatprep.mubr.bf16.mxu0 0
        %6649 = vmatmul.mubr.bf16.gmra.mrb[0].mxu0 %v6427
        %v6650 = vpop.f32.mrb[0].mxu0
        %v6651 = vadd.f32 %v6554, %v6650
        %v6652 = vpop.f32.mrb[0].mxu0
        %v6653 = vpop.f32.mrb[0].mxu0
        %v6654 = vadd.f32 %v6557, %v6653
        %v6655 = vpop.f32.mrb[0].mxu0
        %6656 = vdwg.mxu0
        %v6657 = vpack.c.bf16 %v6418, %v6416
        %v6658 = vpack.c.bf16 %v6425, %v6420
        %s6659 = scalar_lea.vmem [#allocation35], 128
        %v6660 = vld [vmem:[%s6659] sm:$0xf]
        %v6661 = vld [vmem:[%s6659 + $0x4] sm:$0xf]
        %v6662 = vld [vmem:[%s6659 + $0x8] sm:$0xf]
        %v6663 = vld [vmem:[%s6659 + $0xc] sm:$0xf]
        %v6664 = vld [vmem:[%s6659 + $0x10] sm:$0xf]
        %v6665 = vld [vmem:[%s6659 + $0x14] sm:$0xf]
        %v6666 = vld [vmem:[%s6659 + $0x18] sm:$0xf]
        %v6667 = vld [vmem:[%s6659 + $0x1c] sm:$0xf]
        %v6668 = vld [vmem:[%s6659 + $0x20] sm:$0xf]
        %v6669 = vld [vmem:[%s6659 + $0x24] sm:$0xf]
        %v6670 = vld [vmem:[%s6659 + $0x28] sm:$0xf]
        %v6671 = vld [vmem:[%s6659 + $0x2c] sm:$0xf]
        %v6672 = vld [vmem:[%s6659 + $0x30] sm:$0xf]
        %v6673 = vld [vmem:[%s6659 + $0x34] sm:$0xf]
        %v6674 = vld [vmem:[%s6659 + $0x38] sm:$0xf]
        %v6675 = vld [vmem:[%s6659 + $0x3c] sm:$0xf]
        %v6692 = vunpack.c.l.b16 %v6660
        %v6693 = vunpack.c.l.b16 %v6661
        %v6694 = vunpack.c.l.b16 %v6662
        %v6695 = vunpack.c.l.b16 %v6663
        %v6696 = vunpack.c.l.b16 %v6664
        %v6697 = vunpack.c.l.b16 %v6665
        %v6698 = vunpack.c.l.b16 %v6666
        %v6699 = vunpack.c.l.b16 %v6667
        %v6700 = vunpack.c.l.b16 %v6668
        %v6701 = vunpack.c.l.b16 %v6669
        %v6702 = vunpack.c.l.b16 %v6670
        %v6703 = vunpack.c.l.b16 %v6671
        %v6704 = vunpack.c.l.b16 %v6672
        %v6705 = vunpack.c.l.b16 %v6673
        %v6706 = vunpack.c.l.b16 %v6674
        %v6707 = vunpack.c.l.b16 %v6675
        %v6708 = vpack.c.b16 %v6693, %v6692
        %v6709 = vpack.c.b16 %v6695, %v6694
        %v6710 = vpack.c.b16 %v6697, %v6696
        %v6711 = vpack.c.b16 %v6699, %v6698
        %v6712 = vpack.c.b16 %v6701, %v6700
        %v6713 = vpack.c.b16 %v6703, %v6702
        %v6714 = vpack.c.b16 %v6705, %v6704
        %v6715 = vpack.c.b16 %v6707, %v6706
        %6724 = vmatprep.subr.bf16.mxu0 0
        %6725 = vmatpush1.bf16.msra.mxu0 %v6708
        %6726 = vmatprep.subr.bf16.mxu0 0
        %6727 = vmatpush1.bf16.msra.mxu0 %v6709
        %6728 = vmatprep.subr.bf16.mxu0 0
        %6729 = vmatpush1.bf16.msra.mxu0 %v6710
        %6730 = vmatprep.subr.bf16.mxu0 0
        %6731 = vmatpush1.bf16.msra.mxu0 %v6711
        %6732 = vmatprep.subr.bf16.mxu0 0
        %6733 = vmatpush1.bf16.msra.mxu0 %v6712
        %6734 = vmatprep.subr.bf16.mxu0 0
        %6735 = vmatpush1.bf16.msra.mxu0 %v6713
        %6736 = vmatprep.subr.bf16.mxu0 0
        %6737 = vmatpush1.bf16.msra.mxu0 %v6714
        %6738 = vmatprep.subr.bf16.mxu0 0
        %6739 = vmatpush1.bf16.msra.mxu0 %v6715
        %6740 = vmatprep.subr.bf16.mxu0 0
        %6741 = vmatpush1.bf16.msra.mxu0 0
        %6742 = vmatprep.subr.bf16.mxu0 0
        %6743 = vmatpush1.bf16.msra.mxu0 0
        %6744 = vmatprep.subr.bf16.mxu0 0
        %6745 = vmatpush1.bf16.msra.mxu0 0
        %6746 = vmatprep.subr.bf16.mxu0 0
        %6747 = vmatpush1.bf16.msra.mxu0 0
        %6748 = vmatprep.subr.bf16.mxu0 0
        %6749 = vmatpush1.bf16.msra.mxu0 0
        %6750 = vmatprep.subr.bf16.mxu0 0
        %6751 = vmatpush1.bf16.msra.mxu0 0
        %6752 = vmatprep.subr.bf16.mxu0 0
        %6753 = vmatpush1.bf16.msra.mxu0 0
        %6754 = vmatprep.subr.bf16.mxu0 0
        %6755 = vmatpush1.bf16.msra.mxu0 0
        %6756 = vmatprep.mubr.bf16.mxu0 0
        %6757 = vmatmul.mubr.bf16.gmra.mrb[0].mxu0 %v6657
        %v6758 = vpop.f32.mrb[0].mxu0
        %v6759 = vadd.f32 0.0, %v6758
        %v6760 = vpop.f32.mrb[0].mxu0
        %v6761 = vpop.f32.mrb[0].mxu0
        %v6762 = vadd.f32 0.0, %v6761
        %v6763 = vpop.f32.mrb[0].mxu0
        %6764 = vmatprep.mubr.bf16.mxu0 0
        %6765 = vmatmul.mubr.bf16.gmra.mrb[0].mxu0 %v6658
        %v6766 = vpop.f32.mrb[0].mxu0
        %v6767 = vadd.f32 0.0, %v6766
        %v6768 = vpop.f32.mrb[0].mxu0
        %v6769 = vpop.f32.mrb[0].mxu0
        %v6770 = vadd.f32 0.0, %v6769
        %v6771 = vpop.f32.mrb[0].mxu0
        %6772 = vdwg.mxu0
        %v6773 = vadd.f32 %v6643, %v6759
        %v6774 = vadd.f32 %v6646, %v6762
        %v6775 = vadd.f32 %v6651, %v6767
        %v6776 = vadd.f32 %v6654, %v6770
        %v6781 = vrot.slane %v6115, 7
        %v6782 = vrot.slane %v6116, 7
        %v6783 = vsel %vm1513, %v6781, %v6782
        %v6784 = vrot.slane %v6117, 7
        %v6785 = vsel %vm1513, %v6782, %v6784
        %v6786 = vrot.slane %v6118, 7
        %v6787 = vsel %vm1513, %v6784, %v6786
        %v6792 = vsel %vm1513, 0.0, %v6781
        %v6793 = vrot.slane %v6115, 1
        %v6794 = vrot.slane %v6116, 1
        %v6795 = vsel %vm3117, %v6793, %v6794
        %v6796 = vrot.slane %v6117, 1
        %v6797 = vsel %vm3117, %v6794, %v6796
        %v6798 = vrot.slane %v6118, 1
        %v6799 = vsel %vm3117, %v6796, %v6798
        %v6804 = vsel %vm3117, %v6798, 0.0
        %v6805 = vpack.c.bf16 %v6783, %v6792
        %v6806 = vpack.c.bf16 %v6787, %v6785
        %s6807 = scalar_lea.vmem [#allocation35], 192
        %v6808 = vld [vmem:[%s6807] sm:$0xf]
        %v6809 = vld [vmem:[%s6807 + $0x4] sm:$0xf]
        %v6810 = vld [vmem:[%s6807 + $0x8] sm:$0xf]
        %v6811 = vld [vmem:[%s6807 + $0xc] sm:$0xf]
        %v6812 = vld [vmem:[%s6807 + $0x10] sm:$0xf]
        %v6813 = vld [vmem:[%s6807 + $0x14] sm:$0xf]
        %v6814 = vld [vmem:[%s6807 + $0x18] sm:$0xf]
        %v6815 = vld [vmem:[%s6807 + $0x1c] sm:$0xf]
        %v6816 = vld [vmem:[%s6807 + $0x20] sm:$0xf]
        %v6817 = vld [vmem:[%s6807 + $0x24] sm:$0xf]
        %v6818 = vld [vmem:[%s6807 + $0x28] sm:$0xf]
        %v6819 = vld [vmem:[%s6807 + $0x2c] sm:$0xf]
        %v6820 = vld [vmem:[%s6807 + $0x30] sm:$0xf]
        %v6821 = vld [vmem:[%s6807 + $0x34] sm:$0xf]
        %v6822 = vld [vmem:[%s6807 + $0x38] sm:$0xf]
        %v6823 = vld [vmem:[%s6807 + $0x3c] sm:$0xf]
        %v6824 = vpack.c.bf16 %v6116, %v6115
        %v6825 = vpack.c.bf16 %v6118, %v6117
        %s6826 = scalar_lea.vmem [#allocation35], 256
        %v6827 = vld [vmem:[%s6826] sm:$0xf]
        %v6828 = vld [vmem:[%s6826 + $0x4] sm:$0xf]
        %v6829 = vld [vmem:[%s6826 + $0x8] sm:$0xf]
        %v6830 = vld [vmem:[%s6826 + $0xc] sm:$0xf]
        %v6831 = vld [vmem:[%s6826 + $0x10] sm:$0xf]
        %v6832 = vld [vmem:[%s6826 + $0x14] sm:$0xf]
        %v6833 = vld [vmem:[%s6826 + $0x18] sm:$0xf]
        %v6834 = vld [vmem:[%s6826 + $0x1c] sm:$0xf]
        %v6835 = vld [vmem:[%s6826 + $0x20] sm:$0xf]
        %v6836 = vld [vmem:[%s6826 + $0x24] sm:$0xf]
        %v6837 = vld [vmem:[%s6826 + $0x28] sm:$0xf]
        %v6838 = vld [vmem:[%s6826 + $0x2c] sm:$0xf]
        %v6839 = vld [vmem:[%s6826 + $0x30] sm:$0xf]
        %v6840 = vld [vmem:[%s6826 + $0x34] sm:$0xf]
        %v6841 = vld [vmem:[%s6826 + $0x38] sm:$0xf]
        %v6842 = vld [vmem:[%s6826 + $0x3c] sm:$0xf]
        %v6859 = vunpack.c.l.b16 %v6827
        %v6860 = vunpack.c.l.b16 %v6828
        %v6861 = vunpack.c.l.b16 %v6829
        %v6862 = vunpack.c.l.b16 %v6830
        %v6863 = vunpack.c.l.b16 %v6831
        %v6864 = vunpack.c.l.b16 %v6832
        %v6865 = vunpack.c.l.b16 %v6833
        %v6866 = vunpack.c.l.b16 %v6834
        %v6867 = vunpack.c.l.b16 %v6835
        %v6868 = vunpack.c.l.b16 %v6836
        %v6869 = vunpack.c.l.b16 %v6837
        %v6870 = vunpack.c.l.b16 %v6838
        %v6871 = vunpack.c.l.b16 %v6839
        %v6872 = vunpack.c.l.b16 %v6840
        %v6873 = vunpack.c.l.b16 %v6841
        %v6874 = vunpack.c.l.b16 %v6842
        %v6875 = vpack.c.b16 %v6860, %v6859
        %v6876 = vpack.c.b16 %v6862, %v6861
        %v6877 = vpack.c.b16 %v6864, %v6863
        %v6878 = vpack.c.b16 %v6866, %v6865
        %v6879 = vpack.c.b16 %v6868, %v6867
        %v6880 = vpack.c.b16 %v6870, %v6869
        %v6881 = vpack.c.b16 %v6872, %v6871
        %v6882 = vpack.c.b16 %v6874, %v6873
        %6891 = vmatprep.subr.bf16.mxu0 0
        %6892 = vmatpush1.bf16.msra.mxu0 %v6875
        %6893 = vmatprep.subr.bf16.mxu0 0
        %6894 = vmatpush1.bf16.msra.mxu0 %v6876
        %6895 = vmatprep.subr.bf16.mxu0 0
        %6896 = vmatpush1.bf16.msra.mxu0 %v6877
        %6897 = vmatprep.subr.bf16.mxu0 0
        %6898 = vmatpush1.bf16.msra.mxu0 %v6878
        %6899 = vmatprep.subr.bf16.mxu0 0
        %6900 = vmatpush1.bf16.msra.mxu0 %v6879
        %6901 = vmatprep.subr.bf16.mxu0 0
        %6902 = vmatpush1.bf16.msra.mxu0 %v6880
        %6903 = vmatprep.subr.bf16.mxu0 0
        %6904 = vmatpush1.bf16.msra.mxu0 %v6881
        %6905 = vmatprep.subr.bf16.mxu0 0
        %6906 = vmatpush1.bf16.msra.mxu0 %v6882
        %6907 = vmatprep.subr.bf16.mxu0 0
        %6908 = vmatpush1.bf16.msra.mxu0 0
        %6909 = vmatprep.subr.bf16.mxu0 0
        %6910 = vmatpush1.bf16.msra.mxu0 0
        %6911 = vmatprep.subr.bf16.mxu0 0
        %6912 = vmatpush1.bf16.msra.mxu0 0
        %6913 = vmatprep.subr.bf16.mxu0 0
        %6914 = vmatpush1.bf16.msra.mxu0 0
        %6915 = vmatprep.subr.bf16.mxu0 0
        %6916 = vmatpush1.bf16.msra.mxu0 0
        %6917 = vmatprep.subr.bf16.mxu0 0
        %6918 = vmatpush1.bf16.msra.mxu0 0
        %6919 = vmatprep.subr.bf16.mxu0 0
        %6920 = vmatpush1.bf16.msra.mxu0 0
        %6921 = vmatprep.subr.bf16.mxu0 0
        %6922 = vmatpush1.bf16.msra.mxu0 0
        %6923 = vmatprep.mubr.bf16.mxu0 0
        %6924 = vmatmul.mubr.bf16.gmra.mrb[0].mxu0 %v6824
        %v6925 = vpop.f32.mrb[0].mxu0
        %v6926 = vadd.f32 0.0, %v6925
        %v6927 = vpop.f32.mrb[0].mxu0
        %v6928 = vpop.f32.mrb[0].mxu0
        %v6929 = vadd.f32 0.0, %v6928
        %v6930 = vpop.f32.mrb[0].mxu0
        %6931 = vmatprep.mubr.bf16.mxu0 0
        %6932 = vmatmul.mubr.bf16.gmra.mrb[0].mxu0 %v6825
        %v6933 = vpop.f32.mrb[0].mxu0
        %v6934 = vadd.f32 0.0, %v6933
        %v6935 = vpop.f32.mrb[0].mxu0
        %v6936 = vpop.f32.mrb[0].mxu0
        %v6937 = vadd.f32 0.0, %v6936
        %v6938 = vpop.f32.mrb[0].mxu0
        %6939 = vdwg.mxu0
        %v6956 = vunpack.c.l.b16 %v6808
        %v6957 = vunpack.c.l.b16 %v6809
        %v6958 = vunpack.c.l.b16 %v6810
        %v6959 = vunpack.c.l.b16 %v6811
        %v6960 = vunpack.c.l.b16 %v6812
        %v6961 = vunpack.c.l.b16 %v6813
        %v6962 = vunpack.c.l.b16 %v6814
        %v6963 = vunpack.c.l.b16 %v6815
        %v6964 = vunpack.c.l.b16 %v6816
        %v6965 = vunpack.c.l.b16 %v6817
        %v6966 = vunpack.c.l.b16 %v6818
        %v6967 = vunpack.c.l.b16 %v6819
        %v6968 = vunpack.c.l.b16 %v6820
        %v6969 = vunpack.c.l.b16 %v6821
        %v6970 = vunpack.c.l.b16 %v6822
        %v6971 = vunpack.c.l.b16 %v6823
        %v6972 = vpack.c.b16 %v6957, %v6956
        %v6973 = vpack.c.b16 %v6959, %v6958
        %v6974 = vpack.c.b16 %v6961, %v6960
        %v6975 = vpack.c.b16 %v6963, %v6962
        %v6976 = vpack.c.b16 %v6965, %v6964
        %v6977 = vpack.c.b16 %v6967, %v6966
        %v6978 = vpack.c.b16 %v6969, %v6968
        %v6979 = vpack.c.b16 %v6971, %v6970
        %6988 = vmatprep.subr.bf16.mxu0 0
        %6989 = vmatpush1.bf16.msra.mxu0 %v6972
        %6990 = vmatprep.subr.bf16.mxu0 0
        %6991 = vmatpush1.bf16.msra.mxu0 %v6973
        %6992 = vmatprep.subr.bf16.mxu0 0
        %6993 = vmatpush1.bf16.msra.mxu0 %v6974
        %6994 = vmatprep.subr.bf16.mxu0 0
        %6995 = vmatpush1.bf16.msra.mxu0 %v6975
        %6996 = vmatprep.subr.bf16.mxu0 0
        %6997 = vmatpush1.bf16.msra.mxu0 %v6976
        %6998 = vmatprep.subr.bf16.mxu0 0
        %6999 = vmatpush1.bf16.msra.mxu0 %v6977
        %7000 = vmatprep.subr.bf16.mxu0 0
        %7001 = vmatpush1.bf16.msra.mxu0 %v6978
        %7002 = vmatprep.subr.bf16.mxu0 0
        %7003 = vmatpush1.bf16.msra.mxu0 %v6979
        %7004 = vmatprep.subr.bf16.mxu0 0
        %7005 = vmatpush1.bf16.msra.mxu0 0
        %7006 = vmatprep.subr.bf16.mxu0 0
        %7007 = vmatpush1.bf16.msra.mxu0 0
        %7008 = vmatprep.subr.bf16.mxu0 0
        %7009 = vmatpush1.bf16.msra.mxu0 0
        %7010 = vmatprep.subr.bf16.mxu0 0
        %7011 = vmatpush1.bf16.msra.mxu0 0
        %7012 = vmatprep.subr.bf16.mxu0 0
        %7013 = vmatpush1.bf16.msra.mxu0 0
        %7014 = vmatprep.subr.bf16.mxu0 0
        %7015 = vmatpush1.bf16.msra.mxu0 0
        %7016 = vmatprep.subr.bf16.mxu0 0
        %7017 = vmatpush1.bf16.msra.mxu0 0
        %7018 = vmatprep.subr.bf16.mxu0 0
        %7019 = vmatpush1.bf16.msra.mxu0 0
        %7020 = vmatprep.mubr.bf16.mxu0 0
        %7021 = vmatmul.mubr.bf16.gmra.mrb[0].mxu0 %v6805
        %v7022 = vpop.f32.mrb[0].mxu0
        %v7023 = vadd.f32 %v6926, %v7022
        %v7024 = vpop.f32.mrb[0].mxu0
        %v7025 = vpop.f32.mrb[0].mxu0
        %v7026 = vadd.f32 %v6929, %v7025
        %v7027 = vpop.f32.mrb[0].mxu0
        %7028 = vmatprep.mubr.bf16.mxu0 0
        %7029 = vmatmul.mubr.bf16.gmra.mrb[0].mxu0 %v6806
        %v7030 = vpop.f32.mrb[0].mxu0
        %v7031 = vadd.f32 %v6934, %v7030
        %v7032 = vpop.f32.mrb[0].mxu0
        %v7033 = vpop.f32.mrb[0].mxu0
        %v7034 = vadd.f32 %v6937, %v7033
        %v7035 = vpop.f32.mrb[0].mxu0
        %7036 = vdwg.mxu0
        %v7037 = vpack.c.bf16 %v6797, %v6795
        %v7038 = vpack.c.bf16 %v6804, %v6799
        %s7039 = scalar_lea.vmem [#allocation35], 320
        %v7040 = vld [vmem:[%s7039] sm:$0xf]
        %v7041 = vld [vmem:[%s7039 + $0x4] sm:$0xf]
        %v7042 = vld [vmem:[%s7039 + $0x8] sm:$0xf]
        %v7043 = vld [vmem:[%s7039 + $0xc] sm:$0xf]
        %v7044 = vld [vmem:[%s7039 + $0x10] sm:$0xf]
        %v7045 = vld [vmem:[%s7039 + $0x14] sm:$0xf]
        %v7046 = vld [vmem:[%s7039 + $0x18] sm:$0xf]
        %v7047 = vld [vmem:[%s7039 + $0x1c] sm:$0xf]
        %v7048 = vld [vmem:[%s7039 + $0x20] sm:$0xf]
        %v7049 = vld [vmem:[%s7039 + $0x24] sm:$0xf]
        %v7050 = vld [vmem:[%s7039 + $0x28] sm:$0xf]
        %v7051 = vld [vmem:[%s7039 + $0x2c] sm:$0xf]
        %v7052 = vld [vmem:[%s7039 + $0x30] sm:$0xf]
        %v7053 = vld [vmem:[%s7039 + $0x34] sm:$0xf]
        %v7054 = vld [vmem:[%s7039 + $0x38] sm:$0xf]
        %v7055 = vld [vmem:[%s7039 + $0x3c] sm:$0xf]
        %v7072 = vunpack.c.l.b16 %v7040
        %v7073 = vunpack.c.l.b16 %v7041
        %v7074 = vunpack.c.l.b16 %v7042
        %v7075 = vunpack.c.l.b16 %v7043
        %v7076 = vunpack.c.l.b16 %v7044
        %v7077 = vunpack.c.l.b16 %v7045
        %v7078 = vunpack.c.l.b16 %v7046
        %v7079 = vunpack.c.l.b16 %v7047
        %v7080 = vunpack.c.l.b16 %v7048
        %v7081 = vunpack.c.l.b16 %v7049
        %v7082 = vunpack.c.l.b16 %v7050
        %v7083 = vunpack.c.l.b16 %v7051
        %v7084 = vunpack.c.l.b16 %v7052
        %v7085 = vunpack.c.l.b16 %v7053
        %v7086 = vunpack.c.l.b16 %v7054
        %v7087 = vunpack.c.l.b16 %v7055
        %v7088 = vpack.c.b16 %v7073, %v7072
        %v7089 = vpack.c.b16 %v7075, %v7074
        %v7090 = vpack.c.b16 %v7077, %v7076
        %v7091 = vpack.c.b16 %v7079, %v7078
        %v7092 = vpack.c.b16 %v7081, %v7080
        %v7093 = vpack.c.b16 %v7083, %v7082
        %v7094 = vpack.c.b16 %v7085, %v7084
        %v7095 = vpack.c.b16 %v7087, %v7086
        %7104 = vmatprep.subr.bf16.mxu0 0
        %7105 = vmatpush1.bf16.msra.mxu0 %v7088
        %7106 = vmatprep.subr.bf16.mxu0 0
        %7107 = vmatpush1.bf16.msra.mxu0 %v7089
        %7108 = vmatprep.subr.bf16.mxu0 0
        %7109 = vmatpush1.bf16.msra.mxu0 %v7090
        %7110 = vmatprep.subr.bf16.mxu0 0
        %7111 = vmatpush1.bf16.msra.mxu0 %v7091
        %7112 = vmatprep.subr.bf16.mxu0 0
        %7113 = vmatpush1.bf16.msra.mxu0 %v7092
        %7114 = vmatprep.subr.bf16.mxu0 0
        %7115 = vmatpush1.bf16.msra.mxu0 %v7093
        %7116 = vmatprep.subr.bf16.mxu0 0
        %7117 = vmatpush1.bf16.msra.mxu0 %v7094
        %7118 = vmatprep.subr.bf16.mxu0 0
        %7119 = vmatpush1.bf16.msra.mxu0 %v7095
        %7120 = vmatprep.subr.bf16.mxu0 0
        %7121 = vmatpush1.bf16.msra.mxu0 0
        %7122 = vmatprep.subr.bf16.mxu0 0
        %7123 = vmatpush1.bf16.msra.mxu0 0
        %7124 = vmatprep.subr.bf16.mxu0 0
        %7125 = vmatpush1.bf16.msra.mxu0 0
        %7126 = vmatprep.subr.bf16.mxu0 0
        %7127 = vmatpush1.bf16.msra.mxu0 0
        %7128 = vmatprep.subr.bf16.mxu0 0
        %7129 = vmatpush1.bf16.msra.mxu0 0
        %7130 = vmatprep.subr.bf16.mxu0 0
        %7131 = vmatpush1.bf16.msra.mxu0 0
        %7132 = vmatprep.subr.bf16.mxu0 0
        %7133 = vmatpush1.bf16.msra.mxu0 0
        %7134 = vmatprep.subr.bf16.mxu0 0
        %7135 = vmatpush1.bf16.msra.mxu0 0
        %7136 = vmatprep.mubr.bf16.mxu0 0
        %7137 = vmatmul.mubr.bf16.gmra.mrb[0].mxu0 %v7037
        %v7138 = vpop.f32.mrb[0].mxu0
        %v7139 = vadd.f32 0.0, %v7138
        %v7140 = vpop.f32.mrb[0].mxu0
        %v7141 = vpop.f32.mrb[0].mxu0
        %v7142 = vadd.f32 0.0, %v7141
        %v7143 = vpop.f32.mrb[0].mxu0
        %7144 = vmatprep.mubr.bf16.mxu0 0
        %7145 = vmatmul.mubr.bf16.gmra.mrb[0].mxu0 %v7038
        %v7146 = vpop.f32.mrb[0].mxu0
        %v7147 = vadd.f32 0.0, %v7146
        %v7148 = vpop.f32.mrb[0].mxu0
        %v7149 = vpop.f32.mrb[0].mxu0
        %v7150 = vadd.f32 0.0, %v7149
        %v7151 = vpop.f32.mrb[0].mxu0
        %7152 = vdwg.mxu0
        %v7153 = vadd.f32 %v7023, %v7139
        %v7154 = vadd.f32 %v7026, %v7142
        %v7155 = vadd.f32 %v7031, %v7147
        %v7156 = vadd.f32 %v7034, %v7150
        %v7157 = vadd.f32 %v6773, %v7153
        %v7158 = vadd.f32 %v6774, %v7154
        %v7159 = vadd.f32 %v6775, %v7155
        %v7160 = vadd.f32 %v6776, %v7156
        %v7161 = vadd.f32 %v7157, %v7158
        %v7162 = vadd.f32 %v7161, %v7159
        %v7163 = vadd.f32 %v7162, %v7160
        %v7164 = vrot.slane %v7163, 4
        %v7165 = vadd.f32 %v7163, %v7164
        %v7166 = vrot.slane %v7165, 2
        %v7167 = vadd.f32 %v7165, %v7166
        %v7168 = vrot.slane %v7167, 1
        %v7169 = vadd.f32 %v7167, %v7168
        %7170 = vmatprep.subr.mxu0 0.0
        %7171 = vmatpush1.msra.mxu0 %v6136
        %7172 = vmatprep.subr.mxu0 0.0
        %7173 = vmatpush1.msra.mxu0 %v6137
        %7174 = vmatprep.subr.mxu0 0.0
        %7175 = vmatpush1.msra.mxu0 %v6138
        %7176 = vmatprep.subr.mxu0 0.0
        %7177 = vmatpush1.msra.mxu0 %v6139
        %7178 = vmatprep.subr.mxu0 0.0
        %7179 = vmatpush1.msra.mxu0 %v6140
        %7180 = vmatprep.subr.mxu0 0.0
        %7181 = vmatpush1.msra.mxu0 %v6141
        %7182 = vmatprep.subr.mxu0 0.0
        %7183 = vmatpush1.msra.mxu0 %v6142
        %7184 = vmatprep.subr.mxu0 0.0
        %7185 = vmatpush1.msra.mxu0 %v6143
        %7186 = vmatprep.subr.mxu0 0.0
        %7187 = vmatpush1.msra.mxu0 %v6144
        %7188 = vmatprep.subr.mxu0 0.0
        %7189 = vmatpush1.msra.mxu0 %v6145
        %7190 = vmatprep.subr.mxu0 0.0
        %7191 = vmatpush1.msra.mxu0 %v6146
        %7192 = vmatprep.subr.mxu0 0.0
        %7193 = vmatpush1.msra.mxu0 %v6147
        %7194 = vmatprep.subr.mxu0 0.0
        %7195 = vmatpush1.msra.mxu0 %v6148
        %7196 = vmatprep.subr.mxu0 0.0
        %7197 = vmatpush1.msra.mxu0 %v6149
        %7198 = vmatprep.subr.mxu0 0.0
        %7199 = vmatpush1.msra.mxu0 %v6150
        %7200 = vmatprep.subr.mxu0 0.0
        %7201 = vmatpush1.msra.mxu0 %v6151
        %7202 = vmatprep.subr.mxu0 0.0
        %7203 = vmatpush1.msra.mxu0 0.0
        %7204 = vmatprep.subr.mxu0 0.0
        %7205 = vmatpush1.msra.mxu0 0.0
        %7206 = vmatprep.subr.mxu0 0.0
        %7207 = vmatpush1.msra.mxu0 0.0
        %7208 = vmatprep.subr.mxu0 0.0
        %7209 = vmatpush1.msra.mxu0 0.0
        %7210 = vmatprep.subr.mxu0 0.0
        %7211 = vmatpush1.msra.mxu0 0.0
        %7212 = vmatprep.subr.mxu0 0.0
        %7213 = vmatpush1.msra.mxu0 0.0
        %7214 = vmatprep.subr.mxu0 0.0
        %7215 = vmatpush1.msra.mxu0 0.0
        %7216 = vmatprep.subr.mxu0 0.0
        %7217 = vmatpush1.msra.mxu0 0.0
        %7218 = vmatprep.subr.mxu0 0.0
        %7219 = vmatpush1.msra.mxu0 0.0
        %7220 = vmatprep.subr.mxu0 0.0
        %7221 = vmatpush1.msra.mxu0 0.0
        %7222 = vmatprep.subr.mxu0 0.0
        %7223 = vmatpush1.msra.mxu0 0.0
        %7224 = vmatprep.subr.mxu0 0.0
        %7225 = vmatpush1.msra.mxu0 0.0
        %7226 = vmatprep.subr.mxu0 0.0
        %7227 = vmatpush1.msra.mxu0 0.0
        %7228 = vmatprep.subr.mxu0 0.0
        %7229 = vmatpush1.msra.mxu0 0.0
        %7230 = vmatprep.subr.mxu0 0.0
        %7231 = vmatpush1.msra.mxu0 0.0
        %7232 = vmatprep.subr.mxu0 0.0
        %7233 = vmatpush1.msra.mxu0 0.0
        %7234 = vmatprep.mubr.f32.mxu0 0.0
        %7235 = vmatmul.mubr.f32.gmra.mrb[0].mxu0 %v7169
        %v7236 = vpop.f32.mrb[0].mxu0
        %v7237 = vadd.f32 0.0, %v7236
        %v7238 = vpop.f32.mrb[0].mxu0
        %7239 = vdwg.mxu0
        %v7240 = vlaneseq
        %v7241 = vshrl.u32 %v7240, 7
        %v7242 = vsub.s32 0, %v7241
        %v7243 = vrot.slane %v7237, %v7242
        %v7244 = vsub.f32 %v7157, %v7243
        %v7245 = vsub.f32 %v7158, %v7243
        %v7246 = vsub.f32 %v7159, %v7243
        %v7247 = vsub.f32 %v7160, %v7243
        %v7248 = vmul.f32 %v7244, %v7244
        %v7249 = vmul.f32 %v7245, %v7245
        %v7250 = vmul.f32 %v7246, %v7246
        %v7251 = vmul.f32 %v7247, %v7247
        %v7252 = vadd.f32 %v7248, %v7249
        %v7253 = vadd.f32 %v7252, %v7250
        %v7254 = vadd.f32 %v7253, %v7251
        %v7255 = vrot.slane %v7254, 4
        %v7256 = vadd.f32 %v7254, %v7255
        %v7257 = vrot.slane %v7256, 2
        %v7258 = vadd.f32 %v7256, %v7257
        %v7259 = vrot.slane %v7258, 1
        %v7260 = vadd.f32 %v7258, %v7259
        %7261 = vmatprep.subr.mxu0 0.0
        %7262 = vmatpush1.msra.mxu0 %v6136
        %7263 = vmatprep.subr.mxu0 0.0
        %7264 = vmatpush1.msra.mxu0 %v6137
        %7265 = vmatprep.subr.mxu0 0.0
        %7266 = vmatpush1.msra.mxu0 %v6138
        %7267 = vmatprep.subr.mxu0 0.0
        %7268 = vmatpush1.msra.mxu0 %v6139
        %7269 = vmatprep.subr.mxu0 0.0
        %7270 = vmatpush1.msra.mxu0 %v6140
        %7271 = vmatprep.subr.mxu0 0.0
        %7272 = vmatpush1.msra.mxu0 %v6141
        %7273 = vmatprep.subr.mxu0 0.0
        %7274 = vmatpush1.msra.mxu0 %v6142
        %7275 = vmatprep.subr.mxu0 0.0
        %7276 = vmatpush1.msra.mxu0 %v6143
        %7277 = vmatprep.subr.mxu0 0.0
        %7278 = vmatpush1.msra.mxu0 %v6144
        %7279 = vmatprep.subr.mxu0 0.0
        %7280 = vmatpush1.msra.mxu0 %v6145
        %7281 = vmatprep.subr.mxu0 0.0
        %7282 = vmatpush1.msra.mxu0 %v6146
        %7283 = vmatprep.subr.mxu0 0.0
        %7284 = vmatpush1.msra.mxu0 %v6147
        %7285 = vmatprep.subr.mxu0 0.0
        %7286 = vmatpush1.msra.mxu0 %v6148
        %7287 = vmatprep.subr.mxu0 0.0
        %7288 = vmatpush1.msra.mxu0 %v6149
        %7289 = vmatprep.subr.mxu0 0.0
        %7290 = vmatpush1.msra.mxu0 %v6150
        %7291 = vmatprep.subr.mxu0 0.0
        %7292 = vmatpush1.msra.mxu0 %v6151
        %7293 = vmatprep.subr.mxu0 0.0
        %7294 = vmatpush1.msra.mxu0 0.0
        %7295 = vmatprep.subr.mxu0 0.0
        %7296 = vmatpush1.msra.mxu0 0.0
        %7297 = vmatprep.subr.mxu0 0.0
        %7298 = vmatpush1.msra.mxu0 0.0
        %7299 = vmatprep.subr.mxu0 0.0
        %7300 = vmatpush1.msra.mxu0 0.0
        %7301 = vmatprep.subr.mxu0 0.0
        %7302 = vmatpush1.msra.mxu0 0.0
        %7303 = vmatprep.subr.mxu0 0.0
        %7304 = vmatpush1.msra.mxu0 0.0
        %7305 = vmatprep.subr.mxu0 0.0
        %7306 = vmatpush1.msra.mxu0 0.0
        %7307 = vmatprep.subr.mxu0 0.0
        %7308 = vmatpush1.msra.mxu0 0.0
        %7309 = vmatprep.subr.mxu0 0.0
        %7310 = vmatpush1.msra.mxu0 0.0
        %7311 = vmatprep.subr.mxu0 0.0
        %7312 = vmatpush1.msra.mxu0 0.0
        %7313 = vmatprep.subr.mxu0 0.0
        %7314 = vmatpush1.msra.mxu0 0.0
        %7315 = vmatprep.subr.mxu0 0.0
        %7316 = vmatpush1.msra.mxu0 0.0
        %7317 = vmatprep.subr.mxu0 0.0
        %7318 = vmatpush1.msra.mxu0 0.0
        %7319 = vmatprep.subr.mxu0 0.0
        %7320 = vmatpush1.msra.mxu0 0.0
        %7321 = vmatprep.subr.mxu0 0.0
        %7322 = vmatpush1.msra.mxu0 0.0
        %7323 = vmatprep.subr.mxu0 0.0
        %7324 = vmatpush1.msra.mxu0 0.0
        %7325 = vmatprep.mubr.f32.mxu0 0.0
        %7326 = vmatmul.mubr.f32.gmra.mrb[0].mxu0 %v7260
        %v7327 = vpop.f32.mrb[0].mxu0
        %v7328 = vadd.f32 1e-05, %v7327
        %v7329 = vpop.f32.mrb[0].mxu0
        %7330 = vdwg.mxu0
        %v7331 = vrsqrt.pop %v7328
        %v7332 = vlaneseq
        %v7333 = vshrl.u32 %v7332, 7
        %v7334 = vsub.s32 0, %v7333
        %v7335 = vrot.slane %v7331, %v7334
        %v7336 = vmul.f32 %v7244, %v7335
        %v7337 = vmul.f32 %v7245, %v7335
        %v7338 = vmul.f32 %v7246, %v7335
        %v7339 = vmul.f32 %v7247, %v7335
        %v7340 = vlaneseq
        %v7341 = vshrl.u32 %v7340, 7
        %v7342 = vsub.s32 1, %v7341
        %v7343 = vrot.slane %v6119, %v7342
        %v7344 = vmul.f32 %v7336, %v7343
        %v7345 = vmul.f32 %v7337, %v7343
        %v7346 = vmul.f32 %v7338, %v7343
        %v7347 = vmul.f32 %v7339, %v7343
        %v7348 = vlaneseq
        %v7349 = vshrl.u32 %v7348, 7
        %v7350 = vsub.s32 2, %v7349
        %v7351 = vrot.slane %v6119, %v7350
        %v7352 = vadd.f32 %v7344, %v7351
        %v7353 = vadd.f32 %v7345, %v7351
        %v7354 = vadd.f32 %v7346, %v7351
        %v7355 = vadd.f32 %v7347, %v7351
        %vm7356 = vcmp.gt.f32.partialorder %v7352, 0.0
        %vm7357 = vcmp.gt.f32.partialorder %v7353, 0.0
        %vm7358 = vcmp.gt.f32.partialorder %v7354, 0.0
        %vm7359 = vcmp.gt.f32.partialorder %v7355, 0.0
        %v7360 = vmul.f32 %v7352, 1.442695
        %v7361 = vpow.pop %v7360
        %v7362 = vmul.f32 %v7353, 1.442695
        %v7363 = vpow.pop %v7362
        %v7364 = vmul.f32 %v7354, 1.442695
        %v7365 = vpow.pop %v7364
        %v7366 = vmul.f32 %v7355, 1.442695
        %v7367 = vpow.pop %v7366
        %v7368 = vsub.f32 %v7361, 1.0
        %v7369 = vsub.f32 %v7363, 1.0
        %v7370 = vsub.f32 %v7365, 1.0
        %v7371 = vsub.f32 %v7367, 1.0
        %v7372 = vmul.f32 %v7368, 1.6732632
        %v7373 = vmul.f32 %v7369, 1.6732632
        %v7374 = vmul.f32 %v7370, 1.6732632
        %v7375 = vmul.f32 %v7371, 1.6732632
        %v7376 = vsel %vm7356, %v7352, %v7372
        %v7377 = vsel %vm7357, %v7353, %v7373
        %v7378 = vsel %vm7358, %v7354, %v7374
        %v7379 = vsel %vm7359, %v7355, %v7375
        %v7380 = vmul.f32 %v7376, 1.050701
        %v7381 = vmul.f32 %v7377, 1.050701
        %v7382 = vmul.f32 %v7378, 1.050701
        %v7383 = vmul.f32 %v7379, 1.050701
        %v7388 = vrot.slane %v7380, 7
        %v7389 = vrot.slane %v7381, 7
        %v7390 = vsel %vm1513, %v7388, %v7389
        %v7391 = vrot.slane %v7382, 7
        %v7392 = vsel %vm1513, %v7389, %v7391
        %v7393 = vrot.slane %v7383, 7
        %v7394 = vsel %vm1513, %v7391, %v7393
        %v7399 = vsel %vm1513, 0.0, %v7388
        %v7400 = vrot.slane %v7380, 1
        %v7401 = vrot.slane %v7381, 1
        %v7402 = vsel %vm3117, %v7400, %v7401
        %v7403 = vrot.slane %v7382, 1
        %v7404 = vsel %vm3117, %v7401, %v7403
        %v7405 = vrot.slane %v7383, 1
        %v7406 = vsel %vm3117, %v7403, %v7405
        %v7411 = vsel %vm3117, %v7405, 0.0
        %v7412 = vpack.c.bf16 %v7390, %v7399
        %v7413 = vpack.c.bf16 %v7394, %v7392
        %s7414 = scalar_lea.vmem [#allocation35], 384
        %v7415 = vld [vmem:[%s7414] sm:$0xf]
        %v7416 = vld [vmem:[%s7414 + $0x4] sm:$0xf]
        %v7417 = vld [vmem:[%s7414 + $0x8] sm:$0xf]
        %v7418 = vld [vmem:[%s7414 + $0xc] sm:$0xf]
        %v7419 = vld [vmem:[%s7414 + $0x10] sm:$0xf]
        %v7420 = vld [vmem:[%s7414 + $0x14] sm:$0xf]
        %v7421 = vld [vmem:[%s7414 + $0x18] sm:$0xf]
        %v7422 = vld [vmem:[%s7414 + $0x1c] sm:$0xf]
        %v7423 = vld [vmem:[%s7414 + $0x20] sm:$0xf]
        %v7424 = vld [vmem:[%s7414 + $0x24] sm:$0xf]
        %v7425 = vld [vmem:[%s7414 + $0x28] sm:$0xf]
        %v7426 = vld [vmem:[%s7414 + $0x2c] sm:$0xf]
        %v7427 = vld [vmem:[%s7414 + $0x30] sm:$0xf]
        %v7428 = vld [vmem:[%s7414 + $0x34] sm:$0xf]
        %v7429 = vld [vmem:[%s7414 + $0x38] sm:$0xf]
        %v7430 = vld [vmem:[%s7414 + $0x3c] sm:$0xf]
        %v7431 = vpack.c.bf16 %v7381, %v7380
        %v7432 = vpack.c.bf16 %v7383, %v7382
        %s7433 = scalar_lea.vmem [#allocation35], 448
        %v7434 = vld [vmem:[%s7433] sm:$0xf]
        %v7435 = vld [vmem:[%s7433 + $0x4] sm:$0xf]
        %v7436 = vld [vmem:[%s7433 + $0x8] sm:$0xf]
        %v7437 = vld [vmem:[%s7433 + $0xc] sm:$0xf]
        %v7438 = vld [vmem:[%s7433 + $0x10] sm:$0xf]
        %v7439 = vld [vmem:[%s7433 + $0x14] sm:$0xf]
        %v7440 = vld [vmem:[%s7433 + $0x18] sm:$0xf]
        %v7441 = vld [vmem:[%s7433 + $0x1c] sm:$0xf]
        %v7442 = vld [vmem:[%s7433 + $0x20] sm:$0xf]
        %v7443 = vld [vmem:[%s7433 + $0x24] sm:$0xf]
        %v7444 = vld [vmem:[%s7433 + $0x28] sm:$0xf]
        %v7445 = vld [vmem:[%s7433 + $0x2c] sm:$0xf]
        %v7446 = vld [vmem:[%s7433 + $0x30] sm:$0xf]
        %v7447 = vld [vmem:[%s7433 + $0x34] sm:$0xf]
        %v7448 = vld [vmem:[%s7433 + $0x38] sm:$0xf]
        %v7449 = vld [vmem:[%s7433 + $0x3c] sm:$0xf]
        %v7466 = vunpack.c.l.b16 %v7434
        %v7467 = vunpack.c.l.b16 %v7435
        %v7468 = vunpack.c.l.b16 %v7436
        %v7469 = vunpack.c.l.b16 %v7437
        %v7470 = vunpack.c.l.b16 %v7438
        %v7471 = vunpack.c.l.b16 %v7439
        %v7472 = vunpack.c.l.b16 %v7440
        %v7473 = vunpack.c.l.b16 %v7441
        %v7474 = vunpack.c.l.b16 %v7442
        %v7475 = vunpack.c.l.b16 %v7443
        %v7476 = vunpack.c.l.b16 %v7444
        %v7477 = vunpack.c.l.b16 %v7445
        %v7478 = vunpack.c.l.b16 %v7446
        %v7479 = vunpack.c.l.b16 %v7447
        %v7480 = vunpack.c.l.b16 %v7448
        %v7481 = vunpack.c.l.b16 %v7449
        %v7482 = vpack.c.b16 %v7467, %v7466
        %v7483 = vpack.c.b16 %v7469, %v7468
        %v7484 = vpack.c.b16 %v7471, %v7470
        %v7485 = vpack.c.b16 %v7473, %v7472
        %v7486 = vpack.c.b16 %v7475, %v7474
        %v7487 = vpack.c.b16 %v7477, %v7476
        %v7488 = vpack.c.b16 %v7479, %v7478
        %v7489 = vpack.c.b16 %v7481, %v7480
        %7498 = vmatprep.subr.bf16.mxu0 0
        %7499 = vmatpush1.bf16.msra.mxu0 %v7482
        %7500 = vmatprep.subr.bf16.mxu0 0
        %7501 = vmatpush1.bf16.msra.mxu0 %v7483
        %7502 = vmatprep.subr.bf16.mxu0 0
        %7503 = vmatpush1.bf16.msra.mxu0 %v7484
        %7504 = vmatprep.subr.bf16.mxu0 0
        %7505 = vmatpush1.bf16.msra.mxu0 %v7485
        %7506 = vmatprep.subr.bf16.mxu0 0
        %7507 = vmatpush1.bf16.msra.mxu0 %v7486
        %7508 = vmatprep.subr.bf16.mxu0 0
        %7509 = vmatpush1.bf16.msra.mxu0 %v7487
        %7510 = vmatprep.subr.bf16.mxu0 0
        %7511 = vmatpush1.bf16.msra.mxu0 %v7488
        %7512 = vmatprep.subr.bf16.mxu0 0
        %7513 = vmatpush1.bf16.msra.mxu0 %v7489
        %7514 = vmatprep.subr.bf16.mxu0 0
        %7515 = vmatpush1.bf16.msra.mxu0 0
        %7516 = vmatprep.subr.bf16.mxu0 0
        %7517 = vmatpush1.bf16.msra.mxu0 0
        %7518 = vmatprep.subr.bf16.mxu0 0
        %7519 = vmatpush1.bf16.msra.mxu0 0
        %7520 = vmatprep.subr.bf16.mxu0 0
        %7521 = vmatpush1.bf16.msra.mxu0 0
        %7522 = vmatprep.subr.bf16.mxu0 0
        %7523 = vmatpush1.bf16.msra.mxu0 0
        %7524 = vmatprep.subr.bf16.mxu0 0
        %7525 = vmatpush1.bf16.msra.mxu0 0
        %7526 = vmatprep.subr.bf16.mxu0 0
        %7527 = vmatpush1.bf16.msra.mxu0 0
        %7528 = vmatprep.subr.bf16.mxu0 0
        %7529 = vmatpush1.bf16.msra.mxu0 0
        %7530 = vmatprep.mubr.bf16.mxu0 0
        %7531 = vmatmul.mubr.bf16.gmra.mrb[0].mxu0 %v7431
        %v7532 = vpop.f32.mrb[0].mxu0
        %v7533 = vadd.f32 0.0, %v7532
        %v7534 = vpop.f32.mrb[0].mxu0
        %v7535 = vpop.f32.mrb[0].mxu0
        %v7536 = vadd.f32 0.0, %v7535
        %v7537 = vpop.f32.mrb[0].mxu0
        %7538 = vmatprep.mubr.bf16.mxu0 0
        %7539 = vmatmul.mubr.bf16.gmra.mrb[0].mxu0 %v7432
        %v7540 = vpop.f32.mrb[0].mxu0
        %v7541 = vadd.f32 0.0, %v7540
        %v7542 = vpop.f32.mrb[0].mxu0
        %v7543 = vpop.f32.mrb[0].mxu0
        %v7544 = vadd.f32 0.0, %v7543
        %v7545 = vpop.f32.mrb[0].mxu0
        %7546 = vdwg.mxu0
        %v7563 = vunpack.c.l.b16 %v7415
        %v7564 = vunpack.c.l.b16 %v7416
        %v7565 = vunpack.c.l.b16 %v7417
        %v7566 = vunpack.c.l.b16 %v7418
        %v7567 = vunpack.c.l.b16 %v7419
        %v7568 = vunpack.c.l.b16 %v7420
        %v7569 = vunpack.c.l.b16 %v7421
        %v7570 = vunpack.c.l.b16 %v7422
        %v7571 = vunpack.c.l.b16 %v7423
        %v7572 = vunpack.c.l.b16 %v7424
        %v7573 = vunpack.c.l.b16 %v7425
        %v7574 = vunpack.c.l.b16 %v7426
        %v7575 = vunpack.c.l.b16 %v7427
        %v7576 = vunpack.c.l.b16 %v7428
        %v7577 = vunpack.c.l.b16 %v7429
        %v7578 = vunpack.c.l.b16 %v7430
        %v7579 = vpack.c.b16 %v7564, %v7563
        %v7580 = vpack.c.b16 %v7566, %v7565
        %v7581 = vpack.c.b16 %v7568, %v7567
        %v7582 = vpack.c.b16 %v7570, %v7569
        %v7583 = vpack.c.b16 %v7572, %v7571
        %v7584 = vpack.c.b16 %v7574, %v7573
        %v7585 = vpack.c.b16 %v7576, %v7575
        %v7586 = vpack.c.b16 %v7578, %v7577
        %7595 = vmatprep.subr.bf16.mxu0 0
        %7596 = vmatpush1.bf16.msra.mxu0 %v7579
        %7597 = vmatprep.subr.bf16.mxu0 0
        %7598 = vmatpush1.bf16.msra.mxu0 %v7580
        %7599 = vmatprep.subr.bf16.mxu0 0
        %7600 = vmatpush1.bf16.msra.mxu0 %v7581
        %7601 = vmatprep.subr.bf16.mxu0 0
        %7602 = vmatpush1.bf16.msra.mxu0 %v7582
        %7603 = vmatprep.subr.bf16.mxu0 0
        %7604 = vmatpush1.bf16.msra.mxu0 %v7583
        %7605 = vmatprep.subr.bf16.mxu0 0
        %7606 = vmatpush1.bf16.msra.mxu0 %v7584
        %7607 = vmatprep.subr.bf16.mxu0 0
        %7608 = vmatpush1.bf16.msra.mxu0 %v7585
        %7609 = vmatprep.subr.bf16.mxu0 0
        %7610 = vmatpush1.bf16.msra.mxu0 %v7586
        %7611 = vmatprep.subr.bf16.mxu0 0
        %7612 = vmatpush1.bf16.msra.mxu0 0
        %7613 = vmatprep.subr.bf16.mxu0 0
        %7614 = vmatpush1.bf16.msra.mxu0 0
        %7615 = vmatprep.subr.bf16.mxu0 0
        %7616 = vmatpush1.bf16.msra.mxu0 0
        %7617 = vmatprep.subr.bf16.mxu0 0
        %7618 = vmatpush1.bf16.msra.mxu0 0
        %7619 = vmatprep.subr.bf16.mxu0 0
        %7620 = vmatpush1.bf16.msra.mxu0 0
        %7621 = vmatprep.subr.bf16.mxu0 0
        %7622 = vmatpush1.bf16.msra.mxu0 0
        %7623 = vmatprep.subr.bf16.mxu0 0
        %7624 = vmatpush1.bf16.msra.mxu0 0
        %7625 = vmatprep.subr.bf16.mxu0 0
        %7626 = vmatpush1.bf16.msra.mxu0 0
        %7627 = vmatprep.mubr.bf16.mxu0 0
        %7628 = vmatmul.mubr.bf16.gmra.mrb[0].mxu0 %v7412
        %v7629 = vpop.f32.mrb[0].mxu0
        %v7630 = vadd.f32 %v7533, %v7629
        %v7631 = vpop.f32.mrb[0].mxu0
        %v7632 = vpop.f32.mrb[0].mxu0
        %v7633 = vadd.f32 %v7536, %v7632
        %v7634 = vpop.f32.mrb[0].mxu0
        %7635 = vmatprep.mubr.bf16.mxu0 0
        %7636 = vmatmul.mubr.bf16.gmra.mrb[0].mxu0 %v7413
        %v7637 = vpop.f32.mrb[0].mxu0
        %v7638 = vadd.f32 %v7541, %v7637
        %v7639 = vpop.f32.mrb[0].mxu0
        %v7640 = vpop.f32.mrb[0].mxu0
        %v7641 = vadd.f32 %v7544, %v7640
        %v7642 = vpop.f32.mrb[0].mxu0
        %7643 = vdwg.mxu0
        %v7644 = vpack.c.bf16 %v7404, %v7402
        %v7645 = vpack.c.bf16 %v7411, %v7406
        %s7646 = scalar_lea.vmem [#allocation35], 512
        %v7647 = vld [vmem:[%s7646] sm:$0xf]
        %v7648 = vld [vmem:[%s7646 + $0x4] sm:$0xf]
        %v7649 = vld [vmem:[%s7646 + $0x8] sm:$0xf]
        %v7650 = vld [vmem:[%s7646 + $0xc] sm:$0xf]
        %v7651 = vld [vmem:[%s7646 + $0x10] sm:$0xf]
        %v7652 = vld [vmem:[%s7646 + $0x14] sm:$0xf]
        %v7653 = vld [vmem:[%s7646 + $0x18] sm:$0xf]
        %v7654 = vld [vmem:[%s7646 + $0x1c] sm:$0xf]
        %v7655 = vld [vmem:[%s7646 + $0x20] sm:$0xf]
        %v7656 = vld [vmem:[%s7646 + $0x24] sm:$0xf]
        %v7657 = vld [vmem:[%s7646 + $0x28] sm:$0xf]
        %v7658 = vld [vmem:[%s7646 + $0x2c] sm:$0xf]
        %v7659 = vld [vmem:[%s7646 + $0x30] sm:$0xf]
        %v7660 = vld [vmem:[%s7646 + $0x34] sm:$0xf]
        %v7661 = vld [vmem:[%s7646 + $0x38] sm:$0xf]
        %v7662 = vld [vmem:[%s7646 + $0x3c] sm:$0xf]
        %v7679 = vunpack.c.l.b16 %v7647
        %v7680 = vunpack.c.l.b16 %v7648
        %v7681 = vunpack.c.l.b16 %v7649
        %v7682 = vunpack.c.l.b16 %v7650
        %v7683 = vunpack.c.l.b16 %v7651
        %v7684 = vunpack.c.l.b16 %v7652
        %v7685 = vunpack.c.l.b16 %v7653
        %v7686 = vunpack.c.l.b16 %v7654
        %v7687 = vunpack.c.l.b16 %v7655
        %v7688 = vunpack.c.l.b16 %v7656
        %v7689 = vunpack.c.l.b16 %v7657
        %v7690 = vunpack.c.l.b16 %v7658
        %v7691 = vunpack.c.l.b16 %v7659
        %v7692 = vunpack.c.l.b16 %v7660
        %v7693 = vunpack.c.l.b16 %v7661
        %v7694 = vunpack.c.l.b16 %v7662
        %v7695 = vpack.c.b16 %v7680, %v7679
        %v7696 = vpack.c.b16 %v7682, %v7681
        %v7697 = vpack.c.b16 %v7684, %v7683
        %v7698 = vpack.c.b16 %v7686, %v7685
        %v7699 = vpack.c.b16 %v7688, %v7687
        %v7700 = vpack.c.b16 %v7690, %v7689
        %v7701 = vpack.c.b16 %v7692, %v7691
        %v7702 = vpack.c.b16 %v7694, %v7693
        %7711 = vmatprep.subr.bf16.mxu0 0
        %7712 = vmatpush1.bf16.msra.mxu0 %v7695
        %7713 = vmatprep.subr.bf16.mxu0 0
        %7714 = vmatpush1.bf16.msra.mxu0 %v7696
        %7715 = vmatprep.subr.bf16.mxu0 0
        %7716 = vmatpush1.bf16.msra.mxu0 %v7697
        %7717 = vmatprep.subr.bf16.mxu0 0
        %7718 = vmatpush1.bf16.msra.mxu0 %v7698
        %7719 = vmatprep.subr.bf16.mxu0 0
        %7720 = vmatpush1.bf16.msra.mxu0 %v7699
        %7721 = vmatprep.subr.bf16.mxu0 0
        %7722 = vmatpush1.bf16.msra.mxu0 %v7700
        %7723 = vmatprep.subr.bf16.mxu0 0
        %7724 = vmatpush1.bf16.msra.mxu0 %v7701
        %7725 = vmatprep.subr.bf16.mxu0 0
        %7726 = vmatpush1.bf16.msra.mxu0 %v7702
        %7727 = vmatprep.subr.bf16.mxu0 0
        %7728 = vmatpush1.bf16.msra.mxu0 0
        %7729 = vmatprep.subr.bf16.mxu0 0
        %7730 = vmatpush1.bf16.msra.mxu0 0
        %7731 = vmatprep.subr.bf16.mxu0 0
        %7732 = vmatpush1.bf16.msra.mxu0 0
        %7733 = vmatprep.subr.bf16.mxu0 0
        %7734 = vmatpush1.bf16.msra.mxu0 0
        %7735 = vmatprep.subr.bf16.mxu0 0
        %7736 = vmatpush1.bf16.msra.mxu0 0
        %7737 = vmatprep.subr.bf16.mxu0 0
        %7738 = vmatpush1.bf16.msra.mxu0 0
        %7739 = vmatprep.subr.bf16.mxu0 0
        %7740 = vmatpush1.bf16.msra.mxu0 0
        %7741 = vmatprep.subr.bf16.mxu0 0
        %7742 = vmatpush1.bf16.msra.mxu0 0
        %7743 = vmatprep.mubr.bf16.mxu0 0
        %7744 = vmatmul.mubr.bf16.gmra.mrb[0].mxu0 %v7644
        %v7745 = vpop.f32.mrb[0].mxu0
        %v7746 = vadd.f32 0.0, %v7745
        %v7747 = vpop.f32.mrb[0].mxu0
        %v7748 = vpop.f32.mrb[0].mxu0
        %v7749 = vadd.f32 0.0, %v7748
        %v7750 = vpop.f32.mrb[0].mxu0
        %7751 = vmatprep.mubr.bf16.mxu0 0
        %7752 = vmatmul.mubr.bf16.gmra.mrb[0].mxu0 %v7645
        %v7753 = vpop.f32.mrb[0].mxu0
        %v7754 = vadd.f32 0.0, %v7753
        %v7755 = vpop.f32.mrb[0].mxu0
        %v7756 = vpop.f32.mrb[0].mxu0
        %v7757 = vadd.f32 0.0, %v7756
        %v7758 = vpop.f32.mrb[0].mxu0
        %7759 = vdwg.mxu0
        %v7760 = vadd.f32 %v7630, %v7746
        %v7761 = vadd.f32 %v7633, %v7749
        %v7762 = vadd.f32 %v7638, %v7754
        %v7763 = vadd.f32 %v7641, %v7757
        %v7764 = vadd.f32 %v7760, %v7761
        %v7765 = vadd.f32 %v7764, %v7762
        %v7766 = vadd.f32 %v7765, %v7763
        %v7767 = vrot.slane %v7766, 4
        %v7768 = vadd.f32 %v7766, %v7767
        %v7769 = vrot.slane %v7768, 2
        %v7770 = vadd.f32 %v7768, %v7769
        %v7771 = vrot.slane %v7770, 1
        %v7772 = vadd.f32 %v7770, %v7771
        %7773 = vmatprep.subr.mxu0 0.0
        %7774 = vmatpush1.msra.mxu0 %v6136
        %7775 = vmatprep.subr.mxu0 0.0
        %7776 = vmatpush1.msra.mxu0 %v6137
        %7777 = vmatprep.subr.mxu0 0.0
        %7778 = vmatpush1.msra.mxu0 %v6138
        %7779 = vmatprep.subr.mxu0 0.0
        %7780 = vmatpush1.msra.mxu0 %v6139
        %7781 = vmatprep.subr.mxu0 0.0
        %7782 = vmatpush1.msra.mxu0 %v6140
        %7783 = vmatprep.subr.mxu0 0.0
        %7784 = vmatpush1.msra.mxu0 %v6141
        %7785 = vmatprep.subr.mxu0 0.0
        %7786 = vmatpush1.msra.mxu0 %v6142
        %7787 = vmatprep.subr.mxu0 0.0
        %7788 = vmatpush1.msra.mxu0 %v6143
        %7789 = vmatprep.subr.mxu0 0.0
        %7790 = vmatpush1.msra.mxu0 %v6144
        %7791 = vmatprep.subr.mxu0 0.0
        %7792 = vmatpush1.msra.mxu0 %v6145
        %7793 = vmatprep.subr.mxu0 0.0
        %7794 = vmatpush1.msra.mxu0 %v6146
        %7795 = vmatprep.subr.mxu0 0.0
        %7796 = vmatpush1.msra.mxu0 %v6147
        %7797 = vmatprep.subr.mxu0 0.0
        %7798 = vmatpush1.msra.mxu0 %v6148
        %7799 = vmatprep.subr.mxu0 0.0
        %7800 = vmatpush1.msra.mxu0 %v6149
        %7801 = vmatprep.subr.mxu0 0.0
        %7802 = vmatpush1.msra.mxu0 %v6150
        %7803 = vmatprep.subr.mxu0 0.0
        %7804 = vmatpush1.msra.mxu0 %v6151
        %7805 = vmatprep.subr.mxu0 0.0
        %7806 = vmatpush1.msra.mxu0 0.0
        %7807 = vmatprep.subr.mxu0 0.0
        %7808 = vmatpush1.msra.mxu0 0.0
        %7809 = vmatprep.subr.mxu0 0.0
        %7810 = vmatpush1.msra.mxu0 0.0
        %7811 = vmatprep.subr.mxu0 0.0
        %7812 = vmatpush1.msra.mxu0 0.0
        %7813 = vmatprep.subr.mxu0 0.0
        %7814 = vmatpush1.msra.mxu0 0.0
        %7815 = vmatprep.subr.mxu0 0.0
        %7816 = vmatpush1.msra.mxu0 0.0
        %7817 = vmatprep.subr.mxu0 0.0
        %7818 = vmatpush1.msra.mxu0 0.0
        %7819 = vmatprep.subr.mxu0 0.0
        %7820 = vmatpush1.msra.mxu0 0.0
        %7821 = vmatprep.subr.mxu0 0.0
        %7822 = vmatpush1.msra.mxu0 0.0
        %7823 = vmatprep.subr.mxu0 0.0
        %7824 = vmatpush1.msra.mxu0 0.0
        %7825 = vmatprep.subr.mxu0 0.0
        %7826 = vmatpush1.msra.mxu0 0.0
        %7827 = vmatprep.subr.mxu0 0.0
        %7828 = vmatpush1.msra.mxu0 0.0
        %7829 = vmatprep.subr.mxu0 0.0
        %7830 = vmatpush1.msra.mxu0 0.0
        %7831 = vmatprep.subr.mxu0 0.0
        %7832 = vmatpush1.msra.mxu0 0.0
        %7833 = vmatprep.subr.mxu0 0.0
        %7834 = vmatpush1.msra.mxu0 0.0
        %7835 = vmatprep.subr.mxu0 0.0
        %7836 = vmatpush1.msra.mxu0 0.0
        %7837 = vmatprep.mubr.f32.mxu0 0.0
        %7838 = vmatmul.mubr.f32.gmra.mrb[0].mxu0 %v7772
        %v7839 = vpop.f32.mrb[0].mxu0
        %v7840 = vadd.f32 0.0, %v7839
        %v7841 = vpop.f32.mrb[0].mxu0
        %7842 = vdwg.mxu0
        %v7843 = vlaneseq
        %v7844 = vshrl.u32 %v7843, 7
        %v7845 = vsub.s32 0, %v7844
        %v7846 = vrot.slane %v7840, %v7845
        %v7847 = vsub.f32 %v7760, %v7846
        %v7848 = vsub.f32 %v7761, %v7846
        %v7849 = vsub.f32 %v7762, %v7846
        %v7850 = vsub.f32 %v7763, %v7846
        %v7851 = vmul.f32 %v7847, %v7847
        %v7852 = vmul.f32 %v7848, %v7848
        %v7853 = vmul.f32 %v7849, %v7849
        %v7854 = vmul.f32 %v7850, %v7850
        %v7855 = vadd.f32 %v7851, %v7852
        %v7856 = vadd.f32 %v7855, %v7853
        %v7857 = vadd.f32 %v7856, %v7854
        %v7858 = vrot.slane %v7857, 4
        %v7859 = vadd.f32 %v7857, %v7858
        %v7860 = vrot.slane %v7859, 2
        %v7861 = vadd.f32 %v7859, %v7860
        %v7862 = vrot.slane %v7861, 1
        %v7863 = vadd.f32 %v7861, %v7862
        %7864 = vmatprep.subr.mxu0 0.0
        %7865 = vmatpush1.msra.mxu0 %v6136
        %7866 = vmatprep.subr.mxu0 0.0
        %7867 = vmatpush1.msra.mxu0 %v6137
        %7868 = vmatprep.subr.mxu0 0.0
        %7869 = vmatpush1.msra.mxu0 %v6138
        %7870 = vmatprep.subr.mxu0 0.0
        %7871 = vmatpush1.msra.mxu0 %v6139
        %7872 = vmatprep.subr.mxu0 0.0
        %7873 = vmatpush1.msra.mxu0 %v6140
        %7874 = vmatprep.subr.mxu0 0.0
        %7875 = vmatpush1.msra.mxu0 %v6141
        %7876 = vmatprep.subr.mxu0 0.0
        %7877 = vmatpush1.msra.mxu0 %v6142
        %7878 = vmatprep.subr.mxu0 0.0
        %7879 = vmatpush1.msra.mxu0 %v6143
        %7880 = vmatprep.subr.mxu0 0.0
        %7881 = vmatpush1.msra.mxu0 %v6144
        %7882 = vmatprep.subr.mxu0 0.0
        %7883 = vmatpush1.msra.mxu0 %v6145
        %7884 = vmatprep.subr.mxu0 0.0
        %7885 = vmatpush1.msra.mxu0 %v6146
        %7886 = vmatprep.subr.mxu0 0.0
        %7887 = vmatpush1.msra.mxu0 %v6147
        %7888 = vmatprep.subr.mxu0 0.0
        %7889 = vmatpush1.msra.mxu0 %v6148
        %7890 = vmatprep.subr.mxu0 0.0
        %7891 = vmatpush1.msra.mxu0 %v6149
        %7892 = vmatprep.subr.mxu0 0.0
        %7893 = vmatpush1.msra.mxu0 %v6150
        %7894 = vmatprep.subr.mxu0 0.0
        %7895 = vmatpush1.msra.mxu0 %v6151
        %7896 = vmatprep.subr.mxu0 0.0
        %7897 = vmatpush1.msra.mxu0 0.0
        %7898 = vmatprep.subr.mxu0 0.0
        %7899 = vmatpush1.msra.mxu0 0.0
        %7900 = vmatprep.subr.mxu0 0.0
        %7901 = vmatpush1.msra.mxu0 0.0
        %7902 = vmatprep.subr.mxu0 0.0
        %7903 = vmatpush1.msra.mxu0 0.0
        %7904 = vmatprep.subr.mxu0 0.0
        %7905 = vmatpush1.msra.mxu0 0.0
        %7906 = vmatprep.subr.mxu0 0.0
        %7907 = vmatpush1.msra.mxu0 0.0
        %7908 = vmatprep.subr.mxu0 0.0
        %7909 = vmatpush1.msra.mxu0 0.0
        %7910 = vmatprep.subr.mxu0 0.0
        %7911 = vmatpush1.msra.mxu0 0.0
        %7912 = vmatprep.subr.mxu0 0.0
        %7913 = vmatpush1.msra.mxu0 0.0
        %7914 = vmatprep.subr.mxu0 0.0
        %7915 = vmatpush1.msra.mxu0 0.0
        %7916 = vmatprep.subr.mxu0 0.0
        %7917 = vmatpush1.msra.mxu0 0.0
        %7918 = vmatprep.subr.mxu0 0.0
        %7919 = vmatpush1.msra.mxu0 0.0
        %7920 = vmatprep.subr.mxu0 0.0
        %7921 = vmatpush1.msra.mxu0 0.0
        %7922 = vmatprep.subr.mxu0 0.0
        %7923 = vmatpush1.msra.mxu0 0.0
        %7924 = vmatprep.subr.mxu0 0.0
        %7925 = vmatpush1.msra.mxu0 0.0
        %7926 = vmatprep.subr.mxu0 0.0
        %7927 = vmatpush1.msra.mxu0 0.0
        %7928 = vmatprep.mubr.f32.mxu0 0.0
        %7929 = vmatmul.mubr.f32.gmra.mrb[0].mxu0 %v7863
        %v7930 = vpop.f32.mrb[0].mxu0
        %v7931 = vadd.f32 1e-05, %v7930
        %v7932 = vpop.f32.mrb[0].mxu0
        %7933 = vdwg.mxu0
        %v7934 = vrsqrt.pop %v7931
        %v7935 = vlaneseq
        %v7936 = vshrl.u32 %v7935, 7
        %v7937 = vsub.s32 0, %v7936
        %v7938 = vrot.slane %v7934, %v7937
        %v7939 = vmul.f32 %v7847, %v7938
        %v7940 = vmul.f32 %v7848, %v7938
        %v7941 = vmul.f32 %v7849, %v7938
        %v7942 = vmul.f32 %v7850, %v7938
        %v7943 = vlaneseq
        %v7944 = vshrl.u32 %v7943, 7
        %v7945 = vsub.s32 3, %v7944
        %v7946 = vrot.slane %v6119, %v7945
        %v7947 = vmul.f32 %v7939, %v7946
        %v7948 = vmul.f32 %v7940, %v7946
        %v7949 = vmul.f32 %v7941, %v7946
        %v7950 = vmul.f32 %v7942, %v7946
        %v7951 = vlaneseq
        %v7952 = vshrl.u32 %v7951, 7
        %v7953 = vsub.s32 4, %v7952
        %v7954 = vrot.slane %v6119, %v7953
        %v7955 = vadd.f32 %v7947, %v7954
        %v7956 = vadd.f32 %v7948, %v7954
        %v7957 = vadd.f32 %v7949, %v7954
        %v7958 = vadd.f32 %v7950, %v7954
        %vm7959 = vcmp.gt.f32.partialorder %v7955, 0.0
        %vm7960 = vcmp.gt.f32.partialorder %v7956, 0.0
        %vm7961 = vcmp.gt.f32.partialorder %v7957, 0.0
        %vm7962 = vcmp.gt.f32.partialorder %v7958, 0.0
        %v7963 = vmul.f32 %v7955, 1.442695
        %v7964 = vpow.pop %v7963
        %v7965 = vmul.f32 %v7956, 1.442695
        %v7966 = vpow.pop %v7965
        %v7967 = vmul.f32 %v7957, 1.442695
        %v7968 = vpow.pop %v7967
        %v7969 = vmul.f32 %v7958, 1.442695
        %v7970 = vpow.pop %v7969
        %v7971 = vsub.f32 %v7964, 1.0
        %v7972 = vsub.f32 %v7966, 1.0
        %v7973 = vsub.f32 %v7968, 1.0
        %v7974 = vsub.f32 %v7970, 1.0
        %v7975 = vmul.f32 %v7971, 1.6732632
        %v7976 = vmul.f32 %v7972, 1.6732632
        %v7977 = vmul.f32 %v7973, 1.6732632
        %v7978 = vmul.f32 %v7974, 1.6732632
        %v7979 = vsel %vm7959, %v7955, %v7975
        %v7980 = vsel %vm7960, %v7956, %v7976
        %v7981 = vsel %vm7961, %v7957, %v7977
        %v7982 = vsel %vm7962, %v7958, %v7978
        %v7983 = vmul.f32 %v7979, 1.050701
        %v7984 = vmul.f32 %v7980, 1.050701
        %v7985 = vmul.f32 %v7981, 1.050701
        %v7986 = vmul.f32 %v7982, 1.050701
        %v7987 = vpack.c.bf16 %v7984, %v7983
        %v7988 = vpack.c.bf16 %v7986, %v7985
        %v7989 = vld [vmem:[#allocation38] sm:$0xf]
        %v7990 = vld [vmem:[#allocation38 + $0x4] sm:$0xf]
        %v7991 = vld [vmem:[#allocation38 + $0x8] sm:$0xf]
        %v7992 = vld [vmem:[#allocation38 + $0xc] sm:$0xf]
        %v7993 = vld [vmem:[#allocation38 + $0x10] sm:$0xf]
        %v7994 = vld [vmem:[#allocation38 + $0x14] sm:$0xf]
        %v7995 = vld [vmem:[#allocation38 + $0x18] sm:$0xf]
        %v7996 = vld [vmem:[#allocation38 + $0x1c] sm:$0xf]
        %v7997 = vld [vmem:[#allocation38 + $0x20] sm:$0xf]
        %v7998 = vld [vmem:[#allocation38 + $0x24] sm:$0xf]
        %v7999 = vld [vmem:[#allocation38 + $0x28] sm:$0xf]
        %v8000 = vld [vmem:[#allocation38 + $0x2c] sm:$0xf]
        %v8001 = vld [vmem:[#allocation38 + $0x30] sm:$0xf]
        %v8002 = vld [vmem:[#allocation38 + $0x34] sm:$0xf]
        %v8003 = vld [vmem:[#allocation38 + $0x38] sm:$0xf]
        %v8004 = vld [vmem:[#allocation38 + $0x3c] sm:$0xf]
        %v8005 = vld [vmem:[%s26] sm:$0x1]
        %v8007 = vlaneseq
        %v8008 = vshrl.u32 %v8007, 7
        %v8009 = vsub.s32 0, %v8008
        %v8010 = vrot.slane %v8005, %v8009
        %v8028 = vunpack.c.l.b16 %v7989
        %v8029 = vunpack.c.l.b16 %v7990
        %v8030 = vunpack.c.l.b16 %v7991
        %v8031 = vunpack.c.l.b16 %v7992
        %v8032 = vunpack.c.l.b16 %v7993
        %v8033 = vunpack.c.l.b16 %v7994
        %v8034 = vunpack.c.l.b16 %v7995
        %v8035 = vunpack.c.l.b16 %v7996
        %v8036 = vunpack.c.l.b16 %v7997
        %v8037 = vunpack.c.l.b16 %v7998
        %v8038 = vunpack.c.l.b16 %v7999
        %v8039 = vunpack.c.l.b16 %v8000
        %v8040 = vunpack.c.l.b16 %v8001
        %v8041 = vunpack.c.l.b16 %v8002
        %v8042 = vunpack.c.l.b16 %v8003
        %v8043 = vunpack.c.l.b16 %v8004
        %v8044 = vpack.c.b16 %v8029, %v8028
        %v8045 = vpack.c.b16 %v8031, %v8030
        %v8046 = vpack.c.b16 %v8033, %v8032
        %v8047 = vpack.c.b16 %v8035, %v8034
        %v8048 = vpack.c.b16 %v8037, %v8036
        %v8049 = vpack.c.b16 %v8039, %v8038
        %v8050 = vpack.c.b16 %v8041, %v8040
        %v8051 = vpack.c.b16 %v8043, %v8042
        %8060 = vmatprep.subr.bf16.mxu0 0
        %8061 = vmatpush1.bf16.msra.mxu0 %v8044
        %8062 = vmatprep.subr.bf16.mxu0 0
        %8063 = vmatpush1.bf16.msra.mxu0 %v8045
        %8064 = vmatprep.subr.bf16.mxu0 0
        %8065 = vmatpush1.bf16.msra.mxu0 %v8046
        %8066 = vmatprep.subr.bf16.mxu0 0
        %8067 = vmatpush1.bf16.msra.mxu0 %v8047
        %8068 = vmatprep.subr.bf16.mxu0 0
        %8069 = vmatpush1.bf16.msra.mxu0 %v8048
        %8070 = vmatprep.subr.bf16.mxu0 0
        %8071 = vmatpush1.bf16.msra.mxu0 %v8049
        %8072 = vmatprep.subr.bf16.mxu0 0
        %8073 = vmatpush1.bf16.msra.mxu0 %v8050
        %8074 = vmatprep.subr.bf16.mxu0 0
        %8075 = vmatpush1.bf16.msra.mxu0 %v8051
        %8076 = vmatprep.subr.bf16.mxu0 0
        %8077 = vmatpush1.bf16.msra.mxu0 0
        %8078 = vmatprep.subr.bf16.mxu0 0
        %8079 = vmatpush1.bf16.msra.mxu0 0
        %8080 = vmatprep.subr.bf16.mxu0 0
        %8081 = vmatpush1.bf16.msra.mxu0 0
        %8082 = vmatprep.subr.bf16.mxu0 0
        %8083 = vmatpush1.bf16.msra.mxu0 0
        %8084 = vmatprep.subr.bf16.mxu0 0
        %8085 = vmatpush1.bf16.msra.mxu0 0
        %8086 = vmatprep.subr.bf16.mxu0 0
        %8087 = vmatpush1.bf16.msra.mxu0 0
        %8088 = vmatprep.subr.bf16.mxu0 0
        %8089 = vmatpush1.bf16.msra.mxu0 0
        %8090 = vmatprep.subr.bf16.mxu0 0
        %8091 = vmatpush1.bf16.msra.mxu0 0
        %8092 = vmatprep.mubr.bf16.mxu0 0
        %8093 = vmatmul.mubr.bf16.gmra.mrb[0].mxu0 %v7987
        %v8094 = vpop.f32.mrb[0].mxu0
        %v8095 = vadd.f32 %v8010, %v8094
        %v8096 = vpop.f32.mrb[0].mxu0
        %v8097 = vpop.f32.mrb[0].mxu0
        %v8098 = vadd.f32 %v8010, %v8097
        %v8099 = vpop.f32.mrb[0].mxu0
        %8100 = vmatprep.mubr.bf16.mxu0 0
        %8101 = vmatmul.mubr.bf16.gmra.mrb[0].mxu0 %v7988
        %v8102 = vpop.f32.mrb[0].mxu0
        %v8103 = vadd.f32 %v8010, %v8102
        %v8104 = vpop.f32.mrb[0].mxu0
        %v8105 = vpop.f32.mrb[0].mxu0
        %v8106 = vadd.f32 %v8010, %v8105
        %v8107 = vpop.f32.mrb[0].mxu0
        %8108 = vdwg.mxu0
        %8109 = vst [vmem:[%s1247] sm:$0xff] %v8095
        %8110 = vst [vmem:[%s1247 + $0x8] sm:$0xff] %v8098
        %8111 = vst [vmem:[%s1247 + $0x10] sm:$0xff] %v8103
        %8112 = vst [vmem:[%s1247 + $0x18] sm:$0xff] %v8106
        %s8113 = sand.u32 %s660, 1
        %s8114 = scalar_lea.sflag [#allocation4], %s8113
        %s8115 = sand.u32 %s660, 1
        %s8116 = smul.addr %s8115, 32
        %s8117 = scalar_lea.vmem [#allocation40], %s8116
        // Predicated region
        $region225: #{tpu_custom_call.1} parent=127 // pred_check
          %p8118 = pneg %p670
        $region226: #{tpu_custom_call.1} parent=127 // pred_check_branch
          %8120 = sbr.rel (%p8118) target = $region228
        $region227: #{tpu_custom_call.1} parent=127 // pred_region
          %s8122 = ssub.s32 512, 512
          %8123 = vsyncadd %s8114, %s8122
          %s8124 = smul.addr %s60, 4
          %s8125 = smul.addr %s8124, 128
          %s8126 = scalar_lea.hbm %s27, %s8125
          %s8127 = sshll.u32 %s8117, 4
          %s8128 = int_to_ptr.vmem [resolvable:$true] %s8127
          %8133 = dma.vmem_to_hbm [thread:$0]  %s8128, 512, %s8126, %s8114, 128, 128, 8
        $region228: #{tpu_custom_call.1} parent=127 // pred_fallthru
          _
      $region128: #{tpu_custom_call.1} parent=5 // pred_fallthru
        _
      %p8134 = scmp.le.s32.totalorder 2, %s55
      // Predicated region
      $region229: #{tpu_custom_call.1} parent=5 // pred_check
        %p8135 = pneg %p8134
      $region230: #{tpu_custom_call.1} parent=5 // pred_check_branch
        %8137 = sbr.rel (%p8135) target = $region232
      $region231: #{tpu_custom_call.1} parent=5 // pred_region
        %s8138 = ssub.s32 %s55, 2
        // Predicated region
        $region233: #{tpu_custom_call.1} parent=231 // pred_check
          %p8139 = pneg %p676
        $region234: #{tpu_custom_call.1} parent=231 // pred_check_branch
          %8141 = sbr.rel (%p8139) target = $region236
        $region235: #{tpu_custom_call.1} parent=231 // pred_region
          %s8142 = sand.u32 %s661, 1
          %s8143 = scalar_lea.sflag [#allocation4], %s8142
          %s8144 = sand.u32 %s661, 1
          %s8145 = smul.addr %s8144, 32
          %s8146 = scalar_lea.vmem [#allocation40], %s8145
          %8147 = dma.done %s8143, 512
        $region236: #{tpu_custom_call.1} parent=231 // pred_fallthru
          _
      $region232: #{tpu_custom_call.1} parent=5 // pred_fallthru
        _
    $region6: #{tpu_custom_call.1} parent=1 // loop_footer
      %s59 = sadd.s32 1, %s55
    $region7: #{tpu_custom_call.1} parent=1 // loop_footer_branch
      %54 = sbr.rel target = $region3
    $region8: #{tpu_custom_call.1} parent=1 // loop_exit
      _
    %8148 = vsyncpa [#allocation3], 1
    %s8149 = scalar_lea.sflag [#allocation3], 1
    %8150 = vsyncpa %s8149, 1
    %8151 = vsyncpa [#allocation6], 1
    %s8152 = scalar_lea.sflag [#allocation6], 1
    %8153 = vsyncpa %s8152, 1
    %8154 = vsyncpa [#allocation9], 1
    %s8155 = scalar_lea.sflag [#allocation9], 1
    %8156 = vsyncpa %s8155, 1
    %8157 = vsyncpa [#allocation12], 1
    %8158 = vsyncpa [#allocation15], 1
    %8159 = vsyncpa [#allocation18], 1
    %8160 = vsyncpa [#allocation21], 1
    %8161 = vsyncpa [#allocation24], 1
    %8162 = vsyncpa [#allocation27], 1
    %8163 = vsyncpa [#allocation30], 1
    %8164 = vsyncpa [#allocation33], 1
    %8165 = vsyncpa [#allocation36], 1
    %8166 = vsyncpa [#allocation39], 1
    %8167 = vsyncpa [#allocation4], 1
    %s8168 = scalar_lea.sflag [#allocation4], 1
    %8169 = vsyncpa %s8168, 1

</llo_original>
